<compile_context>
chip_gen: v6e
topology: v6e:2x2x1
jax: 0.10.0
libtpu: 0.0.40
codegen_flags: <defaults>
</compile_context>

<pallas_src>
import functools

import numpy as np
import jax
import jax.numpy as jnp
from jax.experimental import pallas as pl
from jax.experimental.pallas import tpu as pltpu


_VMEM_LIMIT = 48 * 1024 * 1024     # fits v5e/v6e (128 MiB) and v7x (64 MiB)
_TM_TARGET = 256                   # row-tile target (multiple of 8)
_ATTN_TARGET_ROWS = 256            # target WB * N rows per attention block


def _round_up(n, m):
    return ((n + m - 1) // m) * m


def _row_tile(m):
    tm = min(_TM_TARGET, _round_up(m, 8))
    return tm, pl.cdiv(m, tm)


def _cparams(n_axes):
    return pltpu.CompilerParams(
        dimension_semantics=("parallel",) * n_axes,
        vmem_limit_bytes=_VMEM_LIMIT)


# ----------------------------- Pallas kernels -----------------------------

def _ln(x, g, b, eps):
    mu = jnp.mean(x, axis=-1, keepdims=True)
    var = jnp.mean((x - mu) * (x - mu), axis=-1, keepdims=True)
    return (x - mu) * jax.lax.rsqrt(var + eps) * g + b


def _linear_kernel(x_ref, w_ref, b_ref, o_ref):
    acc = jnp.dot(x_ref[...].astype(jnp.float32), w_ref[...].astype(jnp.float32),
                  preferred_element_type=jnp.float32)
    o_ref[...] = (acc + b_ref[...].astype(jnp.float32)).astype(o_ref.dtype)


def _linear_add_kernel(x_ref, w_ref, b_ref, r_ref, o_ref):
    acc = jnp.dot(x_ref[...].astype(jnp.float32), w_ref[...].astype(jnp.float32),
                  preferred_element_type=jnp.float32)
    acc = acc + b_ref[...].astype(jnp.float32) + r_ref[...].astype(jnp.float32)
    o_ref[...] = acc.astype(o_ref.dtype)


def _layernorm_kernel(x_ref, g_ref, b_ref, o_ref, *, eps):
    x = x_ref[...].astype(jnp.float32)
    y = _ln(x, g_ref[...].astype(jnp.float32), b_ref[...].astype(jnp.float32), eps)
    o_ref[...] = y.astype(o_ref.dtype)


def _ln_linear_kernel(x_ref, g_ref, bta_ref, w_ref, b_ref, o_ref, *, eps):
    # y = LN(x) @ w + b     (fused LayerNorm -> matmul)
    x = x_ref[...].astype(jnp.float32)
    y = _ln(x, g_ref[...].astype(jnp.float32), bta_ref[...].astype(jnp.float32), eps)
    acc = jnp.dot(y, w_ref[...].astype(jnp.float32), preferred_element_type=jnp.float32)
    o_ref[...] = (acc + b_ref[...].astype(jnp.float32)).astype(o_ref.dtype)


def _linear_ln_kernel(x_ref, w_ref, b_ref, g_ref, bta_ref, o_ref, *, eps):
    # y = LN(x @ w + b)     (fused matmul -> LayerNorm, for patch embed)
    acc = jnp.dot(x_ref[...].astype(jnp.float32), w_ref[...].astype(jnp.float32),
                  preferred_element_type=jnp.float32)
    acc = acc + b_ref[...].astype(jnp.float32)
    y = _ln(acc, g_ref[...].astype(jnp.float32), bta_ref[...].astype(jnp.float32), eps)
    o_ref[...] = y.astype(o_ref.dtype)


def _attn_kernel(qkv_ref, bias_ref, o_ref, *, n_heads, scale):
    # qkv_ref: (WB, N, 3C) block of windows; bias_ref: (WBb, nH, N, N) with
    # WBb == 1 (shared) or WBb == WB (per-window shift mask already folded in).
    qkv = qkv_ref[...].astype(jnp.float32)
    bias = bias_ref[...].astype(jnp.float32)
    wb, n_tok, three_c = qkv.shape
    c = three_c // 3
    d = c // n_heads
    outs = []
    for h in range(n_heads):
        q = qkv[:, :, h * d:(h + 1) * d]
        k = qkv[:, :, c + h * d:c + (h + 1) * d]
        v = qkv[:, :, 2 * c + h * d:2 * c + (h + 1) * d]
        s = jnp.einsum('bqd,bkd->bqk', q, k,
                       preferred_element_type=jnp.float32) * scale
        s = s + bias[:, h]                      # broadcasts over WB if WBb == 1
        s = s - jnp.max(s, axis=-1, keepdims=True)
        p = jnp.exp(s)
        p = p * pl.reciprocal(jnp.sum(p, axis=-1, keepdims=True), approx=True)
        outs.append(jnp.einsum('bqk,bkd->bqd', p, v,
                               preferred_element_type=jnp.float32))
    # lane-dense output: heads concatenated on the channel (last) axis
    o_ref[...] = jnp.concatenate(outs, axis=-1).astype(o_ref.dtype)


def _avgpool_kernel(x_ref, o_ref):
    o_ref[...] = jnp.mean(x_ref[...].astype(jnp.float32), axis=1).astype(o_ref.dtype)


# --------------------------- kernel wrappers -------------------------------

def linear(x, w, b, res=None):
    """y = x @ w + b (+ res).  Row-tiled, weight stays resident."""
    m, k = x.shape
    n = w.shape[1]
    tm, gm = _row_tile(m)
    row = lambda i: (i, 0)
    fix = lambda i: (0, 0)
    x_spec = pl.BlockSpec((tm, k), row)
    w_spec = pl.BlockSpec((k, n), fix)
    b_spec = pl.BlockSpec((1, n), fix)
    o_spec = pl.BlockSpec((tm, n), row)
    if res is None:
        return pl.pallas_call(
            _linear_kernel,
            out_shape=jax.ShapeDtypeStruct((m, n), x.dtype),
            grid=(gm,),
            in_specs=[x_spec, w_spec, b_spec],
            out_specs=o_spec,
            compiler_params=_cparams(1),
        )(x, w, b)
    return pl.pallas_call(
        _linear_add_kernel,
        out_shape=jax.ShapeDtypeStruct((m, n), x.dtype),
        grid=(gm,),
        in_specs=[x_spec, w_spec, b_spec, pl.BlockSpec((tm, n), row)],
        out_specs=o_spec,
        compiler_params=_cparams(1),
    )(x, w, b, res)


def layernorm(x, g, b, eps=1e-5):
    m, c = x.shape
    tm, gm = _row_tile(m)
    return pl.pallas_call(
        functools.partial(_layernorm_kernel, eps=eps),
        out_shape=jax.ShapeDtypeStruct((m, c), x.dtype),
        grid=(gm,),
        in_specs=[pl.BlockSpec((tm, c), lambda i: (i, 0)),
                  pl.BlockSpec((1, c), lambda i: (0, 0)),
                  pl.BlockSpec((1, c), lambda i: (0, 0))],
        out_specs=pl.BlockSpec((tm, c), lambda i: (i, 0)),
        compiler_params=_cparams(1),
    )(x, g, b)


def ln_linear(x, g, bta, w, b, eps=1e-5):
    """y = LN(x) @ w + b, fused."""
    m, k = x.shape
    n = w.shape[1]
    tm, gm = _row_tile(m)
    return pl.pallas_call(
        functools.partial(_ln_linear_kernel, eps=eps),
        out_shape=jax.ShapeDtypeStruct((m, n), x.dtype),
        grid=(gm,),
        in_specs=[pl.BlockSpec((tm, k), lambda i: (i, 0)),
                  pl.BlockSpec((1, k), lambda i: (0, 0)),
                  pl.BlockSpec((1, k), lambda i: (0, 0)),
                  pl.BlockSpec((k, n), lambda i: (0, 0)),
                  pl.BlockSpec((1, n), lambda i: (0, 0))],
        out_specs=pl.BlockSpec((tm, n), lambda i: (i, 0)),
        compiler_params=_cparams(1),
    )(x, g, bta, w, b)


def linear_ln(x, w, b, g, bta, eps=1e-5):
    """y = LN(x @ w + b), fused (patch embed)."""
    m, k = x.shape
    n = w.shape[1]
    tm, gm = _row_tile(m)
    return pl.pallas_call(
        functools.partial(_linear_ln_kernel, eps=eps),
        out_shape=jax.ShapeDtypeStruct((m, n), x.dtype),
        grid=(gm,),
        in_specs=[pl.BlockSpec((tm, k), lambda i: (i, 0)),
                  pl.BlockSpec((k, n), lambda i: (0, 0)),
                  pl.BlockSpec((1, n), lambda i: (0, 0)),
                  pl.BlockSpec((1, n), lambda i: (0, 0)),
                  pl.BlockSpec((1, n), lambda i: (0, 0))],
        out_specs=pl.BlockSpec((tm, n), lambda i: (i, 0)),
        compiler_params=_cparams(1),
    )(x, w, b, g, bta)


def _choose_wb(n_windows, n_bias_windows, n_tokens, target_rows=_ATTN_TARGET_ROWS):
    """Windows per attention block.  Must divide the total window count and,
    when a per-window shift mask is present, also divide nW."""
    limit = n_windows if n_bias_windows == 1 else n_bias_windows
    best = 1
    for wb in range(1, limit + 1):
        if n_windows % wb or limit % wb:
            continue
        if wb * n_tokens <= max(target_rows, n_tokens):
            best = wb
    return best


def attention_core(qkv, bias, n_heads, scale):
    """qkv: (BnW, N, 3C); bias: (1 or nW, nH, N, N) -> out (BnW, N, C)."""
    n_win, n_tok, three_c = qkv.shape
    c = three_c // 3
    n_bias_win = bias.shape[0]
    wb = _choose_wb(n_win, n_bias_win, n_tok)
    if n_bias_win == 1:
        bias_spec = pl.BlockSpec((1, n_heads, n_tok, n_tok),
                                 lambda i: (0, 0, 0, 0))
    else:
        nblk = n_bias_win // wb
        bias_spec = pl.BlockSpec((wb, n_heads, n_tok, n_tok),
                                 lambda i: (i % nblk, 0, 0, 0))
    return pl.pallas_call(
        functools.partial(_attn_kernel, n_heads=n_heads, scale=scale),
        out_shape=jax.ShapeDtypeStruct((n_win, n_tok, c), qkv.dtype),
        grid=(n_win // wb,),
        in_specs=[pl.BlockSpec((wb, n_tok, three_c), lambda i: (i, 0, 0)),
                  bias_spec],
        out_specs=pl.BlockSpec((wb, n_tok, c), lambda i: (i, 0, 0)),
        compiler_params=_cparams(1),
    )(qkv, bias)


def avg_pool(x):
    """AdaptiveAvgPool2d(1)+flatten equivalent: (B, L, C) -> (B, C)."""
    b, l, c = x.shape
    return pl.pallas_call(
        _avgpool_kernel,
        out_shape=jax.ShapeDtypeStruct((b, c), x.dtype),
        grid=(1,),
        in_specs=[pl.BlockSpec((b, l, c), lambda i: (0, 0, 0))],
        out_specs=pl.BlockSpec((b, c), lambda i: (0, 0)),
    )(x)


# ------------------------------ model glue --------------------------------

def window_partition(x, ws):
    B, H, W, C = x.shape
    x = x.reshape(B, H // ws, ws, W // ws, ws, C)
    return x.transpose(0, 1, 3, 2, 4, 5).reshape(-1, ws * ws, C)


def window_reverse(w, ws, B, H, W):
    C = w.shape[-1]
    x = w.reshape(B, H // ws, W // ws, ws, ws, C)
    return x.transpose(0, 1, 3, 2, 4, 5).reshape(B, H, W, C)


def patch_embed(x, p, patch_size, embed_dim):
    # Conv2d(kernel=stride=patch_size) == im2col + matmul, fused with the
    # patch_norm LayerNorm.
    B, C, H, W = x.shape
    ps = patch_size
    Hp, Wp = H // ps, W // ps
    x = x.reshape(B, C, Hp, ps, Wp, ps).transpose(0, 2, 4, 1, 3, 5)
    x = x.reshape(B * Hp * Wp, C * ps * ps)
    x = linear_ln(x, p["proj_w"], p["proj_b"], p["norm_g"], p["norm_b"])
    return x.reshape(B, Hp, Wp, embed_dim)


def patch_merging(x, p):
    B, H, W, C = x.shape
    x0 = x[:, 0::2, 0::2, :]
    x1 = x[:, 1::2, 0::2, :]
    x2 = x[:, 0::2, 1::2, :]
    x3 = x[:, 1::2, 1::2, :]
    xc = jnp.concatenate([x0, x1, x2, x3], axis=-1).reshape(-1, 4 * C)
    # LayerNorm(4C) -> Linear(4C, 2C, bias=False), fused
    y = ln_linear(xc, p["norm_g"], p["norm_b"], p["red_w"],
                  jnp.zeros((1, 2 * C), xc.dtype))
    return y.reshape(B, H // 2, W // 2, 2 * C)


def window_attention(xw, p, n_heads, mask):
    """xw: (BnW, N, C) windows (already shifted if needed)."""
    BnW, N, C = xw.shape
    d = C // n_heads
    # LN1 fused into the QKV projection (LN is per-token -> order independent)
    qkv = ln_linear(xw.reshape(-1, C), p["norm1_g"], p["norm1_b"],
                    p["qkv_w"], p["qkv_b"])
    qkv = qkv.reshape(BnW, N, 3 * C)

    rel = p["rel_table"][p["rel_index"].reshape(-1)]        # (N*N, nH)
    rel = rel.reshape(N, N, n_heads).transpose(2, 0, 1)     # (nH, N, N)
    if mask is None:
        bias = rel[None]                                    # (1, nH, N, N)
    else:
        bias = rel[None] + mask[:, None]                    # (nW, nH, N, N)

    out = attention_core(qkv, bias, n_heads, float(d) ** -0.5)   # (BnW, N, C)
    out = linear(out.reshape(-1, C), p["proj_w"], p["proj_b"])
    return out.reshape(BnW, N, C)


def swin_block(x, p, n_heads, ws, shift, attn_mask):
    B, H, W, C = x.shape
    shortcut = x
    h = x
    if shift > 0:
        h = jnp.roll(h, shift=(-shift, -shift), axis=(1, 2))
    win = window_partition(h, ws)
    att = window_attention(win, p, n_heads, attn_mask if shift > 0 else None)
    h = window_reverse(att, ws, B, H, W)
    if shift > 0:
        h = jnp.roll(h, shift=(shift, shift), axis=(1, 2))
    x = shortcut + h

    # MLP: LN2 -> fc1 fused, exact-erf GELU in XLA, fc2 + residual fused.
    # TODO(synk): exact erf GELU stays in XLA glue (erf lowering inside Mosaic
    #             kernels is not guaranteed); fuse once supported.
    xt = x.reshape(-1, C)
    m = ln_linear(xt, p["norm2_g"], p["norm2_b"], p["fc1_w"], p["fc1_b"])
    m = jax.nn.gelu(m, approximate=False)
    out = linear(m, p["fc2_w"], p["fc2_b"], res=xt)
    return out.reshape(B, H, W, C)


def swin_forward(x, params, cfg):
    # dropout rates are 0.0 -> identity
    x = patch_embed(x, params["patch_embed"], cfg["patch_size"], cfg["embed_dim"])
    ws = cfg["window_size"]
    for li, layer_p in enumerate(params["layers"]):
        if layer_p["merge"] is not None:
            x = patch_merging(x, layer_p["merge"])
        for stack in layer_p["stacks"]:
            x = swin_block(x, stack["block0"], cfg["n_attn_heads"][li], ws, 0, None)
            x = swin_block(x, stack["block1"], cfg["n_attn_heads"][li], ws,
                           ws // 2, stack["attn_mask"])
    B, H, W, C = x.shape
    x = layernorm(x.reshape(-1, C), params["norm_g"], params["norm_b"])
    x = x.reshape(B, H * W, C)
    return avg_pool(x)                                      # (B, num_features)


# --------------------------- parameter building ----------------------------

class KeyGen:
    def __init__(self, key):
        self.key = key

    def __call__(self):
        self.key, sub = jax.random.split(self.key)
        return sub


def trunc_normal(key, shape, std=0.02):
    return (jax.random.truncated_normal(key, -2.0, 2.0, shape) * std).astype(jnp.float32)


def make_rel_index(ws):
    coords = np.stack(np.meshgrid(np.arange(ws), np.arange(ws), indexing="ij"))
    cf = coords.reshape(2, -1)
    rel = (cf[:, :, None] - cf[:, None, :]).transpose(1, 2, 0).astype(np.int64)
    rel[:, :, 0] += ws - 1
    rel[:, :, 1] += ws - 1
    rel[:, :, 0] *= 2 * ws - 1
    return jnp.asarray(rel.sum(-1).astype(np.int32))        # (ws*ws, ws*ws)


def make_attn_mask(H, W, ws, shift):
    img_mask = np.zeros((1, H, W, 1), np.float32)
    cnt = 0
    for h in (slice(0, -ws), slice(-ws, -shift), slice(-shift, None)):
        for w in (slice(0, -ws), slice(-ws, -shift), slice(-shift, None)):
            img_mask[:, h, w, :] = cnt
            cnt += 1
    m = img_mask.reshape(1, H // ws, ws, W // ws, ws, 1)
    m = m.transpose(0, 1, 3, 2, 4, 5).reshape(-1, ws * ws)
    diff = m[:, None, :] - m[:, :, None]
    return jnp.asarray(np.where(diff != 0, -100.0, 0.0).astype(np.float32))  # (nW,N,N)


def init_block(kg, C, n_heads, ws, mlp_ratio, rel_index):
    hidden = int(C * mlp_ratio)
    return dict(
        norm1_g=jnp.ones((1, C), jnp.float32), norm1_b=jnp.zeros((1, C), jnp.float32),
        qkv_w=trunc_normal(kg(), (C, 3 * C)), qkv_b=jnp.zeros((1, 3 * C), jnp.float32),
        proj_w=trunc_normal(kg(), (C, C)), proj_b=jnp.zeros((1, C), jnp.float32),
        rel_table=trunc_normal(kg(), ((2 * ws - 1) ** 2, n_heads)),
        rel_index=rel_index,
        norm2_g=jnp.ones((1, C), jnp.float32), norm2_b=jnp.zeros((1, C), jnp.float32),
        fc1_w=trunc_normal(kg(), (C, hidden)), fc1_b=jnp.zeros((1, hidden), jnp.float32),
        fc2_w=trunc_normal(kg(), (hidden, C)), fc2_b=jnp.zeros((1, C), jnp.float32),
    )


def init_params(key, cfg):
    kg = KeyGen(key)
    n_layers = len(cfg["n_swin_blocks"])
    E, ps, Cin, ws = cfg["embed_dim"], cfg["patch_size"], cfg["n_channels"], cfg["window_size"]
    params = {
        "patch_embed": dict(
            proj_w=trunc_normal(kg(), (Cin * ps * ps, E)),
            proj_b=jnp.zeros((1, E), jnp.float32),
            norm_g=jnp.ones((1, E), jnp.float32),
            norm_b=jnp.zeros((1, E), jnp.float32),
        )
    }
    rel_index = make_rel_index(ws)
    img = cfg["img_size"] // ps
    C = E
    layers = []
    for i in range(n_layers):
        lp = {"merge": None, "stacks": []}
        if i > 0:
            lp["merge"] = dict(
                norm_g=jnp.ones((1, 4 * C), jnp.float32),
                norm_b=jnp.zeros((1, 4 * C), jnp.float32),
                red_w=trunc_normal(kg(), (4 * C, 2 * C)),
            )
            img //= 2
            C *= 2
        mask = make_attn_mask(img, img, ws, ws // 2)
        for _ in range(cfg["n_swin_blocks"][i] // 2):
            lp["stacks"].append(dict(
                block0=init_block(kg, C, cfg["n_attn_heads"][i], ws, cfg["mlp_ratio"], rel_index),
                block1=init_block(kg, C, cfg["n_attn_heads"][i], ws, cfg["mlp_ratio"], rel_index),
                attn_mask=mask,
            ))
        layers.append(lp)
    params["layers"] = layers
    num_features = int(E * 2 ** (n_layers - 1))
    assert num_features == C
    params["norm_g"] = jnp.ones((1, num_features), jnp.float32)
    params["norm_b"] = jnp.zeros((1, num_features), jnp.float32)
    return params


# ---------------------------------- main -----------------------------------

if __name__ == "__main__":
    cfg = dict(img_size=16, patch_size=4, n_channels=3, embed_dim=32,
               window_size=2, mlp_ratio=4.0,
               n_swin_blocks=(2, 2), n_attn_heads=(2, 4))

    key = jax.random.PRNGKey(0)
    pkey, xkey = jax.random.split(key)
    params = init_params(pkey, cfg)
    x = jax.random.normal(
        xkey, (2, cfg["n_channels"], cfg["img_size"], cfg["img_size"]), jnp.float32)

    fwd = jax.jit(functools.partial(swin_forward, cfg=cfg))
    out = fwd(x, params)
    out = jax.block_until_ready(out)

    num_features = cfg["embed_dim"] * 2 ** (len(cfg["n_swin_blocks"]) - 1)
    assert out.shape == (2, num_features), out.shape
    assert bool(jnp.all(jnp.isfinite(out)))
    print("KERNEL_OK")
</pallas_src>

<mosaic_0001>
module attributes {stable_mosaic.version = 11 : i64} {
  func.func @_ln_linear_kernel(%arg0: i32, %arg1: memref<32x32xf32, #tpu.memory_space<vmem>>, %arg2: memref<1x32xf32, #tpu.memory_space<vmem>>, %arg3: memref<1x32xf32, #tpu.memory_space<vmem>>, %arg4: memref<32x96xf32, #tpu.memory_space<vmem>>, %arg5: memref<1x96xf32, #tpu.memory_space<vmem>>, %arg6: memref<32x96xf32, #tpu.memory_space<vmem>>) attributes {dimension_semantics = [#tpu.dimension_semantics<parallel>], iteration_bounds = array<i64: 1>, scalar_prefetch = 0 : i64, scratch_operands = 0 : i64, tpu.core_type = #tpu.core_type<tc>, window_params = [{transform_indices = @transform_0, window_bounds = array<i64: 32, 32>}, {pipeline_mode = #tpu.pipeline_mode<synchronous>, transform_indices = @transform_1, window_bounds = array<i64: 1, 32>}, {pipeline_mode = #tpu.pipeline_mode<synchronous>, transform_indices = @transform_2, window_bounds = array<i64: 1, 32>}, {pipeline_mode = #tpu.pipeline_mode<synchronous>, transform_indices = @transform_3, window_bounds = array<i64: 32, 96>}, {pipeline_mode = #tpu.pipeline_mode<synchronous>, transform_indices = @transform_4, window_bounds = array<i64: 1, 96>}, {transform_indices = @transform_5, window_bounds = array<i64: 32, 96>}]} {
    %c0 = arith.constant 0 : index
    %c0_0 = arith.constant 0 : index
    %0 = vector.load %arg1[%c0, %c0_0] : memref<32x32xf32, #tpu.memory_space<vmem>>, vector<32x32xf32>
    %c0_1 = arith.constant 0 : index
    %c0_2 = arith.constant 0 : index
    %1 = vector.load %arg2[%c0_1, %c0_2] : memref<1x32xf32, #tpu.memory_space<vmem>>, vector<1x32xf32>
    %c0_3 = arith.constant 0 : index
    %c0_4 = arith.constant 0 : index
    %2 = vector.load %arg3[%c0_3, %c0_4] : memref<1x32xf32, #tpu.memory_space<vmem>>, vector<1x32xf32>
    %cst = arith.constant dense<0.000000e+00> : vector<32xf32>
    %3 = vector.multi_reduction <add>, %0, %cst [1] : vector<32x32xf32> to vector<32xf32>
    %4 = vector.shape_cast %3 : vector<32xf32> to vector<32x1xf32>
    %cst_5 = arith.constant 3.200000e+01 : f32
    %5 = vector.broadcast %cst_5 : f32 to vector<32x1xf32>
    %6 = arith.divf %4, %5 : vector<32x1xf32>
    %7 = vector.broadcast %6 : vector<32x1xf32> to vector<32x32xf32>
    %8 = arith.subf %0, %7 : vector<32x32xf32>
    %9 = vector.broadcast %6 : vector<32x1xf32> to vector<32x32xf32>
    %10 = arith.subf %0, %9 : vector<32x32xf32>
    %11 = arith.mulf %8, %10 : vector<32x32xf32>
    %cst_6 = arith.constant dense<0.000000e+00> : vector<32xf32>
    %12 = vector.multi_reduction <add>, %11, %cst_6 [1] : vector<32x32xf32> to vector<32xf32>
    %13 = vector.shape_cast %12 : vector<32xf32> to vector<32x1xf32>
    %cst_7 = arith.constant 3.200000e+01 : f32
    %14 = vector.broadcast %cst_7 : f32 to vector<32x1xf32>
    %15 = arith.divf %13, %14 : vector<32x1xf32>
    %16 = vector.broadcast %6 : vector<32x1xf32> to vector<32x32xf32>
    %17 = arith.subf %0, %16 : vector<32x32xf32>
    %cst_8 = arith.constant 9.99999974E-6 : f32
    %18 = vector.broadcast %cst_8 : f32 to vector<32x1xf32>
    %19 = arith.addf %15, %18 : vector<32x1xf32>
    %20 = math.rsqrt %19 : vector<32x1xf32>
    %21 = vector.broadcast %20 : vector<32x1xf32> to vector<32x32xf32>
    %22 = arith.mulf %17, %21 : vector<32x32xf32>
    %23 = vector.broadcast %1 : vector<1x32xf32> to vector<32x32xf32>
    %24 = arith.mulf %22, %23 : vector<32x32xf32>
    %25 = vector.broadcast %2 : vector<1x32xf32> to vector<32x32xf32>
    %26 = arith.addf %24, %25 : vector<32x32xf32>
    %c0_9 = arith.constant 0 : index
    %c0_10 = arith.constant 0 : index
    %27 = vector.load %arg4[%c0_9, %c0_10] : memref<32x96xf32, #tpu.memory_space<vmem>>, vector<32x96xf32>
    %cst_11 = arith.constant dense<0.000000e+00> : vector<32x96xf32>
    %28 = tpu.matmul %26, %27, %cst_11 {dimension_numbers = #tpu.dot_dimension_numbers<[1], [0], [0], [1], [0, 0, 1, 1], [], []>} : vector<32x32xf32>, vector<32x96xf32>, vector<32x96xf32> -> vector<32x96xf32>
    %c0_12 = arith.constant 0 : index
    %c0_13 = arith.constant 0 : index
    %29 = vector.load %arg5[%c0_12, %c0_13] : memref<1x96xf32, #tpu.memory_space<vmem>>, vector<1x96xf32>
    %30 = vector.broadcast %29 : vector<1x96xf32> to vector<32x96xf32>
    %31 = arith.addf %28, %30 : vector<32x96xf32>
    %c0_14 = arith.constant 0 : index
    %c0_15 = arith.constant 0 : index
    %32 = vector.load %arg6[%c0_14, %c0_15] : memref<32x96xf32, #tpu.memory_space<vmem>>, vector<32x96xf32>
    tpu.vector_store %arg6[%c0_14, %c0_15], %31 {strides = array<i32>} : memref<32x96xf32, #tpu.memory_space<vmem>>, vector<32x96xf32>,
    return
  }
  func.func @transform_0(%arg0: i32) -> (i32, i32) {
    %c0_i32 = arith.constant 0 : i32
    %c0_i32_0 = arith.constant 0 : i32
    return %arg0, %c0_i32 : i32, i32
  }
  func.func @transform_1(%arg0: i32) -> (i32, i32) {
    %c0_i32 = arith.constant 0 : i32
    %c0_i32_0 = arith.constant 0 : i32
    %c0_i32_1 = arith.constant 0 : i32
    return %c0_i32, %c0_i32_0 : i32, i32
  }
  func.func @transform_2(%arg0: i32) -> (i32, i32) {
    %c0_i32 = arith.constant 0 : i32
    %c0_i32_0 = arith.constant 0 : i32
    %c0_i32_1 = arith.constant 0 : i32
    return %c0_i32, %c0_i32_0 : i32, i32
  }
  func.func @transform_3(%arg0: i32) -> (i32, i32) {
    %c0_i32 = arith.constant 0 : i32
    %c0_i32_0 = arith.constant 0 : i32
    %c0_i32_1 = arith.constant 0 : i32
    return %c0_i32, %c0_i32_0 : i32, i32
  }
  func.func @transform_4(%arg0: i32) -> (i32, i32) {
    %c0_i32 = arith.constant 0 : i32
    %c0_i32_0 = arith.constant 0 : i32
    %c0_i32_1 = arith.constant 0 : i32
    return %c0_i32, %c0_i32_0 : i32, i32
  }
  func.func @transform_5(%arg0: i32) -> (i32, i32) {
    %c0_i32 = arith.constant 0 : i32
    %c0_i32_0 = arith.constant 0 : i32
    return %arg0, %c0_i32 : i32, i32
  }
}

module attributes {stable_mosaic.version = 11 : i64} {
  func.func @_linear_ln_kernel(%arg0: i32, %arg1: memref<32x48xf32, #tpu.memory_space<vmem>>, %arg2: memref<48x32xf32, #tpu.memory_space<vmem>>, %arg3: memref<1x32xf32, #tpu.memory_space<vmem>>, %arg4: memref<1x32xf32, #tpu.memory_space<vmem>>, %arg5: memref<1x32xf32, #tpu.memory_space<vmem>>, %arg6: memref<32x32xf32, #tpu.memory_space<vmem>>) attributes {dimension_semantics = [#tpu.dimension_semantics<parallel>], iteration_bounds = array<i64: 1>, scalar_prefetch = 0 : i64, scratch_operands = 0 : i64, tpu.core_type = #tpu.core_type<tc>, window_params = [{transform_indices = @transform_0, window_bounds = array<i64: 32, 48>}, {pipeline_mode = #tpu.pipeline_mode<synchronous>, transform_indices = @transform_1, window_bounds = array<i64: 48, 32>}, {pipeline_mode = #tpu.pipeline_mode<synchronous>, transform_indices = @transform_2, window_bounds = array<i64: 1, 32>}, {pipeline_mode = #tpu.pipeline_mode<synchronous>, transform_indices = @transform_3, window_bounds = array<i64: 1, 32>}, {pipeline_mode = #tpu.pipeline_mode<synchronous>, transform_indices = @transform_4, window_bounds = array<i64: 1, 32>}, {transform_indices = @transform_5, window_bounds = array<i64: 32, 32>}]} {
    %c0 = arith.constant 0 : index
    %c0_0 = arith.constant 0 : index
    %0 = vector.load %arg1[%c0, %c0_0] : memref<32x48xf32, #tpu.memory_space<vmem>>, vector<32x48xf32>
    %c0_1 = arith.constant 0 : index
    %c0_2 = arith.constant 0 : index
    %1 = vector.load %arg2[%c0_1, %c0_2] : memref<48x32xf32, #tpu.memory_space<vmem>>, vector<48x32xf32>
    %cst = arith.constant dense<0.000000e+00> : vector<32x32xf32>
    %2 = tpu.matmul %0, %1, %cst {dimension_numbers = #tpu.dot_dimension_numbers<[1], [0], [0], [1], [0, 0, 1, 1], [], []>} : vector<32x48xf32>, vector<48x32xf32>, vector<32x32xf32> -> vector<32x32xf32>
    %c0_3 = arith.constant 0 : index
    %c0_4 = arith.constant 0 : index
    %3 = vector.load %arg3[%c0_3, %c0_4] : memref<1x32xf32, #tpu.memory_space<vmem>>, vector<1x32xf32>
    %4 = vector.broadcast %3 : vector<1x32xf32> to vector<32x32xf32>
    %5 = arith.addf %2, %4 : vector<32x32xf32>
    %c0_5 = arith.constant 0 : index
    %c0_6 = arith.constant 0 : index
    %6 = vector.load %arg4[%c0_5, %c0_6] : memref<1x32xf32, #tpu.memory_space<vmem>>, vector<1x32xf32>
    %c0_7 = arith.constant 0 : index
    %c0_8 = arith.constant 0 : index
    %7 = vector.load %arg5[%c0_7, %c0_8] : memref<1x32xf32, #tpu.memory_space<vmem>>, vector<1x32xf32>
    %cst_9 = arith.constant dense<0.000000e+00> : vector<32xf32>
    %8 = vector.multi_reduction <add>, %5, %cst_9 [1] : vector<32x32xf32> to vector<32xf32>
    %9 = vector.shape_cast %8 : vector<32xf32> to vector<32x1xf32>
    %cst_10 = arith.constant 3.200000e+01 : f32
    %10 = vector.broadcast %cst_10 : f32 to vector<32x1xf32>
    %11 = arith.divf %9, %10 : vector<32x1xf32>
    %12 = vector.broadcast %11 : vector<32x1xf32> to vector<32x32xf32>
    %13 = arith.subf %5, %12 : vector<32x32xf32>
    %14 = vector.broadcast %11 : vector<32x1xf32> to vector<32x32xf32>
    %15 = arith.subf %5, %14 : vector<32x32xf32>
    %16 = arith.mulf %13, %15 : vector<32x32xf32>
    %cst_11 = arith.constant dense<0.000000e+00> : vector<32xf32>
    %17 = vector.multi_reduction <add>, %16, %cst_11 [1] : vector<32x32xf32> to vector<32xf32>
    %18 = vector.shape_cast %17 : vector<32xf32> to vector<32x1xf32>
    %cst_12 = arith.constant 3.200000e+01 : f32
    %19 = vector.broadcast %cst_12 : f32 to vector<32x1xf32>
    %20 = arith.divf %18, %19 : vector<32x1xf32>
    %21 = vector.broadcast %11 : vector<32x1xf32> to vector<32x32xf32>
    %22 = arith.subf %5, %21 : vector<32x32xf32>
    %cst_13 = arith.constant 9.99999974E-6 : f32
    %23 = vector.broadcast %cst_13 : f32 to vector<32x1xf32>
    %24 = arith.addf %20, %23 : vector<32x1xf32>
    %25 = math.rsqrt %24 : vector<32x1xf32>
    %26 = vector.broadcast %25 : vector<32x1xf32> to vector<32x32xf32>
    %27 = arith.mulf %22, %26 : vector<32x32xf32>
    %28 = vector.broadcast %6 : vector<1x32xf32> to vector<32x32xf32>
    %29 = arith.mulf %27, %28 : vector<32x32xf32>
    %30 = vector.broadcast %7 : vector<1x32xf32> to vector<32x32xf32>
    %31 = arith.addf %29, %30 : vector<32x32xf32>
    %c0_14 = arith.constant 0 : index
    %c0_15 = arith.constant 0 : index
    %32 = vector.load %arg6[%c0_14, %c0_15] : memref<32x32xf32, #tpu.memory_space<vmem>>, vector<32x32xf32>
    tpu.vector_store %arg6[%c0_14, %c0_15], %31 {strides = array<i32>} : memref<32x32xf32, #tpu.memory_space<vmem>>, vector<32x32xf32>,
    return
  }
  func.func @transform_0(%arg0: i32) -> (i32, i32) {
    %c0_i32 = arith.constant 0 : i32
    %c0_i32_0 = arith.constant 0 : i32
    return %arg0, %c0_i32 : i32, i32
  }
  func.func @transform_1(%arg0: i32) -> (i32, i32) {
    %c0_i32 = arith.constant 0 : i32
    %c0_i32_0 = arith.constant 0 : i32
    %c0_i32_1 = arith.constant 0 : i32
    return %c0_i32, %c0_i32_0 : i32, i32
  }
  func.func @transform_2(%arg0: i32) -> (i32, i32) {
    %c0_i32 = arith.constant 0 : i32
    %c0_i32_0 = arith.constant 0 : i32
    %c0_i32_1 = arith.constant 0 : i32
    return %c0_i32, %c0_i32_0 : i32, i32
  }
  func.func @transform_3(%arg0: i32) -> (i32, i32) {
    %c0_i32 = arith.constant 0 : i32
    %c0_i32_0 = arith.constant 0 : i32
    %c0_i32_1 = arith.constant 0 : i32
    return %c0_i32, %c0_i32_0 : i32, i32
  }
  func.func @transform_4(%arg0: i32) -> (i32, i32) {
    %c0_i32 = arith.constant 0 : i32
    %c0_i32_0 = arith.constant 0 : i32
    %c0_i32_1 = arith.constant 0 : i32
    return %c0_i32, %c0_i32_0 : i32, i32
  }
  func.func @transform_5(%arg0: i32) -> (i32, i32) {
    %c0_i32 = arith.constant 0 : i32
    %c0_i32_0 = arith.constant 0 : i32
    return %arg0, %c0_i32 : i32, i32
  }
}

module attributes {stable_mosaic.version = 11 : i64} {
  func.func @_linear_kernel(%arg0: i32, %arg1: memref<32x32xf32, #tpu.memory_space<vmem>>, %arg2: memref<32x32xf32, #tpu.memory_space<vmem>>, %arg3: memref<1x32xf32, #tpu.memory_space<vmem>>, %arg4: memref<32x32xf32, #tpu.memory_space<vmem>>) attributes {dimension_semantics = [#tpu.dimension_semantics<parallel>], iteration_bounds = array<i64: 1>, scalar_prefetch = 0 : i64, scratch_operands = 0 : i64, tpu.core_type = #tpu.core_type<tc>, window_params = [{transform_indices = @transform_0, window_bounds = array<i64: 32, 32>}, {pipeline_mode = #tpu.pipeline_mode<synchronous>, transform_indices = @transform_1, window_bounds = array<i64: 32, 32>}, {pipeline_mode = #tpu.pipeline_mode<synchronous>, transform_indices = @transform_2, window_bounds = array<i64: 1, 32>}, {transform_indices = @transform_3, window_bounds = array<i64: 32, 32>}]} {
    %c0 = arith.constant 0 : index
    %c0_0 = arith.constant 0 : index
    %0 = vector.load %arg1[%c0, %c0_0] : memref<32x32xf32, #tpu.memory_space<vmem>>, vector<32x32xf32>
    %c0_1 = arith.constant 0 : index
    %c0_2 = arith.constant 0 : index
    %1 = vector.load %arg2[%c0_1, %c0_2] : memref<32x32xf32, #tpu.memory_space<vmem>>, vector<32x32xf32>
    %cst = arith.constant dense<0.000000e+00> : vector<32x32xf32>
    %2 = tpu.matmul %0, %1, %cst {dimension_numbers = #tpu.dot_dimension_numbers<[1], [0], [0], [1], [0, 0, 1, 1], [], []>} : vector<32x32xf32>, vector<32x32xf32>, vector<32x32xf32> -> vector<32x32xf32>
    %c0_3 = arith.constant 0 : index
    %c0_4 = arith.constant 0 : index
    %3 = vector.load %arg3[%c0_3, %c0_4] : memref<1x32xf32, #tpu.memory_space<vmem>>, vector<1x32xf32>
    %4 = vector.broadcast %3 : vector<1x32xf32> to vector<32x32xf32>
    %5 = arith.addf %2, %4 : vector<32x32xf32>
    %c0_5 = arith.constant 0 : index
    %c0_6 = arith.constant 0 : index
    %6 = vector.load %arg4[%c0_5, %c0_6] : memref<32x32xf32, #tpu.memory_space<vmem>>, vector<32x32xf32>
    tpu.vector_store %arg4[%c0_5, %c0_6], %5 {strides = array<i32>} : memref<32x32xf32, #tpu.memory_space<vmem>>, vector<32x32xf32>,
    return
  }
  func.func @transform_0(%arg0: i32) -> (i32, i32) {
    %c0_i32 = arith.constant 0 : i32
    %c0_i32_0 = arith.constant 0 : i32
    return %arg0, %c0_i32 : i32, i32
  }
  func.func @transform_1(%arg0: i32) -> (i32, i32) {
    %c0_i32 = arith.constant 0 : i32
    %c0_i32_0 = arith.constant 0 : i32
    %c0_i32_1 = arith.constant 0 : i32
    return %c0_i32, %c0_i32_0 : i32, i32
  }
  func.func @transform_2(%arg0: i32) -> (i32, i32) {
    %c0_i32 = arith.constant 0 : i32
    %c0_i32_0 = arith.constant 0 : i32
    %c0_i32_1 = arith.constant 0 : i32
    return %c0_i32, %c0_i32_0 : i32, i32
  }
  func.func @transform_3(%arg0: i32) -> (i32, i32) {
    %c0_i32 = arith.constant 0 : i32
    %c0_i32_0 = arith.constant 0 : i32
    return %arg0, %c0_i32 : i32, i32
  }
}

module attributes {stable_mosaic.version = 11 : i64} {
  func.func @_attn_kernel(%arg0: i32, %arg1: memref<8x4x96xf32, #tpu.memory_space<vmem>>, %arg2: memref<1x2x4x4xf32, #tpu.memory_space<vmem>>, %arg3: memref<8x4x32xf32, #tpu.memory_space<vmem>>) attributes {dimension_semantics = [#tpu.dimension_semantics<parallel>], iteration_bounds = array<i64: 1>, scalar_prefetch = 0 : i64, scratch_operands = 0 : i64, tpu.core_type = #tpu.core_type<tc>, window_params = [{transform_indices = @transform_0, window_bounds = array<i64: 8, 4, 96>}, {pipeline_mode = #tpu.pipeline_mode<synchronous>, transform_indices = @transform_1, window_bounds = array<i64: 1, 2, 4, 4>}, {transform_indices = @transform_2, window_bounds = array<i64: 8, 4, 32>}]} {
    %c0 = arith.constant 0 : index
    %c0_0 = arith.constant 0 : index
    %c0_1 = arith.constant 0 : index
    %0 = vector.load %arg1[%c0, %c0_0, %c0_1] : memref<8x4x96xf32, #tpu.memory_space<vmem>>, vector<8x4x96xf32>
    %c0_2 = arith.constant 0 : index
    %c0_3 = arith.constant 0 : index
    %c0_4 = arith.constant 0 : index
    %c0_5 = arith.constant 0 : index
    %1 = vector.load %arg2[%c0_2, %c0_3, %c0_4, %c0_5] : memref<1x2x4x4xf32, #tpu.memory_space<vmem>>, vector<1x2x4x4xf32>
    %2 = vector.extract_strided_slice %0 {offsets = [0, 0, 0], sizes = [8, 4, 16], strides = [1, 1, 1]} : vector<8x4x96xf32> to vector<8x4x16xf32>
    %3 = vector.extract_strided_slice %0 {offsets = [0, 0, 32], sizes = [8, 4, 16], strides = [1, 1, 1]} : vector<8x4x96xf32> to vector<8x4x16xf32>
    %4 = vector.extract_strided_slice %0 {offsets = [0, 0, 64], sizes = [8, 4, 16], strides = [1, 1, 1]} : vector<8x4x96xf32> to vector<8x4x16xf32>
    "tpu.trace_start"() <{level = 10 : i32, message = "bqd,bkd->bqk"}> : () -> ()
    %cst = arith.constant dense<0.000000e+00> : vector<8x4x4xf32>
    %5 = tpu.matmul %2, %3, %cst {dimension_numbers = #tpu.dot_dimension_numbers<[2], [2], [1], [1], [0, 0, 0, 1, 1, 1], [0], [0]>} : vector<8x4x16xf32>, vector<8x4x16xf32>, vector<8x4x4xf32> -> vector<8x4x4xf32>
    "tpu.trace_stop"() : () -> ()
    %cst_6 = arith.constant 2.500000e-01 : f32
    %6 = vector.broadcast %cst_6 : f32 to vector<8x4x4xf32>
    %7 = arith.mulf %5, %6 : vector<8x4x4xf32>
    %8 = vector.extract_strided_slice %1 {offsets = [0, 0, 0, 0], sizes = [1, 1, 4, 4], strides = [1, 1, 1, 1]} : vector<1x2x4x4xf32> to vector<1x1x4x4xf32>
    %9 = vector.shape_cast %8 : vector<1x1x4x4xf32> to vector<1x4x4xf32>
    %10 = vector.broadcast %9 : vector<1x4x4xf32> to vector<8x4x4xf32>
    %11 = arith.addf %7, %10 : vector<8x4x4xf32>
    %cst_7 = arith.constant dense<0xFF800000> : vector<8x4xf32>
    %12 = vector.multi_reduction <maximumf>, %11, %cst_7 [2] : vector<8x4x4xf32> to vector<8x4xf32>
    %13 = vector.shape_cast %12 : vector<8x4xf32> to vector<8x4x1xf32>
    %14 = vector.broadcast %13 : vector<8x4x1xf32> to vector<8x4x4xf32>
    %15 = arith.subf %11, %14 : vector<8x4x4xf32>
    %16 = math.exp %15 : vector<8x4x4xf32>
    %cst_8 = arith.constant dense<0.000000e+00> : vector<8x4xf32>
    %17 = vector.multi_reduction <add>, %16, %cst_8 [2] : vector<8x4x4xf32> to vector<8x4xf32>
    %18 = vector.shape_cast %17 : vector<8x4xf32> to vector<8x4x1xf32>
    %19 = tpu.reciprocal %18 {approx = true} : vector<8x4x1xf32> -> vector<8x4x1xf32>
    %20 = vector.broadcast %19 : vector<8x4x1xf32> to vector<8x4x4xf32>
    %21 = arith.mulf %16, %20 : vector<8x4x4xf32>
    "tpu.trace_start"() <{level = 10 : i32, message = "bqk,bkd->bqd"}> : () -> ()
    %cst_9 = arith.constant dense<0.000000e+00> : vector<8x4x16xf32>
    %22 = tpu.matmul %21, %4, %cst_9 {dimension_numbers = #tpu.dot_dimension_numbers<[2], [1], [1], [2], [0, 0, 0, 1, 1, 2], [0], [0]>} : vector<8x4x4xf32>, vector<8x4x16xf32>, vector<8x4x16xf32> -> vector<8x4x16xf32>
    "tpu.trace_stop"() : () -> ()
    %23 = vector.extract_strided_slice %0 {offsets = [0, 0, 16], sizes = [8, 4, 16], strides = [1, 1, 1]} : vector<8x4x96xf32> to vector<8x4x16xf32>
    %24 = vector.extract_strided_slice %0 {offsets = [0, 0, 48], sizes = [8, 4, 16], strides = [1, 1, 1]} : vector<8x4x96xf32> to vector<8x4x16xf32>
    %25 = vector.extract_strided_slice %0 {offsets = [0, 0, 80], sizes = [8, 4, 16], strides = [1, 1, 1]} : vector<8x4x96xf32> to vector<8x4x16xf32>
    "tpu.trace_start"() <{level = 10 : i32, message = "bqd,bkd->bqk"}> : () -> ()
    %cst_10 = arith.constant dense<0.000000e+00> : vector<8x4x4xf32>
    %26 = tpu.matmul %23, %24, %cst_10 {dimension_numbers = #tpu.dot_dimension_numbers<[2], [2], [1], [1], [0, 0, 0, 1, 1, 1], [0], [0]>} : vector<8x4x16xf32>, vector<8x4x16xf32>, vector<8x4x4xf32> -> vector<8x4x4xf32>
    "tpu.trace_stop"() : () -> ()
    %cst_11 = arith.constant 2.500000e-01 : f32
    %27 = vector.broadcast %cst_11 : f32 to vector<8x4x4xf32>
    %28 = arith.mulf %26, %27 : vector<8x4x4xf32>
    %29 = vector.extract_strided_slice %1 {offsets = [0, 1, 0, 0], sizes = [1, 1, 4, 4], strides = [1, 1, 1, 1]} : vector<1x2x4x4xf32> to vector<1x1x4x4xf32>
    %30 = vector.shape_cast %29 : vector<1x1x4x4xf32> to vector<1x4x4xf32>
    %31 = vector.broadcast %30 : vector<1x4x4xf32> to vector<8x4x4xf32>
    %32 = arith.addf %28, %31 : vector<8x4x4xf32>
    %cst_12 = arith.constant dense<0xFF800000> : vector<8x4xf32>
    %33 = vector.multi_reduction <maximumf>, %32, %cst_12 [2] : vector<8x4x4xf32> to vector<8x4xf32>
    %34 = vector.shape_cast %33 : vector<8x4xf32> to vector<8x4x1xf32>
    %35 = vector.broadcast %34 : vector<8x4x1xf32> to vector<8x4x4xf32>
    %36 = arith.subf %32, %35 : vector<8x4x4xf32>
    %37 = math.exp %36 : vector<8x4x4xf32>
    %cst_13 = arith.constant dense<0.000000e+00> : vector<8x4xf32>
    %38 = vector.multi_reduction <add>, %37, %cst_13 [2] : vector<8x4x4xf32> to vector<8x4xf32>
    %39 = vector.shape_cast %38 : vector<8x4xf32> to vector<8x4x1xf32>
    %40 = tpu.reciprocal %39 {approx = true} : vector<8x4x1xf32> -> vector<8x4x1xf32>
    %41 = vector.broadcast %40 : vector<8x4x1xf32> to vector<8x4x4xf32>
    %42 = arith.mulf %37, %41 : vector<8x4x4xf32>
    "tpu.trace_start"() <{level = 10 : i32, message = "bqk,bkd->bqd"}> : () -> ()
    %cst_14 = arith.constant dense<0.000000e+00> : vector<8x4x16xf32>
    %43 = tpu.matmul %42, %25, %cst_14 {dimension_numbers = #tpu.dot_dimension_numbers<[2], [1], [1], [2], [0, 0, 0, 1, 1, 2], [0], [0]>} : vector<8x4x4xf32>, vector<8x4x16xf32>, vector<8x4x16xf32> -> vector<8x4x16xf32>
    "tpu.trace_stop"() : () -> ()
    %44 = tpu.concatenate %22, %43 in 2 : vector<8x4x16xf32>, vector<8x4x16xf32> -> vector<8x4x32xf32>
    %c0_15 = arith.constant 0 : index
    %c0_16 = arith.constant 0 : index
    %c0_17 = arith.constant 0 : index
    %45 = vector.load %arg3[%c0_15, %c0_16, %c0_17] : memref<8x4x32xf32, #tpu.memory_space<vmem>>, vector<8x4x32xf32>
    tpu.vector_store %arg3[%c0_15, %c0_16, %c0_17], %44 {strides = array<i32>} : memref<8x4x32xf32, #tpu.memory_space<vmem>>, vector<8x4x32xf32>,
    return
  }
  func.func @transform_0(%arg0: i32) -> (i32, i32, i32) {
    %c0_i32 = arith.constant 0 : i32
    %c0_i32_0 = arith.constant 0 : i32
    %c0_i32_1 = arith.constant 0 : i32
    return %arg0, %c0_i32, %c0_i32_0 : i32, i32, i32
  }
  func.func @transform_1(%arg0: i32) -> (i32, i32, i32, i32) {
    %c0_i32 = arith.constant 0 : i32
    %c0_i32_0 = arith.constant 0 : i32
    %c0_i32_1 = arith.constant 0 : i32
    %c0_i32_2 = arith.constant 0 : i32
    %c0_i32_3 = arith.constant 0 : i32
    return %c0_i32, %c0_i32_0, %c0_i32_1, %c0_i32_2 : i32, i32, i32, i32
  }
  func.func @transform_2(%arg0: i32) -> (i32, i32, i32) {
    %c0_i32 = arith.constant 0 : i32
    %c0_i32_0 = arith.constant 0 : i32
    %c0_i32_1 = arith.constant 0 : i32
    return %arg0, %c0_i32, %c0_i32_0 : i32, i32, i32
  }
}

module attributes {stable_mosaic.version = 11 : i64} {
  func.func @_ln_linear_kernel(%arg0: i32, %arg1: memref<32x32xf32, #tpu.memory_space<vmem>>, %arg2: memref<1x32xf32, #tpu.memory_space<vmem>>, %arg3: memref<1x32xf32, #tpu.memory_space<vmem>>, %arg4: memref<32x128xf32, #tpu.memory_space<vmem>>, %arg5: memref<1x128xf32, #tpu.memory_space<vmem>>, %arg6: memref<32x128xf32, #tpu.memory_space<vmem>>) attributes {dimension_semantics = [#tpu.dimension_semantics<parallel>], iteration_bounds = array<i64: 1>, scalar_prefetch = 0 : i64, scratch_operands = 0 : i64, tpu.core_type = #tpu.core_type<tc>, window_params = [{transform_indices = @transform_0, window_bounds = array<i64: 32, 32>}, {pipeline_mode = #tpu.pipeline_mode<synchronous>, transform_indices = @transform_1, window_bounds = array<i64: 1, 32>}, {pipeline_mode = #tpu.pipeline_mode<synchronous>, transform_indices = @transform_2, window_bounds = array<i64: 1, 32>}, {pipeline_mode = #tpu.pipeline_mode<synchronous>, transform_indices = @transform_3, window_bounds = array<i64: 32, 128>}, {pipeline_mode = #tpu.pipeline_mode<synchronous>, transform_indices = @transform_4, window_bounds = array<i64: 1, 128>}, {transform_indices = @transform_5, window_bounds = array<i64: 32, 128>}]} {
    %c0 = arith.constant 0 : index
    %c0_0 = arith.constant 0 : index
    %0 = vector.load %arg1[%c0, %c0_0] : memref<32x32xf32, #tpu.memory_space<vmem>>, vector<32x32xf32>
    %c0_1 = arith.constant 0 : index
    %c0_2 = arith.constant 0 : index
    %1 = vector.load %arg2[%c0_1, %c0_2] : memref<1x32xf32, #tpu.memory_space<vmem>>, vector<1x32xf32>
    %c0_3 = arith.constant 0 : index
    %c0_4 = arith.constant 0 : index
    %2 = vector.load %arg3[%c0_3, %c0_4] : memref<1x32xf32, #tpu.memory_space<vmem>>, vector<1x32xf32>
    %cst = arith.constant dense<0.000000e+00> : vector<32xf32>
    %3 = vector.multi_reduction <add>, %0, %cst [1] : vector<32x32xf32> to vector<32xf32>
    %4 = vector.shape_cast %3 : vector<32xf32> to vector<32x1xf32>
    %cst_5 = arith.constant 3.200000e+01 : f32
    %5 = vector.broadcast %cst_5 : f32 to vector<32x1xf32>
    %6 = arith.divf %4, %5 : vector<32x1xf32>
    %7 = vector.broadcast %6 : vector<32x1xf32> to vector<32x32xf32>
    %8 = arith.subf %0, %7 : vector<32x32xf32>
    %9 = vector.broadcast %6 : vector<32x1xf32> to vector<32x32xf32>
    %10 = arith.subf %0, %9 : vector<32x32xf32>
    %11 = arith.mulf %8, %10 : vector<32x32xf32>
    %cst_6 = arith.constant dense<0.000000e+00> : vector<32xf32>
    %12 = vector.multi_reduction <add>, %11, %cst_6 [1] : vector<32x32xf32> to vector<32xf32>
    %13 = vector.shape_cast %12 : vector<32xf32> to vector<32x1xf32>
    %cst_7 = arith.constant 3.200000e+01 : f32
    %14 = vector.broadcast %cst_7 : f32 to vector<32x1xf32>
    %15 = arith.divf %13, %14 : vector<32x1xf32>
    %16 = vector.broadcast %6 : vector<32x1xf32> to vector<32x32xf32>
    %17 = arith.subf %0, %16 : vector<32x32xf32>
    %cst_8 = arith.constant 9.99999974E-6 : f32
    %18 = vector.broadcast %cst_8 : f32 to vector<32x1xf32>
    %19 = arith.addf %15, %18 : vector<32x1xf32>
    %20 = math.rsqrt %19 : vector<32x1xf32>
    %21 = vector.broadcast %20 : vector<32x1xf32> to vector<32x32xf32>
    %22 = arith.mulf %17, %21 : vector<32x32xf32>
    %23 = vector.broadcast %1 : vector<1x32xf32> to vector<32x32xf32>
    %24 = arith.mulf %22, %23 : vector<32x32xf32>
    %25 = vector.broadcast %2 : vector<1x32xf32> to vector<32x32xf32>
    %26 = arith.addf %24, %25 : vector<32x32xf32>
    %c0_9 = arith.constant 0 : index
    %c0_10 = arith.constant 0 : index
    %27 = vector.load %arg4[%c0_9, %c0_10] : memref<32x128xf32, #tpu.memory_space<vmem>>, vector<32x128xf32>
    %cst_11 = arith.constant dense<0.000000e+00> : vector<32x128xf32>
    %28 = tpu.matmul %26, %27, %cst_11 {dimension_numbers = #tpu.dot_dimension_numbers<[1], [0], [0], [1], [0, 0, 1, 1], [], []>} : vector<32x32xf32>, vector<32x128xf32>, vector<32x128xf32> -> vector<32x128xf32>
    %c0_12 = arith.constant 0 : index
    %c0_13 = arith.constant 0 : index
    %29 = vector.load %arg5[%c0_12, %c0_13] : memref<1x128xf32, #tpu.memory_space<vmem>>, vector<1x128xf32>
    %30 = vector.broadcast %29 : vector<1x128xf32> to vector<32x128xf32>
    %31 = arith.addf %28, %30 : vector<32x128xf32>
    %c0_14 = arith.constant 0 : index
    %c0_15 = arith.constant 0 : index
    %32 = vector.load %arg6[%c0_14, %c0_15] : memref<32x128xf32, #tpu.memory_space<vmem>>, vector<32x128xf32>
    tpu.vector_store %arg6[%c0_14, %c0_15], %31 {strides = array<i32>} : memref<32x128xf32, #tpu.memory_space<vmem>>, vector<32x128xf32>,
    return
  }
  func.func @transform_0(%arg0: i32) -> (i32, i32) {
    %c0_i32 = arith.constant 0 : i32
    %c0_i32_0 = arith.constant 0 : i32
    return %arg0, %c0_i32 : i32, i32
  }
  func.func @transform_1(%arg0: i32) -> (i32, i32) {
    %c0_i32 = arith.constant 0 : i32
    %c0_i32_0 = arith.constant 0 : i32
    %c0_i32_1 = arith.constant 0 : i32
    return %c0_i32, %c0_i32_0 : i32, i32
  }
  func.func @transform_2(%arg0: i32) -> (i32, i32) {
    %c0_i32 = arith.constant 0 : i32
    %c0_i32_0 = arith.constant 0 : i32
    %c0_i32_1 = arith.constant 0 : i32
    return %c0_i32, %c0_i32_0 : i32, i32
  }
  func.func @transform_3(%arg0: i32) -> (i32, i32) {
    %c0_i32 = arith.constant 0 : i32
    %c0_i32_0 = arith.constant 0 : i32
    %c0_i32_1 = arith.constant 0 : i32
    return %c0_i32, %c0_i32_0 : i32, i32
  }
  func.func @transform_4(%arg0: i32) -> (i32, i32) {
    %c0_i32 = arith.constant 0 : i32
    %c0_i32_0 = arith.constant 0 : i32
    %c0_i32_1 = arith.constant 0 : i32
    return %c0_i32, %c0_i32_0 : i32, i32
  }
  func.func @transform_5(%arg0: i32) -> (i32, i32) {
    %c0_i32 = arith.constant 0 : i32
    %c0_i32_0 = arith.constant 0 : i32
    return %arg0, %c0_i32 : i32, i32
  }
}

module attributes {stable_mosaic.version = 11 : i64} {
  func.func @_linear_add_kernel(%arg0: i32, %arg1: memref<32x128xf32, #tpu.memory_space<vmem>>, %arg2: memref<128x32xf32, #tpu.memory_space<vmem>>, %arg3: memref<1x32xf32, #tpu.memory_space<vmem>>, %arg4: memref<32x32xf32, #tpu.memory_space<vmem>>, %arg5: memref<32x32xf32, #tpu.memory_space<vmem>>) attributes {dimension_semantics = [#tpu.dimension_semantics<parallel>], iteration_bounds = array<i64: 1>, scalar_prefetch = 0 : i64, scratch_operands = 0 : i64, tpu.core_type = #tpu.core_type<tc>, window_params = [{transform_indices = @transform_0, window_bounds = array<i64: 32, 128>}, {pipeline_mode = #tpu.pipeline_mode<synchronous>, transform_indices = @transform_1, window_bounds = array<i64: 128, 32>}, {pipeline_mode = #tpu.pipeline_mode<synchronous>, transform_indices = @transform_2, window_bounds = array<i64: 1, 32>}, {transform_indices = @transform_3, window_bounds = array<i64: 32, 32>}, {transform_indices = @transform_4, window_bounds = array<i64: 32, 32>}]} {
    %c0 = arith.constant 0 : index
    %c0_0 = arith.constant 0 : index
    %0 = vector.load %arg1[%c0, %c0_0] : memref<32x128xf32, #tpu.memory_space<vmem>>, vector<32x128xf32>
    %c0_1 = arith.constant 0 : index
    %c0_2 = arith.constant 0 : index
    %1 = vector.load %arg2[%c0_1, %c0_2] : memref<128x32xf32, #tpu.memory_space<vmem>>, vector<128x32xf32>
    %cst = arith.constant dense<0.000000e+00> : vector<32x32xf32>
    %2 = tpu.matmul %0, %1, %cst {dimension_numbers = #tpu.dot_dimension_numbers<[1], [0], [0], [1], [0, 0, 1, 1], [], []>} : vector<32x128xf32>, vector<128x32xf32>, vector<32x32xf32> -> vector<32x32xf32>
    %c0_3 = arith.constant 0 : index
    %c0_4 = arith.constant 0 : index
    %3 = vector.load %arg3[%c0_3, %c0_4] : memref<1x32xf32, #tpu.memory_space<vmem>>, vector<1x32xf32>
    %4 = vector.broadcast %3 : vector<1x32xf32> to vector<32x32xf32>
    %5 = arith.addf %2, %4 : vector<32x32xf32>
    %c0_5 = arith.constant 0 : index
    %c0_6 = arith.constant 0 : index
    %6 = vector.load %arg4[%c0_5, %c0_6] : memref<32x32xf32, #tpu.memory_space<vmem>>, vector<32x32xf32>
    %7 = arith.addf %5, %6 : vector<32x32xf32>
    %c0_7 = arith.constant 0 : index
    %c0_8 = arith.constant 0 : index
    %8 = vector.load %arg5[%c0_7, %c0_8] : memref<32x32xf32, #tpu.memory_space<vmem>>, vector<32x32xf32>
    tpu.vector_store %arg5[%c0_7, %c0_8], %7 {strides = array<i32>} : memref<32x32xf32, #tpu.memory_space<vmem>>, vector<32x32xf32>,
    return
  }
  func.func @transform_0(%arg0: i32) -> (i32, i32) {
    %c0_i32 = arith.constant 0 : i32
    %c0_i32_0 = arith.constant 0 : i32
    return %arg0, %c0_i32 : i32, i32
  }
  func.func @transform_1(%arg0: i32) -> (i32, i32) {
    %c0_i32 = arith.constant 0 : i32
    %c0_i32_0 = arith.constant 0 : i32
    %c0_i32_1 = arith.constant 0 : i32
    return %c0_i32, %c0_i32_0 : i32, i32
  }
  func.func @transform_2(%arg0: i32) -> (i32, i32) {
    %c0_i32 = arith.constant 0 : i32
    %c0_i32_0 = arith.constant 0 : i32
    %c0_i32_1 = arith.constant 0 : i32
    return %c0_i32, %c0_i32_0 : i32, i32
  }
  func.func @transform_3(%arg0: i32) -> (i32, i32) {
    %c0_i32 = arith.constant 0 : i32
    %c0_i32_0 = arith.constant 0 : i32
    return %arg0, %c0_i32 : i32, i32
  }
  func.func @transform_4(%arg0: i32) -> (i32, i32) {
    %c0_i32 = arith.constant 0 : i32
    %c0_i32_0 = arith.constant 0 : i32
    return %arg0, %c0_i32 : i32, i32
  }
}

module attributes {stable_mosaic.version = 11 : i64} {
  func.func @_attn_kernel(%arg0: i32, %arg1: memref<4x4x96xf32, #tpu.memory_space<vmem>>, %arg2: memref<4x2x4x4xf32, #tpu.memory_space<vmem>>, %arg3: memref<4x4x32xf32, #tpu.memory_space<vmem>>) attributes {dimension_semantics = [#tpu.dimension_semantics<parallel>], iteration_bounds = array<i64: 2>, scalar_prefetch = 0 : i64, scratch_operands = 0 : i64, tpu.core_type = #tpu.core_type<tc>, window_params = [{transform_indices = @transform_0, window_bounds = array<i64: 4, 4, 96>}, {transform_indices = @transform_1, window_bounds = array<i64: 4, 2, 4, 4>}, {transform_indices = @transform_2, window_bounds = array<i64: 4, 4, 32>}]} {
    %c0 = arith.constant 0 : index
    %c0_0 = arith.constant 0 : index
    %c0_1 = arith.constant 0 : index
    %0 = vector.load %arg1[%c0, %c0_0, %c0_1] : memref<4x4x96xf32, #tpu.memory_space<vmem>>, vector<4x4x96xf32>
    %c0_2 = arith.constant 0 : index
    %c0_3 = arith.constant 0 : index
    %c0_4 = arith.constant 0 : index
    %c0_5 = arith.constant 0 : index
    %1 = vector.load %arg2[%c0_2, %c0_3, %c0_4, %c0_5] : memref<4x2x4x4xf32, #tpu.memory_space<vmem>>, vector<4x2x4x4xf32>
    %2 = vector.extract_strided_slice %0 {offsets = [0, 0, 0], sizes = [4, 4, 16], strides = [1, 1, 1]} : vector<4x4x96xf32> to vector<4x4x16xf32>
    %3 = vector.extract_strided_slice %0 {offsets = [0, 0, 32], sizes = [4, 4, 16], strides = [1, 1, 1]} : vector<4x4x96xf32> to vector<4x4x16xf32>
    %4 = vector.extract_strided_slice %0 {offsets = [0, 0, 64], sizes = [4, 4, 16], strides = [1, 1, 1]} : vector<4x4x96xf32> to vector<4x4x16xf32>
    "tpu.trace_start"() <{level = 10 : i32, message = "bqd,bkd->bqk"}> : () -> ()
    %cst = arith.constant dense<0.000000e+00> : vector<4x4x4xf32>
    %5 = tpu.matmul %2, %3, %cst {dimension_numbers = #tpu.dot_dimension_numbers<[2], [2], [1], [1], [0, 0, 0, 1, 1, 1], [0], [0]>} : vector<4x4x16xf32>, vector<4x4x16xf32>, vector<4x4x4xf32> -> vector<4x4x4xf32>
    "tpu.trace_stop"() : () -> ()
    %cst_6 = arith.constant 2.500000e-01 : f32
    %6 = vector.broadcast %cst_6 : f32 to vector<4x4x4xf32>
    %7 = arith.mulf %5, %6 : vector<4x4x4xf32>
    %8 = vector.extract_strided_slice %1 {offsets = [0, 0, 0, 0], sizes = [4, 1, 4, 4], strides = [1, 1, 1, 1]} : vector<4x2x4x4xf32> to vector<4x1x4x4xf32>
    %9 = vector.shape_cast %8 : vector<4x1x4x4xf32> to vector<4x4x4xf32>
    %10 = arith.addf %7, %9 : vector<4x4x4xf32>
    %cst_7 = arith.constant dense<0xFF800000> : vector<4x4xf32>
    %11 = vector.multi_reduction <maximumf>, %10, %cst_7 [2] : vector<4x4x4xf32> to vector<4x4xf32>
    %12 = vector.shape_cast %11 : vector<4x4xf32> to vector<4x4x1xf32>
    %13 = vector.broadcast %12 : vector<4x4x1xf32> to vector<4x4x4xf32>
    %14 = arith.subf %10, %13 : vector<4x4x4xf32>
    %15 = math.exp %14 : vector<4x4x4xf32>
    %cst_8 = arith.constant dense<0.000000e+00> : vector<4x4xf32>
    %16 = vector.multi_reduction <add>, %15, %cst_8 [2] : vector<4x4x4xf32> to vector<4x4xf32>
    %17 = vector.shape_cast %16 : vector<4x4xf32> to vector<4x4x1xf32>
    %18 = tpu.reciprocal %17 {approx = true} : vector<4x4x1xf32> -> vector<4x4x1xf32>
    %19 = vector.broadcast %18 : vector<4x4x1xf32> to vector<4x4x4xf32>
    %20 = arith.mulf %15, %19 : vector<4x4x4xf32>
    "tpu.trace_start"() <{level = 10 : i32, message = "bqk,bkd->bqd"}> : () -> ()
    %cst_9 = arith.constant dense<0.000000e+00> : vector<4x4x16xf32>
    %21 = tpu.matmul %20, %4, %cst_9 {dimension_numbers = #tpu.dot_dimension_numbers<[2], [1], [1], [2], [0, 0, 0, 1, 1, 2], [0], [0]>} : vector<4x4x4xf32>, vector<4x4x16xf32>, vector<4x4x16xf32> -> vector<4x4x16xf32>
    "tpu.trace_stop"() : () -> ()
    %22 = vector.extract_strided_slice %0 {offsets = [0, 0, 16], sizes = [4, 4, 16], strides = [1, 1, 1]} : vector<4x4x96xf32> to vector<4x4x16xf32>
    %23 = vector.extract_strided_slice %0 {offsets = [0, 0, 48], sizes = [4, 4, 16], strides = [1, 1, 1]} : vector<4x4x96xf32> to vector<4x4x16xf32>
    %24 = vector.extract_strided_slice %0 {offsets = [0, 0, 80], sizes = [4, 4, 16], strides = [1, 1, 1]} : vector<4x4x96xf32> to vector<4x4x16xf32>
    "tpu.trace_start"() <{level = 10 : i32, message = "bqd,bkd->bqk"}> : () -> ()
    %cst_10 = arith.constant dense<0.000000e+00> : vector<4x4x4xf32>
    %25 = tpu.matmul %22, %23, %cst_10 {dimension_numbers = #tpu.dot_dimension_numbers<[2], [2], [1], [1], [0, 0, 0, 1, 1, 1], [0], [0]>} : vector<4x4x16xf32>, vector<4x4x16xf32>, vector<4x4x4xf32> -> vector<4x4x4xf32>
    "tpu.trace_stop"() : () -> ()
    %cst_11 = arith.constant 2.500000e-01 : f32
    %26 = vector.broadcast %cst_11 : f32 to vector<4x4x4xf32>
    %27 = arith.mulf %25, %26 : vector<4x4x4xf32>
    %28 = vector.extract_strided_slice %1 {offsets = [0, 1, 0, 0], sizes = [4, 1, 4, 4], strides = [1, 1, 1, 1]} : vector<4x2x4x4xf32> to vector<4x1x4x4xf32>
    %29 = vector.shape_cast %28 : vector<4x1x4x4xf32> to vector<4x4x4xf32>
    %30 = arith.addf %27, %29 : vector<4x4x4xf32>
    %cst_12 = arith.constant dense<0xFF800000> : vector<4x4xf32>
    %31 = vector.multi_reduction <maximumf>, %30, %cst_12 [2] : vector<4x4x4xf32> to vector<4x4xf32>
    %32 = vector.shape_cast %31 : vector<4x4xf32> to vector<4x4x1xf32>
    %33 = vector.broadcast %32 : vector<4x4x1xf32> to vector<4x4x4xf32>
    %34 = arith.subf %30, %33 : vector<4x4x4xf32>
    %35 = math.exp %34 : vector<4x4x4xf32>
    %cst_13 = arith.constant dense<0.000000e+00> : vector<4x4xf32>
    %36 = vector.multi_reduction <add>, %35, %cst_13 [2] : vector<4x4x4xf32> to vector<4x4xf32>
    %37 = vector.shape_cast %36 : vector<4x4xf32> to vector<4x4x1xf32>
    %38 = tpu.reciprocal %37 {approx = true} : vector<4x4x1xf32> -> vector<4x4x1xf32>
    %39 = vector.broadcast %38 : vector<4x4x1xf32> to vector<4x4x4xf32>
    %40 = arith.mulf %35, %39 : vector<4x4x4xf32>
    "tpu.trace_start"() <{level = 10 : i32, message = "bqk,bkd->bqd"}> : () -> ()
    %cst_14 = arith.constant dense<0.000000e+00> : vector<4x4x16xf32>
    %41 = tpu.matmul %40, %24, %cst_14 {dimension_numbers = #tpu.dot_dimension_numbers<[2], [1], [1], [2], [0, 0, 0, 1, 1, 2], [0], [0]>} : vector<4x4x4xf32>, vector<4x4x16xf32>, vector<4x4x16xf32> -> vector<4x4x16xf32>
    "tpu.trace_stop"() : () -> ()
    %42 = tpu.concatenate %21, %41 in 2 : vector<4x4x16xf32>, vector<4x4x16xf32> -> vector<4x4x32xf32>
    %c0_15 = arith.constant 0 : index
    %c0_16 = arith.constant 0 : index
    %c0_17 = arith.constant 0 : index
    %43 = vector.load %arg3[%c0_15, %c0_16, %c0_17] : memref<4x4x32xf32, #tpu.memory_space<vmem>>, vector<4x4x32xf32>
    tpu.vector_store %arg3[%c0_15, %c0_16, %c0_17], %42 {strides = array<i32>} : memref<4x4x32xf32, #tpu.memory_space<vmem>>, vector<4x4x32xf32>,
    return
  }
  func.func @transform_0(%arg0: i32) -> (i32, i32, i32) {
    %c0_i32 = arith.constant 0 : i32
    %c0_i32_0 = arith.constant 0 : i32
    %c0_i32_1 = arith.constant 0 : i32
    return %arg0, %c0_i32, %c0_i32_0 : i32, i32, i32
  }
  func.func @transform_1(%arg0: i32) -> (i32, i32, i32, i32) {
    %c1_i32 = arith.constant 1 : i32
    %c0_i32 = arith.constant 0 : i32
    %0 = arith.cmpi eq, %c1_i32, %c0_i32 : i32
    %c1_i32_0 = arith.constant 1 : i32
    %1 = arith.select %0, %c1_i32_0, %c1_i32 : i32
    %2 = arith.remsi %arg0, %1 : i32
    %c0_i32_1 = arith.constant 0 : i32
    %3 = arith.cmpi ne, %2, %c0_i32_1 : i32
    %c0_i32_2 = arith.constant 0 : i32
    %4 = arith.cmpi slt, %2, %c0_i32_2 : i32
    %c0_i32_3 = arith.constant 0 : i32
    %5 = arith.cmpi slt, %1, %c0_i32_3 : i32
    %6 = arith.xori %4, %5 : i1
    %7 = arith.andi %6, %3 : i1
    %8 = arith.addi %2, %1 : i32
    %9 = arith.select %7, %8, %2 : i32
    %c0_i32_4 = arith.constant 0 : i32
    %c0_i32_5 = arith.constant 0 : i32
    %c0_i32_6 = arith.constant 0 : i32
    %c0_i32_7 = arith.constant 0 : i32
    return %9, %c0_i32_4, %c0_i32_5, %c0_i32_6 : i32, i32, i32, i32
  }
  func.func @transform_2(%arg0: i32) -> (i32, i32, i32) {
    %c0_i32 = arith.constant 0 : i32
    %c0_i32_0 = arith.constant 0 : i32
    %c0_i32_1 = arith.constant 0 : i32
    return %arg0, %c0_i32, %c0_i32_0 : i32, i32, i32
  }
}

module attributes {stable_mosaic.version = 11 : i64} {
  func.func @_ln_linear_kernel(%arg0: i32, %arg1: memref<8x128xf32, #tpu.memory_space<vmem>>, %arg2: memref<1x128xf32, #tpu.memory_space<vmem>>, %arg3: memref<1x128xf32, #tpu.memory_space<vmem>>, %arg4: memref<128x64xf32, #tpu.memory_space<vmem>>, %arg5: memref<1x64xf32, #tpu.memory_space<vmem>>, %arg6: memref<8x64xf32, #tpu.memory_space<vmem>>) attributes {dimension_semantics = [#tpu.dimension_semantics<parallel>], iteration_bounds = array<i64: 1>, scalar_prefetch = 0 : i64, scratch_operands = 0 : i64, tpu.core_type = #tpu.core_type<tc>, window_params = [{transform_indices = @transform_0, window_bounds = array<i64: 8, 128>}, {pipeline_mode = #tpu.pipeline_mode<synchronous>, transform_indices = @transform_1, window_bounds = array<i64: 1, 128>}, {pipeline_mode = #tpu.pipeline_mode<synchronous>, transform_indices = @transform_2, window_bounds = array<i64: 1, 128>}, {pipeline_mode = #tpu.pipeline_mode<synchronous>, transform_indices = @transform_3, window_bounds = array<i64: 128, 64>}, {pipeline_mode = #tpu.pipeline_mode<synchronous>, transform_indices = @transform_4, window_bounds = array<i64: 1, 64>}, {transform_indices = @transform_5, window_bounds = array<i64: 8, 64>}]} {
    %c0 = arith.constant 0 : index
    %c0_0 = arith.constant 0 : index
    %0 = vector.load %arg1[%c0, %c0_0] : memref<8x128xf32, #tpu.memory_space<vmem>>, vector<8x128xf32>
    %c0_1 = arith.constant 0 : index
    %c0_2 = arith.constant 0 : index
    %1 = vector.load %arg2[%c0_1, %c0_2] : memref<1x128xf32, #tpu.memory_space<vmem>>, vector<1x128xf32>
    %c0_3 = arith.constant 0 : index
    %c0_4 = arith.constant 0 : index
    %2 = vector.load %arg3[%c0_3, %c0_4] : memref<1x128xf32, #tpu.memory_space<vmem>>, vector<1x128xf32>
    %cst = arith.constant dense<0.000000e+00> : vector<8xf32>
    %3 = vector.multi_reduction <add>, %0, %cst [1] : vector<8x128xf32> to vector<8xf32>
    %4 = vector.shape_cast %3 : vector<8xf32> to vector<8x1xf32>
    %cst_5 = arith.constant 1.280000e+02 : f32
    %5 = vector.broadcast %cst_5 : f32 to vector<8x1xf32>
    %6 = arith.divf %4, %5 : vector<8x1xf32>
    %7 = vector.broadcast %6 : vector<8x1xf32> to vector<8x128xf32>
    %8 = arith.subf %0, %7 : vector<8x128xf32>
    %9 = vector.broadcast %6 : vector<8x1xf32> to vector<8x128xf32>
    %10 = arith.subf %0, %9 : vector<8x128xf32>
    %11 = arith.mulf %8, %10 : vector<8x128xf32>
    %cst_6 = arith.constant dense<0.000000e+00> : vector<8xf32>
    %12 = vector.multi_reduction <add>, %11, %cst_6 [1] : vector<8x128xf32> to vector<8xf32>
    %13 = vector.shape_cast %12 : vector<8xf32> to vector<8x1xf32>
    %cst_7 = arith.constant 1.280000e+02 : f32
    %14 = vector.broadcast %cst_7 : f32 to vector<8x1xf32>
    %15 = arith.divf %13, %14 : vector<8x1xf32>
    %16 = vector.broadcast %6 : vector<8x1xf32> to vector<8x128xf32>
    %17 = arith.subf %0, %16 : vector<8x128xf32>
    %cst_8 = arith.constant 9.99999974E-6 : f32
    %18 = vector.broadcast %cst_8 : f32 to vector<8x1xf32>
    %19 = arith.addf %15, %18 : vector<8x1xf32>
    %20 = math.rsqrt %19 : vector<8x1xf32>
    %21 = vector.broadcast %20 : vector<8x1xf32> to vector<8x128xf32>
    %22 = arith.mulf %17, %21 : vector<8x128xf32>
    %23 = vector.broadcast %1 : vector<1x128xf32> to vector<8x128xf32>
    %24 = arith.mulf %22, %23 : vector<8x128xf32>
    %25 = vector.broadcast %2 : vector<1x128xf32> to vector<8x128xf32>
    %26 = arith.addf %24, %25 : vector<8x128xf32>
    %c0_9 = arith.constant 0 : index
    %c0_10 = arith.constant 0 : index
    %27 = vector.load %arg4[%c0_9, %c0_10] : memref<128x64xf32, #tpu.memory_space<vmem>>, vector<128x64xf32>
    %cst_11 = arith.constant dense<0.000000e+00> : vector<8x64xf32>
    %28 = tpu.matmul %26, %27, %cst_11 {dimension_numbers = #tpu.dot_dimension_numbers<[1], [0], [0], [1], [0, 0, 1, 1], [], []>} : vector<8x128xf32>, vector<128x64xf32>, vector<8x64xf32> -> vector<8x64xf32>
    %c0_12 = arith.constant 0 : index
    %c0_13 = arith.constant 0 : index
    %29 = vector.load %arg5[%c0_12, %c0_13] : memref<1x64xf32, #tpu.memory_space<vmem>>, vector<1x64xf32>
    %30 = vector.broadcast %29 : vector<1x64xf32> to vector<8x64xf32>
    %31 = arith.addf %28, %30 : vector<8x64xf32>
    %c0_14 = arith.constant 0 : index
    %c0_15 = arith.constant 0 : index
    %32 = vector.load %arg6[%c0_14, %c0_15] : memref<8x64xf32, #tpu.memory_space<vmem>>, vector<8x64xf32>
    tpu.vector_store %arg6[%c0_14, %c0_15], %31 {strides = array<i32>} : memref<8x64xf32, #tpu.memory_space<vmem>>, vector<8x64xf32>,
    return
  }
  func.func @transform_0(%arg0: i32) -> (i32, i32) {
    %c0_i32 = arith.constant 0 : i32
    %c0_i32_0 = arith.constant 0 : i32
    return %arg0, %c0_i32 : i32, i32
  }
  func.func @transform_1(%arg0: i32) -> (i32, i32) {
    %c0_i32 = arith.constant 0 : i32
    %c0_i32_0 = arith.constant 0 : i32
    %c0_i32_1 = arith.constant 0 : i32
    return %c0_i32, %c0_i32_0 : i32, i32
  }
  func.func @transform_2(%arg0: i32) -> (i32, i32) {
    %c0_i32 = arith.constant 0 : i32
    %c0_i32_0 = arith.constant 0 : i32
    %c0_i32_1 = arith.constant 0 : i32
    return %c0_i32, %c0_i32_0 : i32, i32
  }
  func.func @transform_3(%arg0: i32) -> (i32, i32) {
    %c0_i32 = arith.constant 0 : i32
    %c0_i32_0 = arith.constant 0 : i32
    %c0_i32_1 = arith.constant 0 : i32
    return %c0_i32, %c0_i32_0 : i32, i32
  }
  func.func @transform_4(%arg0: i32) -> (i32, i32) {
    %c0_i32 = arith.constant 0 : i32
    %c0_i32_0 = arith.constant 0 : i32
    %c0_i32_1 = arith.constant 0 : i32
    return %c0_i32, %c0_i32_0 : i32, i32
  }
  func.func @transform_5(%arg0: i32) -> (i32, i32) {
    %c0_i32 = arith.constant 0 : i32
    %c0_i32_0 = arith.constant 0 : i32
    return %arg0, %c0_i32 : i32, i32
  }
}

module attributes {stable_mosaic.version = 11 : i64} {
  func.func @_ln_linear_kernel(%arg0: i32, %arg1: memref<8x64xf32, #tpu.memory_space<vmem>>, %arg2: memref<1x64xf32, #tpu.memory_space<vmem>>, %arg3: memref<1x64xf32, #tpu.memory_space<vmem>>, %arg4: memref<64x192xf32, #tpu.memory_space<vmem>>, %arg5: memref<1x192xf32, #tpu.memory_space<vmem>>, %arg6: memref<8x192xf32, #tpu.memory_space<vmem>>) attributes {dimension_semantics = [#tpu.dimension_semantics<parallel>], iteration_bounds = array<i64: 1>, scalar_prefetch = 0 : i64, scratch_operands = 0 : i64, tpu.core_type = #tpu.core_type<tc>, window_params = [{transform_indices = @transform_0, window_bounds = array<i64: 8, 64>}, {pipeline_mode = #tpu.pipeline_mode<synchronous>, transform_indices = @transform_1, window_bounds = array<i64: 1, 64>}, {pipeline_mode = #tpu.pipeline_mode<synchronous>, transform_indices = @transform_2, window_bounds = array<i64: 1, 64>}, {pipeline_mode = #tpu.pipeline_mode<synchronous>, transform_indices = @transform_3, window_bounds = array<i64: 64, 192>}, {pipeline_mode = #tpu.pipeline_mode<synchronous>, transform_indices = @transform_4, window_bounds = array<i64: 1, 192>}, {transform_indices = @transform_5, window_bounds = array<i64: 8, 192>}]} {
    %c0 = arith.constant 0 : index
    %c0_0 = arith.constant 0 : index
    %0 = vector.load %arg1[%c0, %c0_0] : memref<8x64xf32, #tpu.memory_space<vmem>>, vector<8x64xf32>
    %c0_1 = arith.constant 0 : index
    %c0_2 = arith.constant 0 : index
    %1 = vector.load %arg2[%c0_1, %c0_2] : memref<1x64xf32, #tpu.memory_space<vmem>>, vector<1x64xf32>
    %c0_3 = arith.constant 0 : index
    %c0_4 = arith.constant 0 : index
    %2 = vector.load %arg3[%c0_3, %c0_4] : memref<1x64xf32, #tpu.memory_space<vmem>>, vector<1x64xf32>
    %cst = arith.constant dense<0.000000e+00> : vector<8xf32>
    %3 = vector.multi_reduction <add>, %0, %cst [1] : vector<8x64xf32> to vector<8xf32>
    %4 = vector.shape_cast %3 : vector<8xf32> to vector<8x1xf32>
    %cst_5 = arith.constant 6.400000e+01 : f32
    %5 = vector.broadcast %cst_5 : f32 to vector<8x1xf32>
    %6 = arith.divf %4, %5 : vector<8x1xf32>
    %7 = vector.broadcast %6 : vector<8x1xf32> to vector<8x64xf32>
    %8 = arith.subf %0, %7 : vector<8x64xf32>
    %9 = vector.broadcast %6 : vector<8x1xf32> to vector<8x64xf32>
    %10 = arith.subf %0, %9 : vector<8x64xf32>
    %11 = arith.mulf %8, %10 : vector<8x64xf32>
    %cst_6 = arith.constant dense<0.000000e+00> : vector<8xf32>
    %12 = vector.multi_reduction <add>, %11, %cst_6 [1] : vector<8x64xf32> to vector<8xf32>
    %13 = vector.shape_cast %12 : vector<8xf32> to vector<8x1xf32>
    %cst_7 = arith.constant 6.400000e+01 : f32
    %14 = vector.broadcast %cst_7 : f32 to vector<8x1xf32>
    %15 = arith.divf %13, %14 : vector<8x1xf32>
    %16 = vector.broadcast %6 : vector<8x1xf32> to vector<8x64xf32>
    %17 = arith.subf %0, %16 : vector<8x64xf32>
    %cst_8 = arith.constant 9.99999974E-6 : f32
    %18 = vector.broadcast %cst_8 : f32 to vector<8x1xf32>
    %19 = arith.addf %15, %18 : vector<8x1xf32>
    %20 = math.rsqrt %19 : vector<8x1xf32>
    %21 = vector.broadcast %20 : vector<8x1xf32> to vector<8x64xf32>
    %22 = arith.mulf %17, %21 : vector<8x64xf32>
    %23 = vector.broadcast %1 : vector<1x64xf32> to vector<8x64xf32>
    %24 = arith.mulf %22, %23 : vector<8x64xf32>
    %25 = vector.broadcast %2 : vector<1x64xf32> to vector<8x64xf32>
    %26 = arith.addf %24, %25 : vector<8x64xf32>
    %c0_9 = arith.constant 0 : index
    %c0_10 = arith.constant 0 : index
    %27 = vector.load %arg4[%c0_9, %c0_10] : memref<64x192xf32, #tpu.memory_space<vmem>>, vector<64x192xf32>
    %cst_11 = arith.constant dense<0.000000e+00> : vector<8x192xf32>
    %28 = tpu.matmul %26, %27, %cst_11 {dimension_numbers = #tpu.dot_dimension_numbers<[1], [0], [0], [1], [0, 0, 1, 1], [], []>} : vector<8x64xf32>, vector<64x192xf32>, vector<8x192xf32> -> vector<8x192xf32>
    %c0_12 = arith.constant 0 : index
    %c0_13 = arith.constant 0 : index
    %29 = vector.load %arg5[%c0_12, %c0_13] : memref<1x192xf32, #tpu.memory_space<vmem>>, vector<1x192xf32>
    %30 = vector.broadcast %29 : vector<1x192xf32> to vector<8x192xf32>
    %31 = arith.addf %28, %30 : vector<8x192xf32>
    %c0_14 = arith.constant 0 : index
    %c0_15 = arith.constant 0 : index
    %32 = vector.load %arg6[%c0_14, %c0_15] : memref<8x192xf32, #tpu.memory_space<vmem>>, vector<8x192xf32>
    tpu.vector_store %arg6[%c0_14, %c0_15], %31 {strides = array<i32>} : memref<8x192xf32, #tpu.memory_space<vmem>>, vector<8x192xf32>,
    return
  }
  func.func @transform_0(%arg0: i32) -> (i32, i32) {
    %c0_i32 = arith.constant 0 : i32
    %c0_i32_0 = arith.constant 0 : i32
    return %arg0, %c0_i32 : i32, i32
  }
  func.func @transform_1(%arg0: i32) -> (i32, i32) {
    %c0_i32 = arith.constant 0 : i32
    %c0_i32_0 = arith.constant 0 : i32
    %c0_i32_1 = arith.constant 0 : i32
    return %c0_i32, %c0_i32_0 : i32, i32
  }
  func.func @transform_2(%arg0: i32) -> (i32, i32) {
    %c0_i32 = arith.constant 0 : i32
    %c0_i32_0 = arith.constant 0 : i32
    %c0_i32_1 = arith.constant 0 : i32
    return %c0_i32, %c0_i32_0 : i32, i32
  }
  func.func @transform_3(%arg0: i32) -> (i32, i32) {
    %c0_i32 = arith.constant 0 : i32
    %c0_i32_0 = arith.constant 0 : i32
    %c0_i32_1 = arith.constant 0 : i32
    return %c0_i32, %c0_i32_0 : i32, i32
  }
  func.func @transform_4(%arg0: i32) -> (i32, i32) {
    %c0_i32 = arith.constant 0 : i32
    %c0_i32_0 = arith.constant 0 : i32
    %c0_i32_1 = arith.constant 0 : i32
    return %c0_i32, %c0_i32_0 : i32, i32
  }
  func.func @transform_5(%arg0: i32) -> (i32, i32) {
    %c0_i32 = arith.constant 0 : i32
    %c0_i32_0 = arith.constant 0 : i32
    return %arg0, %c0_i32 : i32, i32
  }
}

module attributes {stable_mosaic.version = 11 : i64} {
  func.func @_attn_kernel(%arg0: i32, %arg1: memref<2x4x192xf32, #tpu.memory_space<vmem>>, %arg2: memref<1x4x4x4xf32, #tpu.memory_space<vmem>>, %arg3: memref<2x4x64xf32, #tpu.memory_space<vmem>>) attributes {dimension_semantics = [#tpu.dimension_semantics<parallel>], iteration_bounds = array<i64: 1>, scalar_prefetch = 0 : i64, scratch_operands = 0 : i64, tpu.core_type = #tpu.core_type<tc>, window_params = [{transform_indices = @transform_0, window_bounds = array<i64: 2, 4, 192>}, {pipeline_mode = #tpu.pipeline_mode<synchronous>, transform_indices = @transform_1, window_bounds = array<i64: 1, 4, 4, 4>}, {transform_indices = @transform_2, window_bounds = array<i64: 2, 4, 64>}]} {
    %c0 = arith.constant 0 : index
    %c0_0 = arith.constant 0 : index
    %c0_1 = arith.constant 0 : index
    %0 = vector.load %arg1[%c0, %c0_0, %c0_1] : memref<2x4x192xf32, #tpu.memory_space<vmem>>, vector<2x4x192xf32>
    %c0_2 = arith.constant 0 : index
    %c0_3 = arith.constant 0 : index
    %c0_4 = arith.constant 0 : index
    %c0_5 = arith.constant 0 : index
    %1 = vector.load %arg2[%c0_2, %c0_3, %c0_4, %c0_5] : memref<1x4x4x4xf32, #tpu.memory_space<vmem>>, vector<1x4x4x4xf32>
    %2 = vector.extract_strided_slice %0 {offsets = [0, 0, 0], sizes = [2, 4, 16], strides = [1, 1, 1]} : vector<2x4x192xf32> to vector<2x4x16xf32>
    %3 = vector.extract_strided_slice %0 {offsets = [0, 0, 64], sizes = [2, 4, 16], strides = [1, 1, 1]} : vector<2x4x192xf32> to vector<2x4x16xf32>
    %4 = vector.extract_strided_slice %0 {offsets = [0, 0, 128], sizes = [2, 4, 16], strides = [1, 1, 1]} : vector<2x4x192xf32> to vector<2x4x16xf32>
    "tpu.trace_start"() <{level = 10 : i32, message = "bqd,bkd->bqk"}> : () -> ()
    %cst = arith.constant dense<0.000000e+00> : vector<2x4x4xf32>
    %5 = tpu.matmul %2, %3, %cst {dimension_numbers = #tpu.dot_dimension_numbers<[2], [2], [1], [1], [0, 0, 0, 1, 1, 1], [0], [0]>} : vector<2x4x16xf32>, vector<2x4x16xf32>, vector<2x4x4xf32> -> vector<2x4x4xf32>
    "tpu.trace_stop"() : () -> ()
    %cst_6 = arith.constant 2.500000e-01 : f32
    %6 = vector.broadcast %cst_6 : f32 to vector<2x4x4xf32>
    %7 = arith.mulf %5, %6 : vector<2x4x4xf32>
    %8 = vector.extract_strided_slice %1 {offsets = [0, 0, 0, 0], sizes = [1, 1, 4, 4], strides = [1, 1, 1, 1]} : vector<1x4x4x4xf32> to vector<1x1x4x4xf32>
    %9 = vector.shape_cast %8 : vector<1x1x4x4xf32> to vector<1x4x4xf32>
    %10 = vector.broadcast %9 : vector<1x4x4xf32> to vector<2x4x4xf32>
    %11 = arith.addf %7, %10 : vector<2x4x4xf32>
    %cst_7 = arith.constant dense<0xFF800000> : vector<2x4xf32>
    %12 = vector.multi_reduction <maximumf>, %11, %cst_7 [2] : vector<2x4x4xf32> to vector<2x4xf32>
    %13 = vector.shape_cast %12 : vector<2x4xf32> to vector<2x4x1xf32>
    %14 = vector.broadcast %13 : vector<2x4x1xf32> to vector<2x4x4xf32>
    %15 = arith.subf %11, %14 : vector<2x4x4xf32>
    %16 = math.exp %15 : vector<2x4x4xf32>
    %cst_8 = arith.constant dense<0.000000e+00> : vector<2x4xf32>
    %17 = vector.multi_reduction <add>, %16, %cst_8 [2] : vector<2x4x4xf32> to vector<2x4xf32>
    %18 = vector.shape_cast %17 : vector<2x4xf32> to vector<2x4x1xf32>
    %19 = tpu.reciprocal %18 {approx = true} : vector<2x4x1xf32> -> vector<2x4x1xf32>
    %20 = vector.broadcast %19 : vector<2x4x1xf32> to vector<2x4x4xf32>
    %21 = arith.mulf %16, %20 : vector<2x4x4xf32>
    "tpu.trace_start"() <{level = 10 : i32, message = "bqk,bkd->bqd"}> : () -> ()
    %cst_9 = arith.constant dense<0.000000e+00> : vector<2x4x16xf32>
    %22 = tpu.matmul %21, %4, %cst_9 {dimension_numbers = #tpu.dot_dimension_numbers<[2], [1], [1], [2], [0, 0, 0, 1, 1, 2], [0], [0]>} : vector<2x4x4xf32>, vector<2x4x16xf32>, vector<2x4x16xf32> -> vector<2x4x16xf32>
    "tpu.trace_stop"() : () -> ()
    %23 = vector.extract_strided_slice %0 {offsets = [0, 0, 16], sizes = [2, 4, 16], strides = [1, 1, 1]} : vector<2x4x192xf32> to vector<2x4x16xf32>
    %24 = vector.extract_strided_slice %0 {offsets = [0, 0, 80], sizes = [2, 4, 16], strides = [1, 1, 1]} : vector<2x4x192xf32> to vector<2x4x16xf32>
    %25 = vector.extract_strided_slice %0 {offsets = [0, 0, 144], sizes = [2, 4, 16], strides = [1, 1, 1]} : vector<2x4x192xf32> to vector<2x4x16xf32>
    "tpu.trace_start"() <{level = 10 : i32, message = "bqd,bkd->bqk"}> : () -> ()
    %cst_10 = arith.constant dense<0.000000e+00> : vector<2x4x4xf32>
    %26 = tpu.matmul %23, %24, %cst_10 {dimension_numbers = #tpu.dot_dimension_numbers<[2], [2], [1], [1], [0, 0, 0, 1, 1, 1], [0], [0]>} : vector<2x4x16xf32>, vector<2x4x16xf32>, vector<2x4x4xf32> -> vector<2x4x4xf32>
    "tpu.trace_stop"() : () -> ()
    %cst_11 = arith.constant 2.500000e-01 : f32
    %27 = vector.broadcast %cst_11 : f32 to vector<2x4x4xf32>
    %28 = arith.mulf %26, %27 : vector<2x4x4xf32>
    %29 = vector.extract_strided_slice %1 {offsets = [0, 1, 0, 0], sizes = [1, 1, 4, 4], strides = [1, 1, 1, 1]} : vector<1x4x4x4xf32> to vector<1x1x4x4xf32>
    %30 = vector.shape_cast %29 : vector<1x1x4x4xf32> to vector<1x4x4xf32>
    %31 = vector.broadcast %30 : vector<1x4x4xf32> to vector<2x4x4xf32>
    %32 = arith.addf %28, %31 : vector<2x4x4xf32>
    %cst_12 = arith.constant dense<0xFF800000> : vector<2x4xf32>
    %33 = vector.multi_reduction <maximumf>, %32, %cst_12 [2] : vector<2x4x4xf32> to vector<2x4xf32>
    %34 = vector.shape_cast %33 : vector<2x4xf32> to vector<2x4x1xf32>
    %35 = vector.broadcast %34 : vector<2x4x1xf32> to vector<2x4x4xf32>
    %36 = arith.subf %32, %35 : vector<2x4x4xf32>
    %37 = math.exp %36 : vector<2x4x4xf32>
    %cst_13 = arith.constant dense<0.000000e+00> : vector<2x4xf32>
    %38 = vector.multi_reduction <add>, %37, %cst_13 [2] : vector<2x4x4xf32> to vector<2x4xf32>
    %39 = vector.shape_cast %38 : vector<2x4xf32> to vector<2x4x1xf32>
    %40 = tpu.reciprocal %39 {approx = true} : vector<2x4x1xf32> -> vector<2x4x1xf32>
    %41 = vector.broadcast %40 : vector<2x4x1xf32> to vector<2x4x4xf32>
    %42 = arith.mulf %37, %41 : vector<2x4x4xf32>
    "tpu.trace_start"() <{level = 10 : i32, message = "bqk,bkd->bqd"}> : () -> ()
    %cst_14 = arith.constant dense<0.000000e+00> : vector<2x4x16xf32>
    %43 = tpu.matmul %42, %25, %cst_14 {dimension_numbers = #tpu.dot_dimension_numbers<[2], [1], [1], [2], [0, 0, 0, 1, 1, 2], [0], [0]>} : vector<2x4x4xf32>, vector<2x4x16xf32>, vector<2x4x16xf32> -> vector<2x4x16xf32>
    "tpu.trace_stop"() : () -> ()
    %44 = vector.extract_strided_slice %0 {offsets = [0, 0, 32], sizes = [2, 4, 16], strides = [1, 1, 1]} : vector<2x4x192xf32> to vector<2x4x16xf32>
    %45 = vector.extract_strided_slice %0 {offsets = [0, 0, 96], sizes = [2, 4, 16], strides = [1, 1, 1]} : vector<2x4x192xf32> to vector<2x4x16xf32>
    %46 = vector.extract_strided_slice %0 {offsets = [0, 0, 160], sizes = [2, 4, 16], strides = [1, 1, 1]} : vector<2x4x192xf32> to vector<2x4x16xf32>
    "tpu.trace_start"() <{level = 10 : i32, message = "bqd,bkd->bqk"}> : () -> ()
    %cst_15 = arith.constant dense<0.000000e+00> : vector<2x4x4xf32>
    %47 = tpu.matmul %44, %45, %cst_15 {dimension_numbers = #tpu.dot_dimension_numbers<[2], [2], [1], [1], [0, 0, 0, 1, 1, 1], [0], [0]>} : vector<2x4x16xf32>, vector<2x4x16xf32>, vector<2x4x4xf32> -> vector<2x4x4xf32>
    "tpu.trace_stop"() : () -> ()
    %cst_16 = arith.constant 2.500000e-01 : f32
    %48 = vector.broadcast %cst_16 : f32 to vector<2x4x4xf32>
    %49 = arith.mulf %47, %48 : vector<2x4x4xf32>
    %50 = vector.extract_strided_slice %1 {offsets = [0, 2, 0, 0], sizes = [1, 1, 4, 4], strides = [1, 1, 1, 1]} : vector<1x4x4x4xf32> to vector<1x1x4x4xf32>
    %51 = vector.shape_cast %50 : vector<1x1x4x4xf32> to vector<1x4x4xf32>
    %52 = vector.broadcast %51 : vector<1x4x4xf32> to vector<2x4x4xf32>
    %53 = arith.addf %49, %52 : vector<2x4x4xf32>
    %cst_17 = arith.constant dense<0xFF800000> : vector<2x4xf32>
    %54 = vector.multi_reduction <maximumf>, %53, %cst_17 [2] : vector<2x4x4xf32> to vector<2x4xf32>
    %55 = vector.shape_cast %54 : vector<2x4xf32> to vector<2x4x1xf32>
    %56 = vector.broadcast %55 : vector<2x4x1xf32> to vector<2x4x4xf32>
    %57 = arith.subf %53, %56 : vector<2x4x4xf32>
    %58 = math.exp %57 : vector<2x4x4xf32>
    %cst_18 = arith.constant dense<0.000000e+00> : vector<2x4xf32>
    %59 = vector.multi_reduction <add>, %58, %cst_18 [2] : vector<2x4x4xf32> to vector<2x4xf32>
    %60 = vector.shape_cast %59 : vector<2x4xf32> to vector<2x4x1xf32>
    %61 = tpu.reciprocal %60 {approx = true} : vector<2x4x1xf32> -> vector<2x4x1xf32>
    %62 = vector.broadcast %61 : vector<2x4x1xf32> to vector<2x4x4xf32>
    %63 = arith.mulf %58, %62 : vector<2x4x4xf32>
    "tpu.trace_start"() <{level = 10 : i32, message = "bqk,bkd->bqd"}> : () -> ()
    %cst_19 = arith.constant dense<0.000000e+00> : vector<2x4x16xf32>
    %64 = tpu.matmul %63, %46, %cst_19 {dimension_numbers = #tpu.dot_dimension_numbers<[2], [1], [1], [2], [0, 0, 0, 1, 1, 2], [0], [0]>} : vector<2x4x4xf32>, vector<2x4x16xf32>, vector<2x4x16xf32> -> vector<2x4x16xf32>
    "tpu.trace_stop"() : () -> ()
    %65 = vector.extract_strided_slice %0 {offsets = [0, 0, 48], sizes = [2, 4, 16], strides = [1, 1, 1]} : vector<2x4x192xf32> to vector<2x4x16xf32>
    %66 = vector.extract_strided_slice %0 {offsets = [0, 0, 112], sizes = [2, 4, 16], strides = [1, 1, 1]} : vector<2x4x192xf32> to vector<2x4x16xf32>
    %67 = vector.extract_strided_slice %0 {offsets = [0, 0, 176], sizes = [2, 4, 16], strides = [1, 1, 1]} : vector<2x4x192xf32> to vector<2x4x16xf32>
    "tpu.trace_start"() <{level = 10 : i32, message = "bqd,bkd->bqk"}> : () -> ()
    %cst_20 = arith.constant dense<0.000000e+00> : vector<2x4x4xf32>
    %68 = tpu.matmul %65, %66, %cst_20 {dimension_numbers = #tpu.dot_dimension_numbers<[2], [2], [1], [1], [0, 0, 0, 1, 1, 1], [0], [0]>} : vector<2x4x16xf32>, vector<2x4x16xf32>, vector<2x4x4xf32> -> vector<2x4x4xf32>
    "tpu.trace_stop"() : () -> ()
    %cst_21 = arith.constant 2.500000e-01 : f32
    %69 = vector.broadcast %cst_21 : f32 to vector<2x4x4xf32>
    %70 = arith.mulf %68, %69 : vector<2x4x4xf32>
    %71 = vector.extract_strided_slice %1 {offsets = [0, 3, 0, 0], sizes = [1, 1, 4, 4], strides = [1, 1, 1, 1]} : vector<1x4x4x4xf32> to vector<1x1x4x4xf32>
    %72 = vector.shape_cast %71 : vector<1x1x4x4xf32> to vector<1x4x4xf32>
    %73 = vector.broadcast %72 : vector<1x4x4xf32> to vector<2x4x4xf32>
    %74 = arith.addf %70, %73 : vector<2x4x4xf32>
    %cst_22 = arith.constant dense<0xFF800000> : vector<2x4xf32>
    %75 = vector.multi_reduction <maximumf>, %74, %cst_22 [2] : vector<2x4x4xf32> to vector<2x4xf32>
    %76 = vector.shape_cast %75 : vector<2x4xf32> to vector<2x4x1xf32>
    %77 = vector.broadcast %76 : vector<2x4x1xf32> to vector<2x4x4xf32>
    %78 = arith.subf %74, %77 : vector<2x4x4xf32>
    %79 = math.exp %78 : vector<2x4x4xf32>
    %cst_23 = arith.constant dense<0.000000e+00> : vector<2x4xf32>
    %80 = vector.multi_reduction <add>, %79, %cst_23 [2] : vector<2x4x4xf32> to vector<2x4xf32>
    %81 = vector.shape_cast %80 : vector<2x4xf32> to vector<2x4x1xf32>
    %82 = tpu.reciprocal %81 {approx = true} : vector<2x4x1xf32> -> vector<2x4x1xf32>
    %83 = vector.broadcast %82 : vector<2x4x1xf32> to vector<2x4x4xf32>
    %84 = arith.mulf %79, %83 : vector<2x4x4xf32>
    "tpu.trace_start"() <{level = 10 : i32, message = "bqk,bkd->bqd"}> : () -> ()
    %cst_24 = arith.constant dense<0.000000e+00> : vector<2x4x16xf32>
    %85 = tpu.matmul %84, %67, %cst_24 {dimension_numbers = #tpu.dot_dimension_numbers<[2], [1], [1], [2], [0, 0, 0, 1, 1, 2], [0], [0]>} : vector<2x4x4xf32>, vector<2x4x16xf32>, vector<2x4x16xf32> -> vector<2x4x16xf32>
    "tpu.trace_stop"() : () -> ()
    %86 = tpu.concatenate %22, %43, %64, %85 in 2 : vector<2x4x16xf32>, vector<2x4x16xf32>, vector<2x4x16xf32>, vector<2x4x16xf32> -> vector<2x4x64xf32>
    %c0_25 = arith.constant 0 : index
    %c0_26 = arith.constant 0 : index
    %c0_27 = arith.constant 0 : index
    %87 = vector.load %arg3[%c0_25, %c0_26, %c0_27] : memref<2x4x64xf32, #tpu.memory_space<vmem>>, vector<2x4x64xf32>
    tpu.vector_store %arg3[%c0_25, %c0_26, %c0_27], %86 {strides = array<i32>} : memref<2x4x64xf32, #tpu.memory_space<vmem>>, vector<2x4x64xf32>,
    return
  }
  func.func @transform_0(%arg0: i32) -> (i32, i32, i32) {
    %c0_i32 = arith.constant 0 : i32
    %c0_i32_0 = arith.constant 0 : i32
    %c0_i32_1 = arith.constant 0 : i32
    return %arg0, %c0_i32, %c0_i32_0 : i32, i32, i32
  }
  func.func @transform_1(%arg0: i32) -> (i32, i32, i32, i32) {
    %c0_i32 = arith.constant 0 : i32
    %c0_i32_0 = arith.constant 0 : i32
    %c0_i32_1 = arith.constant 0 : i32
    %c0_i32_2 = arith.constant 0 : i32
    %c0_i32_3 = arith.constant 0 : i32
    return %c0_i32, %c0_i32_0, %c0_i32_1, %c0_i32_2 : i32, i32, i32, i32
  }
  func.func @transform_2(%arg0: i32) -> (i32, i32, i32) {
    %c0_i32 = arith.constant 0 : i32
    %c0_i32_0 = arith.constant 0 : i32
    %c0_i32_1 = arith.constant 0 : i32
    return %arg0, %c0_i32, %c0_i32_0 : i32, i32, i32
  }
}

module attributes {stable_mosaic.version = 11 : i64} {
  func.func @_ln_linear_kernel(%arg0: i32, %arg1: memref<8x64xf32, #tpu.memory_space<vmem>>, %arg2: memref<1x64xf32, #tpu.memory_space<vmem>>, %arg3: memref<1x64xf32, #tpu.memory_space<vmem>>, %arg4: memref<64x256xf32, #tpu.memory_space<vmem>>, %arg5: memref<1x256xf32, #tpu.memory_space<vmem>>, %arg6: memref<8x256xf32, #tpu.memory_space<vmem>>) attributes {dimension_semantics = [#tpu.dimension_semantics<parallel>], iteration_bounds = array<i64: 1>, scalar_prefetch = 0 : i64, scratch_operands = 0 : i64, tpu.core_type = #tpu.core_type<tc>, window_params = [{transform_indices = @transform_0, window_bounds = array<i64: 8, 64>}, {pipeline_mode = #tpu.pipeline_mode<synchronous>, transform_indices = @transform_1, window_bounds = array<i64: 1, 64>}, {pipeline_mode = #tpu.pipeline_mode<synchronous>, transform_indices = @transform_2, window_bounds = array<i64: 1, 64>}, {pipeline_mode = #tpu.pipeline_mode<synchronous>, transform_indices = @transform_3, window_bounds = array<i64: 64, 256>}, {pipeline_mode = #tpu.pipeline_mode<synchronous>, transform_indices = @transform_4, window_bounds = array<i64: 1, 256>}, {transform_indices = @transform_5, window_bounds = array<i64: 8, 256>}]} {
    %c0 = arith.constant 0 : index
    %c0_0 = arith.constant 0 : index
    %0 = vector.load %arg1[%c0, %c0_0] : memref<8x64xf32, #tpu.memory_space<vmem>>, vector<8x64xf32>
    %c0_1 = arith.constant 0 : index
    %c0_2 = arith.constant 0 : index
    %1 = vector.load %arg2[%c0_1, %c0_2] : memref<1x64xf32, #tpu.memory_space<vmem>>, vector<1x64xf32>
    %c0_3 = arith.constant 0 : index
    %c0_4 = arith.constant 0 : index
    %2 = vector.load %arg3[%c0_3, %c0_4] : memref<1x64xf32, #tpu.memory_space<vmem>>, vector<1x64xf32>
    %cst = arith.constant dense<0.000000e+00> : vector<8xf32>
    %3 = vector.multi_reduction <add>, %0, %cst [1] : vector<8x64xf32> to vector<8xf32>
    %4 = vector.shape_cast %3 : vector<8xf32> to vector<8x1xf32>
    %cst_5 = arith.constant 6.400000e+01 : f32
    %5 = vector.broadcast %cst_5 : f32 to vector<8x1xf32>
    %6 = arith.divf %4, %5 : vector<8x1xf32>
    %7 = vector.broadcast %6 : vector<8x1xf32> to vector<8x64xf32>
    %8 = arith.subf %0, %7 : vector<8x64xf32>
    %9 = vector.broadcast %6 : vector<8x1xf32> to vector<8x64xf32>
    %10 = arith.subf %0, %9 : vector<8x64xf32>
    %11 = arith.mulf %8, %10 : vector<8x64xf32>
    %cst_6 = arith.constant dense<0.000000e+00> : vector<8xf32>
    %12 = vector.multi_reduction <add>, %11, %cst_6 [1] : vector<8x64xf32> to vector<8xf32>
    %13 = vector.shape_cast %12 : vector<8xf32> to vector<8x1xf32>
    %cst_7 = arith.constant 6.400000e+01 : f32
    %14 = vector.broadcast %cst_7 : f32 to vector<8x1xf32>
    %15 = arith.divf %13, %14 : vector<8x1xf32>
    %16 = vector.broadcast %6 : vector<8x1xf32> to vector<8x64xf32>
    %17 = arith.subf %0, %16 : vector<8x64xf32>
    %cst_8 = arith.constant 9.99999974E-6 : f32
    %18 = vector.broadcast %cst_8 : f32 to vector<8x1xf32>
    %19 = arith.addf %15, %18 : vector<8x1xf32>
    %20 = math.rsqrt %19 : vector<8x1xf32>
    %21 = vector.broadcast %20 : vector<8x1xf32> to vector<8x64xf32>
    %22 = arith.mulf %17, %21 : vector<8x64xf32>
    %23 = vector.broadcast %1 : vector<1x64xf32> to vector<8x64xf32>
    %24 = arith.mulf %22, %23 : vector<8x64xf32>
    %25 = vector.broadcast %2 : vector<1x64xf32> to vector<8x64xf32>
    %26 = arith.addf %24, %25 : vector<8x64xf32>
    %c0_9 = arith.constant 0 : index
    %c0_10 = arith.constant 0 : index
    %27 = vector.load %arg4[%c0_9, %c0_10] : memref<64x256xf32, #tpu.memory_space<vmem>>, vector<64x256xf32>
    %cst_11 = arith.constant dense<0.000000e+00> : vector<8x256xf32>
    %28 = tpu.matmul %26, %27, %cst_11 {dimension_numbers = #tpu.dot_dimension_numbers<[1], [0], [0], [1], [0, 0, 1, 1], [], []>} : vector<8x64xf32>, vector<64x256xf32>, vector<8x256xf32> -> vector<8x256xf32>
    %c0_12 = arith.constant 0 : index
    %c0_13 = arith.constant 0 : index
    %29 = vector.load %arg5[%c0_12, %c0_13] : memref<1x256xf32, #tpu.memory_space<vmem>>, vector<1x256xf32>
    %30 = vector.broadcast %29 : vector<1x256xf32> to vector<8x256xf32>
    %31 = arith.addf %28, %30 : vector<8x256xf32>
    %c0_14 = arith.constant 0 : index
    %c0_15 = arith.constant 0 : index
    %32 = vector.load %arg6[%c0_14, %c0_15] : memref<8x256xf32, #tpu.memory_space<vmem>>, vector<8x256xf32>
    tpu.vector_store %arg6[%c0_14, %c0_15], %31 {strides = array<i32>} : memref<8x256xf32, #tpu.memory_space<vmem>>, vector<8x256xf32>,
    return
  }
  func.func @transform_0(%arg0: i32) -> (i32, i32) {
    %c0_i32 = arith.constant 0 : i32
    %c0_i32_0 = arith.constant 0 : i32
    return %arg0, %c0_i32 : i32, i32
  }
  func.func @transform_1(%arg0: i32) -> (i32, i32) {
    %c0_i32 = arith.constant 0 : i32
    %c0_i32_0 = arith.constant 0 : i32
    %c0_i32_1 = arith.constant 0 : i32
    return %c0_i32, %c0_i32_0 : i32, i32
  }
  func.func @transform_2(%arg0: i32) -> (i32, i32) {
    %c0_i32 = arith.constant 0 : i32
    %c0_i32_0 = arith.constant 0 : i32
    %c0_i32_1 = arith.constant 0 : i32
    return %c0_i32, %c0_i32_0 : i32, i32
  }
  func.func @transform_3(%arg0: i32) -> (i32, i32) {
    %c0_i32 = arith.constant 0 : i32
    %c0_i32_0 = arith.constant 0 : i32
    %c0_i32_1 = arith.constant 0 : i32
    return %c0_i32, %c0_i32_0 : i32, i32
  }
  func.func @transform_4(%arg0: i32) -> (i32, i32) {
    %c0_i32 = arith.constant 0 : i32
    %c0_i32_0 = arith.constant 0 : i32
    %c0_i32_1 = arith.constant 0 : i32
    return %c0_i32, %c0_i32_0 : i32, i32
  }
  func.func @transform_5(%arg0: i32) -> (i32, i32) {
    %c0_i32 = arith.constant 0 : i32
    %c0_i32_0 = arith.constant 0 : i32
    return %arg0, %c0_i32 : i32, i32
  }
}

module attributes {stable_mosaic.version = 11 : i64} {
  func.func @_linear_kernel(%arg0: i32, %arg1: memref<8x64xf32, #tpu.memory_space<vmem>>, %arg2: memref<64x64xf32, #tpu.memory_space<vmem>>, %arg3: memref<1x64xf32, #tpu.memory_space<vmem>>, %arg4: memref<8x64xf32, #tpu.memory_space<vmem>>) attributes {dimension_semantics = [#tpu.dimension_semantics<parallel>], iteration_bounds = array<i64: 1>, scalar_prefetch = 0 : i64, scratch_operands = 0 : i64, tpu.core_type = #tpu.core_type<tc>, window_params = [{transform_indices = @transform_0, window_bounds = array<i64: 8, 64>}, {pipeline_mode = #tpu.pipeline_mode<synchronous>, transform_indices = @transform_1, window_bounds = array<i64: 64, 64>}, {pipeline_mode = #tpu.pipeline_mode<synchronous>, transform_indices = @transform_2, window_bounds = array<i64: 1, 64>}, {transform_indices = @transform_3, window_bounds = array<i64: 8, 64>}]} {
    %c0 = arith.constant 0 : index
    %c0_0 = arith.constant 0 : index
    %0 = vector.load %arg1[%c0, %c0_0] : memref<8x64xf32, #tpu.memory_space<vmem>>, vector<8x64xf32>
    %c0_1 = arith.constant 0 : index
    %c0_2 = arith.constant 0 : index
    %1 = vector.load %arg2[%c0_1, %c0_2] : memref<64x64xf32, #tpu.memory_space<vmem>>, vector<64x64xf32>
    %cst = arith.constant dense<0.000000e+00> : vector<8x64xf32>
    %2 = tpu.matmul %0, %1, %cst {dimension_numbers = #tpu.dot_dimension_numbers<[1], [0], [0], [1], [0, 0, 1, 1], [], []>} : vector<8x64xf32>, vector<64x64xf32>, vector<8x64xf32> -> vector<8x64xf32>
    %c0_3 = arith.constant 0 : index
    %c0_4 = arith.constant 0 : index
    %3 = vector.load %arg3[%c0_3, %c0_4] : memref<1x64xf32, #tpu.memory_space<vmem>>, vector<1x64xf32>
    %4 = vector.broadcast %3 : vector<1x64xf32> to vector<8x64xf32>
    %5 = arith.addf %2, %4 : vector<8x64xf32>
    %c0_5 = arith.constant 0 : index
    %c0_6 = arith.constant 0 : index
    %6 = vector.load %arg4[%c0_5, %c0_6] : memref<8x64xf32, #tpu.memory_space<vmem>>, vector<8x64xf32>
    tpu.vector_store %arg4[%c0_5, %c0_6], %5 {strides = array<i32>} : memref<8x64xf32, #tpu.memory_space<vmem>>, vector<8x64xf32>,
    return
  }
  func.func @transform_0(%arg0: i32) -> (i32, i32) {
    %c0_i32 = arith.constant 0 : i32
    %c0_i32_0 = arith.constant 0 : i32
    return %arg0, %c0_i32 : i32, i32
  }
  func.func @transform_1(%arg0: i32) -> (i32, i32) {
    %c0_i32 = arith.constant 0 : i32
    %c0_i32_0 = arith.constant 0 : i32
    %c0_i32_1 = arith.constant 0 : i32
    return %c0_i32, %c0_i32_0 : i32, i32
  }
  func.func @transform_2(%arg0: i32) -> (i32, i32) {
    %c0_i32 = arith.constant 0 : i32
    %c0_i32_0 = arith.constant 0 : i32
    %c0_i32_1 = arith.constant 0 : i32
    return %c0_i32, %c0_i32_0 : i32, i32
  }
  func.func @transform_3(%arg0: i32) -> (i32, i32) {
    %c0_i32 = arith.constant 0 : i32
    %c0_i32_0 = arith.constant 0 : i32
    return %arg0, %c0_i32 : i32, i32
  }
}

module attributes {stable_mosaic.version = 11 : i64} {
  func.func @_linear_add_kernel(%arg0: i32, %arg1: memref<8x256xf32, #tpu.memory_space<vmem>>, %arg2: memref<256x64xf32, #tpu.memory_space<vmem>>, %arg3: memref<1x64xf32, #tpu.memory_space<vmem>>, %arg4: memref<8x64xf32, #tpu.memory_space<vmem>>, %arg5: memref<8x64xf32, #tpu.memory_space<vmem>>) attributes {dimension_semantics = [#tpu.dimension_semantics<parallel>], iteration_bounds = array<i64: 1>, scalar_prefetch = 0 : i64, scratch_operands = 0 : i64, tpu.core_type = #tpu.core_type<tc>, window_params = [{transform_indices = @transform_0, window_bounds = array<i64: 8, 256>}, {pipeline_mode = #tpu.pipeline_mode<synchronous>, transform_indices = @transform_1, window_bounds = array<i64: 256, 64>}, {pipeline_mode = #tpu.pipeline_mode<synchronous>, transform_indices = @transform_2, window_bounds = array<i64: 1, 64>}, {transform_indices = @transform_3, window_bounds = array<i64: 8, 64>}, {transform_indices = @transform_4, window_bounds = array<i64: 8, 64>}]} {
    %c0 = arith.constant 0 : index
    %c0_0 = arith.constant 0 : index
    %0 = vector.load %arg1[%c0, %c0_0] : memref<8x256xf32, #tpu.memory_space<vmem>>, vector<8x256xf32>
    %c0_1 = arith.constant 0 : index
    %c0_2 = arith.constant 0 : index
    %1 = vector.load %arg2[%c0_1, %c0_2] : memref<256x64xf32, #tpu.memory_space<vmem>>, vector<256x64xf32>
    %cst = arith.constant dense<0.000000e+00> : vector<8x64xf32>
    %2 = tpu.matmul %0, %1, %cst {dimension_numbers = #tpu.dot_dimension_numbers<[1], [0], [0], [1], [0, 0, 1, 1], [], []>} : vector<8x256xf32>, vector<256x64xf32>, vector<8x64xf32> -> vector<8x64xf32>
    %c0_3 = arith.constant 0 : index
    %c0_4 = arith.constant 0 : index
    %3 = vector.load %arg3[%c0_3, %c0_4] : memref<1x64xf32, #tpu.memory_space<vmem>>, vector<1x64xf32>
    %4 = vector.broadcast %3 : vector<1x64xf32> to vector<8x64xf32>
    %5 = arith.addf %2, %4 : vector<8x64xf32>
    %c0_5 = arith.constant 0 : index
    %c0_6 = arith.constant 0 : index
    %6 = vector.load %arg4[%c0_5, %c0_6] : memref<8x64xf32, #tpu.memory_space<vmem>>, vector<8x64xf32>
    %7 = arith.addf %5, %6 : vector<8x64xf32>
    %c0_7 = arith.constant 0 : index
    %c0_8 = arith.constant 0 : index
    %8 = vector.load %arg5[%c0_7, %c0_8] : memref<8x64xf32, #tpu.memory_space<vmem>>, vector<8x64xf32>
    tpu.vector_store %arg5[%c0_7, %c0_8], %7 {strides = array<i32>} : memref<8x64xf32, #tpu.memory_space<vmem>>, vector<8x64xf32>,
    return
  }
  func.func @transform_0(%arg0: i32) -> (i32, i32) {
    %c0_i32 = arith.constant 0 : i32
    %c0_i32_0 = arith.constant 0 : i32
    return %arg0, %c0_i32 : i32, i32
  }
  func.func @transform_1(%arg0: i32) -> (i32, i32) {
    %c0_i32 = arith.constant 0 : i32
    %c0_i32_0 = arith.constant 0 : i32
    %c0_i32_1 = arith.constant 0 : i32
    return %c0_i32, %c0_i32_0 : i32, i32
  }
  func.func @transform_2(%arg0: i32) -> (i32, i32) {
    %c0_i32 = arith.constant 0 : i32
    %c0_i32_0 = arith.constant 0 : i32
    %c0_i32_1 = arith.constant 0 : i32
    return %c0_i32, %c0_i32_0 : i32, i32
  }
  func.func @transform_3(%arg0: i32) -> (i32, i32) {
    %c0_i32 = arith.constant 0 : i32
    %c0_i32_0 = arith.constant 0 : i32
    return %arg0, %c0_i32 : i32, i32
  }
  func.func @transform_4(%arg0: i32) -> (i32, i32) {
    %c0_i32 = arith.constant 0 : i32
    %c0_i32_0 = arith.constant 0 : i32
    return %arg0, %c0_i32 : i32, i32
  }
}

module attributes {stable_mosaic.version = 11 : i64} {
  func.func @_layernorm_kernel(%arg0: i32, %arg1: memref<8x64xf32, #tpu.memory_space<vmem>>, %arg2: memref<1x64xf32, #tpu.memory_space<vmem>>, %arg3: memref<1x64xf32, #tpu.memory_space<vmem>>, %arg4: memref<8x64xf32, #tpu.memory_space<vmem>>) attributes {dimension_semantics = [#tpu.dimension_semantics<parallel>], iteration_bounds = array<i64: 1>, scalar_prefetch = 0 : i64, scratch_operands = 0 : i64, tpu.core_type = #tpu.core_type<tc>, window_params = [{transform_indices = @transform_0, window_bounds = array<i64: 8, 64>}, {pipeline_mode = #tpu.pipeline_mode<synchronous>, transform_indices = @transform_1, window_bounds = array<i64: 1, 64>}, {pipeline_mode = #tpu.pipeline_mode<synchronous>, transform_indices = @transform_2, window_bounds = array<i64: 1, 64>}, {transform_indices = @transform_3, window_bounds = array<i64: 8, 64>}]} {
    %c0 = arith.constant 0 : index
    %c0_0 = arith.constant 0 : index
    %0 = vector.load %arg1[%c0, %c0_0] : memref<8x64xf32, #tpu.memory_space<vmem>>, vector<8x64xf32>
    %c0_1 = arith.constant 0 : index
    %c0_2 = arith.constant 0 : index
    %1 = vector.load %arg2[%c0_1, %c0_2] : memref<1x64xf32, #tpu.memory_space<vmem>>, vector<1x64xf32>
    %c0_3 = arith.constant 0 : index
    %c0_4 = arith.constant 0 : index
    %2 = vector.load %arg3[%c0_3, %c0_4] : memref<1x64xf32, #tpu.memory_space<vmem>>, vector<1x64xf32>
    %cst = arith.constant dense<0.000000e+00> : vector<8xf32>
    %3 = vector.multi_reduction <add>, %0, %cst [1] : vector<8x64xf32> to vector<8xf32>
    %4 = vector.shape_cast %3 : vector<8xf32> to vector<8x1xf32>
    %cst_5 = arith.constant 6.400000e+01 : f32
    %5 = vector.broadcast %cst_5 : f32 to vector<8x1xf32>
    %6 = arith.divf %4, %5 : vector<8x1xf32>
    %7 = vector.broadcast %6 : vector<8x1xf32> to vector<8x64xf32>
    %8 = arith.subf %0, %7 : vector<8x64xf32>
    %9 = vector.broadcast %6 : vector<8x1xf32> to vector<8x64xf32>
    %10 = arith.subf %0, %9 : vector<8x64xf32>
    %11 = arith.mulf %8, %10 : vector<8x64xf32>
    %cst_6 = arith.constant dense<0.000000e+00> : vector<8xf32>
    %12 = vector.multi_reduction <add>, %11, %cst_6 [1] : vector<8x64xf32> to vector<8xf32>
    %13 = vector.shape_cast %12 : vector<8xf32> to vector<8x1xf32>
    %cst_7 = arith.constant 6.400000e+01 : f32
    %14 = vector.broadcast %cst_7 : f32 to vector<8x1xf32>
    %15 = arith.divf %13, %14 : vector<8x1xf32>
    %16 = vector.broadcast %6 : vector<8x1xf32> to vector<8x64xf32>
    %17 = arith.subf %0, %16 : vector<8x64xf32>
    %cst_8 = arith.constant 9.99999974E-6 : f32
    %18 = vector.broadcast %cst_8 : f32 to vector<8x1xf32>
    %19 = arith.addf %15, %18 : vector<8x1xf32>
    %20 = math.rsqrt %19 : vector<8x1xf32>
    %21 = vector.broadcast %20 : vector<8x1xf32> to vector<8x64xf32>
    %22 = arith.mulf %17, %21 : vector<8x64xf32>
    %23 = vector.broadcast %1 : vector<1x64xf32> to vector<8x64xf32>
    %24 = arith.mulf %22, %23 : vector<8x64xf32>
    %25 = vector.broadcast %2 : vector<1x64xf32> to vector<8x64xf32>
    %26 = arith.addf %24, %25 : vector<8x64xf32>
    %c0_9 = arith.constant 0 : index
    %c0_10 = arith.constant 0 : index
    %27 = vector.load %arg4[%c0_9, %c0_10] : memref<8x64xf32, #tpu.memory_space<vmem>>, vector<8x64xf32>
    tpu.vector_store %arg4[%c0_9, %c0_10], %26 {strides = array<i32>} : memref<8x64xf32, #tpu.memory_space<vmem>>, vector<8x64xf32>,
    return
  }
  func.func @transform_0(%arg0: i32) -> (i32, i32) {
    %c0_i32 = arith.constant 0 : i32
    %c0_i32_0 = arith.constant 0 : i32
    return %arg0, %c0_i32 : i32, i32
  }
  func.func @transform_1(%arg0: i32) -> (i32, i32) {
    %c0_i32 = arith.constant 0 : i32
    %c0_i32_0 = arith.constant 0 : i32
    %c0_i32_1 = arith.constant 0 : i32
    return %c0_i32, %c0_i32_0 : i32, i32
  }
  func.func @transform_2(%arg0: i32) -> (i32, i32) {
    %c0_i32 = arith.constant 0 : i32
    %c0_i32_0 = arith.constant 0 : i32
    %c0_i32_1 = arith.constant 0 : i32
    return %c0_i32, %c0_i32_0 : i32, i32
  }
  func.func @transform_3(%arg0: i32) -> (i32, i32) {
    %c0_i32 = arith.constant 0 : i32
    %c0_i32_0 = arith.constant 0 : i32
    return %arg0, %c0_i32 : i32, i32
  }
}

module attributes {stable_mosaic.version = 11 : i64} {
  func.func @_avgpool_kernel(%arg0: i32, %arg1: memref<2x4x64xf32, #tpu.memory_space<vmem>>, %arg2: memref<2x64xf32, #tpu.memory_space<vmem>>) attributes {dimension_semantics = [#tpu.dimension_semantics<arbitrary>], iteration_bounds = array<i64: 1>, scalar_prefetch = 0 : i64, scratch_operands = 0 : i64, tpu.core_type = #tpu.core_type<tc>, window_params = [{pipeline_mode = #tpu.pipeline_mode<synchronous>, transform_indices = @transform_0, window_bounds = array<i64: 2, 4, 64>}, {pipeline_mode = #tpu.pipeline_mode<synchronous>, transform_indices = @transform_1, window_bounds = array<i64: 2, 64>}]} {
    %c0 = arith.constant 0 : index
    %c0_0 = arith.constant 0 : index
    %c0_1 = arith.constant 0 : index
    %0 = vector.load %arg1[%c0, %c0_0, %c0_1] : memref<2x4x64xf32, #tpu.memory_space<vmem>>, vector<2x4x64xf32>
    %cst = arith.constant dense<0.000000e+00> : vector<2x64xf32>
    %1 = vector.multi_reduction <add>, %0, %cst [1] : vector<2x4x64xf32> to vector<2x64xf32>
    %cst_2 = arith.constant 4.000000e+00 : f32
    %2 = vector.broadcast %cst_2 : f32 to vector<2x64xf32>
    %3 = arith.divf %1, %2 : vector<2x64xf32>
    %c0_3 = arith.constant 0 : index
    %c0_4 = arith.constant 0 : index
    %4 = vector.load %arg2[%c0_3, %c0_4] : memref<2x64xf32, #tpu.memory_space<vmem>>, vector<2x64xf32>
    tpu.vector_store %arg2[%c0_3, %c0_4], %3 {strides = array<i32>} : memref<2x64xf32, #tpu.memory_space<vmem>>, vector<2x64xf32>,
    return
  }
  func.func @transform_0(%arg0: i32) -> (i32, i32, i32) {
    %c0_i32 = arith.constant 0 : i32
    %c0_i32_0 = arith.constant 0 : i32
    %c0_i32_1 = arith.constant 0 : i32
    %c0_i32_2 = arith.constant 0 : i32
    return %c0_i32, %c0_i32_0, %c0_i32_1 : i32, i32, i32
  }
  func.func @transform_1(%arg0: i32) -> (i32, i32) {
    %c0_i32 = arith.constant 0 : i32
    %c0_i32_0 = arith.constant 0 : i32
    %c0_i32_1 = arith.constant 0 : i32
    return %c0_i32, %c0_i32_0 : i32, i32
  }
}

</mosaic_0001>

<llo_original>
// kernel: swin_forward.25
$region0: #{swin_forward.25}
  #allocation0 [shape = 'u32[]', space=smem, size = 0x4, offset = 0x4, fixed_abs, tag = 'smem constant byte address 0x4 - core index']
  #allocation1 [shape = 'u32[144,128]{1,0:T(1,128)}', space=vmem, size = 0x12000, scoped, tag = 'internal scratch']
  %s0 = inlined_call_operand.vmem [shape: f32[32,32], index: 0, kind: input, shape index: {}]
  %s1 = inlined_call_operand.vmem [shape: f32[1,32], index: 1, kind: input, shape index: {}]
  %s2 = inlined_call_operand.vmem [shape: f32[1,32], index: 2, kind: input, shape index: {}]
  %s3 = inlined_call_operand.vmem [shape: f32[32,96], index: 3, kind: input, shape index: {}]
  %s4 = inlined_call_operand.vmem [shape: f32[1,96], index: 4, kind: input, shape index: {}]
  %s5 = inlined_call_operand.vmem [shape: f32[32,96], index: 5, kind: output, shape index: {}]
  %s6 = sld [smem:[#allocation0]]
  $region30: #{swin_forward.25} parent=0
    _
  %s8 = ssub.s32 1, %s6
  %s9 = scalar_select 0, %s8, %s6
  // Predicated region
  $region2: #{swin_forward.25} parent=0 // pred_check
    _
  $region3: #{swin_forward.25} parent=0 // pred_check_branch
    %11 = sbr.rel (0) target = $region5
  $region4: #{swin_forward.25} parent=0 // pred_region
    _
  $region5: #{swin_forward.25} parent=0 // pred_fallthru
    _
  // Predicated region
  $region6: #{swin_forward.25} parent=0 // pred_check
    _
  $region7: #{swin_forward.25} parent=0 // pred_check_branch
    %13 = sbr.rel (0) target = $region9
  $region8: #{swin_forward.25} parent=0 // pred_region
    _
  $region9: #{swin_forward.25} parent=0 // pred_fallthru
    _
  // Predicated region
  $region10: #{swin_forward.25} parent=0 // pred_check
    _
  $region11: #{swin_forward.25} parent=0 // pred_check_branch
    %15 = sbr.rel (0) target = $region13
  $region12: #{swin_forward.25} parent=0 // pred_region
    _
  $region13: #{swin_forward.25} parent=0 // pred_fallthru
    _
  // Predicated region
  $region14: #{swin_forward.25} parent=0 // pred_check
    _
  $region15: #{swin_forward.25} parent=0 // pred_check_branch
    %17 = sbr.rel (0) target = $region17
  $region16: #{swin_forward.25} parent=0 // pred_region
    _
  $region17: #{swin_forward.25} parent=0 // pred_fallthru
    _
  // Predicated region
  $region18: #{swin_forward.25} parent=0 // pred_check
    _
  $region19: #{swin_forward.25} parent=0 // pred_check_branch
    %19 = sbr.rel (0) target = $region21
  $region20: #{swin_forward.25} parent=0 // pred_region
    _
  $region21: #{swin_forward.25} parent=0 // pred_fallthru
    _
  %v20 = vld [vmem:[%s0] sm:$0xff]
  %v21 = vld [vmem:[%s0 + $0x8] sm:$0xff]
  %v22 = vld [vmem:[%s0 + $0x10] sm:$0xff]
  %v23 = vld [vmem:[%s0 + $0x18] sm:$0xff]
  %v24 = vld [vmem:[%s1] sm:$0x1]
  %v25 = vld [vmem:[%s2] sm:$0x1]
  %vm26 = vcmask 261120
  %v27 = vsel %vm26, %v20, 0.0
  %28 = vadd.xlane.f32.xlu0 %v27
  %v29 = vpop.xlane.xlu0 %28
  %v30 = vsel %vm26, %v21, 0.0
  %31 = vadd.xlane.f32.xlu0 %v30
  %v32 = vpop.xlane.xlu0 %31
  %v33 = vsel %vm26, %v22, 0.0
  %34 = vadd.xlane.f32.xlu0 %v33
  %v35 = vpop.xlane.xlu0 %34
  %v36 = vsel %vm26, %v23, 0.0
  %37 = vadd.xlane.f32.xlu0 %v36
  %v38 = vpop.xlane.xlu0 %37
  %v39 = vrcp.pop 32.0
  %v40 = vmul.f32 %v29, %v39
  %v41 = vmul.f32 %v32, %v39
  %v42 = vmul.f32 %v35, %v39
  %v43 = vmul.f32 %v38, %v39
  %v44 = vsub.f32 %v20, %v40
  %v45 = vsub.f32 %v21, %v41
  %v46 = vsub.f32 %v22, %v42
  %v47 = vsub.f32 %v23, %v43
  %v48 = vmul.f32 %v44, %v44
  %v49 = vmul.f32 %v45, %v45
  %v50 = vmul.f32 %v46, %v46
  %v51 = vmul.f32 %v47, %v47
  %v52 = vsel %vm26, %v48, 0.0
  %53 = vadd.xlane.f32.xlu0 %v52
  %v54 = vpop.xlane.xlu0 %53
  %v55 = vsel %vm26, %v49, 0.0
  %56 = vadd.xlane.f32.xlu0 %v55
  %v57 = vpop.xlane.xlu0 %56
  %v58 = vsel %vm26, %v50, 0.0
  %59 = vadd.xlane.f32.xlu0 %v58
  %v60 = vpop.xlane.xlu0 %59
  %v61 = vsel %vm26, %v51, 0.0
  %62 = vadd.xlane.f32.xlu0 %v61
  %v63 = vpop.xlane.xlu0 %62
  %v64 = vmul.f32 %v54, %v39
  %v65 = vmul.f32 %v57, %v39
  %v66 = vmul.f32 %v60, %v39
  %v67 = vmul.f32 %v63, %v39
  %v68 = vadd.f32 %v64, 1e-05
  %v69 = vadd.f32 %v65, 1e-05
  %v70 = vadd.f32 %v66, 1e-05
  %v71 = vadd.f32 %v67, 1e-05
  %v72 = vrsqrt.pop %v68
  %v73 = vrsqrt.pop %v69
  %v74 = vrsqrt.pop %v70
  %v75 = vrsqrt.pop %v71
  %v76 = vmul.f32 %v44, %v72
  %v77 = vmul.f32 %v45, %v73
  %v78 = vmul.f32 %v46, %v74
  %v79 = vmul.f32 %v47, %v75
  %v81 = vlaneseq
  %v82 = vshrl.u32 %v81, 7
  %v83 = vsub.s32 0, %v82
  %v84 = vrot.slane %v24, %v83
  %v86 = vmul.f32 %v76, %v84
  %v87 = vmul.f32 %v77, %v84
  %v88 = vmul.f32 %v78, %v84
  %v89 = vmul.f32 %v79, %v84
  %v91 = vlaneseq
  %v92 = vshrl.u32 %v91, 7
  %v93 = vsub.s32 0, %v92
  %v94 = vrot.slane %v25, %v93
  %v96 = vadd.f32 %v86, %v94
  %v97 = vadd.f32 %v87, %v94
  %v98 = vadd.f32 %v88, %v94
  %v99 = vadd.f32 %v89, %v94
  %v100 = vld [vmem:[%s3] sm:$0xff]
  %v101 = vld [vmem:[%s3 + $0x8] sm:$0xff]
  %v102 = vld [vmem:[%s3 + $0x10] sm:$0xff]
  %v103 = vld [vmem:[%s3 + $0x18] sm:$0xff]
  %v104 = vld [vmem:[%s4] sm:$0x1]
  %v106 = vlaneseq
  %v107 = vshrl.u32 %v106, 7
  %v108 = vsub.s32 0, %v107
  %v109 = vrot.slane %v104, %v108
  %v112 = vsel %vm26, %v96, 0
  %v115 = vsel %vm26, %v97, 0
  %v118 = vsel %vm26, %v98, 0
  %v121 = vsel %vm26, %v99, 0
  %123 = vmatprep.subr.mxu0 0.0
  %124 = vmatpush1.msra.mxu0 0.0
  %125 = vmatprep.subr.mxu0 0.0
  %126 = vmatpush1.msra.mxu0 0.0
  %127 = vmatprep.subr.mxu0 0.0
  %128 = vmatpush1.msra.mxu0 0.0
  %129 = vmatprep.subr.mxu0 0.0
  %130 = vmatpush1.msra.mxu0 0.0
  %131 = vmatprep.subr.mxu0 0.0
  %132 = vmatpush1.msra.mxu0 0.0
  %133 = vmatprep.subr.mxu0 0.0
  %134 = vmatpush1.msra.mxu0 0.0
  %135 = vmatprep.subr.mxu0 0.0
  %136 = vmatpush1.msra.mxu0 0.0
  %137 = vmatprep.subr.mxu0 0.0
  %138 = vmatpush1.msra.mxu0 0.0
  %139 = vmatprep.subr.mxu0 0.0
  %140 = vmatpush1.msra.mxu0 0.0
  %141 = vmatprep.subr.mxu0 0.0
  %142 = vmatpush1.msra.mxu0 0.0
  %143 = vmatprep.subr.mxu0 0.0
  %144 = vmatpush1.msra.mxu0 0.0
  %145 = vmatprep.subr.mxu0 0.0
  %146 = vmatpush1.msra.mxu0 0.0
  %147 = vmatprep.subr.mxu0 0.0
  %148 = vmatpush1.msra.mxu0 %v103
  %149 = vmatprep.subr.mxu0 0.0
  %150 = vmatpush1.msra.mxu0 %v102
  %151 = vmatprep.subr.mxu0 0.0
  %152 = vmatpush1.msra.mxu0 %v101
  %153 = vmatprep.subr.mxu0 0.0
  %154 = vmatpush1.msra.mxu0 %v100
  %155 = vmatprep.subr.mxu0 0.0
  %156 = vmatpush2.msra.mxu0 0.0
  %157 = vmatprep.subr.mxu0 0.0
  %158 = vmatpush2.msra.mxu0 0.0
  %159 = vmatprep.subr.mxu0 0.0
  %160 = vmatpush2.msra.mxu0 0.0
  %161 = vmatprep.subr.mxu0 0.0
  %162 = vmatpush2.msra.mxu0 0.0
  %163 = vmatprep.subr.mxu0 0.0
  %164 = vmatpush2.msra.mxu0 0.0
  %165 = vmatprep.subr.mxu0 0.0
  %166 = vmatpush2.msra.mxu0 0.0
  %167 = vmatprep.subr.mxu0 0.0
  %168 = vmatpush2.msra.mxu0 0.0
  %169 = vmatprep.subr.mxu0 0.0
  %170 = vmatpush2.msra.mxu0 0.0
  %171 = vmatprep.subr.mxu0 0.0
  %172 = vmatpush2.msra.mxu0 0.0
  %173 = vmatprep.subr.mxu0 0.0
  %174 = vmatpush2.msra.mxu0 0.0
  %175 = vmatprep.subr.mxu0 0.0
  %176 = vmatpush2.msra.mxu0 0.0
  %177 = vmatprep.subr.mxu0 0.0
  %178 = vmatpush2.msra.mxu0 0.0
  %179 = vmatprep.subr.mxu0 0.0
  %180 = vmatpush2.msra.mxu0 0.0
  %181 = vmatprep.subr.mxu0 0.0
  %182 = vmatpush2.msra.mxu0 0.0
  %183 = vmatprep.subr.mxu0 0.0
  %184 = vmatpush2.msra.mxu0 0.0
  %185 = vmatprep.subr.mxu0 0.0
  %186 = vmatpush2.msra.mxu0 0.0
  %187 = vmatprep.mubr.f32.mxu0 0.0
  %188 = vmatmul.mubr.f32.gmra.mxu0 %v112
  %v189 = vpop.f32.mrf.mxu0
  %v190 = vadd.f32 %v109, %v189
  %v191 = vpop.f32.mrf.mxu0
  %192 = vmatprep.mubr.f32.mxu0 0.0
  %193 = vmatmul.mubr.f32.gmra.mxu0 %v115
  %v194 = vpop.f32.mrf.mxu0
  %v195 = vadd.f32 %v109, %v194
  %v196 = vpop.f32.mrf.mxu0
  %197 = vmatprep.mubr.f32.mxu0 0.0
  %198 = vmatmul.mubr.f32.gmra.mxu0 %v118
  %v199 = vpop.f32.mrf.mxu0
  %v200 = vadd.f32 %v109, %v199
  %v201 = vpop.f32.mrf.mxu0
  %202 = vmatprep.mubr.f32.mxu0 0.0
  %203 = vmatmul.mubr.f32.gmra.mxu0 %v121
  %v204 = vpop.f32.mrf.mxu0
  %v205 = vadd.f32 %v109, %v204
  %v206 = vpop.f32.mrf.mxu0
  %207 = vdwg.mxu0
  %vm208 = vcmask 785408
  %209 = vst.msk [vmem:[%s5] sm:$0xff] %vm208, %v190
  %210 = vst.msk [vmem:[%s5 + $0x8] sm:$0xff] %vm208, %v195
  %211 = vst.msk [vmem:[%s5 + $0x10] sm:$0xff] %vm208, %v200
  %212 = vst.msk [vmem:[%s5 + $0x18] sm:$0xff] %vm208, %v205
  // Predicated region
  $region22: #{swin_forward.25} parent=0 // pred_check
    _
  $region23: #{swin_forward.25} parent=0 // pred_check_branch
    %214 = sbr.rel (0) target = $region25
  $region24: #{swin_forward.25} parent=0 // pred_region
    _
  $region25: #{swin_forward.25} parent=0 // pred_fallthru
    _
  // Predicated region
  $region26: #{swin_forward.25} parent=0 // pred_check
    _
  $region27: #{swin_forward.25} parent=0 // pred_check_branch
    %216 = sbr.rel (0) target = $region29
  $region28: #{swin_forward.25} parent=0 // pred_region
    _
  $region29: #{swin_forward.25} parent=0 // pred_fallthru
    _

// kernel: swin_forward.24
$region0: #{swin_forward.24}
  #allocation0 [shape = 'u32[]', space=smem, size = 0x4, offset = 0x4, fixed_abs, tag = 'smem constant byte address 0x4 - core index']
  #allocation1 [shape = 'u32[144,128]{1,0:T(1,128)}', space=vmem, size = 0x12000, scoped, tag = 'internal scratch']
  %s0 = inlined_call_operand.vmem [shape: f32[32,48], index: 0, kind: input, shape index: {}]
  %s1 = inlined_call_operand.vmem [shape: f32[48,32], index: 1, kind: input, shape index: {}]
  %s2 = inlined_call_operand.vmem [shape: f32[1,32], index: 2, kind: input, shape index: {}]
  %s3 = inlined_call_operand.vmem [shape: f32[1,32], index: 3, kind: input, shape index: {}]
  %s4 = inlined_call_operand.vmem [shape: f32[1,32], index: 4, kind: input, shape index: {}]
  %s5 = inlined_call_operand.vmem [shape: f32[32,32], index: 5, kind: output, shape index: {}]
  %s6 = sld [smem:[#allocation0]]
  $region30: #{swin_forward.24} parent=0
    _
  %s8 = ssub.s32 1, %s6
  %s9 = scalar_select 0, %s8, %s6
  // Predicated region
  $region2: #{swin_forward.24} parent=0 // pred_check
    _
  $region3: #{swin_forward.24} parent=0 // pred_check_branch
    %11 = sbr.rel (0) target = $region5
  $region4: #{swin_forward.24} parent=0 // pred_region
    _
  $region5: #{swin_forward.24} parent=0 // pred_fallthru
    _
  // Predicated region
  $region6: #{swin_forward.24} parent=0 // pred_check
    _
  $region7: #{swin_forward.24} parent=0 // pred_check_branch
    %13 = sbr.rel (0) target = $region9
  $region8: #{swin_forward.24} parent=0 // pred_region
    _
  $region9: #{swin_forward.24} parent=0 // pred_fallthru
    _
  // Predicated region
  $region10: #{swin_forward.24} parent=0 // pred_check
    _
  $region11: #{swin_forward.24} parent=0 // pred_check_branch
    %15 = sbr.rel (0) target = $region13
  $region12: #{swin_forward.24} parent=0 // pred_region
    _
  $region13: #{swin_forward.24} parent=0 // pred_fallthru
    _
  // Predicated region
  $region14: #{swin_forward.24} parent=0 // pred_check
    _
  $region15: #{swin_forward.24} parent=0 // pred_check_branch
    %17 = sbr.rel (0) target = $region17
  $region16: #{swin_forward.24} parent=0 // pred_region
    _
  $region17: #{swin_forward.24} parent=0 // pred_fallthru
    _
  // Predicated region
  $region18: #{swin_forward.24} parent=0 // pred_check
    _
  $region19: #{swin_forward.24} parent=0 // pred_check_branch
    %19 = sbr.rel (0) target = $region21
  $region20: #{swin_forward.24} parent=0 // pred_region
    _
  $region21: #{swin_forward.24} parent=0 // pred_fallthru
    _
  %v20 = vld [vmem:[%s0] sm:$0xff]
  %v21 = vld [vmem:[%s0 + $0x8] sm:$0xff]
  %v22 = vld [vmem:[%s0 + $0x10] sm:$0xff]
  %v23 = vld [vmem:[%s0 + $0x18] sm:$0xff]
  %v24 = vld [vmem:[%s1] sm:$0xff]
  %v25 = vld [vmem:[%s1 + $0x8] sm:$0xff]
  %v26 = vld [vmem:[%s1 + $0x10] sm:$0xff]
  %v27 = vld [vmem:[%s1 + $0x18] sm:$0xff]
  %v28 = vld [vmem:[%s1 + $0x20] sm:$0xff]
  %v29 = vld [vmem:[%s1 + $0x28] sm:$0xff]
  %v30 = vld [vmem:[%s2] sm:$0x1]
  %v32 = vlaneseq
  %v33 = vshrl.u32 %v32, 7
  %v34 = vsub.s32 0, %v33
  %v35 = vrot.slane %v30, %v34
  %vm37 = vcmask 392192
  %v39 = vsel %vm37, %v20, 0
  %v42 = vsel %vm37, %v21, 0
  %v45 = vsel %vm37, %v22, 0
  %v48 = vsel %vm37, %v23, 0
  %50 = vmatprep.subr.mxu0 0.0
  %51 = vmatpush1.msra.mxu0 0.0
  %52 = vmatprep.subr.mxu0 0.0
  %53 = vmatpush1.msra.mxu0 0.0
  %54 = vmatprep.subr.mxu0 0.0
  %55 = vmatpush1.msra.mxu0 0.0
  %56 = vmatprep.subr.mxu0 0.0
  %57 = vmatpush1.msra.mxu0 0.0
  %58 = vmatprep.subr.mxu0 0.0
  %59 = vmatpush1.msra.mxu0 0.0
  %60 = vmatprep.subr.mxu0 0.0
  %61 = vmatpush1.msra.mxu0 0.0
  %62 = vmatprep.subr.mxu0 0.0
  %63 = vmatpush1.msra.mxu0 0.0
  %64 = vmatprep.subr.mxu0 0.0
  %65 = vmatpush1.msra.mxu0 0.0
  %66 = vmatprep.subr.mxu0 0.0
  %67 = vmatpush1.msra.mxu0 0.0
  %68 = vmatprep.subr.mxu0 0.0
  %69 = vmatpush1.msra.mxu0 0.0
  %70 = vmatprep.subr.mxu0 0.0
  %71 = vmatpush1.msra.mxu0 %v29
  %72 = vmatprep.subr.mxu0 0.0
  %73 = vmatpush1.msra.mxu0 %v28
  %74 = vmatprep.subr.mxu0 0.0
  %75 = vmatpush1.msra.mxu0 %v27
  %76 = vmatprep.subr.mxu0 0.0
  %77 = vmatpush1.msra.mxu0 %v26
  %78 = vmatprep.subr.mxu0 0.0
  %79 = vmatpush1.msra.mxu0 %v25
  %80 = vmatprep.subr.mxu0 0.0
  %81 = vmatpush1.msra.mxu0 %v24
  %82 = vmatprep.subr.mxu0 0.0
  %83 = vmatpush2.msra.mxu0 0.0
  %84 = vmatprep.subr.mxu0 0.0
  %85 = vmatpush2.msra.mxu0 0.0
  %86 = vmatprep.subr.mxu0 0.0
  %87 = vmatpush2.msra.mxu0 0.0
  %88 = vmatprep.subr.mxu0 0.0
  %89 = vmatpush2.msra.mxu0 0.0
  %90 = vmatprep.subr.mxu0 0.0
  %91 = vmatpush2.msra.mxu0 0.0
  %92 = vmatprep.subr.mxu0 0.0
  %93 = vmatpush2.msra.mxu0 0.0
  %94 = vmatprep.subr.mxu0 0.0
  %95 = vmatpush2.msra.mxu0 0.0
  %96 = vmatprep.subr.mxu0 0.0
  %97 = vmatpush2.msra.mxu0 0.0
  %98 = vmatprep.subr.mxu0 0.0
  %99 = vmatpush2.msra.mxu0 0.0
  %100 = vmatprep.subr.mxu0 0.0
  %101 = vmatpush2.msra.mxu0 0.0
  %102 = vmatprep.subr.mxu0 0.0
  %103 = vmatpush2.msra.mxu0 0.0
  %104 = vmatprep.subr.mxu0 0.0
  %105 = vmatpush2.msra.mxu0 0.0
  %106 = vmatprep.subr.mxu0 0.0
  %107 = vmatpush2.msra.mxu0 0.0
  %108 = vmatprep.subr.mxu0 0.0
  %109 = vmatpush2.msra.mxu0 0.0
  %110 = vmatprep.subr.mxu0 0.0
  %111 = vmatpush2.msra.mxu0 0.0
  %112 = vmatprep.subr.mxu0 0.0
  %113 = vmatpush2.msra.mxu0 0.0
  %114 = vmatprep.mubr.f32.mxu0 0.0
  %115 = vmatmul.mubr.f32.gmra.mxu0 %v39
  %v116 = vpop.f32.mrf.mxu0
  %v117 = vadd.f32 %v35, %v116
  %v118 = vpop.f32.mrf.mxu0
  %119 = vmatprep.mubr.f32.mxu0 0.0
  %120 = vmatmul.mubr.f32.gmra.mxu0 %v42
  %v121 = vpop.f32.mrf.mxu0
  %v122 = vadd.f32 %v35, %v121
  %v123 = vpop.f32.mrf.mxu0
  %124 = vmatprep.mubr.f32.mxu0 0.0
  %125 = vmatmul.mubr.f32.gmra.mxu0 %v45
  %v126 = vpop.f32.mrf.mxu0
  %v127 = vadd.f32 %v35, %v126
  %v128 = vpop.f32.mrf.mxu0
  %129 = vmatprep.mubr.f32.mxu0 0.0
  %130 = vmatmul.mubr.f32.gmra.mxu0 %v48
  %v131 = vpop.f32.mrf.mxu0
  %v132 = vadd.f32 %v35, %v131
  %v133 = vpop.f32.mrf.mxu0
  %134 = vdwg.mxu0
  %v135 = vld [vmem:[%s3] sm:$0x1]
  %v136 = vld [vmem:[%s4] sm:$0x1]
  %vm137 = vcmask 261120
  %v138 = vsel %vm137, %v117, 0.0
  %139 = vadd.xlane.f32.xlu0 %v138
  %v140 = vpop.xlane.xlu0 %139
  %v141 = vsel %vm137, %v122, 0.0
  %142 = vadd.xlane.f32.xlu0 %v141
  %v143 = vpop.xlane.xlu0 %142
  %v144 = vsel %vm137, %v127, 0.0
  %145 = vadd.xlane.f32.xlu0 %v144
  %v146 = vpop.xlane.xlu0 %145
  %v147 = vsel %vm137, %v132, 0.0
  %148 = vadd.xlane.f32.xlu0 %v147
  %v149 = vpop.xlane.xlu0 %148
  %v150 = vrcp.pop 32.0
  %v151 = vmul.f32 %v140, %v150
  %v152 = vmul.f32 %v143, %v150
  %v153 = vmul.f32 %v146, %v150
  %v154 = vmul.f32 %v149, %v150
  %v155 = vsub.f32 %v117, %v151
  %v156 = vsub.f32 %v122, %v152
  %v157 = vsub.f32 %v127, %v153
  %v158 = vsub.f32 %v132, %v154
  %v159 = vmul.f32 %v155, %v155
  %v160 = vmul.f32 %v156, %v156
  %v161 = vmul.f32 %v157, %v157
  %v162 = vmul.f32 %v158, %v158
  %v163 = vsel %vm137, %v159, 0.0
  %164 = vadd.xlane.f32.xlu0 %v163
  %v165 = vpop.xlane.xlu0 %164
  %v166 = vsel %vm137, %v160, 0.0
  %167 = vadd.xlane.f32.xlu0 %v166
  %v168 = vpop.xlane.xlu0 %167
  %v169 = vsel %vm137, %v161, 0.0
  %170 = vadd.xlane.f32.xlu0 %v169
  %v171 = vpop.xlane.xlu0 %170
  %v172 = vsel %vm137, %v162, 0.0
  %173 = vadd.xlane.f32.xlu0 %v172
  %v174 = vpop.xlane.xlu0 %173
  %v175 = vmul.f32 %v165, %v150
  %v176 = vmul.f32 %v168, %v150
  %v177 = vmul.f32 %v171, %v150
  %v178 = vmul.f32 %v174, %v150
  %v179 = vadd.f32 %v175, 1e-05
  %v180 = vadd.f32 %v176, 1e-05
  %v181 = vadd.f32 %v177, 1e-05
  %v182 = vadd.f32 %v178, 1e-05
  %v183 = vrsqrt.pop %v179
  %v184 = vrsqrt.pop %v180
  %v185 = vrsqrt.pop %v181
  %v186 = vrsqrt.pop %v182
  %v187 = vmul.f32 %v155, %v183
  %v188 = vmul.f32 %v156, %v184
  %v189 = vmul.f32 %v157, %v185
  %v190 = vmul.f32 %v158, %v186
  %v192 = vlaneseq
  %v193 = vshrl.u32 %v192, 7
  %v194 = vsub.s32 0, %v193
  %v195 = vrot.slane %v135, %v194
  %v197 = vmul.f32 %v187, %v195
  %v198 = vmul.f32 %v188, %v195
  %v199 = vmul.f32 %v189, %v195
  %v200 = vmul.f32 %v190, %v195
  %v202 = vlaneseq
  %v203 = vshrl.u32 %v202, 7
  %v204 = vsub.s32 0, %v203
  %v205 = vrot.slane %v136, %v204
  %v207 = vadd.f32 %v197, %v205
  %v208 = vadd.f32 %v198, %v205
  %v209 = vadd.f32 %v199, %v205
  %v210 = vadd.f32 %v200, %v205
  %211 = vst.msk [vmem:[%s5] sm:$0xff] %vm137, %v207
  %212 = vst.msk [vmem:[%s5 + $0x8] sm:$0xff] %vm137, %v208
  %213 = vst.msk [vmem:[%s5 + $0x10] sm:$0xff] %vm137, %v209
  %214 = vst.msk [vmem:[%s5 + $0x18] sm:$0xff] %vm137, %v210
  // Predicated region
  $region22: #{swin_forward.24} parent=0 // pred_check
    _
  $region23: #{swin_forward.24} parent=0 // pred_check_branch
    %216 = sbr.rel (0) target = $region25
  $region24: #{swin_forward.24} parent=0 // pred_region
    _
  $region25: #{swin_forward.24} parent=0 // pred_fallthru
    _
  // Predicated region
  $region26: #{swin_forward.24} parent=0 // pred_check
    _
  $region27: #{swin_forward.24} parent=0 // pred_check_branch
    %218 = sbr.rel (0) target = $region29
  $region28: #{swin_forward.24} parent=0 // pred_region
    _
  $region29: #{swin_forward.24} parent=0 // pred_fallthru
    _

// kernel: swin_forward.27
$region0: #{swin_forward.27}
  #allocation0 [shape = 'u32[]', space=smem, size = 0x4, offset = 0x4, fixed_abs, tag = 'smem constant byte address 0x4 - core index']
  #allocation1 [shape = 'u32[144,128]{1,0:T(1,128)}', space=vmem, size = 0x12000, scoped, tag = 'internal scratch']
  %s0 = inlined_call_operand.vmem [shape: f32[32,32], index: 0, kind: input, shape index: {}]
  %s1 = inlined_call_operand.vmem [shape: f32[32,32], index: 1, kind: input, shape index: {}]
  %s2 = inlined_call_operand.vmem [shape: f32[1,32], index: 2, kind: input, shape index: {}]
  %s3 = inlined_call_operand.vmem [shape: f32[32,32], index: 3, kind: output, shape index: {}]
  %s4 = sld [smem:[#allocation0]]
  $region22: #{swin_forward.27} parent=0
    _
  %s6 = ssub.s32 1, %s4
  %s7 = scalar_select 0, %s6, %s4
  // Predicated region
  $region2: #{swin_forward.27} parent=0 // pred_check
    _
  $region3: #{swin_forward.27} parent=0 // pred_check_branch
    %9 = sbr.rel (0) target = $region5
  $region4: #{swin_forward.27} parent=0 // pred_region
    _
  $region5: #{swin_forward.27} parent=0 // pred_fallthru
    _
  // Predicated region
  $region6: #{swin_forward.27} parent=0 // pred_check
    _
  $region7: #{swin_forward.27} parent=0 // pred_check_branch
    %11 = sbr.rel (0) target = $region9
  $region8: #{swin_forward.27} parent=0 // pred_region
    _
  $region9: #{swin_forward.27} parent=0 // pred_fallthru
    _
  // Predicated region
  $region10: #{swin_forward.27} parent=0 // pred_check
    _
  $region11: #{swin_forward.27} parent=0 // pred_check_branch
    %13 = sbr.rel (0) target = $region13
  $region12: #{swin_forward.27} parent=0 // pred_region
    _
  $region13: #{swin_forward.27} parent=0 // pred_fallthru
    _
  %v14 = vld [vmem:[%s0] sm:$0xff]
  %v15 = vld [vmem:[%s0 + $0x8] sm:$0xff]
  %v16 = vld [vmem:[%s0 + $0x10] sm:$0xff]
  %v17 = vld [vmem:[%s0 + $0x18] sm:$0xff]
  %v18 = vld [vmem:[%s1] sm:$0xff]
  %v19 = vld [vmem:[%s1 + $0x8] sm:$0xff]
  %v20 = vld [vmem:[%s1 + $0x10] sm:$0xff]
  %v21 = vld [vmem:[%s1 + $0x18] sm:$0xff]
  %v22 = vld [vmem:[%s2] sm:$0x1]
  %v24 = vlaneseq
  %v25 = vshrl.u32 %v24, 7
  %v26 = vsub.s32 0, %v25
  %v27 = vrot.slane %v22, %v26
  %vm29 = vcmask 261120
  %v31 = vsel %vm29, %v14, 0
  %v34 = vsel %vm29, %v15, 0
  %v37 = vsel %vm29, %v16, 0
  %v40 = vsel %vm29, %v17, 0
  %42 = vmatprep.subr.mxu0 0.0
  %43 = vmatpush1.msra.mxu0 0.0
  %44 = vmatprep.subr.mxu0 0.0
  %45 = vmatpush1.msra.mxu0 0.0
  %46 = vmatprep.subr.mxu0 0.0
  %47 = vmatpush1.msra.mxu0 0.0
  %48 = vmatprep.subr.mxu0 0.0
  %49 = vmatpush1.msra.mxu0 0.0
  %50 = vmatprep.subr.mxu0 0.0
  %51 = vmatpush1.msra.mxu0 0.0
  %52 = vmatprep.subr.mxu0 0.0
  %53 = vmatpush1.msra.mxu0 0.0
  %54 = vmatprep.subr.mxu0 0.0
  %55 = vmatpush1.msra.mxu0 0.0
  %56 = vmatprep.subr.mxu0 0.0
  %57 = vmatpush1.msra.mxu0 0.0
  %58 = vmatprep.subr.mxu0 0.0
  %59 = vmatpush1.msra.mxu0 0.0
  %60 = vmatprep.subr.mxu0 0.0
  %61 = vmatpush1.msra.mxu0 0.0
  %62 = vmatprep.subr.mxu0 0.0
  %63 = vmatpush1.msra.mxu0 0.0
  %64 = vmatprep.subr.mxu0 0.0
  %65 = vmatpush1.msra.mxu0 0.0
  %66 = vmatprep.subr.mxu0 0.0
  %67 = vmatpush1.msra.mxu0 %v21
  %68 = vmatprep.subr.mxu0 0.0
  %69 = vmatpush1.msra.mxu0 %v20
  %70 = vmatprep.subr.mxu0 0.0
  %71 = vmatpush1.msra.mxu0 %v19
  %72 = vmatprep.subr.mxu0 0.0
  %73 = vmatpush1.msra.mxu0 %v18
  %74 = vmatprep.subr.mxu0 0.0
  %75 = vmatpush2.msra.mxu0 0.0
  %76 = vmatprep.subr.mxu0 0.0
  %77 = vmatpush2.msra.mxu0 0.0
  %78 = vmatprep.subr.mxu0 0.0
  %79 = vmatpush2.msra.mxu0 0.0
  %80 = vmatprep.subr.mxu0 0.0
  %81 = vmatpush2.msra.mxu0 0.0
  %82 = vmatprep.subr.mxu0 0.0
  %83 = vmatpush2.msra.mxu0 0.0
  %84 = vmatprep.subr.mxu0 0.0
  %85 = vmatpush2.msra.mxu0 0.0
  %86 = vmatprep.subr.mxu0 0.0
  %87 = vmatpush2.msra.mxu0 0.0
  %88 = vmatprep.subr.mxu0 0.0
  %89 = vmatpush2.msra.mxu0 0.0
  %90 = vmatprep.subr.mxu0 0.0
  %91 = vmatpush2.msra.mxu0 0.0
  %92 = vmatprep.subr.mxu0 0.0
  %93 = vmatpush2.msra.mxu0 0.0
  %94 = vmatprep.subr.mxu0 0.0
  %95 = vmatpush2.msra.mxu0 0.0
  %96 = vmatprep.subr.mxu0 0.0
  %97 = vmatpush2.msra.mxu0 0.0
  %98 = vmatprep.subr.mxu0 0.0
  %99 = vmatpush2.msra.mxu0 0.0
  %100 = vmatprep.subr.mxu0 0.0
  %101 = vmatpush2.msra.mxu0 0.0
  %102 = vmatprep.subr.mxu0 0.0
  %103 = vmatpush2.msra.mxu0 0.0
  %104 = vmatprep.subr.mxu0 0.0
  %105 = vmatpush2.msra.mxu0 0.0
  %106 = vmatprep.mubr.f32.mxu0 0.0
  %107 = vmatmul.mubr.f32.gmra.mxu0 %v31
  %v108 = vpop.f32.mrf.mxu0
  %v109 = vadd.f32 %v27, %v108
  %v110 = vpop.f32.mrf.mxu0
  %111 = vmatprep.mubr.f32.mxu0 0.0
  %112 = vmatmul.mubr.f32.gmra.mxu0 %v34
  %v113 = vpop.f32.mrf.mxu0
  %v114 = vadd.f32 %v27, %v113
  %v115 = vpop.f32.mrf.mxu0
  %116 = vmatprep.mubr.f32.mxu0 0.0
  %117 = vmatmul.mubr.f32.gmra.mxu0 %v37
  %v118 = vpop.f32.mrf.mxu0
  %v119 = vadd.f32 %v27, %v118
  %v120 = vpop.f32.mrf.mxu0
  %121 = vmatprep.mubr.f32.mxu0 0.0
  %122 = vmatmul.mubr.f32.gmra.mxu0 %v40
  %v123 = vpop.f32.mrf.mxu0
  %v124 = vadd.f32 %v27, %v123
  %v125 = vpop.f32.mrf.mxu0
  %126 = vdwg.mxu0
  %127 = vst.msk [vmem:[%s3] sm:$0xff] %vm29, %v109
  %128 = vst.msk [vmem:[%s3 + $0x8] sm:$0xff] %vm29, %v114
  %129 = vst.msk [vmem:[%s3 + $0x10] sm:$0xff] %vm29, %v119
  %130 = vst.msk [vmem:[%s3 + $0x18] sm:$0xff] %vm29, %v124
  // Predicated region
  $region14: #{swin_forward.27} parent=0 // pred_check
    _
  $region15: #{swin_forward.27} parent=0 // pred_check_branch
    %132 = sbr.rel (0) target = $region17
  $region16: #{swin_forward.27} parent=0 // pred_region
    _
  $region17: #{swin_forward.27} parent=0 // pred_fallthru
    _
  // Predicated region
  $region18: #{swin_forward.27} parent=0 // pred_check
    _
  $region19: #{swin_forward.27} parent=0 // pred_check_branch
    %134 = sbr.rel (0) target = $region21
  $region20: #{swin_forward.27} parent=0 // pred_region
    _
  $region21: #{swin_forward.27} parent=0 // pred_fallthru
    _

// kernel: swin_forward.28
$region0: #{swin_forward.28}
  #allocation0 [shape = 'u32[]', space=smem, size = 0x4, offset = 0x4, fixed_abs, tag = 'smem constant byte address 0x4 - core index']
  #allocation1 [shape = 'u32[144,128]{1,0:T(1,128)}', space=vmem, size = 0x12000, scoped, tag = 'internal scratch']
  %s0 = inlined_call_operand.vmem [shape: f32[32,32], index: 0, kind: input, shape index: {}]
  %s1 = inlined_call_operand.vmem [shape: f32[1,32], index: 1, kind: input, shape index: {}]
  %s2 = inlined_call_operand.vmem [shape: f32[1,32], index: 2, kind: input, shape index: {}]
  %s3 = inlined_call_operand.vmem [shape: f32[32,128], index: 3, kind: input, shape index: {}]
  %s4 = inlined_call_operand.vmem [shape: f32[1,128], index: 4, kind: input, shape index: {}]
  %s5 = inlined_call_operand.vmem [shape: f32[32,128], index: 5, kind: output, shape index: {}]
  %s6 = sld [smem:[#allocation0]]
  $region30: #{swin_forward.28} parent=0
    _
  %s8 = ssub.s32 1, %s6
  %s9 = scalar_select 0, %s8, %s6
  // Predicated region
  $region2: #{swin_forward.28} parent=0 // pred_check
    _
  $region3: #{swin_forward.28} parent=0 // pred_check_branch
    %11 = sbr.rel (0) target = $region5
  $region4: #{swin_forward.28} parent=0 // pred_region
    _
  $region5: #{swin_forward.28} parent=0 // pred_fallthru
    _
  // Predicated region
  $region6: #{swin_forward.28} parent=0 // pred_check
    _
  $region7: #{swin_forward.28} parent=0 // pred_check_branch
    %13 = sbr.rel (0) target = $region9
  $region8: #{swin_forward.28} parent=0 // pred_region
    _
  $region9: #{swin_forward.28} parent=0 // pred_fallthru
    _
  // Predicated region
  $region10: #{swin_forward.28} parent=0 // pred_check
    _
  $region11: #{swin_forward.28} parent=0 // pred_check_branch
    %15 = sbr.rel (0) target = $region13
  $region12: #{swin_forward.28} parent=0 // pred_region
    _
  $region13: #{swin_forward.28} parent=0 // pred_fallthru
    _
  // Predicated region
  $region14: #{swin_forward.28} parent=0 // pred_check
    _
  $region15: #{swin_forward.28} parent=0 // pred_check_branch
    %17 = sbr.rel (0) target = $region17
  $region16: #{swin_forward.28} parent=0 // pred_region
    _
  $region17: #{swin_forward.28} parent=0 // pred_fallthru
    _
  // Predicated region
  $region18: #{swin_forward.28} parent=0 // pred_check
    _
  $region19: #{swin_forward.28} parent=0 // pred_check_branch
    %19 = sbr.rel (0) target = $region21
  $region20: #{swin_forward.28} parent=0 // pred_region
    _
  $region21: #{swin_forward.28} parent=0 // pred_fallthru
    _
  %v20 = vld [vmem:[%s0] sm:$0xff]
  %v21 = vld [vmem:[%s0 + $0x8] sm:$0xff]
  %v22 = vld [vmem:[%s0 + $0x10] sm:$0xff]
  %v23 = vld [vmem:[%s0 + $0x18] sm:$0xff]
  %v24 = vld [vmem:[%s1] sm:$0x1]
  %v25 = vld [vmem:[%s2] sm:$0x1]
  %vm26 = vcmask 261120
  %v27 = vsel %vm26, %v20, 0.0
  %28 = vadd.xlane.f32.xlu0 %v27
  %v29 = vpop.xlane.xlu0 %28
  %v30 = vsel %vm26, %v21, 0.0
  %31 = vadd.xlane.f32.xlu0 %v30
  %v32 = vpop.xlane.xlu0 %31
  %v33 = vsel %vm26, %v22, 0.0
  %34 = vadd.xlane.f32.xlu0 %v33
  %v35 = vpop.xlane.xlu0 %34
  %v36 = vsel %vm26, %v23, 0.0
  %37 = vadd.xlane.f32.xlu0 %v36
  %v38 = vpop.xlane.xlu0 %37
  %v39 = vrcp.pop 32.0
  %v40 = vmul.f32 %v29, %v39
  %v41 = vmul.f32 %v32, %v39
  %v42 = vmul.f32 %v35, %v39
  %v43 = vmul.f32 %v38, %v39
  %v44 = vsub.f32 %v20, %v40
  %v45 = vsub.f32 %v21, %v41
  %v46 = vsub.f32 %v22, %v42
  %v47 = vsub.f32 %v23, %v43
  %v48 = vmul.f32 %v44, %v44
  %v49 = vmul.f32 %v45, %v45
  %v50 = vmul.f32 %v46, %v46
  %v51 = vmul.f32 %v47, %v47
  %v52 = vsel %vm26, %v48, 0.0
  %53 = vadd.xlane.f32.xlu0 %v52
  %v54 = vpop.xlane.xlu0 %53
  %v55 = vsel %vm26, %v49, 0.0
  %56 = vadd.xlane.f32.xlu0 %v55
  %v57 = vpop.xlane.xlu0 %56
  %v58 = vsel %vm26, %v50, 0.0
  %59 = vadd.xlane.f32.xlu0 %v58
  %v60 = vpop.xlane.xlu0 %59
  %v61 = vsel %vm26, %v51, 0.0
  %62 = vadd.xlane.f32.xlu0 %v61
  %v63 = vpop.xlane.xlu0 %62
  %v64 = vmul.f32 %v54, %v39
  %v65 = vmul.f32 %v57, %v39
  %v66 = vmul.f32 %v60, %v39
  %v67 = vmul.f32 %v63, %v39
  %v68 = vadd.f32 %v64, 1e-05
  %v69 = vadd.f32 %v65, 1e-05
  %v70 = vadd.f32 %v66, 1e-05
  %v71 = vadd.f32 %v67, 1e-05
  %v72 = vrsqrt.pop %v68
  %v73 = vrsqrt.pop %v69
  %v74 = vrsqrt.pop %v70
  %v75 = vrsqrt.pop %v71
  %v76 = vmul.f32 %v44, %v72
  %v77 = vmul.f32 %v45, %v73
  %v78 = vmul.f32 %v46, %v74
  %v79 = vmul.f32 %v47, %v75
  %v81 = vlaneseq
  %v82 = vshrl.u32 %v81, 7
  %v83 = vsub.s32 0, %v82
  %v84 = vrot.slane %v24, %v83
  %v86 = vmul.f32 %v76, %v84
  %v87 = vmul.f32 %v77, %v84
  %v88 = vmul.f32 %v78, %v84
  %v89 = vmul.f32 %v79, %v84
  %v91 = vlaneseq
  %v92 = vshrl.u32 %v91, 7
  %v93 = vsub.s32 0, %v92
  %v94 = vrot.slane %v25, %v93
  %v96 = vadd.f32 %v86, %v94
  %v97 = vadd.f32 %v87, %v94
  %v98 = vadd.f32 %v88, %v94
  %v99 = vadd.f32 %v89, %v94
  %v100 = vld [vmem:[%s3] sm:$0xff]
  %v101 = vld [vmem:[%s3 + $0x8] sm:$0xff]
  %v102 = vld [vmem:[%s3 + $0x10] sm:$0xff]
  %v103 = vld [vmem:[%s3 + $0x18] sm:$0xff]
  %v104 = vld [vmem:[%s4] sm:$0x1]
  %v106 = vlaneseq
  %v107 = vshrl.u32 %v106, 7
  %v108 = vsub.s32 0, %v107
  %v109 = vrot.slane %v104, %v108
  %v112 = vsel %vm26, %v96, 0
  %v115 = vsel %vm26, %v97, 0
  %v118 = vsel %vm26, %v98, 0
  %v121 = vsel %vm26, %v99, 0
  %123 = vmatprep.subr.mxu0 0.0
  %124 = vmatpush1.msra.mxu0 0.0
  %125 = vmatprep.subr.mxu0 0.0
  %126 = vmatpush1.msra.mxu0 0.0
  %127 = vmatprep.subr.mxu0 0.0
  %128 = vmatpush1.msra.mxu0 0.0
  %129 = vmatprep.subr.mxu0 0.0
  %130 = vmatpush1.msra.mxu0 0.0
  %131 = vmatprep.subr.mxu0 0.0
  %132 = vmatpush1.msra.mxu0 0.0
  %133 = vmatprep.subr.mxu0 0.0
  %134 = vmatpush1.msra.mxu0 0.0
  %135 = vmatprep.subr.mxu0 0.0
  %136 = vmatpush1.msra.mxu0 0.0
  %137 = vmatprep.subr.mxu0 0.0
  %138 = vmatpush1.msra.mxu0 0.0
  %139 = vmatprep.subr.mxu0 0.0
  %140 = vmatpush1.msra.mxu0 0.0
  %141 = vmatprep.subr.mxu0 0.0
  %142 = vmatpush1.msra.mxu0 0.0
  %143 = vmatprep.subr.mxu0 0.0
  %144 = vmatpush1.msra.mxu0 0.0
  %145 = vmatprep.subr.mxu0 0.0
  %146 = vmatpush1.msra.mxu0 0.0
  %147 = vmatprep.subr.mxu0 0.0
  %148 = vmatpush1.msra.mxu0 %v103
  %149 = vmatprep.subr.mxu0 0.0
  %150 = vmatpush1.msra.mxu0 %v102
  %151 = vmatprep.subr.mxu0 0.0
  %152 = vmatpush1.msra.mxu0 %v101
  %153 = vmatprep.subr.mxu0 0.0
  %154 = vmatpush1.msra.mxu0 %v100
  %155 = vmatprep.subr.mxu0 0.0
  %156 = vmatpush2.msra.mxu0 0.0
  %157 = vmatprep.subr.mxu0 0.0
  %158 = vmatpush2.msra.mxu0 0.0
  %159 = vmatprep.subr.mxu0 0.0
  %160 = vmatpush2.msra.mxu0 0.0
  %161 = vmatprep.subr.mxu0 0.0
  %162 = vmatpush2.msra.mxu0 0.0
  %163 = vmatprep.subr.mxu0 0.0
  %164 = vmatpush2.msra.mxu0 0.0
  %165 = vmatprep.subr.mxu0 0.0
  %166 = vmatpush2.msra.mxu0 0.0
  %167 = vmatprep.subr.mxu0 0.0
  %168 = vmatpush2.msra.mxu0 0.0
  %169 = vmatprep.subr.mxu0 0.0
  %170 = vmatpush2.msra.mxu0 0.0
  %171 = vmatprep.subr.mxu0 0.0
  %172 = vmatpush2.msra.mxu0 0.0
  %173 = vmatprep.subr.mxu0 0.0
  %174 = vmatpush2.msra.mxu0 0.0
  %175 = vmatprep.subr.mxu0 0.0
  %176 = vmatpush2.msra.mxu0 0.0
  %177 = vmatprep.subr.mxu0 0.0
  %178 = vmatpush2.msra.mxu0 0.0
  %179 = vmatprep.subr.mxu0 0.0
  %180 = vmatpush2.msra.mxu0 0.0
  %181 = vmatprep.subr.mxu0 0.0
  %182 = vmatpush2.msra.mxu0 0.0
  %183 = vmatprep.subr.mxu0 0.0
  %184 = vmatpush2.msra.mxu0 0.0
  %185 = vmatprep.subr.mxu0 0.0
  %186 = vmatpush2.msra.mxu0 0.0
  %187 = vmatprep.mubr.f32.mxu0 0.0
  %188 = vmatmul.mubr.f32.gmra.mxu0 %v112
  %v189 = vpop.f32.mrf.mxu0
  %v190 = vadd.f32 %v109, %v189
  %v191 = vpop.f32.mrf.mxu0
  %192 = vmatprep.mubr.f32.mxu0 0.0
  %193 = vmatmul.mubr.f32.gmra.mxu0 %v115
  %v194 = vpop.f32.mrf.mxu0
  %v195 = vadd.f32 %v109, %v194
  %v196 = vpop.f32.mrf.mxu0
  %197 = vmatprep.mubr.f32.mxu0 0.0
  %198 = vmatmul.mubr.f32.gmra.mxu0 %v118
  %v199 = vpop.f32.mrf.mxu0
  %v200 = vadd.f32 %v109, %v199
  %v201 = vpop.f32.mrf.mxu0
  %202 = vmatprep.mubr.f32.mxu0 0.0
  %203 = vmatmul.mubr.f32.gmra.mxu0 %v121
  %v204 = vpop.f32.mrf.mxu0
  %v205 = vadd.f32 %v109, %v204
  %v206 = vpop.f32.mrf.mxu0
  %207 = vdwg.mxu0
  %208 = vst [vmem:[%s5] sm:$0xff] %v190
  %209 = vst [vmem:[%s5 + $0x8] sm:$0xff] %v195
  %210 = vst [vmem:[%s5 + $0x10] sm:$0xff] %v200
  %211 = vst [vmem:[%s5 + $0x18] sm:$0xff] %v205
  // Predicated region
  $region22: #{swin_forward.28} parent=0 // pred_check
    _
  $region23: #{swin_forward.28} parent=0 // pred_check_branch
    %213 = sbr.rel (0) target = $region25
  $region24: #{swin_forward.28} parent=0 // pred_region
    _
  $region25: #{swin_forward.28} parent=0 // pred_fallthru
    _
  // Predicated region
  $region26: #{swin_forward.28} parent=0 // pred_check
    _
  $region27: #{swin_forward.28} parent=0 // pred_check_branch
    %215 = sbr.rel (0) target = $region29
  $region28: #{swin_forward.28} parent=0 // pred_region
    _
  $region29: #{swin_forward.28} parent=0 // pred_fallthru
    _

// kernel: swin_forward.29
$region0: #{swin_forward.29}
  #allocation0 [shape = 'u32[]', space=smem, size = 0x4, offset = 0x4, fixed_abs, tag = 'smem constant byte address 0x4 - core index']
  #allocation1 [shape = 'u32[144,128]{1,0:T(1,128)}', space=vmem, size = 0x12000, scoped, tag = 'internal scratch']
  %s0 = inlined_call_operand.vmem [shape: f32[32,128], index: 0, kind: input, shape index: {}]
  %s1 = inlined_call_operand.vmem [shape: f32[128,32], index: 1, kind: input, shape index: {}]
  %s2 = inlined_call_operand.vmem [shape: f32[1,32], index: 2, kind: input, shape index: {}]
  %s3 = inlined_call_operand.vmem [shape: f32[32,32], index: 3, kind: input, shape index: {}]
  %s4 = inlined_call_operand.vmem [shape: f32[32,32], index: 4, kind: output, shape index: {}]
  %s5 = sld [smem:[#allocation0]]
  $region26: #{swin_forward.29} parent=0
    _
  %s7 = ssub.s32 1, %s5
  %s8 = scalar_select 0, %s7, %s5
  // Predicated region
  $region2: #{swin_forward.29} parent=0 // pred_check
    _
  $region3: #{swin_forward.29} parent=0 // pred_check_branch
    %10 = sbr.rel (0) target = $region5
  $region4: #{swin_forward.29} parent=0 // pred_region
    _
  $region5: #{swin_forward.29} parent=0 // pred_fallthru
    _
  // Predicated region
  $region6: #{swin_forward.29} parent=0 // pred_check
    _
  $region7: #{swin_forward.29} parent=0 // pred_check_branch
    %12 = sbr.rel (0) target = $region9
  $region8: #{swin_forward.29} parent=0 // pred_region
    _
  $region9: #{swin_forward.29} parent=0 // pred_fallthru
    _
  // Predicated region
  $region10: #{swin_forward.29} parent=0 // pred_check
    _
  $region11: #{swin_forward.29} parent=0 // pred_check_branch
    %14 = sbr.rel (0) target = $region13
  $region12: #{swin_forward.29} parent=0 // pred_region
    _
  $region13: #{swin_forward.29} parent=0 // pred_fallthru
    _
  // Predicated region
  $region14: #{swin_forward.29} parent=0 // pred_check
    _
  $region15: #{swin_forward.29} parent=0 // pred_check_branch
    %16 = sbr.rel (0) target = $region17
  $region16: #{swin_forward.29} parent=0 // pred_region
    _
  $region17: #{swin_forward.29} parent=0 // pred_fallthru
    _
  %v17 = vld [vmem:[%s0] sm:$0xff]
  %v18 = vld [vmem:[%s0 + $0x8] sm:$0xff]
  %v19 = vld [vmem:[%s0 + $0x10] sm:$0xff]
  %v20 = vld [vmem:[%s0 + $0x18] sm:$0xff]
  %v21 = vld [vmem:[%s1] sm:$0xff]
  %v22 = vld [vmem:[%s1 + $0x8] sm:$0xff]
  %v23 = vld [vmem:[%s1 + $0x10] sm:$0xff]
  %v24 = vld [vmem:[%s1 + $0x18] sm:$0xff]
  %v25 = vld [vmem:[%s1 + $0x20] sm:$0xff]
  %v26 = vld [vmem:[%s1 + $0x28] sm:$0xff]
  %v27 = vld [vmem:[%s1 + $0x30] sm:$0xff]
  %v28 = vld [vmem:[%s1 + $0x38] sm:$0xff]
  %v29 = vld [vmem:[%s1 + $0x40] sm:$0xff]
  %v30 = vld [vmem:[%s1 + $0x48] sm:$0xff]
  %v31 = vld [vmem:[%s1 + $0x50] sm:$0xff]
  %v32 = vld [vmem:[%s1 + $0x58] sm:$0xff]
  %v33 = vld [vmem:[%s1 + $0x60] sm:$0xff]
  %v34 = vld [vmem:[%s1 + $0x68] sm:$0xff]
  %v35 = vld [vmem:[%s1 + $0x70] sm:$0xff]
  %v36 = vld [vmem:[%s1 + $0x78] sm:$0xff]
  %v37 = vld [vmem:[%s2] sm:$0x1]
  %v39 = vlaneseq
  %v40 = vshrl.u32 %v39, 7
  %v41 = vsub.s32 0, %v40
  %v42 = vrot.slane %v37, %v41
  %44 = vmatprep.subr.mxu0 0.0
  %45 = vmatpush1.msra.mxu0 %v36
  %46 = vmatprep.subr.mxu0 0.0
  %47 = vmatpush1.msra.mxu0 %v35
  %48 = vmatprep.subr.mxu0 0.0
  %49 = vmatpush1.msra.mxu0 %v34
  %50 = vmatprep.subr.mxu0 0.0
  %51 = vmatpush1.msra.mxu0 %v33
  %52 = vmatprep.subr.mxu0 0.0
  %53 = vmatpush1.msra.mxu0 %v32
  %54 = vmatprep.subr.mxu0 0.0
  %55 = vmatpush1.msra.mxu0 %v31
  %56 = vmatprep.subr.mxu0 0.0
  %57 = vmatpush1.msra.mxu0 %v30
  %58 = vmatprep.subr.mxu0 0.0
  %59 = vmatpush1.msra.mxu0 %v29
  %60 = vmatprep.subr.mxu0 0.0
  %61 = vmatpush1.msra.mxu0 %v28
  %62 = vmatprep.subr.mxu0 0.0
  %63 = vmatpush1.msra.mxu0 %v27
  %64 = vmatprep.subr.mxu0 0.0
  %65 = vmatpush1.msra.mxu0 %v26
  %66 = vmatprep.subr.mxu0 0.0
  %67 = vmatpush1.msra.mxu0 %v25
  %68 = vmatprep.subr.mxu0 0.0
  %69 = vmatpush1.msra.mxu0 %v24
  %70 = vmatprep.subr.mxu0 0.0
  %71 = vmatpush1.msra.mxu0 %v23
  %72 = vmatprep.subr.mxu0 0.0
  %73 = vmatpush1.msra.mxu0 %v22
  %74 = vmatprep.subr.mxu0 0.0
  %75 = vmatpush1.msra.mxu0 %v21
  %76 = vmatprep.subr.mxu0 0.0
  %77 = vmatpush2.msra.mxu0 0.0
  %78 = vmatprep.subr.mxu0 0.0
  %79 = vmatpush2.msra.mxu0 0.0
  %80 = vmatprep.subr.mxu0 0.0
  %81 = vmatpush2.msra.mxu0 0.0
  %82 = vmatprep.subr.mxu0 0.0
  %83 = vmatpush2.msra.mxu0 0.0
  %84 = vmatprep.subr.mxu0 0.0
  %85 = vmatpush2.msra.mxu0 0.0
  %86 = vmatprep.subr.mxu0 0.0
  %87 = vmatpush2.msra.mxu0 0.0
  %88 = vmatprep.subr.mxu0 0.0
  %89 = vmatpush2.msra.mxu0 0.0
  %90 = vmatprep.subr.mxu0 0.0
  %91 = vmatpush2.msra.mxu0 0.0
  %92 = vmatprep.subr.mxu0 0.0
  %93 = vmatpush2.msra.mxu0 0.0
  %94 = vmatprep.subr.mxu0 0.0
  %95 = vmatpush2.msra.mxu0 0.0
  %96 = vmatprep.subr.mxu0 0.0
  %97 = vmatpush2.msra.mxu0 0.0
  %98 = vmatprep.subr.mxu0 0.0
  %99 = vmatpush2.msra.mxu0 0.0
  %100 = vmatprep.subr.mxu0 0.0
  %101 = vmatpush2.msra.mxu0 0.0
  %102 = vmatprep.subr.mxu0 0.0
  %103 = vmatpush2.msra.mxu0 0.0
  %104 = vmatprep.subr.mxu0 0.0
  %105 = vmatpush2.msra.mxu0 0.0
  %106 = vmatprep.subr.mxu0 0.0
  %107 = vmatpush2.msra.mxu0 0.0
  %108 = vmatprep.mubr.f32.mxu0 0.0
  %109 = vmatmul.mubr.f32.gmra.mxu0 %v17
  %v110 = vpop.f32.mrf.mxu0
  %v111 = vadd.f32 %v42, %v110
  %v112 = vpop.f32.mrf.mxu0
  %113 = vmatprep.mubr.f32.mxu0 0.0
  %114 = vmatmul.mubr.f32.gmra.mxu0 %v18
  %v115 = vpop.f32.mrf.mxu0
  %v116 = vadd.f32 %v42, %v115
  %v117 = vpop.f32.mrf.mxu0
  %118 = vmatprep.mubr.f32.mxu0 0.0
  %119 = vmatmul.mubr.f32.gmra.mxu0 %v19
  %v120 = vpop.f32.mrf.mxu0
  %v121 = vadd.f32 %v42, %v120
  %v122 = vpop.f32.mrf.mxu0
  %123 = vmatprep.mubr.f32.mxu0 0.0
  %124 = vmatmul.mubr.f32.gmra.mxu0 %v20
  %v125 = vpop.f32.mrf.mxu0
  %v126 = vadd.f32 %v42, %v125
  %v127 = vpop.f32.mrf.mxu0
  %128 = vdwg.mxu0
  %v129 = vld [vmem:[%s3] sm:$0xff]
  %v130 = vld [vmem:[%s3 + $0x8] sm:$0xff]
  %v131 = vld [vmem:[%s3 + $0x10] sm:$0xff]
  %v132 = vld [vmem:[%s3 + $0x18] sm:$0xff]
  %v133 = vadd.f32 %v111, %v129
  %v134 = vadd.f32 %v116, %v130
  %v135 = vadd.f32 %v121, %v131
  %v136 = vadd.f32 %v126, %v132
  %vm137 = vcmask 261120
  %138 = vst.msk [vmem:[%s4] sm:$0xff] %vm137, %v133
  %139 = vst.msk [vmem:[%s4 + $0x8] sm:$0xff] %vm137, %v134
  %140 = vst.msk [vmem:[%s4 + $0x10] sm:$0xff] %vm137, %v135
  %141 = vst.msk [vmem:[%s4 + $0x18] sm:$0xff] %vm137, %v136
  // Predicated region
  $region18: #{swin_forward.29} parent=0 // pred_check
    _
  $region19: #{swin_forward.29} parent=0 // pred_check_branch
    %143 = sbr.rel (0) target = $region21
  $region20: #{swin_forward.29} parent=0 // pred_region
    _
  $region21: #{swin_forward.29} parent=0 // pred_fallthru
    _
  // Predicated region
  $region22: #{swin_forward.29} parent=0 // pred_check
    _
  $region23: #{swin_forward.29} parent=0 // pred_check_branch
    %145 = sbr.rel (0) target = $region25
  $region24: #{swin_forward.29} parent=0 // pred_region
    _
  $region25: #{swin_forward.29} parent=0 // pred_fallthru
    _

// kernel: swin_forward.26
$region0: #{swin_forward.26}
  #allocation0 [shape = 'u32[]', space=smem, size = 0x4, offset = 0x4, fixed_abs, tag = 'smem constant byte address 0x4 - core index']
  #allocation1 [shape = 'u32[144,128]{1,0:T(1,128)}', space=vmem, size = 0x12000, scoped, tag = 'internal scratch']
  %s0 = inlined_call_operand.vmem [shape: f32[8,4,96], index: 0, kind: input, shape index: {}]
  %s1 = inlined_call_operand.vmem [shape: f32[1,2,4,4], index: 1, kind: input, shape index: {}]
  %s2 = inlined_call_operand.vmem [shape: f32[8,4,32], index: 2, kind: output, shape index: {}]
  %s3 = sld [smem:[#allocation0]]
  $region18: #{swin_forward.26} parent=0
    _
  %s5 = ssub.s32 1, %s3
  %s6 = scalar_select 0, %s5, %s3
  // Predicated region
  $region2: #{swin_forward.26} parent=0 // pred_check
    _
  $region3: #{swin_forward.26} parent=0 // pred_check_branch
    %8 = sbr.rel (0) target = $region5
  $region4: #{swin_forward.26} parent=0 // pred_region
    _
  $region5: #{swin_forward.26} parent=0 // pred_fallthru
    _
  // Predicated region
  $region6: #{swin_forward.26} parent=0 // pred_check
    _
  $region7: #{swin_forward.26} parent=0 // pred_check_branch
    %10 = sbr.rel (0) target = $region9
  $region8: #{swin_forward.26} parent=0 // pred_region
    _
  $region9: #{swin_forward.26} parent=0 // pred_fallthru
    _
  %v11 = vld [vmem:[%s0] sm:$0xf]
  %v12 = vld [vmem:[%s0 + $0x4] sm:$0xf]
  %v13 = vld [vmem:[%s0 + $0x8] sm:$0xf]
  %v14 = vld [vmem:[%s0 + $0xc] sm:$0xf]
  %v15 = vld [vmem:[%s0 + $0x10] sm:$0xf]
  %v16 = vld [vmem:[%s0 + $0x14] sm:$0xf]
  %v17 = vld [vmem:[%s0 + $0x18] sm:$0xf]
  %v18 = vld [vmem:[%s0 + $0x1c] sm:$0xf]
  %v19 = vld [vmem:[%s1] sm:$0xf]
  %v20 = vld [vmem:[%s1 + $0x4] sm:$0xf]
  %22 = vrot.lane.b32.xlu0 %v11, 96
  %v23 = vpop.permute.xlu0 %22
  %vm24 = vcmask 130048
  %v25 = vsel %vm24, %v11, 0
  %v27 = vsel %vm24, %v23, 0
  %29 = vmatprep.subr.mxu0 0.0
  %30 = vmatpush1.xpose.msra.mxu0 0.0
  %31 = vmatprep.subr.mxu0 0.0
  %32 = vmatpush1.xpose.msra.mxu0 0.0
  %33 = vmatprep.subr.mxu0 0.0
  %34 = vmatpush1.xpose.msra.mxu0 0.0
  %35 = vmatprep.subr.mxu0 0.0
  %36 = vmatpush1.xpose.msra.mxu0 0.0
  %37 = vmatprep.subr.mxu0 0.0
  %38 = vmatpush1.xpose.msra.mxu0 0.0
  %39 = vmatprep.subr.mxu0 0.0
  %40 = vmatpush1.xpose.msra.mxu0 0.0
  %41 = vmatprep.subr.mxu0 0.0
  %42 = vmatpush1.xpose.msra.mxu0 0.0
  %43 = vmatprep.subr.mxu0 0.0
  %44 = vmatpush1.xpose.msra.mxu0 0.0
  %45 = vmatprep.subr.mxu0 0.0
  %46 = vmatpush1.xpose.msra.mxu0 0.0
  %47 = vmatprep.subr.mxu0 0.0
  %48 = vmatpush1.xpose.msra.mxu0 0.0
  %49 = vmatprep.subr.mxu0 0.0
  %50 = vmatpush1.xpose.msra.mxu0 0.0
  %51 = vmatprep.subr.mxu0 0.0
  %52 = vmatpush1.xpose.msra.mxu0 0.0
  %53 = vmatprep.subr.mxu0 0.0
  %54 = vmatpush1.xpose.msra.mxu0 0.0
  %55 = vmatprep.subr.mxu0 0.0
  %56 = vmatpush1.xpose.msra.mxu0 0.0
  %57 = vmatprep.subr.mxu0 0.0
  %58 = vmatpush1.xpose.msra.mxu0 0.0
  %59 = vmatprep.subr.mxu0 0.0
  %60 = vmatpush1.xpose.msra.mxu0 %v27
  %61 = vmatprep.subr.mxu0 0.0
  %62 = vmatpush2.xpose.msra.mxu0 0.0
  %63 = vmatprep.subr.mxu0 0.0
  %64 = vmatpush2.xpose.msra.mxu0 0.0
  %65 = vmatprep.subr.mxu0 0.0
  %66 = vmatpush2.xpose.msra.mxu0 0.0
  %67 = vmatprep.subr.mxu0 0.0
  %68 = vmatpush2.xpose.msra.mxu0 0.0
  %69 = vmatprep.subr.mxu0 0.0
  %70 = vmatpush2.xpose.msra.mxu0 0.0
  %71 = vmatprep.subr.mxu0 0.0
  %72 = vmatpush2.xpose.msra.mxu0 0.0
  %73 = vmatprep.subr.mxu0 0.0
  %74 = vmatpush2.xpose.msra.mxu0 0.0
  %75 = vmatprep.subr.mxu0 0.0
  %76 = vmatpush2.xpose.msra.mxu0 0.0
  %77 = vmatprep.subr.mxu0 0.0
  %78 = vmatpush2.xpose.msra.mxu0 0.0
  %79 = vmatprep.subr.mxu0 0.0
  %80 = vmatpush2.xpose.msra.mxu0 0.0
  %81 = vmatprep.subr.mxu0 0.0
  %82 = vmatpush2.xpose.msra.mxu0 0.0
  %83 = vmatprep.subr.mxu0 0.0
  %84 = vmatpush2.xpose.msra.mxu0 0.0
  %85 = vmatprep.subr.mxu0 0.0
  %86 = vmatpush2.xpose.msra.mxu0 0.0
  %87 = vmatprep.subr.mxu0 0.0
  %88 = vmatpush2.xpose.msra.mxu0 0.0
  %89 = vmatprep.subr.mxu0 0.0
  %90 = vmatpush2.xpose.msra.mxu0 0.0
  %91 = vmatprep.subr.mxu0 0.0
  %92 = vmatpush2.xpose.msra.mxu0 0.0
  %93 = vmatprep.mubr.f32.mxu0 0.0
  %94 = vmatmul.mubr.f32.gmra.mxu0 %v25
  %v95 = vpop.f32.mrf.mxu0
  %v96 = vadd.f32 0.0, %v95
  %v97 = vpop.f32.mrf.mxu0
  %98 = vdwg.mxu0
  %100 = vrot.lane.b32.xlu0 %v12, 96
  %v101 = vpop.permute.xlu0 %100
  %v102 = vsel %vm24, %v12, 0
  %v104 = vsel %vm24, %v101, 0
  %106 = vmatprep.subr.mxu0 0.0
  %107 = vmatpush1.xpose.msra.mxu0 0.0
  %108 = vmatprep.subr.mxu0 0.0
  %109 = vmatpush1.xpose.msra.mxu0 0.0
  %110 = vmatprep.subr.mxu0 0.0
  %111 = vmatpush1.xpose.msra.mxu0 0.0
  %112 = vmatprep.subr.mxu0 0.0
  %113 = vmatpush1.xpose.msra.mxu0 0.0
  %114 = vmatprep.subr.mxu0 0.0
  %115 = vmatpush1.xpose.msra.mxu0 0.0
  %116 = vmatprep.subr.mxu0 0.0
  %117 = vmatpush1.xpose.msra.mxu0 0.0
  %118 = vmatprep.subr.mxu0 0.0
  %119 = vmatpush1.xpose.msra.mxu0 0.0
  %120 = vmatprep.subr.mxu0 0.0
  %121 = vmatpush1.xpose.msra.mxu0 0.0
  %122 = vmatprep.subr.mxu0 0.0
  %123 = vmatpush1.xpose.msra.mxu0 0.0
  %124 = vmatprep.subr.mxu0 0.0
  %125 = vmatpush1.xpose.msra.mxu0 0.0
  %126 = vmatprep.subr.mxu0 0.0
  %127 = vmatpush1.xpose.msra.mxu0 0.0
  %128 = vmatprep.subr.mxu0 0.0
  %129 = vmatpush1.xpose.msra.mxu0 0.0
  %130 = vmatprep.subr.mxu0 0.0
  %131 = vmatpush1.xpose.msra.mxu0 0.0
  %132 = vmatprep.subr.mxu0 0.0
  %133 = vmatpush1.xpose.msra.mxu0 0.0
  %134 = vmatprep.subr.mxu0 0.0
  %135 = vmatpush1.xpose.msra.mxu0 0.0
  %136 = vmatprep.subr.mxu0 0.0
  %137 = vmatpush1.xpose.msra.mxu0 %v104
  %138 = vmatprep.subr.mxu0 0.0
  %139 = vmatpush2.xpose.msra.mxu0 0.0
  %140 = vmatprep.subr.mxu0 0.0
  %141 = vmatpush2.xpose.msra.mxu0 0.0
  %142 = vmatprep.subr.mxu0 0.0
  %143 = vmatpush2.xpose.msra.mxu0 0.0
  %144 = vmatprep.subr.mxu0 0.0
  %145 = vmatpush2.xpose.msra.mxu0 0.0
  %146 = vmatprep.subr.mxu0 0.0
  %147 = vmatpush2.xpose.msra.mxu0 0.0
  %148 = vmatprep.subr.mxu0 0.0
  %149 = vmatpush2.xpose.msra.mxu0 0.0
  %150 = vmatprep.subr.mxu0 0.0
  %151 = vmatpush2.xpose.msra.mxu0 0.0
  %152 = vmatprep.subr.mxu0 0.0
  %153 = vmatpush2.xpose.msra.mxu0 0.0
  %154 = vmatprep.subr.mxu0 0.0
  %155 = vmatpush2.xpose.msra.mxu0 0.0
  %156 = vmatprep.subr.mxu0 0.0
  %157 = vmatpush2.xpose.msra.mxu0 0.0
  %158 = vmatprep.subr.mxu0 0.0
  %159 = vmatpush2.xpose.msra.mxu0 0.0
  %160 = vmatprep.subr.mxu0 0.0
  %161 = vmatpush2.xpose.msra.mxu0 0.0
  %162 = vmatprep.subr.mxu0 0.0
  %163 = vmatpush2.xpose.msra.mxu0 0.0
  %164 = vmatprep.subr.mxu0 0.0
  %165 = vmatpush2.xpose.msra.mxu0 0.0
  %166 = vmatprep.subr.mxu0 0.0
  %167 = vmatpush2.xpose.msra.mxu0 0.0
  %168 = vmatprep.subr.mxu0 0.0
  %169 = vmatpush2.xpose.msra.mxu0 0.0
  %170 = vmatprep.mubr.f32.mxu0 0.0
  %171 = vmatmul.mubr.f32.gmra.mxu0 %v102
  %v172 = vpop.f32.mrf.mxu0
  %v173 = vadd.f32 0.0, %v172
  %v174 = vpop.f32.mrf.mxu0
  %175 = vdwg.mxu0
  %177 = vrot.lane.b32.xlu0 %v13, 96
  %v178 = vpop.permute.xlu0 %177
  %v179 = vsel %vm24, %v13, 0
  %v181 = vsel %vm24, %v178, 0
  %183 = vmatprep.subr.mxu0 0.0
  %184 = vmatpush1.xpose.msra.mxu0 0.0
  %185 = vmatprep.subr.mxu0 0.0
  %186 = vmatpush1.xpose.msra.mxu0 0.0
  %187 = vmatprep.subr.mxu0 0.0
  %188 = vmatpush1.xpose.msra.mxu0 0.0
  %189 = vmatprep.subr.mxu0 0.0
  %190 = vmatpush1.xpose.msra.mxu0 0.0
  %191 = vmatprep.subr.mxu0 0.0
  %192 = vmatpush1.xpose.msra.mxu0 0.0
  %193 = vmatprep.subr.mxu0 0.0
  %194 = vmatpush1.xpose.msra.mxu0 0.0
  %195 = vmatprep.subr.mxu0 0.0
  %196 = vmatpush1.xpose.msra.mxu0 0.0
  %197 = vmatprep.subr.mxu0 0.0
  %198 = vmatpush1.xpose.msra.mxu0 0.0
  %199 = vmatprep.subr.mxu0 0.0
  %200 = vmatpush1.xpose.msra.mxu0 0.0
  %201 = vmatprep.subr.mxu0 0.0
  %202 = vmatpush1.xpose.msra.mxu0 0.0
  %203 = vmatprep.subr.mxu0 0.0
  %204 = vmatpush1.xpose.msra.mxu0 0.0
  %205 = vmatprep.subr.mxu0 0.0
  %206 = vmatpush1.xpose.msra.mxu0 0.0
  %207 = vmatprep.subr.mxu0 0.0
  %208 = vmatpush1.xpose.msra.mxu0 0.0
  %209 = vmatprep.subr.mxu0 0.0
  %210 = vmatpush1.xpose.msra.mxu0 0.0
  %211 = vmatprep.subr.mxu0 0.0
  %212 = vmatpush1.xpose.msra.mxu0 0.0
  %213 = vmatprep.subr.mxu0 0.0
  %214 = vmatpush1.xpose.msra.mxu0 %v181
  %215 = vmatprep.subr.mxu0 0.0
  %216 = vmatpush2.xpose.msra.mxu0 0.0
  %217 = vmatprep.subr.mxu0 0.0
  %218 = vmatpush2.xpose.msra.mxu0 0.0
  %219 = vmatprep.subr.mxu0 0.0
  %220 = vmatpush2.xpose.msra.mxu0 0.0
  %221 = vmatprep.subr.mxu0 0.0
  %222 = vmatpush2.xpose.msra.mxu0 0.0
  %223 = vmatprep.subr.mxu0 0.0
  %224 = vmatpush2.xpose.msra.mxu0 0.0
  %225 = vmatprep.subr.mxu0 0.0
  %226 = vmatpush2.xpose.msra.mxu0 0.0
  %227 = vmatprep.subr.mxu0 0.0
  %228 = vmatpush2.xpose.msra.mxu0 0.0
  %229 = vmatprep.subr.mxu0 0.0
  %230 = vmatpush2.xpose.msra.mxu0 0.0
  %231 = vmatprep.subr.mxu0 0.0
  %232 = vmatpush2.xpose.msra.mxu0 0.0
  %233 = vmatprep.subr.mxu0 0.0
  %234 = vmatpush2.xpose.msra.mxu0 0.0
  %235 = vmatprep.subr.mxu0 0.0
  %236 = vmatpush2.xpose.msra.mxu0 0.0
  %237 = vmatprep.subr.mxu0 0.0
  %238 = vmatpush2.xpose.msra.mxu0 0.0
  %239 = vmatprep.subr.mxu0 0.0
  %240 = vmatpush2.xpose.msra.mxu0 0.0
  %241 = vmatprep.subr.mxu0 0.0
  %242 = vmatpush2.xpose.msra.mxu0 0.0
  %243 = vmatprep.subr.mxu0 0.0
  %244 = vmatpush2.xpose.msra.mxu0 0.0
  %245 = vmatprep.subr.mxu0 0.0
  %246 = vmatpush2.xpose.msra.mxu0 0.0
  %247 = vmatprep.mubr.f32.mxu0 0.0
  %248 = vmatmul.mubr.f32.gmra.mxu0 %v179
  %v249 = vpop.f32.mrf.mxu0
  %v250 = vadd.f32 0.0, %v249
  %v251 = vpop.f32.mrf.mxu0
  %252 = vdwg.mxu0
  %254 = vrot.lane.b32.xlu0 %v14, 96
  %v255 = vpop.permute.xlu0 %254
  %v256 = vsel %vm24, %v14, 0
  %v258 = vsel %vm24, %v255, 0
  %260 = vmatprep.subr.mxu0 0.0
  %261 = vmatpush1.xpose.msra.mxu0 0.0
  %262 = vmatprep.subr.mxu0 0.0
  %263 = vmatpush1.xpose.msra.mxu0 0.0
  %264 = vmatprep.subr.mxu0 0.0
  %265 = vmatpush1.xpose.msra.mxu0 0.0
  %266 = vmatprep.subr.mxu0 0.0
  %267 = vmatpush1.xpose.msra.mxu0 0.0
  %268 = vmatprep.subr.mxu0 0.0
  %269 = vmatpush1.xpose.msra.mxu0 0.0
  %270 = vmatprep.subr.mxu0 0.0
  %271 = vmatpush1.xpose.msra.mxu0 0.0
  %272 = vmatprep.subr.mxu0 0.0
  %273 = vmatpush1.xpose.msra.mxu0 0.0
  %274 = vmatprep.subr.mxu0 0.0
  %275 = vmatpush1.xpose.msra.mxu0 0.0
  %276 = vmatprep.subr.mxu0 0.0
  %277 = vmatpush1.xpose.msra.mxu0 0.0
  %278 = vmatprep.subr.mxu0 0.0
  %279 = vmatpush1.xpose.msra.mxu0 0.0
  %280 = vmatprep.subr.mxu0 0.0
  %281 = vmatpush1.xpose.msra.mxu0 0.0
  %282 = vmatprep.subr.mxu0 0.0
  %283 = vmatpush1.xpose.msra.mxu0 0.0
  %284 = vmatprep.subr.mxu0 0.0
  %285 = vmatpush1.xpose.msra.mxu0 0.0
  %286 = vmatprep.subr.mxu0 0.0
  %287 = vmatpush1.xpose.msra.mxu0 0.0
  %288 = vmatprep.subr.mxu0 0.0
  %289 = vmatpush1.xpose.msra.mxu0 0.0
  %290 = vmatprep.subr.mxu0 0.0
  %291 = vmatpush1.xpose.msra.mxu0 %v258
  %292 = vmatprep.subr.mxu0 0.0
  %293 = vmatpush2.xpose.msra.mxu0 0.0
  %294 = vmatprep.subr.mxu0 0.0
  %295 = vmatpush2.xpose.msra.mxu0 0.0
  %296 = vmatprep.subr.mxu0 0.0
  %297 = vmatpush2.xpose.msra.mxu0 0.0
  %298 = vmatprep.subr.mxu0 0.0
  %299 = vmatpush2.xpose.msra.mxu0 0.0
  %300 = vmatprep.subr.mxu0 0.0
  %301 = vmatpush2.xpose.msra.mxu0 0.0
  %302 = vmatprep.subr.mxu0 0.0
  %303 = vmatpush2.xpose.msra.mxu0 0.0
  %304 = vmatprep.subr.mxu0 0.0
  %305 = vmatpush2.xpose.msra.mxu0 0.0
  %306 = vmatprep.subr.mxu0 0.0
  %307 = vmatpush2.xpose.msra.mxu0 0.0
  %308 = vmatprep.subr.mxu0 0.0
  %309 = vmatpush2.xpose.msra.mxu0 0.0
  %310 = vmatprep.subr.mxu0 0.0
  %311 = vmatpush2.xpose.msra.mxu0 0.0
  %312 = vmatprep.subr.mxu0 0.0
  %313 = vmatpush2.xpose.msra.mxu0 0.0
  %314 = vmatprep.subr.mxu0 0.0
  %315 = vmatpush2.xpose.msra.mxu0 0.0
  %316 = vmatprep.subr.mxu0 0.0
  %317 = vmatpush2.xpose.msra.mxu0 0.0
  %318 = vmatprep.subr.mxu0 0.0
  %319 = vmatpush2.xpose.msra.mxu0 0.0
  %320 = vmatprep.subr.mxu0 0.0
  %321 = vmatpush2.xpose.msra.mxu0 0.0
  %322 = vmatprep.subr.mxu0 0.0
  %323 = vmatpush2.xpose.msra.mxu0 0.0
  %324 = vmatprep.mubr.f32.mxu0 0.0
  %325 = vmatmul.mubr.f32.gmra.mxu0 %v256
  %v326 = vpop.f32.mrf.mxu0
  %v327 = vadd.f32 0.0, %v326
  %v328 = vpop.f32.mrf.mxu0
  %329 = vdwg.mxu0
  %331 = vrot.lane.b32.xlu0 %v15, 96
  %v332 = vpop.permute.xlu0 %331
  %v333 = vsel %vm24, %v15, 0
  %v335 = vsel %vm24, %v332, 0
  %337 = vmatprep.subr.mxu0 0.0
  %338 = vmatpush1.xpose.msra.mxu0 0.0
  %339 = vmatprep.subr.mxu0 0.0
  %340 = vmatpush1.xpose.msra.mxu0 0.0
  %341 = vmatprep.subr.mxu0 0.0
  %342 = vmatpush1.xpose.msra.mxu0 0.0
  %343 = vmatprep.subr.mxu0 0.0
  %344 = vmatpush1.xpose.msra.mxu0 0.0
  %345 = vmatprep.subr.mxu0 0.0
  %346 = vmatpush1.xpose.msra.mxu0 0.0
  %347 = vmatprep.subr.mxu0 0.0
  %348 = vmatpush1.xpose.msra.mxu0 0.0
  %349 = vmatprep.subr.mxu0 0.0
  %350 = vmatpush1.xpose.msra.mxu0 0.0
  %351 = vmatprep.subr.mxu0 0.0
  %352 = vmatpush1.xpose.msra.mxu0 0.0
  %353 = vmatprep.subr.mxu0 0.0
  %354 = vmatpush1.xpose.msra.mxu0 0.0
  %355 = vmatprep.subr.mxu0 0.0
  %356 = vmatpush1.xpose.msra.mxu0 0.0
  %357 = vmatprep.subr.mxu0 0.0
  %358 = vmatpush1.xpose.msra.mxu0 0.0
  %359 = vmatprep.subr.mxu0 0.0
  %360 = vmatpush1.xpose.msra.mxu0 0.0
  %361 = vmatprep.subr.mxu0 0.0
  %362 = vmatpush1.xpose.msra.mxu0 0.0
  %363 = vmatprep.subr.mxu0 0.0
  %364 = vmatpush1.xpose.msra.mxu0 0.0
  %365 = vmatprep.subr.mxu0 0.0
  %366 = vmatpush1.xpose.msra.mxu0 0.0
  %367 = vmatprep.subr.mxu0 0.0
  %368 = vmatpush1.xpose.msra.mxu0 %v335
  %369 = vmatprep.subr.mxu0 0.0
  %370 = vmatpush2.xpose.msra.mxu0 0.0
  %371 = vmatprep.subr.mxu0 0.0
  %372 = vmatpush2.xpose.msra.mxu0 0.0
  %373 = vmatprep.subr.mxu0 0.0
  %374 = vmatpush2.xpose.msra.mxu0 0.0
  %375 = vmatprep.subr.mxu0 0.0
  %376 = vmatpush2.xpose.msra.mxu0 0.0
  %377 = vmatprep.subr.mxu0 0.0
  %378 = vmatpush2.xpose.msra.mxu0 0.0
  %379 = vmatprep.subr.mxu0 0.0
  %380 = vmatpush2.xpose.msra.mxu0 0.0
  %381 = vmatprep.subr.mxu0 0.0
  %382 = vmatpush2.xpose.msra.mxu0 0.0
  %383 = vmatprep.subr.mxu0 0.0
  %384 = vmatpush2.xpose.msra.mxu0 0.0
  %385 = vmatprep.subr.mxu0 0.0
  %386 = vmatpush2.xpose.msra.mxu0 0.0
  %387 = vmatprep.subr.mxu0 0.0
  %388 = vmatpush2.xpose.msra.mxu0 0.0
  %389 = vmatprep.subr.mxu0 0.0
  %390 = vmatpush2.xpose.msra.mxu0 0.0
  %391 = vmatprep.subr.mxu0 0.0
  %392 = vmatpush2.xpose.msra.mxu0 0.0
  %393 = vmatprep.subr.mxu0 0.0
  %394 = vmatpush2.xpose.msra.mxu0 0.0
  %395 = vmatprep.subr.mxu0 0.0
  %396 = vmatpush2.xpose.msra.mxu0 0.0
  %397 = vmatprep.subr.mxu0 0.0
  %398 = vmatpush2.xpose.msra.mxu0 0.0
  %399 = vmatprep.subr.mxu0 0.0
  %400 = vmatpush2.xpose.msra.mxu0 0.0
  %401 = vmatprep.mubr.f32.mxu0 0.0
  %402 = vmatmul.mubr.f32.gmra.mxu0 %v333
  %v403 = vpop.f32.mrf.mxu0
  %v404 = vadd.f32 0.0, %v403
  %v405 = vpop.f32.mrf.mxu0
  %406 = vdwg.mxu0
  %408 = vrot.lane.b32.xlu0 %v16, 96
  %v409 = vpop.permute.xlu0 %408
  %v410 = vsel %vm24, %v16, 0
  %v412 = vsel %vm24, %v409, 0
  %414 = vmatprep.subr.mxu0 0.0
  %415 = vmatpush1.xpose.msra.mxu0 0.0
  %416 = vmatprep.subr.mxu0 0.0
  %417 = vmatpush1.xpose.msra.mxu0 0.0
  %418 = vmatprep.subr.mxu0 0.0
  %419 = vmatpush1.xpose.msra.mxu0 0.0
  %420 = vmatprep.subr.mxu0 0.0
  %421 = vmatpush1.xpose.msra.mxu0 0.0
  %422 = vmatprep.subr.mxu0 0.0
  %423 = vmatpush1.xpose.msra.mxu0 0.0
  %424 = vmatprep.subr.mxu0 0.0
  %425 = vmatpush1.xpose.msra.mxu0 0.0
  %426 = vmatprep.subr.mxu0 0.0
  %427 = vmatpush1.xpose.msra.mxu0 0.0
  %428 = vmatprep.subr.mxu0 0.0
  %429 = vmatpush1.xpose.msra.mxu0 0.0
  %430 = vmatprep.subr.mxu0 0.0
  %431 = vmatpush1.xpose.msra.mxu0 0.0
  %432 = vmatprep.subr.mxu0 0.0
  %433 = vmatpush1.xpose.msra.mxu0 0.0
  %434 = vmatprep.subr.mxu0 0.0
  %435 = vmatpush1.xpose.msra.mxu0 0.0
  %436 = vmatprep.subr.mxu0 0.0
  %437 = vmatpush1.xpose.msra.mxu0 0.0
  %438 = vmatprep.subr.mxu0 0.0
  %439 = vmatpush1.xpose.msra.mxu0 0.0
  %440 = vmatprep.subr.mxu0 0.0
  %441 = vmatpush1.xpose.msra.mxu0 0.0
  %442 = vmatprep.subr.mxu0 0.0
  %443 = vmatpush1.xpose.msra.mxu0 0.0
  %444 = vmatprep.subr.mxu0 0.0
  %445 = vmatpush1.xpose.msra.mxu0 %v412
  %446 = vmatprep.subr.mxu0 0.0
  %447 = vmatpush2.xpose.msra.mxu0 0.0
  %448 = vmatprep.subr.mxu0 0.0
  %449 = vmatpush2.xpose.msra.mxu0 0.0
  %450 = vmatprep.subr.mxu0 0.0
  %451 = vmatpush2.xpose.msra.mxu0 0.0
  %452 = vmatprep.subr.mxu0 0.0
  %453 = vmatpush2.xpose.msra.mxu0 0.0
  %454 = vmatprep.subr.mxu0 0.0
  %455 = vmatpush2.xpose.msra.mxu0 0.0
  %456 = vmatprep.subr.mxu0 0.0
  %457 = vmatpush2.xpose.msra.mxu0 0.0
  %458 = vmatprep.subr.mxu0 0.0
  %459 = vmatpush2.xpose.msra.mxu0 0.0
  %460 = vmatprep.subr.mxu0 0.0
  %461 = vmatpush2.xpose.msra.mxu0 0.0
  %462 = vmatprep.subr.mxu0 0.0
  %463 = vmatpush2.xpose.msra.mxu0 0.0
  %464 = vmatprep.subr.mxu0 0.0
  %465 = vmatpush2.xpose.msra.mxu0 0.0
  %466 = vmatprep.subr.mxu0 0.0
  %467 = vmatpush2.xpose.msra.mxu0 0.0
  %468 = vmatprep.subr.mxu0 0.0
  %469 = vmatpush2.xpose.msra.mxu0 0.0
  %470 = vmatprep.subr.mxu0 0.0
  %471 = vmatpush2.xpose.msra.mxu0 0.0
  %472 = vmatprep.subr.mxu0 0.0
  %473 = vmatpush2.xpose.msra.mxu0 0.0
  %474 = vmatprep.subr.mxu0 0.0
  %475 = vmatpush2.xpose.msra.mxu0 0.0
  %476 = vmatprep.subr.mxu0 0.0
  %477 = vmatpush2.xpose.msra.mxu0 0.0
  %478 = vmatprep.mubr.f32.mxu0 0.0
  %479 = vmatmul.mubr.f32.gmra.mxu0 %v410
  %v480 = vpop.f32.mrf.mxu0
  %v481 = vadd.f32 0.0, %v480
  %v482 = vpop.f32.mrf.mxu0
  %483 = vdwg.mxu0
  %485 = vrot.lane.b32.xlu0 %v17, 96
  %v486 = vpop.permute.xlu0 %485
  %v487 = vsel %vm24, %v17, 0
  %v489 = vsel %vm24, %v486, 0
  %491 = vmatprep.subr.mxu0 0.0
  %492 = vmatpush1.xpose.msra.mxu0 0.0
  %493 = vmatprep.subr.mxu0 0.0
  %494 = vmatpush1.xpose.msra.mxu0 0.0
  %495 = vmatprep.subr.mxu0 0.0
  %496 = vmatpush1.xpose.msra.mxu0 0.0
  %497 = vmatprep.subr.mxu0 0.0
  %498 = vmatpush1.xpose.msra.mxu0 0.0
  %499 = vmatprep.subr.mxu0 0.0
  %500 = vmatpush1.xpose.msra.mxu0 0.0
  %501 = vmatprep.subr.mxu0 0.0
  %502 = vmatpush1.xpose.msra.mxu0 0.0
  %503 = vmatprep.subr.mxu0 0.0
  %504 = vmatpush1.xpose.msra.mxu0 0.0
  %505 = vmatprep.subr.mxu0 0.0
  %506 = vmatpush1.xpose.msra.mxu0 0.0
  %507 = vmatprep.subr.mxu0 0.0
  %508 = vmatpush1.xpose.msra.mxu0 0.0
  %509 = vmatprep.subr.mxu0 0.0
  %510 = vmatpush1.xpose.msra.mxu0 0.0
  %511 = vmatprep.subr.mxu0 0.0
  %512 = vmatpush1.xpose.msra.mxu0 0.0
  %513 = vmatprep.subr.mxu0 0.0
  %514 = vmatpush1.xpose.msra.mxu0 0.0
  %515 = vmatprep.subr.mxu0 0.0
  %516 = vmatpush1.xpose.msra.mxu0 0.0
  %517 = vmatprep.subr.mxu0 0.0
  %518 = vmatpush1.xpose.msra.mxu0 0.0
  %519 = vmatprep.subr.mxu0 0.0
  %520 = vmatpush1.xpose.msra.mxu0 0.0
  %521 = vmatprep.subr.mxu0 0.0
  %522 = vmatpush1.xpose.msra.mxu0 %v489
  %523 = vmatprep.subr.mxu0 0.0
  %524 = vmatpush2.xpose.msra.mxu0 0.0
  %525 = vmatprep.subr.mxu0 0.0
  %526 = vmatpush2.xpose.msra.mxu0 0.0
  %527 = vmatprep.subr.mxu0 0.0
  %528 = vmatpush2.xpose.msra.mxu0 0.0
  %529 = vmatprep.subr.mxu0 0.0
  %530 = vmatpush2.xpose.msra.mxu0 0.0
  %531 = vmatprep.subr.mxu0 0.0
  %532 = vmatpush2.xpose.msra.mxu0 0.0
  %533 = vmatprep.subr.mxu0 0.0
  %534 = vmatpush2.xpose.msra.mxu0 0.0
  %535 = vmatprep.subr.mxu0 0.0
  %536 = vmatpush2.xpose.msra.mxu0 0.0
  %537 = vmatprep.subr.mxu0 0.0
  %538 = vmatpush2.xpose.msra.mxu0 0.0
  %539 = vmatprep.subr.mxu0 0.0
  %540 = vmatpush2.xpose.msra.mxu0 0.0
  %541 = vmatprep.subr.mxu0 0.0
  %542 = vmatpush2.xpose.msra.mxu0 0.0
  %543 = vmatprep.subr.mxu0 0.0
  %544 = vmatpush2.xpose.msra.mxu0 0.0
  %545 = vmatprep.subr.mxu0 0.0
  %546 = vmatpush2.xpose.msra.mxu0 0.0
  %547 = vmatprep.subr.mxu0 0.0
  %548 = vmatpush2.xpose.msra.mxu0 0.0
  %549 = vmatprep.subr.mxu0 0.0
  %550 = vmatpush2.xpose.msra.mxu0 0.0
  %551 = vmatprep.subr.mxu0 0.0
  %552 = vmatpush2.xpose.msra.mxu0 0.0
  %553 = vmatprep.subr.mxu0 0.0
  %554 = vmatpush2.xpose.msra.mxu0 0.0
  %555 = vmatprep.mubr.f32.mxu0 0.0
  %556 = vmatmul.mubr.f32.gmra.mxu0 %v487
  %v557 = vpop.f32.mrf.mxu0
  %v558 = vadd.f32 0.0, %v557
  %v559 = vpop.f32.mrf.mxu0
  %560 = vdwg.mxu0
  %562 = vrot.lane.b32.xlu0 %v18, 96
  %v563 = vpop.permute.xlu0 %562
  %v564 = vsel %vm24, %v18, 0
  %v566 = vsel %vm24, %v563, 0
  %568 = vmatprep.subr.mxu0 0.0
  %569 = vmatpush1.xpose.msra.mxu0 0.0
  %570 = vmatprep.subr.mxu0 0.0
  %571 = vmatpush1.xpose.msra.mxu0 0.0
  %572 = vmatprep.subr.mxu0 0.0
  %573 = vmatpush1.xpose.msra.mxu0 0.0
  %574 = vmatprep.subr.mxu0 0.0
  %575 = vmatpush1.xpose.msra.mxu0 0.0
  %576 = vmatprep.subr.mxu0 0.0
  %577 = vmatpush1.xpose.msra.mxu0 0.0
  %578 = vmatprep.subr.mxu0 0.0
  %579 = vmatpush1.xpose.msra.mxu0 0.0
  %580 = vmatprep.subr.mxu0 0.0
  %581 = vmatpush1.xpose.msra.mxu0 0.0
  %582 = vmatprep.subr.mxu0 0.0
  %583 = vmatpush1.xpose.msra.mxu0 0.0
  %584 = vmatprep.subr.mxu0 0.0
  %585 = vmatpush1.xpose.msra.mxu0 0.0
  %586 = vmatprep.subr.mxu0 0.0
  %587 = vmatpush1.xpose.msra.mxu0 0.0
  %588 = vmatprep.subr.mxu0 0.0
  %589 = vmatpush1.xpose.msra.mxu0 0.0
  %590 = vmatprep.subr.mxu0 0.0
  %591 = vmatpush1.xpose.msra.mxu0 0.0
  %592 = vmatprep.subr.mxu0 0.0
  %593 = vmatpush1.xpose.msra.mxu0 0.0
  %594 = vmatprep.subr.mxu0 0.0
  %595 = vmatpush1.xpose.msra.mxu0 0.0
  %596 = vmatprep.subr.mxu0 0.0
  %597 = vmatpush1.xpose.msra.mxu0 0.0
  %598 = vmatprep.subr.mxu0 0.0
  %599 = vmatpush1.xpose.msra.mxu0 %v566
  %600 = vmatprep.subr.mxu0 0.0
  %601 = vmatpush2.xpose.msra.mxu0 0.0
  %602 = vmatprep.subr.mxu0 0.0
  %603 = vmatpush2.xpose.msra.mxu0 0.0
  %604 = vmatprep.subr.mxu0 0.0
  %605 = vmatpush2.xpose.msra.mxu0 0.0
  %606 = vmatprep.subr.mxu0 0.0
  %607 = vmatpush2.xpose.msra.mxu0 0.0
  %608 = vmatprep.subr.mxu0 0.0
  %609 = vmatpush2.xpose.msra.mxu0 0.0
  %610 = vmatprep.subr.mxu0 0.0
  %611 = vmatpush2.xpose.msra.mxu0 0.0
  %612 = vmatprep.subr.mxu0 0.0
  %613 = vmatpush2.xpose.msra.mxu0 0.0
  %614 = vmatprep.subr.mxu0 0.0
  %615 = vmatpush2.xpose.msra.mxu0 0.0
  %616 = vmatprep.subr.mxu0 0.0
  %617 = vmatpush2.xpose.msra.mxu0 0.0
  %618 = vmatprep.subr.mxu0 0.0
  %619 = vmatpush2.xpose.msra.mxu0 0.0
  %620 = vmatprep.subr.mxu0 0.0
  %621 = vmatpush2.xpose.msra.mxu0 0.0
  %622 = vmatprep.subr.mxu0 0.0
  %623 = vmatpush2.xpose.msra.mxu0 0.0
  %624 = vmatprep.subr.mxu0 0.0
  %625 = vmatpush2.xpose.msra.mxu0 0.0
  %626 = vmatprep.subr.mxu0 0.0
  %627 = vmatpush2.xpose.msra.mxu0 0.0
  %628 = vmatprep.subr.mxu0 0.0
  %629 = vmatpush2.xpose.msra.mxu0 0.0
  %630 = vmatprep.subr.mxu0 0.0
  %631 = vmatpush2.xpose.msra.mxu0 0.0
  %632 = vmatprep.mubr.f32.mxu0 0.0
  %633 = vmatmul.mubr.f32.gmra.mxu0 %v564
  %v634 = vpop.f32.mrf.mxu0
  %v635 = vadd.f32 0.0, %v634
  %v636 = vpop.f32.mrf.mxu0
  %637 = vdwg.mxu0
  %v638 = vmul.f32 %v96, 0.25
  %v639 = vmul.f32 %v173, 0.25
  %v640 = vmul.f32 %v250, 0.25
  %v641 = vmul.f32 %v327, 0.25
  %v642 = vmul.f32 %v404, 0.25
  %v643 = vmul.f32 %v481, 0.25
  %v644 = vmul.f32 %v558, 0.25
  %v645 = vmul.f32 %v635, 0.25
  %v646 = vadd.f32 %v638, %v19
  %v647 = vadd.f32 %v639, %v19
  %v648 = vadd.f32 %v640, %v19
  %v649 = vadd.f32 %v641, %v19
  %v650 = vadd.f32 %v642, %v19
  %v651 = vadd.f32 %v643, %v19
  %v652 = vadd.f32 %v644, %v19
  %v653 = vadd.f32 %v645, %v19
  %vm654 = vcmask 27648
  %v655 = vsel %vm654, %v646, -inf
  %656 = vmax.xlane.f32.xlu0 %v655
  %v657 = vpop.xlane.xlu0 %656
  %v658 = vsel %vm654, %v647, -inf
  %659 = vmax.xlane.f32.xlu0 %v658
  %v660 = vpop.xlane.xlu0 %659
  %v661 = vsel %vm654, %v648, -inf
  %662 = vmax.xlane.f32.xlu0 %v661
  %v663 = vpop.xlane.xlu0 %662
  %v664 = vsel %vm654, %v649, -inf
  %665 = vmax.xlane.f32.xlu0 %v664
  %v666 = vpop.xlane.xlu0 %665
  %v667 = vsel %vm654, %v650, -inf
  %668 = vmax.xlane.f32.xlu0 %v667
  %v669 = vpop.xlane.xlu0 %668
  %v670 = vsel %vm654, %v651, -inf
  %671 = vmax.xlane.f32.xlu0 %v670
  %v672 = vpop.xlane.xlu0 %671
  %v673 = vsel %vm654, %v652, -inf
  %674 = vmax.xlane.f32.xlu0 %v673
  %v675 = vpop.xlane.xlu0 %674
  %v676 = vsel %vm654, %v653, -inf
  %677 = vmax.xlane.f32.xlu0 %v676
  %v678 = vpop.xlane.xlu0 %677
  %v679 = vsub.f32 %v646, %v657
  %v680 = vsub.f32 %v647, %v660
  %v681 = vsub.f32 %v648, %v663
  %v682 = vsub.f32 %v649, %v666
  %v683 = vsub.f32 %v650, %v669
  %v684 = vsub.f32 %v651, %v672
  %v685 = vsub.f32 %v652, %v675
  %v686 = vsub.f32 %v653, %v678
  %v687 = vmul.f32 %v679, 1.442695
  %v688 = vpow.pop %v687
  %v689 = vmul.f32 %v680, 1.442695
  %v690 = vpow.pop %v689
  %v691 = vmul.f32 %v681, 1.442695
  %v692 = vpow.pop %v691
  %v693 = vmul.f32 %v682, 1.442695
  %v694 = vpow.pop %v693
  %v695 = vmul.f32 %v683, 1.442695
  %v696 = vpow.pop %v695
  %v697 = vmul.f32 %v684, 1.442695
  %v698 = vpow.pop %v697
  %v699 = vmul.f32 %v685, 1.442695
  %v700 = vpow.pop %v699
  %v701 = vmul.f32 %v686, 1.442695
  %v702 = vpow.pop %v701
  %v703 = vsel %vm654, %v688, 0.0
  %704 = vadd.xlane.f32.xlu0 %v703
  %v705 = vpop.xlane.xlu0 %704
  %v706 = vsel %vm654, %v690, 0.0
  %707 = vadd.xlane.f32.xlu0 %v706
  %v708 = vpop.xlane.xlu0 %707
  %v709 = vsel %vm654, %v692, 0.0
  %710 = vadd.xlane.f32.xlu0 %v709
  %v711 = vpop.xlane.xlu0 %710
  %v712 = vsel %vm654, %v694, 0.0
  %713 = vadd.xlane.f32.xlu0 %v712
  %v714 = vpop.xlane.xlu0 %713
  %v715 = vsel %vm654, %v696, 0.0
  %716 = vadd.xlane.f32.xlu0 %v715
  %v717 = vpop.xlane.xlu0 %716
  %v718 = vsel %vm654, %v698, 0.0
  %719 = vadd.xlane.f32.xlu0 %v718
  %v720 = vpop.xlane.xlu0 %719
  %v721 = vsel %vm654, %v700, 0.0
  %722 = vadd.xlane.f32.xlu0 %v721
  %v723 = vpop.xlane.xlu0 %722
  %v724 = vsel %vm654, %v702, 0.0
  %725 = vadd.xlane.f32.xlu0 %v724
  %v726 = vpop.xlane.xlu0 %725
  %v727 = vrcp.pop %v705
  %v728 = vrcp.pop %v708
  %v729 = vrcp.pop %v711
  %v730 = vrcp.pop %v714
  %v731 = vrcp.pop %v717
  %v732 = vrcp.pop %v720
  %v733 = vrcp.pop %v723
  %v734 = vrcp.pop %v726
  %v735 = vmul.f32 %v688, %v727
  %v736 = vmul.f32 %v690, %v728
  %v737 = vmul.f32 %v692, %v729
  %v738 = vmul.f32 %v694, %v730
  %v739 = vmul.f32 %v696, %v731
  %v740 = vmul.f32 %v698, %v732
  %v741 = vmul.f32 %v700, %v733
  %v742 = vmul.f32 %v702, %v734
  %743 = vrot.lane.b32.xlu0 %v11, 64
  %v744 = vpop.permute.xlu0 %743
  %vm745 = vcmask 31744
  %v747 = vsel %vm745, %v735, 0
  %vm749 = vcmask 1043456
  %v750 = vsel %vm749, %v744, 0
  %752 = vmatprep.subr.mxu0 0.0
  %753 = vmatpush1.msra.mxu0 0.0
  %754 = vmatprep.subr.mxu0 0.0
  %755 = vmatpush1.msra.mxu0 0.0
  %756 = vmatprep.subr.mxu0 0.0
  %757 = vmatpush1.msra.mxu0 0.0
  %758 = vmatprep.subr.mxu0 0.0
  %759 = vmatpush1.msra.mxu0 0.0
  %760 = vmatprep.subr.mxu0 0.0
  %761 = vmatpush1.msra.mxu0 0.0
  %762 = vmatprep.subr.mxu0 0.0
  %763 = vmatpush1.msra.mxu0 0.0
  %764 = vmatprep.subr.mxu0 0.0
  %765 = vmatpush1.msra.mxu0 0.0
  %766 = vmatprep.subr.mxu0 0.0
  %767 = vmatpush1.msra.mxu0 0.0
  %768 = vmatprep.subr.mxu0 0.0
  %769 = vmatpush1.msra.mxu0 0.0
  %770 = vmatprep.subr.mxu0 0.0
  %771 = vmatpush1.msra.mxu0 0.0
  %772 = vmatprep.subr.mxu0 0.0
  %773 = vmatpush1.msra.mxu0 0.0
  %774 = vmatprep.subr.mxu0 0.0
  %775 = vmatpush1.msra.mxu0 0.0
  %776 = vmatprep.subr.mxu0 0.0
  %777 = vmatpush1.msra.mxu0 0.0
  %778 = vmatprep.subr.mxu0 0.0
  %779 = vmatpush1.msra.mxu0 0.0
  %780 = vmatprep.subr.mxu0 0.0
  %781 = vmatpush1.msra.mxu0 0.0
  %782 = vmatprep.subr.mxu0 0.0
  %783 = vmatpush1.msra.mxu0 %v750
  %784 = vmatprep.subr.mxu0 0.0
  %785 = vmatpush2.msra.mxu0 0.0
  %786 = vmatprep.subr.mxu0 0.0
  %787 = vmatpush2.msra.mxu0 0.0
  %788 = vmatprep.subr.mxu0 0.0
  %789 = vmatpush2.msra.mxu0 0.0
  %790 = vmatprep.subr.mxu0 0.0
  %791 = vmatpush2.msra.mxu0 0.0
  %792 = vmatprep.subr.mxu0 0.0
  %793 = vmatpush2.msra.mxu0 0.0
  %794 = vmatprep.subr.mxu0 0.0
  %795 = vmatpush2.msra.mxu0 0.0
  %796 = vmatprep.subr.mxu0 0.0
  %797 = vmatpush2.msra.mxu0 0.0
  %798 = vmatprep.subr.mxu0 0.0
  %799 = vmatpush2.msra.mxu0 0.0
  %800 = vmatprep.subr.mxu0 0.0
  %801 = vmatpush2.msra.mxu0 0.0
  %802 = vmatprep.subr.mxu0 0.0
  %803 = vmatpush2.msra.mxu0 0.0
  %804 = vmatprep.subr.mxu0 0.0
  %805 = vmatpush2.msra.mxu0 0.0
  %806 = vmatprep.subr.mxu0 0.0
  %807 = vmatpush2.msra.mxu0 0.0
  %808 = vmatprep.subr.mxu0 0.0
  %809 = vmatpush2.msra.mxu0 0.0
  %810 = vmatprep.subr.mxu0 0.0
  %811 = vmatpush2.msra.mxu0 0.0
  %812 = vmatprep.subr.mxu0 0.0
  %813 = vmatpush2.msra.mxu0 0.0
  %814 = vmatprep.subr.mxu0 0.0
  %815 = vmatpush2.msra.mxu0 0.0
  %816 = vmatprep.mubr.f32.mxu0 0.0
  %817 = vmatmul.mubr.f32.gmra.mxu0 %v747
  %v818 = vpop.f32.mrf.mxu0
  %v819 = vadd.f32 0.0, %v818
  %v820 = vpop.f32.mrf.mxu0
  %821 = vdwg.mxu0
  %822 = vrot.lane.b32.xlu0 %v12, 64
  %v823 = vpop.permute.xlu0 %822
  %v825 = vsel %vm745, %v736, 0
  %v827 = vsel %vm749, %v823, 0
  %829 = vmatprep.subr.mxu0 0.0
  %830 = vmatpush1.msra.mxu0 0.0
  %831 = vmatprep.subr.mxu0 0.0
  %832 = vmatpush1.msra.mxu0 0.0
  %833 = vmatprep.subr.mxu0 0.0
  %834 = vmatpush1.msra.mxu0 0.0
  %835 = vmatprep.subr.mxu0 0.0
  %836 = vmatpush1.msra.mxu0 0.0
  %837 = vmatprep.subr.mxu0 0.0
  %838 = vmatpush1.msra.mxu0 0.0
  %839 = vmatprep.subr.mxu0 0.0
  %840 = vmatpush1.msra.mxu0 0.0
  %841 = vmatprep.subr.mxu0 0.0
  %842 = vmatpush1.msra.mxu0 0.0
  %843 = vmatprep.subr.mxu0 0.0
  %844 = vmatpush1.msra.mxu0 0.0
  %845 = vmatprep.subr.mxu0 0.0
  %846 = vmatpush1.msra.mxu0 0.0
  %847 = vmatprep.subr.mxu0 0.0
  %848 = vmatpush1.msra.mxu0 0.0
  %849 = vmatprep.subr.mxu0 0.0
  %850 = vmatpush1.msra.mxu0 0.0
  %851 = vmatprep.subr.mxu0 0.0
  %852 = vmatpush1.msra.mxu0 0.0
  %853 = vmatprep.subr.mxu0 0.0
  %854 = vmatpush1.msra.mxu0 0.0
  %855 = vmatprep.subr.mxu0 0.0
  %856 = vmatpush1.msra.mxu0 0.0
  %857 = vmatprep.subr.mxu0 0.0
  %858 = vmatpush1.msra.mxu0 0.0
  %859 = vmatprep.subr.mxu0 0.0
  %860 = vmatpush1.msra.mxu0 %v827
  %861 = vmatprep.subr.mxu0 0.0
  %862 = vmatpush2.msra.mxu0 0.0
  %863 = vmatprep.subr.mxu0 0.0
  %864 = vmatpush2.msra.mxu0 0.0
  %865 = vmatprep.subr.mxu0 0.0
  %866 = vmatpush2.msra.mxu0 0.0
  %867 = vmatprep.subr.mxu0 0.0
  %868 = vmatpush2.msra.mxu0 0.0
  %869 = vmatprep.subr.mxu0 0.0
  %870 = vmatpush2.msra.mxu0 0.0
  %871 = vmatprep.subr.mxu0 0.0
  %872 = vmatpush2.msra.mxu0 0.0
  %873 = vmatprep.subr.mxu0 0.0
  %874 = vmatpush2.msra.mxu0 0.0
  %875 = vmatprep.subr.mxu0 0.0
  %876 = vmatpush2.msra.mxu0 0.0
  %877 = vmatprep.subr.mxu0 0.0
  %878 = vmatpush2.msra.mxu0 0.0
  %879 = vmatprep.subr.mxu0 0.0
  %880 = vmatpush2.msra.mxu0 0.0
  %881 = vmatprep.subr.mxu0 0.0
  %882 = vmatpush2.msra.mxu0 0.0
  %883 = vmatprep.subr.mxu0 0.0
  %884 = vmatpush2.msra.mxu0 0.0
  %885 = vmatprep.subr.mxu0 0.0
  %886 = vmatpush2.msra.mxu0 0.0
  %887 = vmatprep.subr.mxu0 0.0
  %888 = vmatpush2.msra.mxu0 0.0
  %889 = vmatprep.subr.mxu0 0.0
  %890 = vmatpush2.msra.mxu0 0.0
  %891 = vmatprep.subr.mxu0 0.0
  %892 = vmatpush2.msra.mxu0 0.0
  %893 = vmatprep.mubr.f32.mxu0 0.0
  %894 = vmatmul.mubr.f32.gmra.mxu0 %v825
  %v895 = vpop.f32.mrf.mxu0
  %v896 = vadd.f32 0.0, %v895
  %v897 = vpop.f32.mrf.mxu0
  %898 = vdwg.mxu0
  %899 = vrot.lane.b32.xlu0 %v13, 64
  %v900 = vpop.permute.xlu0 %899
  %v902 = vsel %vm745, %v737, 0
  %v904 = vsel %vm749, %v900, 0
  %906 = vmatprep.subr.mxu0 0.0
  %907 = vmatpush1.msra.mxu0 0.0
  %908 = vmatprep.subr.mxu0 0.0
  %909 = vmatpush1.msra.mxu0 0.0
  %910 = vmatprep.subr.mxu0 0.0
  %911 = vmatpush1.msra.mxu0 0.0
  %912 = vmatprep.subr.mxu0 0.0
  %913 = vmatpush1.msra.mxu0 0.0
  %914 = vmatprep.subr.mxu0 0.0
  %915 = vmatpush1.msra.mxu0 0.0
  %916 = vmatprep.subr.mxu0 0.0
  %917 = vmatpush1.msra.mxu0 0.0
  %918 = vmatprep.subr.mxu0 0.0
  %919 = vmatpush1.msra.mxu0 0.0
  %920 = vmatprep.subr.mxu0 0.0
  %921 = vmatpush1.msra.mxu0 0.0
  %922 = vmatprep.subr.mxu0 0.0
  %923 = vmatpush1.msra.mxu0 0.0
  %924 = vmatprep.subr.mxu0 0.0
  %925 = vmatpush1.msra.mxu0 0.0
  %926 = vmatprep.subr.mxu0 0.0
  %927 = vmatpush1.msra.mxu0 0.0
  %928 = vmatprep.subr.mxu0 0.0
  %929 = vmatpush1.msra.mxu0 0.0
  %930 = vmatprep.subr.mxu0 0.0
  %931 = vmatpush1.msra.mxu0 0.0
  %932 = vmatprep.subr.mxu0 0.0
  %933 = vmatpush1.msra.mxu0 0.0
  %934 = vmatprep.subr.mxu0 0.0
  %935 = vmatpush1.msra.mxu0 0.0
  %936 = vmatprep.subr.mxu0 0.0
  %937 = vmatpush1.msra.mxu0 %v904
  %938 = vmatprep.subr.mxu0 0.0
  %939 = vmatpush2.msra.mxu0 0.0
  %940 = vmatprep.subr.mxu0 0.0
  %941 = vmatpush2.msra.mxu0 0.0
  %942 = vmatprep.subr.mxu0 0.0
  %943 = vmatpush2.msra.mxu0 0.0
  %944 = vmatprep.subr.mxu0 0.0
  %945 = vmatpush2.msra.mxu0 0.0
  %946 = vmatprep.subr.mxu0 0.0
  %947 = vmatpush2.msra.mxu0 0.0
  %948 = vmatprep.subr.mxu0 0.0
  %949 = vmatpush2.msra.mxu0 0.0
  %950 = vmatprep.subr.mxu0 0.0
  %951 = vmatpush2.msra.mxu0 0.0
  %952 = vmatprep.subr.mxu0 0.0
  %953 = vmatpush2.msra.mxu0 0.0
  %954 = vmatprep.subr.mxu0 0.0
  %955 = vmatpush2.msra.mxu0 0.0
  %956 = vmatprep.subr.mxu0 0.0
  %957 = vmatpush2.msra.mxu0 0.0
  %958 = vmatprep.subr.mxu0 0.0
  %959 = vmatpush2.msra.mxu0 0.0
  %960 = vmatprep.subr.mxu0 0.0
  %961 = vmatpush2.msra.mxu0 0.0
  %962 = vmatprep.subr.mxu0 0.0
  %963 = vmatpush2.msra.mxu0 0.0
  %964 = vmatprep.subr.mxu0 0.0
  %965 = vmatpush2.msra.mxu0 0.0
  %966 = vmatprep.subr.mxu0 0.0
  %967 = vmatpush2.msra.mxu0 0.0
  %968 = vmatprep.subr.mxu0 0.0
  %969 = vmatpush2.msra.mxu0 0.0
  %970 = vmatprep.mubr.f32.mxu0 0.0
  %971 = vmatmul.mubr.f32.gmra.mxu0 %v902
  %v972 = vpop.f32.mrf.mxu0
  %v973 = vadd.f32 0.0, %v972
  %v974 = vpop.f32.mrf.mxu0
  %975 = vdwg.mxu0
  %976 = vrot.lane.b32.xlu0 %v14, 64
  %v977 = vpop.permute.xlu0 %976
  %v979 = vsel %vm745, %v738, 0
  %v981 = vsel %vm749, %v977, 0
  %983 = vmatprep.subr.mxu0 0.0
  %984 = vmatpush1.msra.mxu0 0.0
  %985 = vmatprep.subr.mxu0 0.0
  %986 = vmatpush1.msra.mxu0 0.0
  %987 = vmatprep.subr.mxu0 0.0
  %988 = vmatpush1.msra.mxu0 0.0
  %989 = vmatprep.subr.mxu0 0.0
  %990 = vmatpush1.msra.mxu0 0.0
  %991 = vmatprep.subr.mxu0 0.0
  %992 = vmatpush1.msra.mxu0 0.0
  %993 = vmatprep.subr.mxu0 0.0
  %994 = vmatpush1.msra.mxu0 0.0
  %995 = vmatprep.subr.mxu0 0.0
  %996 = vmatpush1.msra.mxu0 0.0
  %997 = vmatprep.subr.mxu0 0.0
  %998 = vmatpush1.msra.mxu0 0.0
  %999 = vmatprep.subr.mxu0 0.0
  %1000 = vmatpush1.msra.mxu0 0.0
  %1001 = vmatprep.subr.mxu0 0.0
  %1002 = vmatpush1.msra.mxu0 0.0
  %1003 = vmatprep.subr.mxu0 0.0
  %1004 = vmatpush1.msra.mxu0 0.0
  %1005 = vmatprep.subr.mxu0 0.0
  %1006 = vmatpush1.msra.mxu0 0.0
  %1007 = vmatprep.subr.mxu0 0.0
  %1008 = vmatpush1.msra.mxu0 0.0
  %1009 = vmatprep.subr.mxu0 0.0
  %1010 = vmatpush1.msra.mxu0 0.0
  %1011 = vmatprep.subr.mxu0 0.0
  %1012 = vmatpush1.msra.mxu0 0.0
  %1013 = vmatprep.subr.mxu0 0.0
  %1014 = vmatpush1.msra.mxu0 %v981
  %1015 = vmatprep.subr.mxu0 0.0
  %1016 = vmatpush2.msra.mxu0 0.0
  %1017 = vmatprep.subr.mxu0 0.0
  %1018 = vmatpush2.msra.mxu0 0.0
  %1019 = vmatprep.subr.mxu0 0.0
  %1020 = vmatpush2.msra.mxu0 0.0
  %1021 = vmatprep.subr.mxu0 0.0
  %1022 = vmatpush2.msra.mxu0 0.0
  %1023 = vmatprep.subr.mxu0 0.0
  %1024 = vmatpush2.msra.mxu0 0.0
  %1025 = vmatprep.subr.mxu0 0.0
  %1026 = vmatpush2.msra.mxu0 0.0
  %1027 = vmatprep.subr.mxu0 0.0
  %1028 = vmatpush2.msra.mxu0 0.0
  %1029 = vmatprep.subr.mxu0 0.0
  %1030 = vmatpush2.msra.mxu0 0.0
  %1031 = vmatprep.subr.mxu0 0.0
  %1032 = vmatpush2.msra.mxu0 0.0
  %1033 = vmatprep.subr.mxu0 0.0
  %1034 = vmatpush2.msra.mxu0 0.0
  %1035 = vmatprep.subr.mxu0 0.0
  %1036 = vmatpush2.msra.mxu0 0.0
  %1037 = vmatprep.subr.mxu0 0.0
  %1038 = vmatpush2.msra.mxu0 0.0
  %1039 = vmatprep.subr.mxu0 0.0
  %1040 = vmatpush2.msra.mxu0 0.0
  %1041 = vmatprep.subr.mxu0 0.0
  %1042 = vmatpush2.msra.mxu0 0.0
  %1043 = vmatprep.subr.mxu0 0.0
  %1044 = vmatpush2.msra.mxu0 0.0
  %1045 = vmatprep.subr.mxu0 0.0
  %1046 = vmatpush2.msra.mxu0 0.0
  %1047 = vmatprep.mubr.f32.mxu0 0.0
  %1048 = vmatmul.mubr.f32.gmra.mxu0 %v979
  %v1049 = vpop.f32.mrf.mxu0
  %v1050 = vadd.f32 0.0, %v1049
  %v1051 = vpop.f32.mrf.mxu0
  %1052 = vdwg.mxu0
  %1053 = vrot.lane.b32.xlu0 %v15, 64
  %v1054 = vpop.permute.xlu0 %1053
  %v1056 = vsel %vm745, %v739, 0
  %v1058 = vsel %vm749, %v1054, 0
  %1060 = vmatprep.subr.mxu0 0.0
  %1061 = vmatpush1.msra.mxu0 0.0
  %1062 = vmatprep.subr.mxu0 0.0
  %1063 = vmatpush1.msra.mxu0 0.0
  %1064 = vmatprep.subr.mxu0 0.0
  %1065 = vmatpush1.msra.mxu0 0.0
  %1066 = vmatprep.subr.mxu0 0.0
  %1067 = vmatpush1.msra.mxu0 0.0
  %1068 = vmatprep.subr.mxu0 0.0
  %1069 = vmatpush1.msra.mxu0 0.0
  %1070 = vmatprep.subr.mxu0 0.0
  %1071 = vmatpush1.msra.mxu0 0.0
  %1072 = vmatprep.subr.mxu0 0.0
  %1073 = vmatpush1.msra.mxu0 0.0
  %1074 = vmatprep.subr.mxu0 0.0
  %1075 = vmatpush1.msra.mxu0 0.0
  %1076 = vmatprep.subr.mxu0 0.0
  %1077 = vmatpush1.msra.mxu0 0.0
  %1078 = vmatprep.subr.mxu0 0.0
  %1079 = vmatpush1.msra.mxu0 0.0
  %1080 = vmatprep.subr.mxu0 0.0
  %1081 = vmatpush1.msra.mxu0 0.0
  %1082 = vmatprep.subr.mxu0 0.0
  %1083 = vmatpush1.msra.mxu0 0.0
  %1084 = vmatprep.subr.mxu0 0.0
  %1085 = vmatpush1.msra.mxu0 0.0
  %1086 = vmatprep.subr.mxu0 0.0
  %1087 = vmatpush1.msra.mxu0 0.0
  %1088 = vmatprep.subr.mxu0 0.0
  %1089 = vmatpush1.msra.mxu0 0.0
  %1090 = vmatprep.subr.mxu0 0.0
  %1091 = vmatpush1.msra.mxu0 %v1058
  %1092 = vmatprep.subr.mxu0 0.0
  %1093 = vmatpush2.msra.mxu0 0.0
  %1094 = vmatprep.subr.mxu0 0.0
  %1095 = vmatpush2.msra.mxu0 0.0
  %1096 = vmatprep.subr.mxu0 0.0
  %1097 = vmatpush2.msra.mxu0 0.0
  %1098 = vmatprep.subr.mxu0 0.0
  %1099 = vmatpush2.msra.mxu0 0.0
  %1100 = vmatprep.subr.mxu0 0.0
  %1101 = vmatpush2.msra.mxu0 0.0
  %1102 = vmatprep.subr.mxu0 0.0
  %1103 = vmatpush2.msra.mxu0 0.0
  %1104 = vmatprep.subr.mxu0 0.0
  %1105 = vmatpush2.msra.mxu0 0.0
  %1106 = vmatprep.subr.mxu0 0.0
  %1107 = vmatpush2.msra.mxu0 0.0
  %1108 = vmatprep.subr.mxu0 0.0
  %1109 = vmatpush2.msra.mxu0 0.0
  %1110 = vmatprep.subr.mxu0 0.0
  %1111 = vmatpush2.msra.mxu0 0.0
  %1112 = vmatprep.subr.mxu0 0.0
  %1113 = vmatpush2.msra.mxu0 0.0
  %1114 = vmatprep.subr.mxu0 0.0
  %1115 = vmatpush2.msra.mxu0 0.0
  %1116 = vmatprep.subr.mxu0 0.0
  %1117 = vmatpush2.msra.mxu0 0.0
  %1118 = vmatprep.subr.mxu0 0.0
  %1119 = vmatpush2.msra.mxu0 0.0
  %1120 = vmatprep.subr.mxu0 0.0
  %1121 = vmatpush2.msra.mxu0 0.0
  %1122 = vmatprep.subr.mxu0 0.0
  %1123 = vmatpush2.msra.mxu0 0.0
  %1124 = vmatprep.mubr.f32.mxu0 0.0
  %1125 = vmatmul.mubr.f32.gmra.mxu0 %v1056
  %v1126 = vpop.f32.mrf.mxu0
  %v1127 = vadd.f32 0.0, %v1126
  %v1128 = vpop.f32.mrf.mxu0
  %1129 = vdwg.mxu0
  %1130 = vrot.lane.b32.xlu0 %v16, 64
  %v1131 = vpop.permute.xlu0 %1130
  %v1133 = vsel %vm745, %v740, 0
  %v1135 = vsel %vm749, %v1131, 0
  %1137 = vmatprep.subr.mxu0 0.0
  %1138 = vmatpush1.msra.mxu0 0.0
  %1139 = vmatprep.subr.mxu0 0.0
  %1140 = vmatpush1.msra.mxu0 0.0
  %1141 = vmatprep.subr.mxu0 0.0
  %1142 = vmatpush1.msra.mxu0 0.0
  %1143 = vmatprep.subr.mxu0 0.0
  %1144 = vmatpush1.msra.mxu0 0.0
  %1145 = vmatprep.subr.mxu0 0.0
  %1146 = vmatpush1.msra.mxu0 0.0
  %1147 = vmatprep.subr.mxu0 0.0
  %1148 = vmatpush1.msra.mxu0 0.0
  %1149 = vmatprep.subr.mxu0 0.0
  %1150 = vmatpush1.msra.mxu0 0.0
  %1151 = vmatprep.subr.mxu0 0.0
  %1152 = vmatpush1.msra.mxu0 0.0
  %1153 = vmatprep.subr.mxu0 0.0
  %1154 = vmatpush1.msra.mxu0 0.0
  %1155 = vmatprep.subr.mxu0 0.0
  %1156 = vmatpush1.msra.mxu0 0.0
  %1157 = vmatprep.subr.mxu0 0.0
  %1158 = vmatpush1.msra.mxu0 0.0
  %1159 = vmatprep.subr.mxu0 0.0
  %1160 = vmatpush1.msra.mxu0 0.0
  %1161 = vmatprep.subr.mxu0 0.0
  %1162 = vmatpush1.msra.mxu0 0.0
  %1163 = vmatprep.subr.mxu0 0.0
  %1164 = vmatpush1.msra.mxu0 0.0
  %1165 = vmatprep.subr.mxu0 0.0
  %1166 = vmatpush1.msra.mxu0 0.0
  %1167 = vmatprep.subr.mxu0 0.0
  %1168 = vmatpush1.msra.mxu0 %v1135
  %1169 = vmatprep.subr.mxu0 0.0
  %1170 = vmatpush2.msra.mxu0 0.0
  %1171 = vmatprep.subr.mxu0 0.0
  %1172 = vmatpush2.msra.mxu0 0.0
  %1173 = vmatprep.subr.mxu0 0.0
  %1174 = vmatpush2.msra.mxu0 0.0
  %1175 = vmatprep.subr.mxu0 0.0
  %1176 = vmatpush2.msra.mxu0 0.0
  %1177 = vmatprep.subr.mxu0 0.0
  %1178 = vmatpush2.msra.mxu0 0.0
  %1179 = vmatprep.subr.mxu0 0.0
  %1180 = vmatpush2.msra.mxu0 0.0
  %1181 = vmatprep.subr.mxu0 0.0
  %1182 = vmatpush2.msra.mxu0 0.0
  %1183 = vmatprep.subr.mxu0 0.0
  %1184 = vmatpush2.msra.mxu0 0.0
  %1185 = vmatprep.subr.mxu0 0.0
  %1186 = vmatpush2.msra.mxu0 0.0
  %1187 = vmatprep.subr.mxu0 0.0
  %1188 = vmatpush2.msra.mxu0 0.0
  %1189 = vmatprep.subr.mxu0 0.0
  %1190 = vmatpush2.msra.mxu0 0.0
  %1191 = vmatprep.subr.mxu0 0.0
  %1192 = vmatpush2.msra.mxu0 0.0
  %1193 = vmatprep.subr.mxu0 0.0
  %1194 = vmatpush2.msra.mxu0 0.0
  %1195 = vmatprep.subr.mxu0 0.0
  %1196 = vmatpush2.msra.mxu0 0.0
  %1197 = vmatprep.subr.mxu0 0.0
  %1198 = vmatpush2.msra.mxu0 0.0
  %1199 = vmatprep.subr.mxu0 0.0
  %1200 = vmatpush2.msra.mxu0 0.0
  %1201 = vmatprep.mubr.f32.mxu0 0.0
  %1202 = vmatmul.mubr.f32.gmra.mxu0 %v1133
  %v1203 = vpop.f32.mrf.mxu0
  %v1204 = vadd.f32 0.0, %v1203
  %v1205 = vpop.f32.mrf.mxu0
  %1206 = vdwg.mxu0
  %1207 = vrot.lane.b32.xlu0 %v17, 64
  %v1208 = vpop.permute.xlu0 %1207
  %v1210 = vsel %vm745, %v741, 0
  %v1212 = vsel %vm749, %v1208, 0
  %1214 = vmatprep.subr.mxu0 0.0
  %1215 = vmatpush1.msra.mxu0 0.0
  %1216 = vmatprep.subr.mxu0 0.0
  %1217 = vmatpush1.msra.mxu0 0.0
  %1218 = vmatprep.subr.mxu0 0.0
  %1219 = vmatpush1.msra.mxu0 0.0
  %1220 = vmatprep.subr.mxu0 0.0
  %1221 = vmatpush1.msra.mxu0 0.0
  %1222 = vmatprep.subr.mxu0 0.0
  %1223 = vmatpush1.msra.mxu0 0.0
  %1224 = vmatprep.subr.mxu0 0.0
  %1225 = vmatpush1.msra.mxu0 0.0
  %1226 = vmatprep.subr.mxu0 0.0
  %1227 = vmatpush1.msra.mxu0 0.0
  %1228 = vmatprep.subr.mxu0 0.0
  %1229 = vmatpush1.msra.mxu0 0.0
  %1230 = vmatprep.subr.mxu0 0.0
  %1231 = vmatpush1.msra.mxu0 0.0
  %1232 = vmatprep.subr.mxu0 0.0
  %1233 = vmatpush1.msra.mxu0 0.0
  %1234 = vmatprep.subr.mxu0 0.0
  %1235 = vmatpush1.msra.mxu0 0.0
  %1236 = vmatprep.subr.mxu0 0.0
  %1237 = vmatpush1.msra.mxu0 0.0
  %1238 = vmatprep.subr.mxu0 0.0
  %1239 = vmatpush1.msra.mxu0 0.0
  %1240 = vmatprep.subr.mxu0 0.0
  %1241 = vmatpush1.msra.mxu0 0.0
  %1242 = vmatprep.subr.mxu0 0.0
  %1243 = vmatpush1.msra.mxu0 0.0
  %1244 = vmatprep.subr.mxu0 0.0
  %1245 = vmatpush1.msra.mxu0 %v1212
  %1246 = vmatprep.subr.mxu0 0.0
  %1247 = vmatpush2.msra.mxu0 0.0
  %1248 = vmatprep.subr.mxu0 0.0
  %1249 = vmatpush2.msra.mxu0 0.0
  %1250 = vmatprep.subr.mxu0 0.0
  %1251 = vmatpush2.msra.mxu0 0.0
  %1252 = vmatprep.subr.mxu0 0.0
  %1253 = vmatpush2.msra.mxu0 0.0
  %1254 = vmatprep.subr.mxu0 0.0
  %1255 = vmatpush2.msra.mxu0 0.0
  %1256 = vmatprep.subr.mxu0 0.0
  %1257 = vmatpush2.msra.mxu0 0.0
  %1258 = vmatprep.subr.mxu0 0.0
  %1259 = vmatpush2.msra.mxu0 0.0
  %1260 = vmatprep.subr.mxu0 0.0
  %1261 = vmatpush2.msra.mxu0 0.0
  %1262 = vmatprep.subr.mxu0 0.0
  %1263 = vmatpush2.msra.mxu0 0.0
  %1264 = vmatprep.subr.mxu0 0.0
  %1265 = vmatpush2.msra.mxu0 0.0
  %1266 = vmatprep.subr.mxu0 0.0
  %1267 = vmatpush2.msra.mxu0 0.0
  %1268 = vmatprep.subr.mxu0 0.0
  %1269 = vmatpush2.msra.mxu0 0.0
  %1270 = vmatprep.subr.mxu0 0.0
  %1271 = vmatpush2.msra.mxu0 0.0
  %1272 = vmatprep.subr.mxu0 0.0
  %1273 = vmatpush2.msra.mxu0 0.0
  %1274 = vmatprep.subr.mxu0 0.0
  %1275 = vmatpush2.msra.mxu0 0.0
  %1276 = vmatprep.subr.mxu0 0.0
  %1277 = vmatpush2.msra.mxu0 0.0
  %1278 = vmatprep.mubr.f32.mxu0 0.0
  %1279 = vmatmul.mubr.f32.gmra.mxu0 %v1210
  %v1280 = vpop.f32.mrf.mxu0
  %v1281 = vadd.f32 0.0, %v1280
  %v1282 = vpop.f32.mrf.mxu0
  %1283 = vdwg.mxu0
  %1284 = vrot.lane.b32.xlu0 %v18, 64
  %v1285 = vpop.permute.xlu0 %1284
  %v1287 = vsel %vm745, %v742, 0
  %v1289 = vsel %vm749, %v1285, 0
  %1291 = vmatprep.subr.mxu0 0.0
  %1292 = vmatpush1.msra.mxu0 0.0
  %1293 = vmatprep.subr.mxu0 0.0
  %1294 = vmatpush1.msra.mxu0 0.0
  %1295 = vmatprep.subr.mxu0 0.0
  %1296 = vmatpush1.msra.mxu0 0.0
  %1297 = vmatprep.subr.mxu0 0.0
  %1298 = vmatpush1.msra.mxu0 0.0
  %1299 = vmatprep.subr.mxu0 0.0
  %1300 = vmatpush1.msra.mxu0 0.0
  %1301 = vmatprep.subr.mxu0 0.0
  %1302 = vmatpush1.msra.mxu0 0.0
  %1303 = vmatprep.subr.mxu0 0.0
  %1304 = vmatpush1.msra.mxu0 0.0
  %1305 = vmatprep.subr.mxu0 0.0
  %1306 = vmatpush1.msra.mxu0 0.0
  %1307 = vmatprep.subr.mxu0 0.0
  %1308 = vmatpush1.msra.mxu0 0.0
  %1309 = vmatprep.subr.mxu0 0.0
  %1310 = vmatpush1.msra.mxu0 0.0
  %1311 = vmatprep.subr.mxu0 0.0
  %1312 = vmatpush1.msra.mxu0 0.0
  %1313 = vmatprep.subr.mxu0 0.0
  %1314 = vmatpush1.msra.mxu0 0.0
  %1315 = vmatprep.subr.mxu0 0.0
  %1316 = vmatpush1.msra.mxu0 0.0
  %1317 = vmatprep.subr.mxu0 0.0
  %1318 = vmatpush1.msra.mxu0 0.0
  %1319 = vmatprep.subr.mxu0 0.0
  %1320 = vmatpush1.msra.mxu0 0.0
  %1321 = vmatprep.subr.mxu0 0.0
  %1322 = vmatpush1.msra.mxu0 %v1289
  %1323 = vmatprep.subr.mxu0 0.0
  %1324 = vmatpush2.msra.mxu0 0.0
  %1325 = vmatprep.subr.mxu0 0.0
  %1326 = vmatpush2.msra.mxu0 0.0
  %1327 = vmatprep.subr.mxu0 0.0
  %1328 = vmatpush2.msra.mxu0 0.0
  %1329 = vmatprep.subr.mxu0 0.0
  %1330 = vmatpush2.msra.mxu0 0.0
  %1331 = vmatprep.subr.mxu0 0.0
  %1332 = vmatpush2.msra.mxu0 0.0
  %1333 = vmatprep.subr.mxu0 0.0
  %1334 = vmatpush2.msra.mxu0 0.0
  %1335 = vmatprep.subr.mxu0 0.0
  %1336 = vmatpush2.msra.mxu0 0.0
  %1337 = vmatprep.subr.mxu0 0.0
  %1338 = vmatpush2.msra.mxu0 0.0
  %1339 = vmatprep.subr.mxu0 0.0
  %1340 = vmatpush2.msra.mxu0 0.0
  %1341 = vmatprep.subr.mxu0 0.0
  %1342 = vmatpush2.msra.mxu0 0.0
  %1343 = vmatprep.subr.mxu0 0.0
  %1344 = vmatpush2.msra.mxu0 0.0
  %1345 = vmatprep.subr.mxu0 0.0
  %1346 = vmatpush2.msra.mxu0 0.0
  %1347 = vmatprep.subr.mxu0 0.0
  %1348 = vmatpush2.msra.mxu0 0.0
  %1349 = vmatprep.subr.mxu0 0.0
  %1350 = vmatpush2.msra.mxu0 0.0
  %1351 = vmatprep.subr.mxu0 0.0
  %1352 = vmatpush2.msra.mxu0 0.0
  %1353 = vmatprep.subr.mxu0 0.0
  %1354 = vmatpush2.msra.mxu0 0.0
  %1355 = vmatprep.mubr.f32.mxu0 0.0
  %1356 = vmatmul.mubr.f32.gmra.mxu0 %v1287
  %v1357 = vpop.f32.mrf.mxu0
  %v1358 = vadd.f32 0.0, %v1357
  %v1359 = vpop.f32.mrf.mxu0
  %1360 = vdwg.mxu0
  %1361 = vrot.lane.b32.xlu0 %v11, 112
  %v1362 = vpop.permute.xlu0 %1361
  %1363 = vrot.lane.b32.xlu0 %v11, 80
  %v1364 = vpop.permute.xlu0 %1363
  %v1365 = vsel %vm24, %v1362, 0
  %v1367 = vsel %vm24, %v1364, 0
  %1369 = vmatprep.subr.mxu0 0.0
  %1370 = vmatpush1.xpose.msra.mxu0 0.0
  %1371 = vmatprep.subr.mxu0 0.0
  %1372 = vmatpush1.xpose.msra.mxu0 0.0
  %1373 = vmatprep.subr.mxu0 0.0
  %1374 = vmatpush1.xpose.msra.mxu0 0.0
  %1375 = vmatprep.subr.mxu0 0.0
  %1376 = vmatpush1.xpose.msra.mxu0 0.0
  %1377 = vmatprep.subr.mxu0 0.0
  %1378 = vmatpush1.xpose.msra.mxu0 0.0
  %1379 = vmatprep.subr.mxu0 0.0
  %1380 = vmatpush1.xpose.msra.mxu0 0.0
  %1381 = vmatprep.subr.mxu0 0.0
  %1382 = vmatpush1.xpose.msra.mxu0 0.0
  %1383 = vmatprep.subr.mxu0 0.0
  %1384 = vmatpush1.xpose.msra.mxu0 0.0
  %1385 = vmatprep.subr.mxu0 0.0
  %1386 = vmatpush1.xpose.msra.mxu0 0.0
  %1387 = vmatprep.subr.mxu0 0.0
  %1388 = vmatpush1.xpose.msra.mxu0 0.0
  %1389 = vmatprep.subr.mxu0 0.0
  %1390 = vmatpush1.xpose.msra.mxu0 0.0
  %1391 = vmatprep.subr.mxu0 0.0
  %1392 = vmatpush1.xpose.msra.mxu0 0.0
  %1393 = vmatprep.subr.mxu0 0.0
  %1394 = vmatpush1.xpose.msra.mxu0 0.0
  %1395 = vmatprep.subr.mxu0 0.0
  %1396 = vmatpush1.xpose.msra.mxu0 0.0
  %1397 = vmatprep.subr.mxu0 0.0
  %1398 = vmatpush1.xpose.msra.mxu0 0.0
  %1399 = vmatprep.subr.mxu0 0.0
  %1400 = vmatpush1.xpose.msra.mxu0 %v1367
  %1401 = vmatprep.subr.mxu0 0.0
  %1402 = vmatpush2.xpose.msra.mxu0 0.0
  %1403 = vmatprep.subr.mxu0 0.0
  %1404 = vmatpush2.xpose.msra.mxu0 0.0
  %1405 = vmatprep.subr.mxu0 0.0
  %1406 = vmatpush2.xpose.msra.mxu0 0.0
  %1407 = vmatprep.subr.mxu0 0.0
  %1408 = vmatpush2.xpose.msra.mxu0 0.0
  %1409 = vmatprep.subr.mxu0 0.0
  %1410 = vmatpush2.xpose.msra.mxu0 0.0
  %1411 = vmatprep.subr.mxu0 0.0
  %1412 = vmatpush2.xpose.msra.mxu0 0.0
  %1413 = vmatprep.subr.mxu0 0.0
  %1414 = vmatpush2.xpose.msra.mxu0 0.0
  %1415 = vmatprep.subr.mxu0 0.0
  %1416 = vmatpush2.xpose.msra.mxu0 0.0
  %1417 = vmatprep.subr.mxu0 0.0
  %1418 = vmatpush2.xpose.msra.mxu0 0.0
  %1419 = vmatprep.subr.mxu0 0.0
  %1420 = vmatpush2.xpose.msra.mxu0 0.0
  %1421 = vmatprep.subr.mxu0 0.0
  %1422 = vmatpush2.xpose.msra.mxu0 0.0
  %1423 = vmatprep.subr.mxu0 0.0
  %1424 = vmatpush2.xpose.msra.mxu0 0.0
  %1425 = vmatprep.subr.mxu0 0.0
  %1426 = vmatpush2.xpose.msra.mxu0 0.0
  %1427 = vmatprep.subr.mxu0 0.0
  %1428 = vmatpush2.xpose.msra.mxu0 0.0
  %1429 = vmatprep.subr.mxu0 0.0
  %1430 = vmatpush2.xpose.msra.mxu0 0.0
  %1431 = vmatprep.subr.mxu0 0.0
  %1432 = vmatpush2.xpose.msra.mxu0 0.0
  %1433 = vmatprep.mubr.f32.mxu0 0.0
  %1434 = vmatmul.mubr.f32.gmra.mxu0 %v1365
  %v1435 = vpop.f32.mrf.mxu0
  %v1436 = vadd.f32 0.0, %v1435
  %v1437 = vpop.f32.mrf.mxu0
  %1438 = vdwg.mxu0
  %1439 = vrot.lane.b32.xlu0 %v12, 112
  %v1440 = vpop.permute.xlu0 %1439
  %1441 = vrot.lane.b32.xlu0 %v12, 80
  %v1442 = vpop.permute.xlu0 %1441
  %v1443 = vsel %vm24, %v1440, 0
  %v1445 = vsel %vm24, %v1442, 0
  %1447 = vmatprep.subr.mxu0 0.0
  %1448 = vmatpush1.xpose.msra.mxu0 0.0
  %1449 = vmatprep.subr.mxu0 0.0
  %1450 = vmatpush1.xpose.msra.mxu0 0.0
  %1451 = vmatprep.subr.mxu0 0.0
  %1452 = vmatpush1.xpose.msra.mxu0 0.0
  %1453 = vmatprep.subr.mxu0 0.0
  %1454 = vmatpush1.xpose.msra.mxu0 0.0
  %1455 = vmatprep.subr.mxu0 0.0
  %1456 = vmatpush1.xpose.msra.mxu0 0.0
  %1457 = vmatprep.subr.mxu0 0.0
  %1458 = vmatpush1.xpose.msra.mxu0 0.0
  %1459 = vmatprep.subr.mxu0 0.0
  %1460 = vmatpush1.xpose.msra.mxu0 0.0
  %1461 = vmatprep.subr.mxu0 0.0
  %1462 = vmatpush1.xpose.msra.mxu0 0.0
  %1463 = vmatprep.subr.mxu0 0.0
  %1464 = vmatpush1.xpose.msra.mxu0 0.0
  %1465 = vmatprep.subr.mxu0 0.0
  %1466 = vmatpush1.xpose.msra.mxu0 0.0
  %1467 = vmatprep.subr.mxu0 0.0
  %1468 = vmatpush1.xpose.msra.mxu0 0.0
  %1469 = vmatprep.subr.mxu0 0.0
  %1470 = vmatpush1.xpose.msra.mxu0 0.0
  %1471 = vmatprep.subr.mxu0 0.0
  %1472 = vmatpush1.xpose.msra.mxu0 0.0
  %1473 = vmatprep.subr.mxu0 0.0
  %1474 = vmatpush1.xpose.msra.mxu0 0.0
  %1475 = vmatprep.subr.mxu0 0.0
  %1476 = vmatpush1.xpose.msra.mxu0 0.0
  %1477 = vmatprep.subr.mxu0 0.0
  %1478 = vmatpush1.xpose.msra.mxu0 %v1445
  %1479 = vmatprep.subr.mxu0 0.0
  %1480 = vmatpush2.xpose.msra.mxu0 0.0
  %1481 = vmatprep.subr.mxu0 0.0
  %1482 = vmatpush2.xpose.msra.mxu0 0.0
  %1483 = vmatprep.subr.mxu0 0.0
  %1484 = vmatpush2.xpose.msra.mxu0 0.0
  %1485 = vmatprep.subr.mxu0 0.0
  %1486 = vmatpush2.xpose.msra.mxu0 0.0
  %1487 = vmatprep.subr.mxu0 0.0
  %1488 = vmatpush2.xpose.msra.mxu0 0.0
  %1489 = vmatprep.subr.mxu0 0.0
  %1490 = vmatpush2.xpose.msra.mxu0 0.0
  %1491 = vmatprep.subr.mxu0 0.0
  %1492 = vmatpush2.xpose.msra.mxu0 0.0
  %1493 = vmatprep.subr.mxu0 0.0
  %1494 = vmatpush2.xpose.msra.mxu0 0.0
  %1495 = vmatprep.subr.mxu0 0.0
  %1496 = vmatpush2.xpose.msra.mxu0 0.0
  %1497 = vmatprep.subr.mxu0 0.0
  %1498 = vmatpush2.xpose.msra.mxu0 0.0
  %1499 = vmatprep.subr.mxu0 0.0
  %1500 = vmatpush2.xpose.msra.mxu0 0.0
  %1501 = vmatprep.subr.mxu0 0.0
  %1502 = vmatpush2.xpose.msra.mxu0 0.0
  %1503 = vmatprep.subr.mxu0 0.0
  %1504 = vmatpush2.xpose.msra.mxu0 0.0
  %1505 = vmatprep.subr.mxu0 0.0
  %1506 = vmatpush2.xpose.msra.mxu0 0.0
  %1507 = vmatprep.subr.mxu0 0.0
  %1508 = vmatpush2.xpose.msra.mxu0 0.0
  %1509 = vmatprep.subr.mxu0 0.0
  %1510 = vmatpush2.xpose.msra.mxu0 0.0
  %1511 = vmatprep.mubr.f32.mxu0 0.0
  %1512 = vmatmul.mubr.f32.gmra.mxu0 %v1443
  %v1513 = vpop.f32.mrf.mxu0
  %v1514 = vadd.f32 0.0, %v1513
  %v1515 = vpop.f32.mrf.mxu0
  %1516 = vdwg.mxu0
  %1517 = vrot.lane.b32.xlu0 %v13, 112
  %v1518 = vpop.permute.xlu0 %1517
  %1519 = vrot.lane.b32.xlu0 %v13, 80
  %v1520 = vpop.permute.xlu0 %1519
  %v1521 = vsel %vm24, %v1518, 0
  %v1523 = vsel %vm24, %v1520, 0
  %1525 = vmatprep.subr.mxu0 0.0
  %1526 = vmatpush1.xpose.msra.mxu0 0.0
  %1527 = vmatprep.subr.mxu0 0.0
  %1528 = vmatpush1.xpose.msra.mxu0 0.0
  %1529 = vmatprep.subr.mxu0 0.0
  %1530 = vmatpush1.xpose.msra.mxu0 0.0
  %1531 = vmatprep.subr.mxu0 0.0
  %1532 = vmatpush1.xpose.msra.mxu0 0.0
  %1533 = vmatprep.subr.mxu0 0.0
  %1534 = vmatpush1.xpose.msra.mxu0 0.0
  %1535 = vmatprep.subr.mxu0 0.0
  %1536 = vmatpush1.xpose.msra.mxu0 0.0
  %1537 = vmatprep.subr.mxu0 0.0
  %1538 = vmatpush1.xpose.msra.mxu0 0.0
  %1539 = vmatprep.subr.mxu0 0.0
  %1540 = vmatpush1.xpose.msra.mxu0 0.0
  %1541 = vmatprep.subr.mxu0 0.0
  %1542 = vmatpush1.xpose.msra.mxu0 0.0
  %1543 = vmatprep.subr.mxu0 0.0
  %1544 = vmatpush1.xpose.msra.mxu0 0.0
  %1545 = vmatprep.subr.mxu0 0.0
  %1546 = vmatpush1.xpose.msra.mxu0 0.0
  %1547 = vmatprep.subr.mxu0 0.0
  %1548 = vmatpush1.xpose.msra.mxu0 0.0
  %1549 = vmatprep.subr.mxu0 0.0
  %1550 = vmatpush1.xpose.msra.mxu0 0.0
  %1551 = vmatprep.subr.mxu0 0.0
  %1552 = vmatpush1.xpose.msra.mxu0 0.0
  %1553 = vmatprep.subr.mxu0 0.0
  %1554 = vmatpush1.xpose.msra.mxu0 0.0
  %1555 = vmatprep.subr.mxu0 0.0
  %1556 = vmatpush1.xpose.msra.mxu0 %v1523
  %1557 = vmatprep.subr.mxu0 0.0
  %1558 = vmatpush2.xpose.msra.mxu0 0.0
  %1559 = vmatprep.subr.mxu0 0.0
  %1560 = vmatpush2.xpose.msra.mxu0 0.0
  %1561 = vmatprep.subr.mxu0 0.0
  %1562 = vmatpush2.xpose.msra.mxu0 0.0
  %1563 = vmatprep.subr.mxu0 0.0
  %1564 = vmatpush2.xpose.msra.mxu0 0.0
  %1565 = vmatprep.subr.mxu0 0.0
  %1566 = vmatpush2.xpose.msra.mxu0 0.0
  %1567 = vmatprep.subr.mxu0 0.0
  %1568 = vmatpush2.xpose.msra.mxu0 0.0
  %1569 = vmatprep.subr.mxu0 0.0
  %1570 = vmatpush2.xpose.msra.mxu0 0.0
  %1571 = vmatprep.subr.mxu0 0.0
  %1572 = vmatpush2.xpose.msra.mxu0 0.0
  %1573 = vmatprep.subr.mxu0 0.0
  %1574 = vmatpush2.xpose.msra.mxu0 0.0
  %1575 = vmatprep.subr.mxu0 0.0
  %1576 = vmatpush2.xpose.msra.mxu0 0.0
  %1577 = vmatprep.subr.mxu0 0.0
  %1578 = vmatpush2.xpose.msra.mxu0 0.0
  %1579 = vmatprep.subr.mxu0 0.0
  %1580 = vmatpush2.xpose.msra.mxu0 0.0
  %1581 = vmatprep.subr.mxu0 0.0
  %1582 = vmatpush2.xpose.msra.mxu0 0.0
  %1583 = vmatprep.subr.mxu0 0.0
  %1584 = vmatpush2.xpose.msra.mxu0 0.0
  %1585 = vmatprep.subr.mxu0 0.0
  %1586 = vmatpush2.xpose.msra.mxu0 0.0
  %1587 = vmatprep.subr.mxu0 0.0
  %1588 = vmatpush2.xpose.msra.mxu0 0.0
  %1589 = vmatprep.mubr.f32.mxu0 0.0
  %1590 = vmatmul.mubr.f32.gmra.mxu0 %v1521
  %v1591 = vpop.f32.mrf.mxu0
  %v1592 = vadd.f32 0.0, %v1591
  %v1593 = vpop.f32.mrf.mxu0
  %1594 = vdwg.mxu0
  %1595 = vrot.lane.b32.xlu0 %v14, 112
  %v1596 = vpop.permute.xlu0 %1595
  %1597 = vrot.lane.b32.xlu0 %v14, 80
  %v1598 = vpop.permute.xlu0 %1597
  %v1599 = vsel %vm24, %v1596, 0
  %v1601 = vsel %vm24, %v1598, 0
  %1603 = vmatprep.subr.mxu0 0.0
  %1604 = vmatpush1.xpose.msra.mxu0 0.0
  %1605 = vmatprep.subr.mxu0 0.0
  %1606 = vmatpush1.xpose.msra.mxu0 0.0
  %1607 = vmatprep.subr.mxu0 0.0
  %1608 = vmatpush1.xpose.msra.mxu0 0.0
  %1609 = vmatprep.subr.mxu0 0.0
  %1610 = vmatpush1.xpose.msra.mxu0 0.0
  %1611 = vmatprep.subr.mxu0 0.0
  %1612 = vmatpush1.xpose.msra.mxu0 0.0
  %1613 = vmatprep.subr.mxu0 0.0
  %1614 = vmatpush1.xpose.msra.mxu0 0.0
  %1615 = vmatprep.subr.mxu0 0.0
  %1616 = vmatpush1.xpose.msra.mxu0 0.0
  %1617 = vmatprep.subr.mxu0 0.0
  %1618 = vmatpush1.xpose.msra.mxu0 0.0
  %1619 = vmatprep.subr.mxu0 0.0
  %1620 = vmatpush1.xpose.msra.mxu0 0.0
  %1621 = vmatprep.subr.mxu0 0.0
  %1622 = vmatpush1.xpose.msra.mxu0 0.0
  %1623 = vmatprep.subr.mxu0 0.0
  %1624 = vmatpush1.xpose.msra.mxu0 0.0
  %1625 = vmatprep.subr.mxu0 0.0
  %1626 = vmatpush1.xpose.msra.mxu0 0.0
  %1627 = vmatprep.subr.mxu0 0.0
  %1628 = vmatpush1.xpose.msra.mxu0 0.0
  %1629 = vmatprep.subr.mxu0 0.0
  %1630 = vmatpush1.xpose.msra.mxu0 0.0
  %1631 = vmatprep.subr.mxu0 0.0
  %1632 = vmatpush1.xpose.msra.mxu0 0.0
  %1633 = vmatprep.subr.mxu0 0.0
  %1634 = vmatpush1.xpose.msra.mxu0 %v1601
  %1635 = vmatprep.subr.mxu0 0.0
  %1636 = vmatpush2.xpose.msra.mxu0 0.0
  %1637 = vmatprep.subr.mxu0 0.0
  %1638 = vmatpush2.xpose.msra.mxu0 0.0
  %1639 = vmatprep.subr.mxu0 0.0
  %1640 = vmatpush2.xpose.msra.mxu0 0.0
  %1641 = vmatprep.subr.mxu0 0.0
  %1642 = vmatpush2.xpose.msra.mxu0 0.0
  %1643 = vmatprep.subr.mxu0 0.0
  %1644 = vmatpush2.xpose.msra.mxu0 0.0
  %1645 = vmatprep.subr.mxu0 0.0
  %1646 = vmatpush2.xpose.msra.mxu0 0.0
  %1647 = vmatprep.subr.mxu0 0.0
  %1648 = vmatpush2.xpose.msra.mxu0 0.0
  %1649 = vmatprep.subr.mxu0 0.0
  %1650 = vmatpush2.xpose.msra.mxu0 0.0
  %1651 = vmatprep.subr.mxu0 0.0
  %1652 = vmatpush2.xpose.msra.mxu0 0.0
  %1653 = vmatprep.subr.mxu0 0.0
  %1654 = vmatpush2.xpose.msra.mxu0 0.0
  %1655 = vmatprep.subr.mxu0 0.0
  %1656 = vmatpush2.xpose.msra.mxu0 0.0
  %1657 = vmatprep.subr.mxu0 0.0
  %1658 = vmatpush2.xpose.msra.mxu0 0.0
  %1659 = vmatprep.subr.mxu0 0.0
  %1660 = vmatpush2.xpose.msra.mxu0 0.0
  %1661 = vmatprep.subr.mxu0 0.0
  %1662 = vmatpush2.xpose.msra.mxu0 0.0
  %1663 = vmatprep.subr.mxu0 0.0
  %1664 = vmatpush2.xpose.msra.mxu0 0.0
  %1665 = vmatprep.subr.mxu0 0.0
  %1666 = vmatpush2.xpose.msra.mxu0 0.0
  %1667 = vmatprep.mubr.f32.mxu0 0.0
  %1668 = vmatmul.mubr.f32.gmra.mxu0 %v1599
  %v1669 = vpop.f32.mrf.mxu0
  %v1670 = vadd.f32 0.0, %v1669
  %v1671 = vpop.f32.mrf.mxu0
  %1672 = vdwg.mxu0
  %1673 = vrot.lane.b32.xlu0 %v15, 112
  %v1674 = vpop.permute.xlu0 %1673
  %1675 = vrot.lane.b32.xlu0 %v15, 80
  %v1676 = vpop.permute.xlu0 %1675
  %v1677 = vsel %vm24, %v1674, 0
  %v1679 = vsel %vm24, %v1676, 0
  %1681 = vmatprep.subr.mxu0 0.0
  %1682 = vmatpush1.xpose.msra.mxu0 0.0
  %1683 = vmatprep.subr.mxu0 0.0
  %1684 = vmatpush1.xpose.msra.mxu0 0.0
  %1685 = vmatprep.subr.mxu0 0.0
  %1686 = vmatpush1.xpose.msra.mxu0 0.0
  %1687 = vmatprep.subr.mxu0 0.0
  %1688 = vmatpush1.xpose.msra.mxu0 0.0
  %1689 = vmatprep.subr.mxu0 0.0
  %1690 = vmatpush1.xpose.msra.mxu0 0.0
  %1691 = vmatprep.subr.mxu0 0.0
  %1692 = vmatpush1.xpose.msra.mxu0 0.0
  %1693 = vmatprep.subr.mxu0 0.0
  %1694 = vmatpush1.xpose.msra.mxu0 0.0
  %1695 = vmatprep.subr.mxu0 0.0
  %1696 = vmatpush1.xpose.msra.mxu0 0.0
  %1697 = vmatprep.subr.mxu0 0.0
  %1698 = vmatpush1.xpose.msra.mxu0 0.0
  %1699 = vmatprep.subr.mxu0 0.0
  %1700 = vmatpush1.xpose.msra.mxu0 0.0
  %1701 = vmatprep.subr.mxu0 0.0
  %1702 = vmatpush1.xpose.msra.mxu0 0.0
  %1703 = vmatprep.subr.mxu0 0.0
  %1704 = vmatpush1.xpose.msra.mxu0 0.0
  %1705 = vmatprep.subr.mxu0 0.0
  %1706 = vmatpush1.xpose.msra.mxu0 0.0
  %1707 = vmatprep.subr.mxu0 0.0
  %1708 = vmatpush1.xpose.msra.mxu0 0.0
  %1709 = vmatprep.subr.mxu0 0.0
  %1710 = vmatpush1.xpose.msra.mxu0 0.0
  %1711 = vmatprep.subr.mxu0 0.0
  %1712 = vmatpush1.xpose.msra.mxu0 %v1679
  %1713 = vmatprep.subr.mxu0 0.0
  %1714 = vmatpush2.xpose.msra.mxu0 0.0
  %1715 = vmatprep.subr.mxu0 0.0
  %1716 = vmatpush2.xpose.msra.mxu0 0.0
  %1717 = vmatprep.subr.mxu0 0.0
  %1718 = vmatpush2.xpose.msra.mxu0 0.0
  %1719 = vmatprep.subr.mxu0 0.0
  %1720 = vmatpush2.xpose.msra.mxu0 0.0
  %1721 = vmatprep.subr.mxu0 0.0
  %1722 = vmatpush2.xpose.msra.mxu0 0.0
  %1723 = vmatprep.subr.mxu0 0.0
  %1724 = vmatpush2.xpose.msra.mxu0 0.0
  %1725 = vmatprep.subr.mxu0 0.0
  %1726 = vmatpush2.xpose.msra.mxu0 0.0
  %1727 = vmatprep.subr.mxu0 0.0
  %1728 = vmatpush2.xpose.msra.mxu0 0.0
  %1729 = vmatprep.subr.mxu0 0.0
  %1730 = vmatpush2.xpose.msra.mxu0 0.0
  %1731 = vmatprep.subr.mxu0 0.0
  %1732 = vmatpush2.xpose.msra.mxu0 0.0
  %1733 = vmatprep.subr.mxu0 0.0
  %1734 = vmatpush2.xpose.msra.mxu0 0.0
  %1735 = vmatprep.subr.mxu0 0.0
  %1736 = vmatpush2.xpose.msra.mxu0 0.0
  %1737 = vmatprep.subr.mxu0 0.0
  %1738 = vmatpush2.xpose.msra.mxu0 0.0
  %1739 = vmatprep.subr.mxu0 0.0
  %1740 = vmatpush2.xpose.msra.mxu0 0.0
  %1741 = vmatprep.subr.mxu0 0.0
  %1742 = vmatpush2.xpose.msra.mxu0 0.0
  %1743 = vmatprep.subr.mxu0 0.0
  %1744 = vmatpush2.xpose.msra.mxu0 0.0
  %1745 = vmatprep.mubr.f32.mxu0 0.0
  %1746 = vmatmul.mubr.f32.gmra.mxu0 %v1677
  %v1747 = vpop.f32.mrf.mxu0
  %v1748 = vadd.f32 0.0, %v1747
  %v1749 = vpop.f32.mrf.mxu0
  %1750 = vdwg.mxu0
  %1751 = vrot.lane.b32.xlu0 %v16, 112
  %v1752 = vpop.permute.xlu0 %1751
  %1753 = vrot.lane.b32.xlu0 %v16, 80
  %v1754 = vpop.permute.xlu0 %1753
  %v1755 = vsel %vm24, %v1752, 0
  %v1757 = vsel %vm24, %v1754, 0
  %1759 = vmatprep.subr.mxu0 0.0
  %1760 = vmatpush1.xpose.msra.mxu0 0.0
  %1761 = vmatprep.subr.mxu0 0.0
  %1762 = vmatpush1.xpose.msra.mxu0 0.0
  %1763 = vmatprep.subr.mxu0 0.0
  %1764 = vmatpush1.xpose.msra.mxu0 0.0
  %1765 = vmatprep.subr.mxu0 0.0
  %1766 = vmatpush1.xpose.msra.mxu0 0.0
  %1767 = vmatprep.subr.mxu0 0.0
  %1768 = vmatpush1.xpose.msra.mxu0 0.0
  %1769 = vmatprep.subr.mxu0 0.0
  %1770 = vmatpush1.xpose.msra.mxu0 0.0
  %1771 = vmatprep.subr.mxu0 0.0
  %1772 = vmatpush1.xpose.msra.mxu0 0.0
  %1773 = vmatprep.subr.mxu0 0.0
  %1774 = vmatpush1.xpose.msra.mxu0 0.0
  %1775 = vmatprep.subr.mxu0 0.0
  %1776 = vmatpush1.xpose.msra.mxu0 0.0
  %1777 = vmatprep.subr.mxu0 0.0
  %1778 = vmatpush1.xpose.msra.mxu0 0.0
  %1779 = vmatprep.subr.mxu0 0.0
  %1780 = vmatpush1.xpose.msra.mxu0 0.0
  %1781 = vmatprep.subr.mxu0 0.0
  %1782 = vmatpush1.xpose.msra.mxu0 0.0
  %1783 = vmatprep.subr.mxu0 0.0
  %1784 = vmatpush1.xpose.msra.mxu0 0.0
  %1785 = vmatprep.subr.mxu0 0.0
  %1786 = vmatpush1.xpose.msra.mxu0 0.0
  %1787 = vmatprep.subr.mxu0 0.0
  %1788 = vmatpush1.xpose.msra.mxu0 0.0
  %1789 = vmatprep.subr.mxu0 0.0
  %1790 = vmatpush1.xpose.msra.mxu0 %v1757
  %1791 = vmatprep.subr.mxu0 0.0
  %1792 = vmatpush2.xpose.msra.mxu0 0.0
  %1793 = vmatprep.subr.mxu0 0.0
  %1794 = vmatpush2.xpose.msra.mxu0 0.0
  %1795 = vmatprep.subr.mxu0 0.0
  %1796 = vmatpush2.xpose.msra.mxu0 0.0
  %1797 = vmatprep.subr.mxu0 0.0
  %1798 = vmatpush2.xpose.msra.mxu0 0.0
  %1799 = vmatprep.subr.mxu0 0.0
  %1800 = vmatpush2.xpose.msra.mxu0 0.0
  %1801 = vmatprep.subr.mxu0 0.0
  %1802 = vmatpush2.xpose.msra.mxu0 0.0
  %1803 = vmatprep.subr.mxu0 0.0
  %1804 = vmatpush2.xpose.msra.mxu0 0.0
  %1805 = vmatprep.subr.mxu0 0.0
  %1806 = vmatpush2.xpose.msra.mxu0 0.0
  %1807 = vmatprep.subr.mxu0 0.0
  %1808 = vmatpush2.xpose.msra.mxu0 0.0
  %1809 = vmatprep.subr.mxu0 0.0
  %1810 = vmatpush2.xpose.msra.mxu0 0.0
  %1811 = vmatprep.subr.mxu0 0.0
  %1812 = vmatpush2.xpose.msra.mxu0 0.0
  %1813 = vmatprep.subr.mxu0 0.0
  %1814 = vmatpush2.xpose.msra.mxu0 0.0
  %1815 = vmatprep.subr.mxu0 0.0
  %1816 = vmatpush2.xpose.msra.mxu0 0.0
  %1817 = vmatprep.subr.mxu0 0.0
  %1818 = vmatpush2.xpose.msra.mxu0 0.0
  %1819 = vmatprep.subr.mxu0 0.0
  %1820 = vmatpush2.xpose.msra.mxu0 0.0
  %1821 = vmatprep.subr.mxu0 0.0
  %1822 = vmatpush2.xpose.msra.mxu0 0.0
  %1823 = vmatprep.mubr.f32.mxu0 0.0
  %1824 = vmatmul.mubr.f32.gmra.mxu0 %v1755
  %v1825 = vpop.f32.mrf.mxu0
  %v1826 = vadd.f32 0.0, %v1825
  %v1827 = vpop.f32.mrf.mxu0
  %1828 = vdwg.mxu0
  %1829 = vrot.lane.b32.xlu0 %v17, 112
  %v1830 = vpop.permute.xlu0 %1829
  %1831 = vrot.lane.b32.xlu0 %v17, 80
  %v1832 = vpop.permute.xlu0 %1831
  %v1833 = vsel %vm24, %v1830, 0
  %v1835 = vsel %vm24, %v1832, 0
  %1837 = vmatprep.subr.mxu0 0.0
  %1838 = vmatpush1.xpose.msra.mxu0 0.0
  %1839 = vmatprep.subr.mxu0 0.0
  %1840 = vmatpush1.xpose.msra.mxu0 0.0
  %1841 = vmatprep.subr.mxu0 0.0
  %1842 = vmatpush1.xpose.msra.mxu0 0.0
  %1843 = vmatprep.subr.mxu0 0.0
  %1844 = vmatpush1.xpose.msra.mxu0 0.0
  %1845 = vmatprep.subr.mxu0 0.0
  %1846 = vmatpush1.xpose.msra.mxu0 0.0
  %1847 = vmatprep.subr.mxu0 0.0
  %1848 = vmatpush1.xpose.msra.mxu0 0.0
  %1849 = vmatprep.subr.mxu0 0.0
  %1850 = vmatpush1.xpose.msra.mxu0 0.0
  %1851 = vmatprep.subr.mxu0 0.0
  %1852 = vmatpush1.xpose.msra.mxu0 0.0
  %1853 = vmatprep.subr.mxu0 0.0
  %1854 = vmatpush1.xpose.msra.mxu0 0.0
  %1855 = vmatprep.subr.mxu0 0.0
  %1856 = vmatpush1.xpose.msra.mxu0 0.0
  %1857 = vmatprep.subr.mxu0 0.0
  %1858 = vmatpush1.xpose.msra.mxu0 0.0
  %1859 = vmatprep.subr.mxu0 0.0
  %1860 = vmatpush1.xpose.msra.mxu0 0.0
  %1861 = vmatprep.subr.mxu0 0.0
  %1862 = vmatpush1.xpose.msra.mxu0 0.0
  %1863 = vmatprep.subr.mxu0 0.0
  %1864 = vmatpush1.xpose.msra.mxu0 0.0
  %1865 = vmatprep.subr.mxu0 0.0
  %1866 = vmatpush1.xpose.msra.mxu0 0.0
  %1867 = vmatprep.subr.mxu0 0.0
  %1868 = vmatpush1.xpose.msra.mxu0 %v1835
  %1869 = vmatprep.subr.mxu0 0.0
  %1870 = vmatpush2.xpose.msra.mxu0 0.0
  %1871 = vmatprep.subr.mxu0 0.0
  %1872 = vmatpush2.xpose.msra.mxu0 0.0
  %1873 = vmatprep.subr.mxu0 0.0
  %1874 = vmatpush2.xpose.msra.mxu0 0.0
  %1875 = vmatprep.subr.mxu0 0.0
  %1876 = vmatpush2.xpose.msra.mxu0 0.0
  %1877 = vmatprep.subr.mxu0 0.0
  %1878 = vmatpush2.xpose.msra.mxu0 0.0
  %1879 = vmatprep.subr.mxu0 0.0
  %1880 = vmatpush2.xpose.msra.mxu0 0.0
  %1881 = vmatprep.subr.mxu0 0.0
  %1882 = vmatpush2.xpose.msra.mxu0 0.0
  %1883 = vmatprep.subr.mxu0 0.0
  %1884 = vmatpush2.xpose.msra.mxu0 0.0
  %1885 = vmatprep.subr.mxu0 0.0
  %1886 = vmatpush2.xpose.msra.mxu0 0.0
  %1887 = vmatprep.subr.mxu0 0.0
  %1888 = vmatpush2.xpose.msra.mxu0 0.0
  %1889 = vmatprep.subr.mxu0 0.0
  %1890 = vmatpush2.xpose.msra.mxu0 0.0
  %1891 = vmatprep.subr.mxu0 0.0
  %1892 = vmatpush2.xpose.msra.mxu0 0.0
  %1893 = vmatprep.subr.mxu0 0.0
  %1894 = vmatpush2.xpose.msra.mxu0 0.0
  %1895 = vmatprep.subr.mxu0 0.0
  %1896 = vmatpush2.xpose.msra.mxu0 0.0
  %1897 = vmatprep.subr.mxu0 0.0
  %1898 = vmatpush2.xpose.msra.mxu0 0.0
  %1899 = vmatprep.subr.mxu0 0.0
  %1900 = vmatpush2.xpose.msra.mxu0 0.0
  %1901 = vmatprep.mubr.f32.mxu0 0.0
  %1902 = vmatmul.mubr.f32.gmra.mxu0 %v1833
  %v1903 = vpop.f32.mrf.mxu0
  %v1904 = vadd.f32 0.0, %v1903
  %v1905 = vpop.f32.mrf.mxu0
  %1906 = vdwg.mxu0
  %1907 = vrot.lane.b32.xlu0 %v18, 112
  %v1908 = vpop.permute.xlu0 %1907
  %1909 = vrot.lane.b32.xlu0 %v18, 80
  %v1910 = vpop.permute.xlu0 %1909
  %v1911 = vsel %vm24, %v1908, 0
  %v1913 = vsel %vm24, %v1910, 0
  %1915 = vmatprep.subr.mxu0 0.0
  %1916 = vmatpush1.xpose.msra.mxu0 0.0
  %1917 = vmatprep.subr.mxu0 0.0
  %1918 = vmatpush1.xpose.msra.mxu0 0.0
  %1919 = vmatprep.subr.mxu0 0.0
  %1920 = vmatpush1.xpose.msra.mxu0 0.0
  %1921 = vmatprep.subr.mxu0 0.0
  %1922 = vmatpush1.xpose.msra.mxu0 0.0
  %1923 = vmatprep.subr.mxu0 0.0
  %1924 = vmatpush1.xpose.msra.mxu0 0.0
  %1925 = vmatprep.subr.mxu0 0.0
  %1926 = vmatpush1.xpose.msra.mxu0 0.0
  %1927 = vmatprep.subr.mxu0 0.0
  %1928 = vmatpush1.xpose.msra.mxu0 0.0
  %1929 = vmatprep.subr.mxu0 0.0
  %1930 = vmatpush1.xpose.msra.mxu0 0.0
  %1931 = vmatprep.subr.mxu0 0.0
  %1932 = vmatpush1.xpose.msra.mxu0 0.0
  %1933 = vmatprep.subr.mxu0 0.0
  %1934 = vmatpush1.xpose.msra.mxu0 0.0
  %1935 = vmatprep.subr.mxu0 0.0
  %1936 = vmatpush1.xpose.msra.mxu0 0.0
  %1937 = vmatprep.subr.mxu0 0.0
  %1938 = vmatpush1.xpose.msra.mxu0 0.0
  %1939 = vmatprep.subr.mxu0 0.0
  %1940 = vmatpush1.xpose.msra.mxu0 0.0
  %1941 = vmatprep.subr.mxu0 0.0
  %1942 = vmatpush1.xpose.msra.mxu0 0.0
  %1943 = vmatprep.subr.mxu0 0.0
  %1944 = vmatpush1.xpose.msra.mxu0 0.0
  %1945 = vmatprep.subr.mxu0 0.0
  %1946 = vmatpush1.xpose.msra.mxu0 %v1913
  %1947 = vmatprep.subr.mxu0 0.0
  %1948 = vmatpush2.xpose.msra.mxu0 0.0
  %1949 = vmatprep.subr.mxu0 0.0
  %1950 = vmatpush2.xpose.msra.mxu0 0.0
  %1951 = vmatprep.subr.mxu0 0.0
  %1952 = vmatpush2.xpose.msra.mxu0 0.0
  %1953 = vmatprep.subr.mxu0 0.0
  %1954 = vmatpush2.xpose.msra.mxu0 0.0
  %1955 = vmatprep.subr.mxu0 0.0
  %1956 = vmatpush2.xpose.msra.mxu0 0.0
  %1957 = vmatprep.subr.mxu0 0.0
  %1958 = vmatpush2.xpose.msra.mxu0 0.0
  %1959 = vmatprep.subr.mxu0 0.0
  %1960 = vmatpush2.xpose.msra.mxu0 0.0
  %1961 = vmatprep.subr.mxu0 0.0
  %1962 = vmatpush2.xpose.msra.mxu0 0.0
  %1963 = vmatprep.subr.mxu0 0.0
  %1964 = vmatpush2.xpose.msra.mxu0 0.0
  %1965 = vmatprep.subr.mxu0 0.0
  %1966 = vmatpush2.xpose.msra.mxu0 0.0
  %1967 = vmatprep.subr.mxu0 0.0
  %1968 = vmatpush2.xpose.msra.mxu0 0.0
  %1969 = vmatprep.subr.mxu0 0.0
  %1970 = vmatpush2.xpose.msra.mxu0 0.0
  %1971 = vmatprep.subr.mxu0 0.0
  %1972 = vmatpush2.xpose.msra.mxu0 0.0
  %1973 = vmatprep.subr.mxu0 0.0
  %1974 = vmatpush2.xpose.msra.mxu0 0.0
  %1975 = vmatprep.subr.mxu0 0.0
  %1976 = vmatpush2.xpose.msra.mxu0 0.0
  %1977 = vmatprep.subr.mxu0 0.0
  %1978 = vmatpush2.xpose.msra.mxu0 0.0
  %1979 = vmatprep.mubr.f32.mxu0 0.0
  %1980 = vmatmul.mubr.f32.gmra.mxu0 %v1911
  %v1981 = vpop.f32.mrf.mxu0
  %v1982 = vadd.f32 0.0, %v1981
  %v1983 = vpop.f32.mrf.mxu0
  %1984 = vdwg.mxu0
  %v1985 = vmul.f32 %v1436, 0.25
  %v1986 = vmul.f32 %v1514, 0.25
  %v1987 = vmul.f32 %v1592, 0.25
  %v1988 = vmul.f32 %v1670, 0.25
  %v1989 = vmul.f32 %v1748, 0.25
  %v1990 = vmul.f32 %v1826, 0.25
  %v1991 = vmul.f32 %v1904, 0.25
  %v1992 = vmul.f32 %v1982, 0.25
  %v1993 = vadd.f32 %v1985, %v20
  %v1994 = vadd.f32 %v1986, %v20
  %v1995 = vadd.f32 %v1987, %v20
  %v1996 = vadd.f32 %v1988, %v20
  %v1997 = vadd.f32 %v1989, %v20
  %v1998 = vadd.f32 %v1990, %v20
  %v1999 = vadd.f32 %v1991, %v20
  %v2000 = vadd.f32 %v1992, %v20
  %v2001 = vsel %vm654, %v1993, -inf
  %2002 = vmax.xlane.f32.xlu0 %v2001
  %v2003 = vpop.xlane.xlu0 %2002
  %v2004 = vsel %vm654, %v1994, -inf
  %2005 = vmax.xlane.f32.xlu0 %v2004
  %v2006 = vpop.xlane.xlu0 %2005
  %v2007 = vsel %vm654, %v1995, -inf
  %2008 = vmax.xlane.f32.xlu0 %v2007
  %v2009 = vpop.xlane.xlu0 %2008
  %v2010 = vsel %vm654, %v1996, -inf
  %2011 = vmax.xlane.f32.xlu0 %v2010
  %v2012 = vpop.xlane.xlu0 %2011
  %v2013 = vsel %vm654, %v1997, -inf
  %2014 = vmax.xlane.f32.xlu0 %v2013
  %v2015 = vpop.xlane.xlu0 %2014
  %v2016 = vsel %vm654, %v1998, -inf
  %2017 = vmax.xlane.f32.xlu0 %v2016
  %v2018 = vpop.xlane.xlu0 %2017
  %v2019 = vsel %vm654, %v1999, -inf
  %2020 = vmax.xlane.f32.xlu0 %v2019
  %v2021 = vpop.xlane.xlu0 %2020
  %v2022 = vsel %vm654, %v2000, -inf
  %2023 = vmax.xlane.f32.xlu0 %v2022
  %v2024 = vpop.xlane.xlu0 %2023
  %v2025 = vsub.f32 %v1993, %v2003
  %v2026 = vsub.f32 %v1994, %v2006
  %v2027 = vsub.f32 %v1995, %v2009
  %v2028 = vsub.f32 %v1996, %v2012
  %v2029 = vsub.f32 %v1997, %v2015
  %v2030 = vsub.f32 %v1998, %v2018
  %v2031 = vsub.f32 %v1999, %v2021
  %v2032 = vsub.f32 %v2000, %v2024
  %v2033 = vmul.f32 %v2025, 1.442695
  %v2034 = vpow.pop %v2033
  %v2035 = vmul.f32 %v2026, 1.442695
  %v2036 = vpow.pop %v2035
  %v2037 = vmul.f32 %v2027, 1.442695
  %v2038 = vpow.pop %v2037
  %v2039 = vmul.f32 %v2028, 1.442695
  %v2040 = vpow.pop %v2039
  %v2041 = vmul.f32 %v2029, 1.442695
  %v2042 = vpow.pop %v2041
  %v2043 = vmul.f32 %v2030, 1.442695
  %v2044 = vpow.pop %v2043
  %v2045 = vmul.f32 %v2031, 1.442695
  %v2046 = vpow.pop %v2045
  %v2047 = vmul.f32 %v2032, 1.442695
  %v2048 = vpow.pop %v2047
  %v2049 = vsel %vm654, %v2034, 0.0
  %2050 = vadd.xlane.f32.xlu0 %v2049
  %v2051 = vpop.xlane.xlu0 %2050
  %v2052 = vsel %vm654, %v2036, 0.0
  %2053 = vadd.xlane.f32.xlu0 %v2052
  %v2054 = vpop.xlane.xlu0 %2053
  %v2055 = vsel %vm654, %v2038, 0.0
  %2056 = vadd.xlane.f32.xlu0 %v2055
  %v2057 = vpop.xlane.xlu0 %2056
  %v2058 = vsel %vm654, %v2040, 0.0
  %2059 = vadd.xlane.f32.xlu0 %v2058
  %v2060 = vpop.xlane.xlu0 %2059
  %v2061 = vsel %vm654, %v2042, 0.0
  %2062 = vadd.xlane.f32.xlu0 %v2061
  %v2063 = vpop.xlane.xlu0 %2062
  %v2064 = vsel %vm654, %v2044, 0.0
  %2065 = vadd.xlane.f32.xlu0 %v2064
  %v2066 = vpop.xlane.xlu0 %2065
  %v2067 = vsel %vm654, %v2046, 0.0
  %2068 = vadd.xlane.f32.xlu0 %v2067
  %v2069 = vpop.xlane.xlu0 %2068
  %v2070 = vsel %vm654, %v2048, 0.0
  %2071 = vadd.xlane.f32.xlu0 %v2070
  %v2072 = vpop.xlane.xlu0 %2071
  %v2073 = vrcp.pop %v2051
  %v2074 = vrcp.pop %v2054
  %v2075 = vrcp.pop %v2057
  %v2076 = vrcp.pop %v2060
  %v2077 = vrcp.pop %v2063
  %v2078 = vrcp.pop %v2066
  %v2079 = vrcp.pop %v2069
  %v2080 = vrcp.pop %v2072
  %v2081 = vmul.f32 %v2034, %v2073
  %v2082 = vmul.f32 %v2036, %v2074
  %v2083 = vmul.f32 %v2038, %v2075
  %v2084 = vmul.f32 %v2040, %v2076
  %v2085 = vmul.f32 %v2042, %v2077
  %v2086 = vmul.f32 %v2044, %v2078
  %v2087 = vmul.f32 %v2046, %v2079
  %v2088 = vmul.f32 %v2048, %v2080
  %2089 = vrot.lane.b32.xlu0 %v11, 48
  %v2090 = vpop.permute.xlu0 %2089
  %v2092 = vsel %vm745, %v2081, 0
  %v2094 = vsel %vm749, %v2090, 0
  %2096 = vmatprep.subr.mxu0 0.0
  %2097 = vmatpush1.msra.mxu0 0.0
  %2098 = vmatprep.subr.mxu0 0.0
  %2099 = vmatpush1.msra.mxu0 0.0
  %2100 = vmatprep.subr.mxu0 0.0
  %2101 = vmatpush1.msra.mxu0 0.0
  %2102 = vmatprep.subr.mxu0 0.0
  %2103 = vmatpush1.msra.mxu0 0.0
  %2104 = vmatprep.subr.mxu0 0.0
  %2105 = vmatpush1.msra.mxu0 0.0
  %2106 = vmatprep.subr.mxu0 0.0
  %2107 = vmatpush1.msra.mxu0 0.0
  %2108 = vmatprep.subr.mxu0 0.0
  %2109 = vmatpush1.msra.mxu0 0.0
  %2110 = vmatprep.subr.mxu0 0.0
  %2111 = vmatpush1.msra.mxu0 0.0
  %2112 = vmatprep.subr.mxu0 0.0
  %2113 = vmatpush1.msra.mxu0 0.0
  %2114 = vmatprep.subr.mxu0 0.0
  %2115 = vmatpush1.msra.mxu0 0.0
  %2116 = vmatprep.subr.mxu0 0.0
  %2117 = vmatpush1.msra.mxu0 0.0
  %2118 = vmatprep.subr.mxu0 0.0
  %2119 = vmatpush1.msra.mxu0 0.0
  %2120 = vmatprep.subr.mxu0 0.0
  %2121 = vmatpush1.msra.mxu0 0.0
  %2122 = vmatprep.subr.mxu0 0.0
  %2123 = vmatpush1.msra.mxu0 0.0
  %2124 = vmatprep.subr.mxu0 0.0
  %2125 = vmatpush1.msra.mxu0 0.0
  %2126 = vmatprep.subr.mxu0 0.0
  %2127 = vmatpush1.msra.mxu0 %v2094
  %2128 = vmatprep.subr.mxu0 0.0
  %2129 = vmatpush2.msra.mxu0 0.0
  %2130 = vmatprep.subr.mxu0 0.0
  %2131 = vmatpush2.msra.mxu0 0.0
  %2132 = vmatprep.subr.mxu0 0.0
  %2133 = vmatpush2.msra.mxu0 0.0
  %2134 = vmatprep.subr.mxu0 0.0
  %2135 = vmatpush2.msra.mxu0 0.0
  %2136 = vmatprep.subr.mxu0 0.0
  %2137 = vmatpush2.msra.mxu0 0.0
  %2138 = vmatprep.subr.mxu0 0.0
  %2139 = vmatpush2.msra.mxu0 0.0
  %2140 = vmatprep.subr.mxu0 0.0
  %2141 = vmatpush2.msra.mxu0 0.0
  %2142 = vmatprep.subr.mxu0 0.0
  %2143 = vmatpush2.msra.mxu0 0.0
  %2144 = vmatprep.subr.mxu0 0.0
  %2145 = vmatpush2.msra.mxu0 0.0
  %2146 = vmatprep.subr.mxu0 0.0
  %2147 = vmatpush2.msra.mxu0 0.0
  %2148 = vmatprep.subr.mxu0 0.0
  %2149 = vmatpush2.msra.mxu0 0.0
  %2150 = vmatprep.subr.mxu0 0.0
  %2151 = vmatpush2.msra.mxu0 0.0
  %2152 = vmatprep.subr.mxu0 0.0
  %2153 = vmatpush2.msra.mxu0 0.0
  %2154 = vmatprep.subr.mxu0 0.0
  %2155 = vmatpush2.msra.mxu0 0.0
  %2156 = vmatprep.subr.mxu0 0.0
  %2157 = vmatpush2.msra.mxu0 0.0
  %2158 = vmatprep.subr.mxu0 0.0
  %2159 = vmatpush2.msra.mxu0 0.0
  %2160 = vmatprep.mubr.f32.mxu0 0.0
  %2161 = vmatmul.mubr.f32.gmra.mxu0 %v2092
  %v2162 = vpop.f32.mrf.mxu0
  %v2163 = vadd.f32 0.0, %v2162
  %v2164 = vpop.f32.mrf.mxu0
  %2165 = vdwg.mxu0
  %2166 = vrot.lane.b32.xlu0 %v12, 48
  %v2167 = vpop.permute.xlu0 %2166
  %v2169 = vsel %vm745, %v2082, 0
  %v2171 = vsel %vm749, %v2167, 0
  %2173 = vmatprep.subr.mxu0 0.0
  %2174 = vmatpush1.msra.mxu0 0.0
  %2175 = vmatprep.subr.mxu0 0.0
  %2176 = vmatpush1.msra.mxu0 0.0
  %2177 = vmatprep.subr.mxu0 0.0
  %2178 = vmatpush1.msra.mxu0 0.0
  %2179 = vmatprep.subr.mxu0 0.0
  %2180 = vmatpush1.msra.mxu0 0.0
  %2181 = vmatprep.subr.mxu0 0.0
  %2182 = vmatpush1.msra.mxu0 0.0
  %2183 = vmatprep.subr.mxu0 0.0
  %2184 = vmatpush1.msra.mxu0 0.0
  %2185 = vmatprep.subr.mxu0 0.0
  %2186 = vmatpush1.msra.mxu0 0.0
  %2187 = vmatprep.subr.mxu0 0.0
  %2188 = vmatpush1.msra.mxu0 0.0
  %2189 = vmatprep.subr.mxu0 0.0
  %2190 = vmatpush1.msra.mxu0 0.0
  %2191 = vmatprep.subr.mxu0 0.0
  %2192 = vmatpush1.msra.mxu0 0.0
  %2193 = vmatprep.subr.mxu0 0.0
  %2194 = vmatpush1.msra.mxu0 0.0
  %2195 = vmatprep.subr.mxu0 0.0
  %2196 = vmatpush1.msra.mxu0 0.0
  %2197 = vmatprep.subr.mxu0 0.0
  %2198 = vmatpush1.msra.mxu0 0.0
  %2199 = vmatprep.subr.mxu0 0.0
  %2200 = vmatpush1.msra.mxu0 0.0
  %2201 = vmatprep.subr.mxu0 0.0
  %2202 = vmatpush1.msra.mxu0 0.0
  %2203 = vmatprep.subr.mxu0 0.0
  %2204 = vmatpush1.msra.mxu0 %v2171
  %2205 = vmatprep.subr.mxu0 0.0
  %2206 = vmatpush2.msra.mxu0 0.0
  %2207 = vmatprep.subr.mxu0 0.0
  %2208 = vmatpush2.msra.mxu0 0.0
  %2209 = vmatprep.subr.mxu0 0.0
  %2210 = vmatpush2.msra.mxu0 0.0
  %2211 = vmatprep.subr.mxu0 0.0
  %2212 = vmatpush2.msra.mxu0 0.0
  %2213 = vmatprep.subr.mxu0 0.0
  %2214 = vmatpush2.msra.mxu0 0.0
  %2215 = vmatprep.subr.mxu0 0.0
  %2216 = vmatpush2.msra.mxu0 0.0
  %2217 = vmatprep.subr.mxu0 0.0
  %2218 = vmatpush2.msra.mxu0 0.0
  %2219 = vmatprep.subr.mxu0 0.0
  %2220 = vmatpush2.msra.mxu0 0.0
  %2221 = vmatprep.subr.mxu0 0.0
  %2222 = vmatpush2.msra.mxu0 0.0
  %2223 = vmatprep.subr.mxu0 0.0
  %2224 = vmatpush2.msra.mxu0 0.0
  %2225 = vmatprep.subr.mxu0 0.0
  %2226 = vmatpush2.msra.mxu0 0.0
  %2227 = vmatprep.subr.mxu0 0.0
  %2228 = vmatpush2.msra.mxu0 0.0
  %2229 = vmatprep.subr.mxu0 0.0
  %2230 = vmatpush2.msra.mxu0 0.0
  %2231 = vmatprep.subr.mxu0 0.0
  %2232 = vmatpush2.msra.mxu0 0.0
  %2233 = vmatprep.subr.mxu0 0.0
  %2234 = vmatpush2.msra.mxu0 0.0
  %2235 = vmatprep.subr.mxu0 0.0
  %2236 = vmatpush2.msra.mxu0 0.0
  %2237 = vmatprep.mubr.f32.mxu0 0.0
  %2238 = vmatmul.mubr.f32.gmra.mxu0 %v2169
  %v2239 = vpop.f32.mrf.mxu0
  %v2240 = vadd.f32 0.0, %v2239
  %v2241 = vpop.f32.mrf.mxu0
  %2242 = vdwg.mxu0
  %2243 = vrot.lane.b32.xlu0 %v13, 48
  %v2244 = vpop.permute.xlu0 %2243
  %v2246 = vsel %vm745, %v2083, 0
  %v2248 = vsel %vm749, %v2244, 0
  %2250 = vmatprep.subr.mxu0 0.0
  %2251 = vmatpush1.msra.mxu0 0.0
  %2252 = vmatprep.subr.mxu0 0.0
  %2253 = vmatpush1.msra.mxu0 0.0
  %2254 = vmatprep.subr.mxu0 0.0
  %2255 = vmatpush1.msra.mxu0 0.0
  %2256 = vmatprep.subr.mxu0 0.0
  %2257 = vmatpush1.msra.mxu0 0.0
  %2258 = vmatprep.subr.mxu0 0.0
  %2259 = vmatpush1.msra.mxu0 0.0
  %2260 = vmatprep.subr.mxu0 0.0
  %2261 = vmatpush1.msra.mxu0 0.0
  %2262 = vmatprep.subr.mxu0 0.0
  %2263 = vmatpush1.msra.mxu0 0.0
  %2264 = vmatprep.subr.mxu0 0.0
  %2265 = vmatpush1.msra.mxu0 0.0
  %2266 = vmatprep.subr.mxu0 0.0
  %2267 = vmatpush1.msra.mxu0 0.0
  %2268 = vmatprep.subr.mxu0 0.0
  %2269 = vmatpush1.msra.mxu0 0.0
  %2270 = vmatprep.subr.mxu0 0.0
  %2271 = vmatpush1.msra.mxu0 0.0
  %2272 = vmatprep.subr.mxu0 0.0
  %2273 = vmatpush1.msra.mxu0 0.0
  %2274 = vmatprep.subr.mxu0 0.0
  %2275 = vmatpush1.msra.mxu0 0.0
  %2276 = vmatprep.subr.mxu0 0.0
  %2277 = vmatpush1.msra.mxu0 0.0
  %2278 = vmatprep.subr.mxu0 0.0
  %2279 = vmatpush1.msra.mxu0 0.0
  %2280 = vmatprep.subr.mxu0 0.0
  %2281 = vmatpush1.msra.mxu0 %v2248
  %2282 = vmatprep.subr.mxu0 0.0
  %2283 = vmatpush2.msra.mxu0 0.0
  %2284 = vmatprep.subr.mxu0 0.0
  %2285 = vmatpush2.msra.mxu0 0.0
  %2286 = vmatprep.subr.mxu0 0.0
  %2287 = vmatpush2.msra.mxu0 0.0
  %2288 = vmatprep.subr.mxu0 0.0
  %2289 = vmatpush2.msra.mxu0 0.0
  %2290 = vmatprep.subr.mxu0 0.0
  %2291 = vmatpush2.msra.mxu0 0.0
  %2292 = vmatprep.subr.mxu0 0.0
  %2293 = vmatpush2.msra.mxu0 0.0
  %2294 = vmatprep.subr.mxu0 0.0
  %2295 = vmatpush2.msra.mxu0 0.0
  %2296 = vmatprep.subr.mxu0 0.0
  %2297 = vmatpush2.msra.mxu0 0.0
  %2298 = vmatprep.subr.mxu0 0.0
  %2299 = vmatpush2.msra.mxu0 0.0
  %2300 = vmatprep.subr.mxu0 0.0
  %2301 = vmatpush2.msra.mxu0 0.0
  %2302 = vmatprep.subr.mxu0 0.0
  %2303 = vmatpush2.msra.mxu0 0.0
  %2304 = vmatprep.subr.mxu0 0.0
  %2305 = vmatpush2.msra.mxu0 0.0
  %2306 = vmatprep.subr.mxu0 0.0
  %2307 = vmatpush2.msra.mxu0 0.0
  %2308 = vmatprep.subr.mxu0 0.0
  %2309 = vmatpush2.msra.mxu0 0.0
  %2310 = vmatprep.subr.mxu0 0.0
  %2311 = vmatpush2.msra.mxu0 0.0
  %2312 = vmatprep.subr.mxu0 0.0
  %2313 = vmatpush2.msra.mxu0 0.0
  %2314 = vmatprep.mubr.f32.mxu0 0.0
  %2315 = vmatmul.mubr.f32.gmra.mxu0 %v2246
  %v2316 = vpop.f32.mrf.mxu0
  %v2317 = vadd.f32 0.0, %v2316
  %v2318 = vpop.f32.mrf.mxu0
  %2319 = vdwg.mxu0
  %2320 = vrot.lane.b32.xlu0 %v14, 48
  %v2321 = vpop.permute.xlu0 %2320
  %v2323 = vsel %vm745, %v2084, 0
  %v2325 = vsel %vm749, %v2321, 0
  %2327 = vmatprep.subr.mxu0 0.0
  %2328 = vmatpush1.msra.mxu0 0.0
  %2329 = vmatprep.subr.mxu0 0.0
  %2330 = vmatpush1.msra.mxu0 0.0
  %2331 = vmatprep.subr.mxu0 0.0
  %2332 = vmatpush1.msra.mxu0 0.0
  %2333 = vmatprep.subr.mxu0 0.0
  %2334 = vmatpush1.msra.mxu0 0.0
  %2335 = vmatprep.subr.mxu0 0.0
  %2336 = vmatpush1.msra.mxu0 0.0
  %2337 = vmatprep.subr.mxu0 0.0
  %2338 = vmatpush1.msra.mxu0 0.0
  %2339 = vmatprep.subr.mxu0 0.0
  %2340 = vmatpush1.msra.mxu0 0.0
  %2341 = vmatprep.subr.mxu0 0.0
  %2342 = vmatpush1.msra.mxu0 0.0
  %2343 = vmatprep.subr.mxu0 0.0
  %2344 = vmatpush1.msra.mxu0 0.0
  %2345 = vmatprep.subr.mxu0 0.0
  %2346 = vmatpush1.msra.mxu0 0.0
  %2347 = vmatprep.subr.mxu0 0.0
  %2348 = vmatpush1.msra.mxu0 0.0
  %2349 = vmatprep.subr.mxu0 0.0
  %2350 = vmatpush1.msra.mxu0 0.0
  %2351 = vmatprep.subr.mxu0 0.0
  %2352 = vmatpush1.msra.mxu0 0.0
  %2353 = vmatprep.subr.mxu0 0.0
  %2354 = vmatpush1.msra.mxu0 0.0
  %2355 = vmatprep.subr.mxu0 0.0
  %2356 = vmatpush1.msra.mxu0 0.0
  %2357 = vmatprep.subr.mxu0 0.0
  %2358 = vmatpush1.msra.mxu0 %v2325
  %2359 = vmatprep.subr.mxu0 0.0
  %2360 = vmatpush2.msra.mxu0 0.0
  %2361 = vmatprep.subr.mxu0 0.0
  %2362 = vmatpush2.msra.mxu0 0.0
  %2363 = vmatprep.subr.mxu0 0.0
  %2364 = vmatpush2.msra.mxu0 0.0
  %2365 = vmatprep.subr.mxu0 0.0
  %2366 = vmatpush2.msra.mxu0 0.0
  %2367 = vmatprep.subr.mxu0 0.0
  %2368 = vmatpush2.msra.mxu0 0.0
  %2369 = vmatprep.subr.mxu0 0.0
  %2370 = vmatpush2.msra.mxu0 0.0
  %2371 = vmatprep.subr.mxu0 0.0
  %2372 = vmatpush2.msra.mxu0 0.0
  %2373 = vmatprep.subr.mxu0 0.0
  %2374 = vmatpush2.msra.mxu0 0.0
  %2375 = vmatprep.subr.mxu0 0.0
  %2376 = vmatpush2.msra.mxu0 0.0
  %2377 = vmatprep.subr.mxu0 0.0
  %2378 = vmatpush2.msra.mxu0 0.0
  %2379 = vmatprep.subr.mxu0 0.0
  %2380 = vmatpush2.msra.mxu0 0.0
  %2381 = vmatprep.subr.mxu0 0.0
  %2382 = vmatpush2.msra.mxu0 0.0
  %2383 = vmatprep.subr.mxu0 0.0
  %2384 = vmatpush2.msra.mxu0 0.0
  %2385 = vmatprep.subr.mxu0 0.0
  %2386 = vmatpush2.msra.mxu0 0.0
  %2387 = vmatprep.subr.mxu0 0.0
  %2388 = vmatpush2.msra.mxu0 0.0
  %2389 = vmatprep.subr.mxu0 0.0
  %2390 = vmatpush2.msra.mxu0 0.0
  %2391 = vmatprep.mubr.f32.mxu0 0.0
  %2392 = vmatmul.mubr.f32.gmra.mxu0 %v2323
  %v2393 = vpop.f32.mrf.mxu0
  %v2394 = vadd.f32 0.0, %v2393
  %v2395 = vpop.f32.mrf.mxu0
  %2396 = vdwg.mxu0
  %2397 = vrot.lane.b32.xlu0 %v15, 48
  %v2398 = vpop.permute.xlu0 %2397
  %v2400 = vsel %vm745, %v2085, 0
  %v2402 = vsel %vm749, %v2398, 0
  %2404 = vmatprep.subr.mxu0 0.0
  %2405 = vmatpush1.msra.mxu0 0.0
  %2406 = vmatprep.subr.mxu0 0.0
  %2407 = vmatpush1.msra.mxu0 0.0
  %2408 = vmatprep.subr.mxu0 0.0
  %2409 = vmatpush1.msra.mxu0 0.0
  %2410 = vmatprep.subr.mxu0 0.0
  %2411 = vmatpush1.msra.mxu0 0.0
  %2412 = vmatprep.subr.mxu0 0.0
  %2413 = vmatpush1.msra.mxu0 0.0
  %2414 = vmatprep.subr.mxu0 0.0
  %2415 = vmatpush1.msra.mxu0 0.0
  %2416 = vmatprep.subr.mxu0 0.0
  %2417 = vmatpush1.msra.mxu0 0.0
  %2418 = vmatprep.subr.mxu0 0.0
  %2419 = vmatpush1.msra.mxu0 0.0
  %2420 = vmatprep.subr.mxu0 0.0
  %2421 = vmatpush1.msra.mxu0 0.0
  %2422 = vmatprep.subr.mxu0 0.0
  %2423 = vmatpush1.msra.mxu0 0.0
  %2424 = vmatprep.subr.mxu0 0.0
  %2425 = vmatpush1.msra.mxu0 0.0
  %2426 = vmatprep.subr.mxu0 0.0
  %2427 = vmatpush1.msra.mxu0 0.0
  %2428 = vmatprep.subr.mxu0 0.0
  %2429 = vmatpush1.msra.mxu0 0.0
  %2430 = vmatprep.subr.mxu0 0.0
  %2431 = vmatpush1.msra.mxu0 0.0
  %2432 = vmatprep.subr.mxu0 0.0
  %2433 = vmatpush1.msra.mxu0 0.0
  %2434 = vmatprep.subr.mxu0 0.0
  %2435 = vmatpush1.msra.mxu0 %v2402
  %2436 = vmatprep.subr.mxu0 0.0
  %2437 = vmatpush2.msra.mxu0 0.0
  %2438 = vmatprep.subr.mxu0 0.0
  %2439 = vmatpush2.msra.mxu0 0.0
  %2440 = vmatprep.subr.mxu0 0.0
  %2441 = vmatpush2.msra.mxu0 0.0
  %2442 = vmatprep.subr.mxu0 0.0
  %2443 = vmatpush2.msra.mxu0 0.0
  %2444 = vmatprep.subr.mxu0 0.0
  %2445 = vmatpush2.msra.mxu0 0.0
  %2446 = vmatprep.subr.mxu0 0.0
  %2447 = vmatpush2.msra.mxu0 0.0
  %2448 = vmatprep.subr.mxu0 0.0
  %2449 = vmatpush2.msra.mxu0 0.0
  %2450 = vmatprep.subr.mxu0 0.0
  %2451 = vmatpush2.msra.mxu0 0.0
  %2452 = vmatprep.subr.mxu0 0.0
  %2453 = vmatpush2.msra.mxu0 0.0
  %2454 = vmatprep.subr.mxu0 0.0
  %2455 = vmatpush2.msra.mxu0 0.0
  %2456 = vmatprep.subr.mxu0 0.0
  %2457 = vmatpush2.msra.mxu0 0.0
  %2458 = vmatprep.subr.mxu0 0.0
  %2459 = vmatpush2.msra.mxu0 0.0
  %2460 = vmatprep.subr.mxu0 0.0
  %2461 = vmatpush2.msra.mxu0 0.0
  %2462 = vmatprep.subr.mxu0 0.0
  %2463 = vmatpush2.msra.mxu0 0.0
  %2464 = vmatprep.subr.mxu0 0.0
  %2465 = vmatpush2.msra.mxu0 0.0
  %2466 = vmatprep.subr.mxu0 0.0
  %2467 = vmatpush2.msra.mxu0 0.0
  %2468 = vmatprep.mubr.f32.mxu0 0.0
  %2469 = vmatmul.mubr.f32.gmra.mxu0 %v2400
  %v2470 = vpop.f32.mrf.mxu0
  %v2471 = vadd.f32 0.0, %v2470
  %v2472 = vpop.f32.mrf.mxu0
  %2473 = vdwg.mxu0
  %2474 = vrot.lane.b32.xlu0 %v16, 48
  %v2475 = vpop.permute.xlu0 %2474
  %v2477 = vsel %vm745, %v2086, 0
  %v2479 = vsel %vm749, %v2475, 0
  %2481 = vmatprep.subr.mxu0 0.0
  %2482 = vmatpush1.msra.mxu0 0.0
  %2483 = vmatprep.subr.mxu0 0.0
  %2484 = vmatpush1.msra.mxu0 0.0
  %2485 = vmatprep.subr.mxu0 0.0
  %2486 = vmatpush1.msra.mxu0 0.0
  %2487 = vmatprep.subr.mxu0 0.0
  %2488 = vmatpush1.msra.mxu0 0.0
  %2489 = vmatprep.subr.mxu0 0.0
  %2490 = vmatpush1.msra.mxu0 0.0
  %2491 = vmatprep.subr.mxu0 0.0
  %2492 = vmatpush1.msra.mxu0 0.0
  %2493 = vmatprep.subr.mxu0 0.0
  %2494 = vmatpush1.msra.mxu0 0.0
  %2495 = vmatprep.subr.mxu0 0.0
  %2496 = vmatpush1.msra.mxu0 0.0
  %2497 = vmatprep.subr.mxu0 0.0
  %2498 = vmatpush1.msra.mxu0 0.0
  %2499 = vmatprep.subr.mxu0 0.0
  %2500 = vmatpush1.msra.mxu0 0.0
  %2501 = vmatprep.subr.mxu0 0.0
  %2502 = vmatpush1.msra.mxu0 0.0
  %2503 = vmatprep.subr.mxu0 0.0
  %2504 = vmatpush1.msra.mxu0 0.0
  %2505 = vmatprep.subr.mxu0 0.0
  %2506 = vmatpush1.msra.mxu0 0.0
  %2507 = vmatprep.subr.mxu0 0.0
  %2508 = vmatpush1.msra.mxu0 0.0
  %2509 = vmatprep.subr.mxu0 0.0
  %2510 = vmatpush1.msra.mxu0 0.0
  %2511 = vmatprep.subr.mxu0 0.0
  %2512 = vmatpush1.msra.mxu0 %v2479
  %2513 = vmatprep.subr.mxu0 0.0
  %2514 = vmatpush2.msra.mxu0 0.0
  %2515 = vmatprep.subr.mxu0 0.0
  %2516 = vmatpush2.msra.mxu0 0.0
  %2517 = vmatprep.subr.mxu0 0.0
  %2518 = vmatpush2.msra.mxu0 0.0
  %2519 = vmatprep.subr.mxu0 0.0
  %2520 = vmatpush2.msra.mxu0 0.0
  %2521 = vmatprep.subr.mxu0 0.0
  %2522 = vmatpush2.msra.mxu0 0.0
  %2523 = vmatprep.subr.mxu0 0.0
  %2524 = vmatpush2.msra.mxu0 0.0
  %2525 = vmatprep.subr.mxu0 0.0
  %2526 = vmatpush2.msra.mxu0 0.0
  %2527 = vmatprep.subr.mxu0 0.0
  %2528 = vmatpush2.msra.mxu0 0.0
  %2529 = vmatprep.subr.mxu0 0.0
  %2530 = vmatpush2.msra.mxu0 0.0
  %2531 = vmatprep.subr.mxu0 0.0
  %2532 = vmatpush2.msra.mxu0 0.0
  %2533 = vmatprep.subr.mxu0 0.0
  %2534 = vmatpush2.msra.mxu0 0.0
  %2535 = vmatprep.subr.mxu0 0.0
  %2536 = vmatpush2.msra.mxu0 0.0
  %2537 = vmatprep.subr.mxu0 0.0
  %2538 = vmatpush2.msra.mxu0 0.0
  %2539 = vmatprep.subr.mxu0 0.0
  %2540 = vmatpush2.msra.mxu0 0.0
  %2541 = vmatprep.subr.mxu0 0.0
  %2542 = vmatpush2.msra.mxu0 0.0
  %2543 = vmatprep.subr.mxu0 0.0
  %2544 = vmatpush2.msra.mxu0 0.0
  %2545 = vmatprep.mubr.f32.mxu0 0.0
  %2546 = vmatmul.mubr.f32.gmra.mxu0 %v2477
  %v2547 = vpop.f32.mrf.mxu0
  %v2548 = vadd.f32 0.0, %v2547
  %v2549 = vpop.f32.mrf.mxu0
  %2550 = vdwg.mxu0
  %2551 = vrot.lane.b32.xlu0 %v17, 48
  %v2552 = vpop.permute.xlu0 %2551
  %v2554 = vsel %vm745, %v2087, 0
  %v2556 = vsel %vm749, %v2552, 0
  %2558 = vmatprep.subr.mxu0 0.0
  %2559 = vmatpush1.msra.mxu0 0.0
  %2560 = vmatprep.subr.mxu0 0.0
  %2561 = vmatpush1.msra.mxu0 0.0
  %2562 = vmatprep.subr.mxu0 0.0
  %2563 = vmatpush1.msra.mxu0 0.0
  %2564 = vmatprep.subr.mxu0 0.0
  %2565 = vmatpush1.msra.mxu0 0.0
  %2566 = vmatprep.subr.mxu0 0.0
  %2567 = vmatpush1.msra.mxu0 0.0
  %2568 = vmatprep.subr.mxu0 0.0
  %2569 = vmatpush1.msra.mxu0 0.0
  %2570 = vmatprep.subr.mxu0 0.0
  %2571 = vmatpush1.msra.mxu0 0.0
  %2572 = vmatprep.subr.mxu0 0.0
  %2573 = vmatpush1.msra.mxu0 0.0
  %2574 = vmatprep.subr.mxu0 0.0
  %2575 = vmatpush1.msra.mxu0 0.0
  %2576 = vmatprep.subr.mxu0 0.0
  %2577 = vmatpush1.msra.mxu0 0.0
  %2578 = vmatprep.subr.mxu0 0.0
  %2579 = vmatpush1.msra.mxu0 0.0
  %2580 = vmatprep.subr.mxu0 0.0
  %2581 = vmatpush1.msra.mxu0 0.0
  %2582 = vmatprep.subr.mxu0 0.0
  %2583 = vmatpush1.msra.mxu0 0.0
  %2584 = vmatprep.subr.mxu0 0.0
  %2585 = vmatpush1.msra.mxu0 0.0
  %2586 = vmatprep.subr.mxu0 0.0
  %2587 = vmatpush1.msra.mxu0 0.0
  %2588 = vmatprep.subr.mxu0 0.0
  %2589 = vmatpush1.msra.mxu0 %v2556
  %2590 = vmatprep.subr.mxu0 0.0
  %2591 = vmatpush2.msra.mxu0 0.0
  %2592 = vmatprep.subr.mxu0 0.0
  %2593 = vmatpush2.msra.mxu0 0.0
  %2594 = vmatprep.subr.mxu0 0.0
  %2595 = vmatpush2.msra.mxu0 0.0
  %2596 = vmatprep.subr.mxu0 0.0
  %2597 = vmatpush2.msra.mxu0 0.0
  %2598 = vmatprep.subr.mxu0 0.0
  %2599 = vmatpush2.msra.mxu0 0.0
  %2600 = vmatprep.subr.mxu0 0.0
  %2601 = vmatpush2.msra.mxu0 0.0
  %2602 = vmatprep.subr.mxu0 0.0
  %2603 = vmatpush2.msra.mxu0 0.0
  %2604 = vmatprep.subr.mxu0 0.0
  %2605 = vmatpush2.msra.mxu0 0.0
  %2606 = vmatprep.subr.mxu0 0.0
  %2607 = vmatpush2.msra.mxu0 0.0
  %2608 = vmatprep.subr.mxu0 0.0
  %2609 = vmatpush2.msra.mxu0 0.0
  %2610 = vmatprep.subr.mxu0 0.0
  %2611 = vmatpush2.msra.mxu0 0.0
  %2612 = vmatprep.subr.mxu0 0.0
  %2613 = vmatpush2.msra.mxu0 0.0
  %2614 = vmatprep.subr.mxu0 0.0
  %2615 = vmatpush2.msra.mxu0 0.0
  %2616 = vmatprep.subr.mxu0 0.0
  %2617 = vmatpush2.msra.mxu0 0.0
  %2618 = vmatprep.subr.mxu0 0.0
  %2619 = vmatpush2.msra.mxu0 0.0
  %2620 = vmatprep.subr.mxu0 0.0
  %2621 = vmatpush2.msra.mxu0 0.0
  %2622 = vmatprep.mubr.f32.mxu0 0.0
  %2623 = vmatmul.mubr.f32.gmra.mxu0 %v2554
  %v2624 = vpop.f32.mrf.mxu0
  %v2625 = vadd.f32 0.0, %v2624
  %v2626 = vpop.f32.mrf.mxu0
  %2627 = vdwg.mxu0
  %2628 = vrot.lane.b32.xlu0 %v18, 48
  %v2629 = vpop.permute.xlu0 %2628
  %v2631 = vsel %vm745, %v2088, 0
  %v2633 = vsel %vm749, %v2629, 0
  %2635 = vmatprep.subr.mxu0 0.0
  %2636 = vmatpush1.msra.mxu0 0.0
  %2637 = vmatprep.subr.mxu0 0.0
  %2638 = vmatpush1.msra.mxu0 0.0
  %2639 = vmatprep.subr.mxu0 0.0
  %2640 = vmatpush1.msra.mxu0 0.0
  %2641 = vmatprep.subr.mxu0 0.0
  %2642 = vmatpush1.msra.mxu0 0.0
  %2643 = vmatprep.subr.mxu0 0.0
  %2644 = vmatpush1.msra.mxu0 0.0
  %2645 = vmatprep.subr.mxu0 0.0
  %2646 = vmatpush1.msra.mxu0 0.0
  %2647 = vmatprep.subr.mxu0 0.0
  %2648 = vmatpush1.msra.mxu0 0.0
  %2649 = vmatprep.subr.mxu0 0.0
  %2650 = vmatpush1.msra.mxu0 0.0
  %2651 = vmatprep.subr.mxu0 0.0
  %2652 = vmatpush1.msra.mxu0 0.0
  %2653 = vmatprep.subr.mxu0 0.0
  %2654 = vmatpush1.msra.mxu0 0.0
  %2655 = vmatprep.subr.mxu0 0.0
  %2656 = vmatpush1.msra.mxu0 0.0
  %2657 = vmatprep.subr.mxu0 0.0
  %2658 = vmatpush1.msra.mxu0 0.0
  %2659 = vmatprep.subr.mxu0 0.0
  %2660 = vmatpush1.msra.mxu0 0.0
  %2661 = vmatprep.subr.mxu0 0.0
  %2662 = vmatpush1.msra.mxu0 0.0
  %2663 = vmatprep.subr.mxu0 0.0
  %2664 = vmatpush1.msra.mxu0 0.0
  %2665 = vmatprep.subr.mxu0 0.0
  %2666 = vmatpush1.msra.mxu0 %v2633
  %2667 = vmatprep.subr.mxu0 0.0
  %2668 = vmatpush2.msra.mxu0 0.0
  %2669 = vmatprep.subr.mxu0 0.0
  %2670 = vmatpush2.msra.mxu0 0.0
  %2671 = vmatprep.subr.mxu0 0.0
  %2672 = vmatpush2.msra.mxu0 0.0
  %2673 = vmatprep.subr.mxu0 0.0
  %2674 = vmatpush2.msra.mxu0 0.0
  %2675 = vmatprep.subr.mxu0 0.0
  %2676 = vmatpush2.msra.mxu0 0.0
  %2677 = vmatprep.subr.mxu0 0.0
  %2678 = vmatpush2.msra.mxu0 0.0
  %2679 = vmatprep.subr.mxu0 0.0
  %2680 = vmatpush2.msra.mxu0 0.0
  %2681 = vmatprep.subr.mxu0 0.0
  %2682 = vmatpush2.msra.mxu0 0.0
  %2683 = vmatprep.subr.mxu0 0.0
  %2684 = vmatpush2.msra.mxu0 0.0
  %2685 = vmatprep.subr.mxu0 0.0
  %2686 = vmatpush2.msra.mxu0 0.0
  %2687 = vmatprep.subr.mxu0 0.0
  %2688 = vmatpush2.msra.mxu0 0.0
  %2689 = vmatprep.subr.mxu0 0.0
  %2690 = vmatpush2.msra.mxu0 0.0
  %2691 = vmatprep.subr.mxu0 0.0
  %2692 = vmatpush2.msra.mxu0 0.0
  %2693 = vmatprep.subr.mxu0 0.0
  %2694 = vmatpush2.msra.mxu0 0.0
  %2695 = vmatprep.subr.mxu0 0.0
  %2696 = vmatpush2.msra.mxu0 0.0
  %2697 = vmatprep.subr.mxu0 0.0
  %2698 = vmatpush2.msra.mxu0 0.0
  %2699 = vmatprep.mubr.f32.mxu0 0.0
  %2700 = vmatmul.mubr.f32.gmra.mxu0 %v2631
  %v2701 = vpop.f32.mrf.mxu0
  %v2702 = vadd.f32 0.0, %v2701
  %v2703 = vpop.f32.mrf.mxu0
  %2704 = vdwg.mxu0
  %2713 = vrot.lane.b32.xlu0 %v2163, 16
  %v2714 = vpop.permute.xlu0 %2713
  %2715 = vrot.lane.b32.xlu0 %v2240, 16
  %v2716 = vpop.permute.xlu0 %2715
  %2717 = vrot.lane.b32.xlu0 %v2317, 16
  %v2718 = vpop.permute.xlu0 %2717
  %2719 = vrot.lane.b32.xlu0 %v2394, 16
  %v2720 = vpop.permute.xlu0 %2719
  %2721 = vrot.lane.b32.xlu0 %v2471, 16
  %v2722 = vpop.permute.xlu0 %2721
  %2723 = vrot.lane.b32.xlu0 %v2548, 16
  %v2724 = vpop.permute.xlu0 %2723
  %2725 = vrot.lane.b32.xlu0 %v2625, 16
  %v2726 = vpop.permute.xlu0 %2725
  %2727 = vrot.lane.b32.xlu0 %v2702, 16
  %v2728 = vpop.permute.xlu0 %2727
  %v2737 = vsel %vm24, %v819, %v2714
  %v2738 = vsel %vm24, %v896, %v2716
  %v2739 = vsel %vm24, %v973, %v2718
  %v2740 = vsel %vm24, %v1050, %v2720
  %v2741 = vsel %vm24, %v1127, %v2722
  %v2742 = vsel %vm24, %v1204, %v2724
  %v2743 = vsel %vm24, %v1281, %v2726
  %v2744 = vsel %vm24, %v1358, %v2728
  %vm2745 = vcmask 257024
  %2746 = vst.msk [vmem:[%s2] sm:$0xf] %vm2745, %v2737
  %2747 = vst.msk [vmem:[%s2 + $0x4] sm:$0xf] %vm2745, %v2738
  %2748 = vst.msk [vmem:[%s2 + $0x8] sm:$0xf] %vm2745, %v2739
  %2749 = vst.msk [vmem:[%s2 + $0xc] sm:$0xf] %vm2745, %v2740
  %2750 = vst.msk [vmem:[%s2 + $0x10] sm:$0xf] %vm2745, %v2741
  %2751 = vst.msk [vmem:[%s2 + $0x14] sm:$0xf] %vm2745, %v2742
  %2752 = vst.msk [vmem:[%s2 + $0x18] sm:$0xf] %vm2745, %v2743
  %2753 = vst.msk [vmem:[%s2 + $0x1c] sm:$0xf] %vm2745, %v2744
  // Predicated region
  $region10: #{swin_forward.26} parent=0 // pred_check
    _
  $region11: #{swin_forward.26} parent=0 // pred_check_branch
    %2755 = sbr.rel (0) target = $region13
  $region12: #{swin_forward.26} parent=0 // pred_region
    _
  $region13: #{swin_forward.26} parent=0 // pred_fallthru
    _
  // Predicated region
  $region14: #{swin_forward.26} parent=0 // pred_check
    _
  $region15: #{swin_forward.26} parent=0 // pred_check_branch
    %2757 = sbr.rel (0) target = $region17
  $region16: #{swin_forward.26} parent=0 // pred_region
    _
  $region17: #{swin_forward.26} parent=0 // pred_fallthru
    _

// kernel: swin_forward.35
$region0: #{swin_forward.35}
  #allocation0 [shape = 'u32[]', space=smem, size = 0x4, offset = 0x4, fixed_abs, tag = 'smem constant byte address 0x4 - core index']
  #allocation1 [shape = 'u32[144,128]{1,0:T(1,128)}', space=vmem, size = 0x12000, scoped, tag = 'internal scratch']
  %s0 = inlined_call_operand.vmem [shape: f32[8,128], index: 0, kind: input, shape index: {}]
  %s1 = inlined_call_operand.vmem [shape: f32[1,128], index: 1, kind: input, shape index: {}]
  %s2 = inlined_call_operand.vmem [shape: f32[1,128], index: 2, kind: input, shape index: {}]
  %s3 = inlined_call_operand.vmem [shape: f32[128,64], index: 3, kind: input, shape index: {}]
  %s4 = inlined_call_operand.vmem [shape: f32[1,64], index: 4, kind: input, shape index: {}]
  %s5 = inlined_call_operand.vmem [shape: f32[8,64], index: 5, kind: output, shape index: {}]
  %s6 = sld [smem:[#allocation0]]
  $region30: #{swin_forward.35} parent=0
    _
  %s8 = ssub.s32 1, %s6
  %s9 = scalar_select 0, %s8, %s6
  // Predicated region
  $region2: #{swin_forward.35} parent=0 // pred_check
    _
  $region3: #{swin_forward.35} parent=0 // pred_check_branch
    %11 = sbr.rel (0) target = $region5
  $region4: #{swin_forward.35} parent=0 // pred_region
    _
  $region5: #{swin_forward.35} parent=0 // pred_fallthru
    _
  // Predicated region
  $region6: #{swin_forward.35} parent=0 // pred_check
    _
  $region7: #{swin_forward.35} parent=0 // pred_check_branch
    %13 = sbr.rel (0) target = $region9
  $region8: #{swin_forward.35} parent=0 // pred_region
    _
  $region9: #{swin_forward.35} parent=0 // pred_fallthru
    _
  // Predicated region
  $region10: #{swin_forward.35} parent=0 // pred_check
    _
  $region11: #{swin_forward.35} parent=0 // pred_check_branch
    %15 = sbr.rel (0) target = $region13
  $region12: #{swin_forward.35} parent=0 // pred_region
    _
  $region13: #{swin_forward.35} parent=0 // pred_fallthru
    _
  // Predicated region
  $region14: #{swin_forward.35} parent=0 // pred_check
    _
  $region15: #{swin_forward.35} parent=0 // pred_check_branch
    %17 = sbr.rel (0) target = $region17
  $region16: #{swin_forward.35} parent=0 // pred_region
    _
  $region17: #{swin_forward.35} parent=0 // pred_fallthru
    _
  // Predicated region
  $region18: #{swin_forward.35} parent=0 // pred_check
    _
  $region19: #{swin_forward.35} parent=0 // pred_check_branch
    %19 = sbr.rel (0) target = $region21
  $region20: #{swin_forward.35} parent=0 // pred_region
    _
  $region21: #{swin_forward.35} parent=0 // pred_fallthru
    _
  %v20 = vld [vmem:[%s0] sm:$0xff]
  %v21 = vld [vmem:[%s1] sm:$0x1]
  %v22 = vld [vmem:[%s2] sm:$0x1]
  %23 = vadd.xlane.f32.xlu0 %v20
  %v24 = vpop.xlane.xlu0 %23
  %v25 = vrcp.pop 128.0
  %v26 = vmul.f32 %v24, %v25
  %v27 = vsub.f32 %v20, %v26
  %v28 = vmul.f32 %v27, %v27
  %29 = vadd.xlane.f32.xlu0 %v28
  %v30 = vpop.xlane.xlu0 %29
  %v31 = vmul.f32 %v30, %v25
  %v32 = vadd.f32 %v31, 1e-05
  %v33 = vrsqrt.pop %v32
  %v34 = vmul.f32 %v27, %v33
  %v36 = vlaneseq
  %v37 = vshrl.u32 %v36, 7
  %v38 = vsub.s32 0, %v37
  %v39 = vrot.slane %v21, %v38
  %v41 = vmul.f32 %v34, %v39
  %v43 = vlaneseq
  %v44 = vshrl.u32 %v43, 7
  %v45 = vsub.s32 0, %v44
  %v46 = vrot.slane %v22, %v45
  %v48 = vadd.f32 %v41, %v46
  %v49 = vld [vmem:[%s3] sm:$0xff]
  %v50 = vld [vmem:[%s3 + $0x8] sm:$0xff]
  %v51 = vld [vmem:[%s3 + $0x10] sm:$0xff]
  %v52 = vld [vmem:[%s3 + $0x18] sm:$0xff]
  %v53 = vld [vmem:[%s3 + $0x20] sm:$0xff]
  %v54 = vld [vmem:[%s3 + $0x28] sm:$0xff]
  %v55 = vld [vmem:[%s3 + $0x30] sm:$0xff]
  %v56 = vld [vmem:[%s3 + $0x38] sm:$0xff]
  %v57 = vld [vmem:[%s3 + $0x40] sm:$0xff]
  %v58 = vld [vmem:[%s3 + $0x48] sm:$0xff]
  %v59 = vld [vmem:[%s3 + $0x50] sm:$0xff]
  %v60 = vld [vmem:[%s3 + $0x58] sm:$0xff]
  %v61 = vld [vmem:[%s3 + $0x60] sm:$0xff]
  %v62 = vld [vmem:[%s3 + $0x68] sm:$0xff]
  %v63 = vld [vmem:[%s3 + $0x70] sm:$0xff]
  %v64 = vld [vmem:[%s3 + $0x78] sm:$0xff]
  %v65 = vld [vmem:[%s4] sm:$0x1]
  %v67 = vlaneseq
  %v68 = vshrl.u32 %v67, 7
  %v69 = vsub.s32 0, %v68
  %v70 = vrot.slane %v65, %v69
  %72 = vmatprep.subr.mxu0 0.0
  %73 = vmatpush1.msra.mxu0 %v64
  %74 = vmatprep.subr.mxu0 0.0
  %75 = vmatpush1.msra.mxu0 %v63
  %76 = vmatprep.subr.mxu0 0.0
  %77 = vmatpush1.msra.mxu0 %v62
  %78 = vmatprep.subr.mxu0 0.0
  %79 = vmatpush1.msra.mxu0 %v61
  %80 = vmatprep.subr.mxu0 0.0
  %81 = vmatpush1.msra.mxu0 %v60
  %82 = vmatprep.subr.mxu0 0.0
  %83 = vmatpush1.msra.mxu0 %v59
  %84 = vmatprep.subr.mxu0 0.0
  %85 = vmatpush1.msra.mxu0 %v58
  %86 = vmatprep.subr.mxu0 0.0
  %87 = vmatpush1.msra.mxu0 %v57
  %88 = vmatprep.subr.mxu0 0.0
  %89 = vmatpush1.msra.mxu0 %v56
  %90 = vmatprep.subr.mxu0 0.0
  %91 = vmatpush1.msra.mxu0 %v55
  %92 = vmatprep.subr.mxu0 0.0
  %93 = vmatpush1.msra.mxu0 %v54
  %94 = vmatprep.subr.mxu0 0.0
  %95 = vmatpush1.msra.mxu0 %v53
  %96 = vmatprep.subr.mxu0 0.0
  %97 = vmatpush1.msra.mxu0 %v52
  %98 = vmatprep.subr.mxu0 0.0
  %99 = vmatpush1.msra.mxu0 %v51
  %100 = vmatprep.subr.mxu0 0.0
  %101 = vmatpush1.msra.mxu0 %v50
  %102 = vmatprep.subr.mxu0 0.0
  %103 = vmatpush1.msra.mxu0 %v49
  %104 = vmatprep.subr.mxu0 0.0
  %105 = vmatpush2.msra.mxu0 0.0
  %106 = vmatprep.subr.mxu0 0.0
  %107 = vmatpush2.msra.mxu0 0.0
  %108 = vmatprep.subr.mxu0 0.0
  %109 = vmatpush2.msra.mxu0 0.0
  %110 = vmatprep.subr.mxu0 0.0
  %111 = vmatpush2.msra.mxu0 0.0
  %112 = vmatprep.subr.mxu0 0.0
  %113 = vmatpush2.msra.mxu0 0.0
  %114 = vmatprep.subr.mxu0 0.0
  %115 = vmatpush2.msra.mxu0 0.0
  %116 = vmatprep.subr.mxu0 0.0
  %117 = vmatpush2.msra.mxu0 0.0
  %118 = vmatprep.subr.mxu0 0.0
  %119 = vmatpush2.msra.mxu0 0.0
  %120 = vmatprep.subr.mxu0 0.0
  %121 = vmatpush2.msra.mxu0 0.0
  %122 = vmatprep.subr.mxu0 0.0
  %123 = vmatpush2.msra.mxu0 0.0
  %124 = vmatprep.subr.mxu0 0.0
  %125 = vmatpush2.msra.mxu0 0.0
  %126 = vmatprep.subr.mxu0 0.0
  %127 = vmatpush2.msra.mxu0 0.0
  %128 = vmatprep.subr.mxu0 0.0
  %129 = vmatpush2.msra.mxu0 0.0
  %130 = vmatprep.subr.mxu0 0.0
  %131 = vmatpush2.msra.mxu0 0.0
  %132 = vmatprep.subr.mxu0 0.0
  %133 = vmatpush2.msra.mxu0 0.0
  %134 = vmatprep.subr.mxu0 0.0
  %135 = vmatpush2.msra.mxu0 0.0
  %136 = vmatprep.mubr.f32.mxu0 0.0
  %137 = vmatmul.mubr.f32.gmra.mxu0 %v48
  %v138 = vpop.f32.mrf.mxu0
  %v139 = vadd.f32 %v70, %v138
  %v140 = vpop.f32.mrf.mxu0
  %141 = vdwg.mxu0
  %vm142 = vcmask 523264
  %143 = vst.msk [vmem:[%s5] sm:$0xff] %vm142, %v139
  // Predicated region
  $region22: #{swin_forward.35} parent=0 // pred_check
    _
  $region23: #{swin_forward.35} parent=0 // pred_check_branch
    %145 = sbr.rel (0) target = $region25
  $region24: #{swin_forward.35} parent=0 // pred_region
    _
  $region25: #{swin_forward.35} parent=0 // pred_fallthru
    _
  // Predicated region
  $region26: #{swin_forward.35} parent=0 // pred_check
    _
  $region27: #{swin_forward.35} parent=0 // pred_check_branch
    %147 = sbr.rel (0) target = $region29
  $region28: #{swin_forward.35} parent=0 // pred_region
    _
  $region29: #{swin_forward.35} parent=0 // pred_fallthru
    _

// kernel: swin_forward.36
$region0: #{swin_forward.36}
  #allocation0 [shape = 'u32[]', space=smem, size = 0x4, offset = 0x4, fixed_abs, tag = 'smem constant byte address 0x4 - core index']
  #allocation1 [shape = 'u32[144,128]{1,0:T(1,128)}', space=vmem, size = 0x12000, scoped, tag = 'internal scratch']
  %s0 = inlined_call_operand.vmem [shape: f32[8,64], index: 0, kind: input, shape index: {}]
  %s1 = inlined_call_operand.vmem [shape: f32[1,64], index: 1, kind: input, shape index: {}]
  %s2 = inlined_call_operand.vmem [shape: f32[1,64], index: 2, kind: input, shape index: {}]
  %s3 = inlined_call_operand.vmem [shape: f32[64,192], index: 3, kind: input, shape index: {}]
  %s4 = inlined_call_operand.vmem [shape: f32[1,192], index: 4, kind: input, shape index: {}]
  %s5 = inlined_call_operand.vmem [shape: f32[8,192], index: 5, kind: output, shape index: {}]
  %s6 = sld [smem:[#allocation0]]
  $region30: #{swin_forward.36} parent=0
    _
  %s8 = ssub.s32 1, %s6
  %s9 = scalar_select 0, %s8, %s6
  // Predicated region
  $region2: #{swin_forward.36} parent=0 // pred_check
    _
  $region3: #{swin_forward.36} parent=0 // pred_check_branch
    %11 = sbr.rel (0) target = $region5
  $region4: #{swin_forward.36} parent=0 // pred_region
    _
  $region5: #{swin_forward.36} parent=0 // pred_fallthru
    _
  // Predicated region
  $region6: #{swin_forward.36} parent=0 // pred_check
    _
  $region7: #{swin_forward.36} parent=0 // pred_check_branch
    %13 = sbr.rel (0) target = $region9
  $region8: #{swin_forward.36} parent=0 // pred_region
    _
  $region9: #{swin_forward.36} parent=0 // pred_fallthru
    _
  // Predicated region
  $region10: #{swin_forward.36} parent=0 // pred_check
    _
  $region11: #{swin_forward.36} parent=0 // pred_check_branch
    %15 = sbr.rel (0) target = $region13
  $region12: #{swin_forward.36} parent=0 // pred_region
    _
  $region13: #{swin_forward.36} parent=0 // pred_fallthru
    _
  // Predicated region
  $region14: #{swin_forward.36} parent=0 // pred_check
    _
  $region15: #{swin_forward.36} parent=0 // pred_check_branch
    %17 = sbr.rel (0) target = $region17
  $region16: #{swin_forward.36} parent=0 // pred_region
    _
  $region17: #{swin_forward.36} parent=0 // pred_fallthru
    _
  // Predicated region
  $region18: #{swin_forward.36} parent=0 // pred_check
    _
  $region19: #{swin_forward.36} parent=0 // pred_check_branch
    %19 = sbr.rel (0) target = $region21
  $region20: #{swin_forward.36} parent=0 // pred_region
    _
  $region21: #{swin_forward.36} parent=0 // pred_fallthru
    _
  %v20 = vld [vmem:[%s0] sm:$0xff]
  %v21 = vld [vmem:[%s1] sm:$0x1]
  %v22 = vld [vmem:[%s2] sm:$0x1]
  %vm23 = vcmask 523264
  %v24 = vsel %vm23, %v20, 0.0
  %25 = vadd.xlane.f32.xlu0 %v24
  %v26 = vpop.xlane.xlu0 %25
  %v27 = vrcp.pop 64.0
  %v28 = vmul.f32 %v26, %v27
  %v29 = vsub.f32 %v20, %v28
  %v30 = vmul.f32 %v29, %v29
  %v31 = vsel %vm23, %v30, 0.0
  %32 = vadd.xlane.f32.xlu0 %v31
  %v33 = vpop.xlane.xlu0 %32
  %v34 = vmul.f32 %v33, %v27
  %v35 = vadd.f32 %v34, 1e-05
  %v36 = vrsqrt.pop %v35
  %v37 = vmul.f32 %v29, %v36
  %v39 = vlaneseq
  %v40 = vshrl.u32 %v39, 7
  %v41 = vsub.s32 0, %v40
  %v42 = vrot.slane %v21, %v41
  %v44 = vmul.f32 %v37, %v42
  %v46 = vlaneseq
  %v47 = vshrl.u32 %v46, 7
  %v48 = vsub.s32 0, %v47
  %v49 = vrot.slane %v22, %v48
  %v51 = vadd.f32 %v44, %v49
  %v52 = vld [vmem:[%s3] sm:$0xff]
  %v53 = vld [vmem:[%s3 + $0x8] sm:$0xff]
  %v54 = vld [vmem:[%s3 + $0x10] sm:$0xff]
  %v55 = vld [vmem:[%s3 + $0x18] sm:$0xff]
  %v56 = vld [vmem:[%s3 + $0x20] sm:$0xff]
  %v57 = vld [vmem:[%s3 + $0x28] sm:$0xff]
  %v58 = vld [vmem:[%s3 + $0x30] sm:$0xff]
  %v59 = vld [vmem:[%s3 + $0x38] sm:$0xff]
  %v60 = vld [vmem:[%s3 + $0x40] sm:$0xff]
  %v61 = vld [vmem:[%s3 + $0x48] sm:$0xff]
  %v62 = vld [vmem:[%s3 + $0x50] sm:$0xff]
  %v63 = vld [vmem:[%s3 + $0x58] sm:$0xff]
  %v64 = vld [vmem:[%s3 + $0x60] sm:$0xff]
  %v65 = vld [vmem:[%s3 + $0x68] sm:$0xff]
  %v66 = vld [vmem:[%s3 + $0x70] sm:$0xff]
  %v67 = vld [vmem:[%s3 + $0x78] sm:$0xff]
  %v68 = vld [vmem:[%s4] sm:$0x3]
  %v70 = vlaneseq
  %v71 = vshrl.u32 %v70, 7
  %v72 = vsub.s32 0, %v71
  %v73 = vrot.slane %v68, %v72
  %v74 = vlaneseq
  %v75 = vshrl.u32 %v74, 7
  %v76 = vsub.s32 1, %v75
  %v77 = vrot.slane %v68, %v76
  %v81 = vsel %vm23, %v51, 0
  %83 = vmatprep.subr.mxu0 0.0
  %84 = vmatpush1.msra.mxu0 0.0
  %85 = vmatprep.subr.mxu0 0.0
  %86 = vmatpush1.msra.mxu0 0.0
  %87 = vmatprep.subr.mxu0 0.0
  %88 = vmatpush1.msra.mxu0 0.0
  %89 = vmatprep.subr.mxu0 0.0
  %90 = vmatpush1.msra.mxu0 0.0
  %91 = vmatprep.subr.mxu0 0.0
  %92 = vmatpush1.msra.mxu0 0.0
  %93 = vmatprep.subr.mxu0 0.0
  %94 = vmatpush1.msra.mxu0 0.0
  %95 = vmatprep.subr.mxu0 0.0
  %96 = vmatpush1.msra.mxu0 0.0
  %97 = vmatprep.subr.mxu0 0.0
  %98 = vmatpush1.msra.mxu0 0.0
  %99 = vmatprep.subr.mxu0 %v67
  %100 = vmatpush1.msra.mxu0 %v66
  %101 = vmatprep.subr.mxu0 %v65
  %102 = vmatpush1.msra.mxu0 %v64
  %103 = vmatprep.subr.mxu0 %v63
  %104 = vmatpush1.msra.mxu0 %v62
  %105 = vmatprep.subr.mxu0 %v61
  %106 = vmatpush1.msra.mxu0 %v60
  %107 = vmatprep.subr.mxu0 %v59
  %108 = vmatpush1.msra.mxu0 %v58
  %109 = vmatprep.subr.mxu0 %v57
  %110 = vmatpush1.msra.mxu0 %v56
  %111 = vmatprep.subr.mxu0 %v55
  %112 = vmatpush1.msra.mxu0 %v54
  %113 = vmatprep.subr.mxu0 %v53
  %114 = vmatpush1.msra.mxu0 %v52
  %115 = vmatprep.subr.mxu0 0.0
  %116 = vmatpush2.msra.mxu0 0.0
  %117 = vmatprep.subr.mxu0 0.0
  %118 = vmatpush2.msra.mxu0 0.0
  %119 = vmatprep.subr.mxu0 0.0
  %120 = vmatpush2.msra.mxu0 0.0
  %121 = vmatprep.subr.mxu0 0.0
  %122 = vmatpush2.msra.mxu0 0.0
  %123 = vmatprep.subr.mxu0 0.0
  %124 = vmatpush2.msra.mxu0 0.0
  %125 = vmatprep.subr.mxu0 0.0
  %126 = vmatpush2.msra.mxu0 0.0
  %127 = vmatprep.subr.mxu0 0.0
  %128 = vmatpush2.msra.mxu0 0.0
  %129 = vmatprep.subr.mxu0 0.0
  %130 = vmatpush2.msra.mxu0 0.0
  %131 = vmatprep.subr.mxu0 0.0
  %132 = vmatpush2.msra.mxu0 0.0
  %133 = vmatprep.subr.mxu0 0.0
  %134 = vmatpush2.msra.mxu0 0.0
  %135 = vmatprep.subr.mxu0 0.0
  %136 = vmatpush2.msra.mxu0 0.0
  %137 = vmatprep.subr.mxu0 0.0
  %138 = vmatpush2.msra.mxu0 0.0
  %139 = vmatprep.subr.mxu0 0.0
  %140 = vmatpush2.msra.mxu0 0.0
  %141 = vmatprep.subr.mxu0 0.0
  %142 = vmatpush2.msra.mxu0 0.0
  %143 = vmatprep.subr.mxu0 0.0
  %144 = vmatpush2.msra.mxu0 0.0
  %145 = vmatprep.subr.mxu0 0.0
  %146 = vmatpush2.msra.mxu0 0.0
  %147 = vmatprep.mubr.f32.mxu0 0.0
  %148 = vmatmul.mubr.f32.gmra.mxu0 %v81
  %v149 = vpop.f32.mrf.mxu0
  %v150 = vadd.f32 %v73, %v149
  %v151 = vpop.f32.mrf.mxu0
  %v152 = vadd.f32 %v77, %v151
  %153 = vdwg.mxu0
  %154 = vst [vmem:[%s5] sm:$0xff] %v150
  %155 = vst.msk [vmem:[%s5 + $0x8] sm:$0xff] %vm23, %v152
  // Predicated region
  $region22: #{swin_forward.36} parent=0 // pred_check
    _
  $region23: #{swin_forward.36} parent=0 // pred_check_branch
    %157 = sbr.rel (0) target = $region25
  $region24: #{swin_forward.36} parent=0 // pred_region
    _
  $region25: #{swin_forward.36} parent=0 // pred_fallthru
    _
  // Predicated region
  $region26: #{swin_forward.36} parent=0 // pred_check
    _
  $region27: #{swin_forward.36} parent=0 // pred_check_branch
    %159 = sbr.rel (0) target = $region29
  $region28: #{swin_forward.36} parent=0 // pred_region
    _
  $region29: #{swin_forward.36} parent=0 // pred_fallthru
    _

// kernel: swin_forward.31
$region0: #{swin_forward.31}
  #allocation0 [shape = 'u32[]', space=smem, size = 0x4, offset = 0x4, fixed_abs, tag = 'smem constant byte address 0x4 - core index']
  #allocation1 [shape = 'u32[144,128]{1,0:T(1,128)}', space=vmem, size = 0x12000, scoped, tag = 'internal scratch']
  %s0 = inlined_call_operand.vmem [shape: f32[8,4,96], index: 0, kind: input, shape index: {}]
  %s1 = inlined_call_operand.vmem [shape: f32[4,2,4,4], index: 1, kind: input, shape index: {}]
  %s2 = inlined_call_operand.vmem [shape: f32[8,4,32], index: 2, kind: output, shape index: {}]
  %s3 = sld [smem:[#allocation0]]
  $region41: #{swin_forward.31} parent=0
    _
  %s5 = ssub.s32 1, %s3
  %s6 = scalar_select 0, %s5, %s3
  loop: start=0, step=1, limit=4
  $region2: #{swin_forward.31} parent=0 // loop_pre_header
    _
  $region3: #{swin_forward.31} parent=0 // loop_header
    %s8 = sphi 0, %s12
    %p9 = scmp.ge.s32.totalorder %s8, 4
    %s18 = sphi 0, %s20
    %s21 = sphi 0, %s18
    %s22 = sphi 0, %s21
    %s38 = sphi 0, %s22
    %s42 = sphi 0, %s42
    %s44 = sphi 0, %s42
    %s45 = sphi 0, %s44
    %s59 = sphi 0, %s45
    %s65 = sphi 0, %s67
    %s68 = sphi 0, %s65
    %s69 = sphi 0, %s68
    %s85 = sphi 0, %s69
  $region4: #{swin_forward.31} parent=0 // loop_header_branch
    %11 = sbr.rel (%p9) target = $region8
  $region5: #{swin_forward.31} parent=0 // loop_body
    %s13 = ssub.s32 %s8, 1
    %s14 = ssub.s32 %s8, 2
    %s15 = sadd.s32 %s8, 1
    %s16 = ssub.s32 %s8, %s15
    %p17 = scmp.eq.s32.totalorder %s16, 0
    %s19 = sadd.s32 %s18, 1
    %s20 = scalar_select %p17, %s18, %s19
    %p23 = pneg %p17
    %p24 = scmp.eq.s32.totalorder %s8, 1
    %p25 = por %p23, %p24
    %p26 = scmp.ne.s32.totalorder %s18, %s21
    %p27 = scmp.eq.s32.totalorder %s8, 0
    %p28 = por %p26, %p27
    %p29 = scmp.ne.s32.totalorder %s18, %s21
    %p30 = scmp.eq.s32.totalorder %s13, 1
    %p31 = por %p29, %p30
    %p32 = scmp.ne.s32.totalorder %s21, %s22
    %p33 = scmp.eq.s32.totalorder %s13, 0
    %p34 = por %p32, %p33
    %p35 = scmp.ne.s32.totalorder %s21, %s22
    %p36 = scmp.eq.s32.totalorder %s14, 1
    %p37 = por %p35, %p36
    %p39 = scmp.ne.s32.totalorder %s22, %s38
    %p40 = scmp.eq.s32.totalorder %s14, 0
    %p41 = por %p39, %p40
    %s43 = sadd.s32 %s42, 1
    %p46 = scmp.eq.s32.totalorder %s8, 1
    %p47 = scmp.ne.s32.totalorder %s42, %s44
    %p48 = scmp.eq.s32.totalorder %s8, 0
    %p49 = por %p47, %p48
    %p50 = scmp.ne.s32.totalorder %s42, %s44
    %p51 = scmp.eq.s32.totalorder %s13, 1
    %p52 = por %p50, %p51
    %p53 = scmp.ne.s32.totalorder %s44, %s45
    %p54 = scmp.eq.s32.totalorder %s13, 0
    %p55 = por %p53, %p54
    %p56 = scmp.ne.s32.totalorder %s44, %s45
    %p57 = scmp.eq.s32.totalorder %s14, 1
    %p58 = por %p56, %p57
    %p60 = scmp.ne.s32.totalorder %s45, %s59
    %p61 = scmp.eq.s32.totalorder %s14, 0
    %p62 = por %p60, %p61
    %s63 = ssub.s32 %s8, %s15
    %p64 = scmp.eq.s32.totalorder %s63, 0
    %s66 = sadd.s32 %s65, 1
    %s67 = scalar_select %p64, %s65, %s66
    %p70 = pneg %p64
    %p71 = scmp.eq.s32.totalorder %s8, 1
    %p72 = por %p70, %p71
    %p73 = scmp.ne.s32.totalorder %s65, %s68
    %p74 = scmp.eq.s32.totalorder %s8, 0
    %p75 = por %p73, %p74
    %p76 = scmp.ne.s32.totalorder %s65, %s68
    %p77 = scmp.eq.s32.totalorder %s13, 1
    %p78 = por %p76, %p77
    %p79 = scmp.ne.s32.totalorder %s68, %s69
    %p80 = scmp.eq.s32.totalorder %s13, 0
    %p81 = por %p79, %p80
    %p82 = scmp.ne.s32.totalorder %s68, %s69
    %p83 = scmp.eq.s32.totalorder %s14, 1
    %p84 = por %p82, %p83
    %p86 = scmp.ne.s32.totalorder %s69, %s85
    %p87 = scmp.eq.s32.totalorder %s14, 0
    %p88 = por %p86, %p87
    %p89 = scmp.le.s32.totalorder 1, %s8
    %p90 = scmp.lt.s32.totalorder %s8, 3
    %p91 = pnand %p89, %p90
    %p92 = pneg %p91
    // Predicated region
    $region9: #{swin_forward.31} parent=5 // pred_check
      _
    $region10: #{swin_forward.31} parent=5 // pred_check_branch
      %94 = sbr.rel (%p91) target = $region12
    $region11: #{swin_forward.31} parent=5 // pred_region
      %s95 = ssub.s32 %s8, 1
      // Predicated region
      $region13: #{swin_forward.31} parent=11 // pred_check
        %p96 = pneg %p55
      $region14: #{swin_forward.31} parent=11 // pred_check_branch
        %98 = sbr.rel (%p96) target = $region16
      $region15: #{swin_forward.31} parent=11 // pred_region
        _
      $region16: #{swin_forward.31} parent=11 // pred_fallthru
        _
    $region12: #{swin_forward.31} parent=5 // pred_fallthru
      _
    %p99 = scmp.lt.s32.totalorder %s8, 2
    // Predicated region
    $region17: #{swin_forward.31} parent=5 // pred_check
      %p100 = pneg %p99
    $region18: #{swin_forward.31} parent=5 // pred_check_branch
      %102 = sbr.rel (%p100) target = $region20
    $region19: #{swin_forward.31} parent=5 // pred_region
      // Predicated region
      $region21: #{swin_forward.31} parent=19 // pred_check
        %p103 = pneg %p28
      $region22: #{swin_forward.31} parent=19 // pred_check_branch
        %105 = sbr.rel (%p103) target = $region24
      $region23: #{swin_forward.31} parent=19 // pred_region
        %s106 = smul.u32 4, %s8
        %p107 = scmp.lt.s32.totalorder %s106, 7
        %s108 = scalar_select %p107, %s106, 7
        %s109 = smul.addr %s108, 4
        %s110 = scalar_lea.vmem %s0, %s109
        %s111 = smul.u32 4, %s8
      $region24: #{swin_forward.31} parent=19 // pred_fallthru
        _
    $region20: #{swin_forward.31} parent=5 // pred_fallthru
      _
    %p112 = scmp.le.s32.totalorder 1, %s8
    %p113 = scmp.lt.s32.totalorder %s8, 3
    %p114 = pnand %p112, %p113
    %p115 = pneg %p114
    // Predicated region
    $region25: #{swin_forward.31} parent=5 // pred_check
      _
    $region26: #{swin_forward.31} parent=5 // pred_check_branch
      %117 = sbr.rel (%p114) target = $region28
    $region27: #{swin_forward.31} parent=5 // pred_region
      %s118 = ssub.s32 %s8, 1
      %s119 = smul.u32 4, %s13
      %p120 = scmp.lt.s32.totalorder %s119, 7
      %s121 = scalar_select %p120, %s119, 7
      %s122 = smul.addr %s121, 4
      %s123 = scalar_lea.vmem %s0, %s122
      %p124 = pneg %p34
      %p125 = pneg %p31
      %p126 = pneg %p55
      %p127 = pneg %p52
      %p128 = pneg %p81
      %p129 = pneg %p78
      %s130 = smul.u32 4, %s13
      %p131 = scmp.lt.s32.totalorder %s130, 7
      %s132 = scalar_select %p131, %s130, 7
      %s133 = smul.addr %s132, 4
      %s134 = scalar_lea.vmem %s2, %s133
      %s135 = smul.u32 4, %s13
      %p136 = scmp.lt.s32.totalorder %s135, 7
      %s137 = scalar_select %p136, %s135, 7
      %s138 = smul.addr %s137, 4
      %s139 = scalar_lea.vmem %s0, %s138
      %s140 = smul.u32 4, %s13
      %s141 = smul.u32 4, %s13
      %p142 = scmp.lt.s32.totalorder %s141, 7
      %s143 = scalar_select %p142, %s141, 7
      %s144 = smul.addr %s143, 4
      %s145 = scalar_lea.vmem %s2, %s144
      %s146 = smul.u32 4, %s13
      %v147 = vld [vmem:[%s139] sm:$0xf]
      %v148 = vld [vmem:[%s139 + $0x4] sm:$0xf]
      %v149 = vld [vmem:[%s139 + $0x8] sm:$0xf]
      %v150 = vld [vmem:[%s139 + $0xc] sm:$0xf]
      %v151 = vld [vmem:[%s1] sm:$0xf]
      %v152 = vld [vmem:[%s1 + $0x4] sm:$0xf]
      %v153 = vld [vmem:[%s1 + $0x8] sm:$0xf]
      %v154 = vld [vmem:[%s1 + $0xc] sm:$0xf]
      %v155 = vld [vmem:[%s1 + $0x10] sm:$0xf]
      %v156 = vld [vmem:[%s1 + $0x14] sm:$0xf]
      %v157 = vld [vmem:[%s1 + $0x18] sm:$0xf]
      %v158 = vld [vmem:[%s1 + $0x1c] sm:$0xf]
      %160 = vrot.lane.b32.xlu0 %v147, 96
      %v161 = vpop.permute.xlu0 %160
      %vm162 = vcmask 130048
      %v163 = vsel %vm162, %v147, 0
      %v165 = vsel %vm162, %v161, 0
      %167 = vmatprep.subr.mxu0 0.0
      %168 = vmatpush1.xpose.msra.mxu0 0.0
      %169 = vmatprep.subr.mxu0 0.0
      %170 = vmatpush1.xpose.msra.mxu0 0.0
      %171 = vmatprep.subr.mxu0 0.0
      %172 = vmatpush1.xpose.msra.mxu0 0.0
      %173 = vmatprep.subr.mxu0 0.0
      %174 = vmatpush1.xpose.msra.mxu0 0.0
      %175 = vmatprep.subr.mxu0 0.0
      %176 = vmatpush1.xpose.msra.mxu0 0.0
      %177 = vmatprep.subr.mxu0 0.0
      %178 = vmatpush1.xpose.msra.mxu0 0.0
      %179 = vmatprep.subr.mxu0 0.0
      %180 = vmatpush1.xpose.msra.mxu0 0.0
      %181 = vmatprep.subr.mxu0 0.0
      %182 = vmatpush1.xpose.msra.mxu0 0.0
      %183 = vmatprep.subr.mxu0 0.0
      %184 = vmatpush1.xpose.msra.mxu0 0.0
      %185 = vmatprep.subr.mxu0 0.0
      %186 = vmatpush1.xpose.msra.mxu0 0.0
      %187 = vmatprep.subr.mxu0 0.0
      %188 = vmatpush1.xpose.msra.mxu0 0.0
      %189 = vmatprep.subr.mxu0 0.0
      %190 = vmatpush1.xpose.msra.mxu0 0.0
      %191 = vmatprep.subr.mxu0 0.0
      %192 = vmatpush1.xpose.msra.mxu0 0.0
      %193 = vmatprep.subr.mxu0 0.0
      %194 = vmatpush1.xpose.msra.mxu0 0.0
      %195 = vmatprep.subr.mxu0 0.0
      %196 = vmatpush1.xpose.msra.mxu0 0.0
      %197 = vmatprep.subr.mxu0 0.0
      %198 = vmatpush1.xpose.msra.mxu0 %v165
      %199 = vmatprep.subr.mxu0 0.0
      %200 = vmatpush2.xpose.msra.mxu0 0.0
      %201 = vmatprep.subr.mxu0 0.0
      %202 = vmatpush2.xpose.msra.mxu0 0.0
      %203 = vmatprep.subr.mxu0 0.0
      %204 = vmatpush2.xpose.msra.mxu0 0.0
      %205 = vmatprep.subr.mxu0 0.0
      %206 = vmatpush2.xpose.msra.mxu0 0.0
      %207 = vmatprep.subr.mxu0 0.0
      %208 = vmatpush2.xpose.msra.mxu0 0.0
      %209 = vmatprep.subr.mxu0 0.0
      %210 = vmatpush2.xpose.msra.mxu0 0.0
      %211 = vmatprep.subr.mxu0 0.0
      %212 = vmatpush2.xpose.msra.mxu0 0.0
      %213 = vmatprep.subr.mxu0 0.0
      %214 = vmatpush2.xpose.msra.mxu0 0.0
      %215 = vmatprep.subr.mxu0 0.0
      %216 = vmatpush2.xpose.msra.mxu0 0.0
      %217 = vmatprep.subr.mxu0 0.0
      %218 = vmatpush2.xpose.msra.mxu0 0.0
      %219 = vmatprep.subr.mxu0 0.0
      %220 = vmatpush2.xpose.msra.mxu0 0.0
      %221 = vmatprep.subr.mxu0 0.0
      %222 = vmatpush2.xpose.msra.mxu0 0.0
      %223 = vmatprep.subr.mxu0 0.0
      %224 = vmatpush2.xpose.msra.mxu0 0.0
      %225 = vmatprep.subr.mxu0 0.0
      %226 = vmatpush2.xpose.msra.mxu0 0.0
      %227 = vmatprep.subr.mxu0 0.0
      %228 = vmatpush2.xpose.msra.mxu0 0.0
      %229 = vmatprep.subr.mxu0 0.0
      %230 = vmatpush2.xpose.msra.mxu0 0.0
      %231 = vmatprep.mubr.f32.mxu0 0.0
      %232 = vmatmul.mubr.f32.gmra.mxu0 %v163
      %v233 = vpop.f32.mrf.mxu0
      %v234 = vadd.f32 0.0, %v233
      %v235 = vpop.f32.mrf.mxu0
      %236 = vdwg.mxu0
      %238 = vrot.lane.b32.xlu0 %v148, 96
      %v239 = vpop.permute.xlu0 %238
      %v240 = vsel %vm162, %v148, 0
      %v242 = vsel %vm162, %v239, 0
      %244 = vmatprep.subr.mxu0 0.0
      %245 = vmatpush1.xpose.msra.mxu0 0.0
      %246 = vmatprep.subr.mxu0 0.0
      %247 = vmatpush1.xpose.msra.mxu0 0.0
      %248 = vmatprep.subr.mxu0 0.0
      %249 = vmatpush1.xpose.msra.mxu0 0.0
      %250 = vmatprep.subr.mxu0 0.0
      %251 = vmatpush1.xpose.msra.mxu0 0.0
      %252 = vmatprep.subr.mxu0 0.0
      %253 = vmatpush1.xpose.msra.mxu0 0.0
      %254 = vmatprep.subr.mxu0 0.0
      %255 = vmatpush1.xpose.msra.mxu0 0.0
      %256 = vmatprep.subr.mxu0 0.0
      %257 = vmatpush1.xpose.msra.mxu0 0.0
      %258 = vmatprep.subr.mxu0 0.0
      %259 = vmatpush1.xpose.msra.mxu0 0.0
      %260 = vmatprep.subr.mxu0 0.0
      %261 = vmatpush1.xpose.msra.mxu0 0.0
      %262 = vmatprep.subr.mxu0 0.0
      %263 = vmatpush1.xpose.msra.mxu0 0.0
      %264 = vmatprep.subr.mxu0 0.0
      %265 = vmatpush1.xpose.msra.mxu0 0.0
      %266 = vmatprep.subr.mxu0 0.0
      %267 = vmatpush1.xpose.msra.mxu0 0.0
      %268 = vmatprep.subr.mxu0 0.0
      %269 = vmatpush1.xpose.msra.mxu0 0.0
      %270 = vmatprep.subr.mxu0 0.0
      %271 = vmatpush1.xpose.msra.mxu0 0.0
      %272 = vmatprep.subr.mxu0 0.0
      %273 = vmatpush1.xpose.msra.mxu0 0.0
      %274 = vmatprep.subr.mxu0 0.0
      %275 = vmatpush1.xpose.msra.mxu0 %v242
      %276 = vmatprep.subr.mxu0 0.0
      %277 = vmatpush2.xpose.msra.mxu0 0.0
      %278 = vmatprep.subr.mxu0 0.0
      %279 = vmatpush2.xpose.msra.mxu0 0.0
      %280 = vmatprep.subr.mxu0 0.0
      %281 = vmatpush2.xpose.msra.mxu0 0.0
      %282 = vmatprep.subr.mxu0 0.0
      %283 = vmatpush2.xpose.msra.mxu0 0.0
      %284 = vmatprep.subr.mxu0 0.0
      %285 = vmatpush2.xpose.msra.mxu0 0.0
      %286 = vmatprep.subr.mxu0 0.0
      %287 = vmatpush2.xpose.msra.mxu0 0.0
      %288 = vmatprep.subr.mxu0 0.0
      %289 = vmatpush2.xpose.msra.mxu0 0.0
      %290 = vmatprep.subr.mxu0 0.0
      %291 = vmatpush2.xpose.msra.mxu0 0.0
      %292 = vmatprep.subr.mxu0 0.0
      %293 = vmatpush2.xpose.msra.mxu0 0.0
      %294 = vmatprep.subr.mxu0 0.0
      %295 = vmatpush2.xpose.msra.mxu0 0.0
      %296 = vmatprep.subr.mxu0 0.0
      %297 = vmatpush2.xpose.msra.mxu0 0.0
      %298 = vmatprep.subr.mxu0 0.0
      %299 = vmatpush2.xpose.msra.mxu0 0.0
      %300 = vmatprep.subr.mxu0 0.0
      %301 = vmatpush2.xpose.msra.mxu0 0.0
      %302 = vmatprep.subr.mxu0 0.0
      %303 = vmatpush2.xpose.msra.mxu0 0.0
      %304 = vmatprep.subr.mxu0 0.0
      %305 = vmatpush2.xpose.msra.mxu0 0.0
      %306 = vmatprep.subr.mxu0 0.0
      %307 = vmatpush2.xpose.msra.mxu0 0.0
      %308 = vmatprep.mubr.f32.mxu0 0.0
      %309 = vmatmul.mubr.f32.gmra.mxu0 %v240
      %v310 = vpop.f32.mrf.mxu0
      %v311 = vadd.f32 0.0, %v310
      %v312 = vpop.f32.mrf.mxu0
      %313 = vdwg.mxu0
      %315 = vrot.lane.b32.xlu0 %v149, 96
      %v316 = vpop.permute.xlu0 %315
      %v317 = vsel %vm162, %v149, 0
      %v319 = vsel %vm162, %v316, 0
      %321 = vmatprep.subr.mxu0 0.0
      %322 = vmatpush1.xpose.msra.mxu0 0.0
      %323 = vmatprep.subr.mxu0 0.0
      %324 = vmatpush1.xpose.msra.mxu0 0.0
      %325 = vmatprep.subr.mxu0 0.0
      %326 = vmatpush1.xpose.msra.mxu0 0.0
      %327 = vmatprep.subr.mxu0 0.0
      %328 = vmatpush1.xpose.msra.mxu0 0.0
      %329 = vmatprep.subr.mxu0 0.0
      %330 = vmatpush1.xpose.msra.mxu0 0.0
      %331 = vmatprep.subr.mxu0 0.0
      %332 = vmatpush1.xpose.msra.mxu0 0.0
      %333 = vmatprep.subr.mxu0 0.0
      %334 = vmatpush1.xpose.msra.mxu0 0.0
      %335 = vmatprep.subr.mxu0 0.0
      %336 = vmatpush1.xpose.msra.mxu0 0.0
      %337 = vmatprep.subr.mxu0 0.0
      %338 = vmatpush1.xpose.msra.mxu0 0.0
      %339 = vmatprep.subr.mxu0 0.0
      %340 = vmatpush1.xpose.msra.mxu0 0.0
      %341 = vmatprep.subr.mxu0 0.0
      %342 = vmatpush1.xpose.msra.mxu0 0.0
      %343 = vmatprep.subr.mxu0 0.0
      %344 = vmatpush1.xpose.msra.mxu0 0.0
      %345 = vmatprep.subr.mxu0 0.0
      %346 = vmatpush1.xpose.msra.mxu0 0.0
      %347 = vmatprep.subr.mxu0 0.0
      %348 = vmatpush1.xpose.msra.mxu0 0.0
      %349 = vmatprep.subr.mxu0 0.0
      %350 = vmatpush1.xpose.msra.mxu0 0.0
      %351 = vmatprep.subr.mxu0 0.0
      %352 = vmatpush1.xpose.msra.mxu0 %v319
      %353 = vmatprep.subr.mxu0 0.0
      %354 = vmatpush2.xpose.msra.mxu0 0.0
      %355 = vmatprep.subr.mxu0 0.0
      %356 = vmatpush2.xpose.msra.mxu0 0.0
      %357 = vmatprep.subr.mxu0 0.0
      %358 = vmatpush2.xpose.msra.mxu0 0.0
      %359 = vmatprep.subr.mxu0 0.0
      %360 = vmatpush2.xpose.msra.mxu0 0.0
      %361 = vmatprep.subr.mxu0 0.0
      %362 = vmatpush2.xpose.msra.mxu0 0.0
      %363 = vmatprep.subr.mxu0 0.0
      %364 = vmatpush2.xpose.msra.mxu0 0.0
      %365 = vmatprep.subr.mxu0 0.0
      %366 = vmatpush2.xpose.msra.mxu0 0.0
      %367 = vmatprep.subr.mxu0 0.0
      %368 = vmatpush2.xpose.msra.mxu0 0.0
      %369 = vmatprep.subr.mxu0 0.0
      %370 = vmatpush2.xpose.msra.mxu0 0.0
      %371 = vmatprep.subr.mxu0 0.0
      %372 = vmatpush2.xpose.msra.mxu0 0.0
      %373 = vmatprep.subr.mxu0 0.0
      %374 = vmatpush2.xpose.msra.mxu0 0.0
      %375 = vmatprep.subr.mxu0 0.0
      %376 = vmatpush2.xpose.msra.mxu0 0.0
      %377 = vmatprep.subr.mxu0 0.0
      %378 = vmatpush2.xpose.msra.mxu0 0.0
      %379 = vmatprep.subr.mxu0 0.0
      %380 = vmatpush2.xpose.msra.mxu0 0.0
      %381 = vmatprep.subr.mxu0 0.0
      %382 = vmatpush2.xpose.msra.mxu0 0.0
      %383 = vmatprep.subr.mxu0 0.0
      %384 = vmatpush2.xpose.msra.mxu0 0.0
      %385 = vmatprep.mubr.f32.mxu0 0.0
      %386 = vmatmul.mubr.f32.gmra.mxu0 %v317
      %v387 = vpop.f32.mrf.mxu0
      %v388 = vadd.f32 0.0, %v387
      %v389 = vpop.f32.mrf.mxu0
      %390 = vdwg.mxu0
      %392 = vrot.lane.b32.xlu0 %v150, 96
      %v393 = vpop.permute.xlu0 %392
      %v394 = vsel %vm162, %v150, 0
      %v396 = vsel %vm162, %v393, 0
      %398 = vmatprep.subr.mxu0 0.0
      %399 = vmatpush1.xpose.msra.mxu0 0.0
      %400 = vmatprep.subr.mxu0 0.0
      %401 = vmatpush1.xpose.msra.mxu0 0.0
      %402 = vmatprep.subr.mxu0 0.0
      %403 = vmatpush1.xpose.msra.mxu0 0.0
      %404 = vmatprep.subr.mxu0 0.0
      %405 = vmatpush1.xpose.msra.mxu0 0.0
      %406 = vmatprep.subr.mxu0 0.0
      %407 = vmatpush1.xpose.msra.mxu0 0.0
      %408 = vmatprep.subr.mxu0 0.0
      %409 = vmatpush1.xpose.msra.mxu0 0.0
      %410 = vmatprep.subr.mxu0 0.0
      %411 = vmatpush1.xpose.msra.mxu0 0.0
      %412 = vmatprep.subr.mxu0 0.0
      %413 = vmatpush1.xpose.msra.mxu0 0.0
      %414 = vmatprep.subr.mxu0 0.0
      %415 = vmatpush1.xpose.msra.mxu0 0.0
      %416 = vmatprep.subr.mxu0 0.0
      %417 = vmatpush1.xpose.msra.mxu0 0.0
      %418 = vmatprep.subr.mxu0 0.0
      %419 = vmatpush1.xpose.msra.mxu0 0.0
      %420 = vmatprep.subr.mxu0 0.0
      %421 = vmatpush1.xpose.msra.mxu0 0.0
      %422 = vmatprep.subr.mxu0 0.0
      %423 = vmatpush1.xpose.msra.mxu0 0.0
      %424 = vmatprep.subr.mxu0 0.0
      %425 = vmatpush1.xpose.msra.mxu0 0.0
      %426 = vmatprep.subr.mxu0 0.0
      %427 = vmatpush1.xpose.msra.mxu0 0.0
      %428 = vmatprep.subr.mxu0 0.0
      %429 = vmatpush1.xpose.msra.mxu0 %v396
      %430 = vmatprep.subr.mxu0 0.0
      %431 = vmatpush2.xpose.msra.mxu0 0.0
      %432 = vmatprep.subr.mxu0 0.0
      %433 = vmatpush2.xpose.msra.mxu0 0.0
      %434 = vmatprep.subr.mxu0 0.0
      %435 = vmatpush2.xpose.msra.mxu0 0.0
      %436 = vmatprep.subr.mxu0 0.0
      %437 = vmatpush2.xpose.msra.mxu0 0.0
      %438 = vmatprep.subr.mxu0 0.0
      %439 = vmatpush2.xpose.msra.mxu0 0.0
      %440 = vmatprep.subr.mxu0 0.0
      %441 = vmatpush2.xpose.msra.mxu0 0.0
      %442 = vmatprep.subr.mxu0 0.0
      %443 = vmatpush2.xpose.msra.mxu0 0.0
      %444 = vmatprep.subr.mxu0 0.0
      %445 = vmatpush2.xpose.msra.mxu0 0.0
      %446 = vmatprep.subr.mxu0 0.0
      %447 = vmatpush2.xpose.msra.mxu0 0.0
      %448 = vmatprep.subr.mxu0 0.0
      %449 = vmatpush2.xpose.msra.mxu0 0.0
      %450 = vmatprep.subr.mxu0 0.0
      %451 = vmatpush2.xpose.msra.mxu0 0.0
      %452 = vmatprep.subr.mxu0 0.0
      %453 = vmatpush2.xpose.msra.mxu0 0.0
      %454 = vmatprep.subr.mxu0 0.0
      %455 = vmatpush2.xpose.msra.mxu0 0.0
      %456 = vmatprep.subr.mxu0 0.0
      %457 = vmatpush2.xpose.msra.mxu0 0.0
      %458 = vmatprep.subr.mxu0 0.0
      %459 = vmatpush2.xpose.msra.mxu0 0.0
      %460 = vmatprep.subr.mxu0 0.0
      %461 = vmatpush2.xpose.msra.mxu0 0.0
      %462 = vmatprep.mubr.f32.mxu0 0.0
      %463 = vmatmul.mubr.f32.gmra.mxu0 %v394
      %v464 = vpop.f32.mrf.mxu0
      %v465 = vadd.f32 0.0, %v464
      %v466 = vpop.f32.mrf.mxu0
      %467 = vdwg.mxu0
      %v468 = vmul.f32 %v234, 0.25
      %v469 = vmul.f32 %v311, 0.25
      %v470 = vmul.f32 %v388, 0.25
      %v471 = vmul.f32 %v465, 0.25
      %v472 = vadd.f32 %v468, %v151
      %v473 = vadd.f32 %v469, %v153
      %v474 = vadd.f32 %v470, %v155
      %v475 = vadd.f32 %v471, %v157
      %vm476 = vcmask 27648
      %v477 = vsel %vm476, %v472, -inf
      %478 = vmax.xlane.f32.xlu0 %v477
      %v479 = vpop.xlane.xlu0 %478
      %v480 = vsel %vm476, %v473, -inf
      %481 = vmax.xlane.f32.xlu0 %v480
      %v482 = vpop.xlane.xlu0 %481
      %v483 = vsel %vm476, %v474, -inf
      %484 = vmax.xlane.f32.xlu0 %v483
      %v485 = vpop.xlane.xlu0 %484
      %v486 = vsel %vm476, %v475, -inf
      %487 = vmax.xlane.f32.xlu0 %v486
      %v488 = vpop.xlane.xlu0 %487
      %v489 = vsub.f32 %v472, %v479
      %v490 = vsub.f32 %v473, %v482
      %v491 = vsub.f32 %v474, %v485
      %v492 = vsub.f32 %v475, %v488
      %v493 = vmul.f32 %v489, 1.442695
      %v494 = vpow.pop %v493
      %v495 = vmul.f32 %v490, 1.442695
      %v496 = vpow.pop %v495
      %v497 = vmul.f32 %v491, 1.442695
      %v498 = vpow.pop %v497
      %v499 = vmul.f32 %v492, 1.442695
      %v500 = vpow.pop %v499
      %v501 = vsel %vm476, %v494, 0.0
      %502 = vadd.xlane.f32.xlu0 %v501
      %v503 = vpop.xlane.xlu0 %502
      %v504 = vsel %vm476, %v496, 0.0
      %505 = vadd.xlane.f32.xlu0 %v504
      %v506 = vpop.xlane.xlu0 %505
      %v507 = vsel %vm476, %v498, 0.0
      %508 = vadd.xlane.f32.xlu0 %v507
      %v509 = vpop.xlane.xlu0 %508
      %v510 = vsel %vm476, %v500, 0.0
      %511 = vadd.xlane.f32.xlu0 %v510
      %v512 = vpop.xlane.xlu0 %511
      %v513 = vrcp.pop %v503
      %v514 = vrcp.pop %v506
      %v515 = vrcp.pop %v509
      %v516 = vrcp.pop %v512
      %v517 = vmul.f32 %v494, %v513
      %v518 = vmul.f32 %v496, %v514
      %v519 = vmul.f32 %v498, %v515
      %v520 = vmul.f32 %v500, %v516
      %521 = vrot.lane.b32.xlu0 %v147, 64
      %v522 = vpop.permute.xlu0 %521
      %vm523 = vcmask 31744
      %v525 = vsel %vm523, %v517, 0
      %vm527 = vcmask 1043456
      %v528 = vsel %vm527, %v522, 0
      %530 = vmatprep.subr.mxu0 0.0
      %531 = vmatpush1.msra.mxu0 0.0
      %532 = vmatprep.subr.mxu0 0.0
      %533 = vmatpush1.msra.mxu0 0.0
      %534 = vmatprep.subr.mxu0 0.0
      %535 = vmatpush1.msra.mxu0 0.0
      %536 = vmatprep.subr.mxu0 0.0
      %537 = vmatpush1.msra.mxu0 0.0
      %538 = vmatprep.subr.mxu0 0.0
      %539 = vmatpush1.msra.mxu0 0.0
      %540 = vmatprep.subr.mxu0 0.0
      %541 = vmatpush1.msra.mxu0 0.0
      %542 = vmatprep.subr.mxu0 0.0
      %543 = vmatpush1.msra.mxu0 0.0
      %544 = vmatprep.subr.mxu0 0.0
      %545 = vmatpush1.msra.mxu0 0.0
      %546 = vmatprep.subr.mxu0 0.0
      %547 = vmatpush1.msra.mxu0 0.0
      %548 = vmatprep.subr.mxu0 0.0
      %549 = vmatpush1.msra.mxu0 0.0
      %550 = vmatprep.subr.mxu0 0.0
      %551 = vmatpush1.msra.mxu0 0.0
      %552 = vmatprep.subr.mxu0 0.0
      %553 = vmatpush1.msra.mxu0 0.0
      %554 = vmatprep.subr.mxu0 0.0
      %555 = vmatpush1.msra.mxu0 0.0
      %556 = vmatprep.subr.mxu0 0.0
      %557 = vmatpush1.msra.mxu0 0.0
      %558 = vmatprep.subr.mxu0 0.0
      %559 = vmatpush1.msra.mxu0 0.0
      %560 = vmatprep.subr.mxu0 0.0
      %561 = vmatpush1.msra.mxu0 %v528
      %562 = vmatprep.subr.mxu0 0.0
      %563 = vmatpush2.msra.mxu0 0.0
      %564 = vmatprep.subr.mxu0 0.0
      %565 = vmatpush2.msra.mxu0 0.0
      %566 = vmatprep.subr.mxu0 0.0
      %567 = vmatpush2.msra.mxu0 0.0
      %568 = vmatprep.subr.mxu0 0.0
      %569 = vmatpush2.msra.mxu0 0.0
      %570 = vmatprep.subr.mxu0 0.0
      %571 = vmatpush2.msra.mxu0 0.0
      %572 = vmatprep.subr.mxu0 0.0
      %573 = vmatpush2.msra.mxu0 0.0
      %574 = vmatprep.subr.mxu0 0.0
      %575 = vmatpush2.msra.mxu0 0.0
      %576 = vmatprep.subr.mxu0 0.0
      %577 = vmatpush2.msra.mxu0 0.0
      %578 = vmatprep.subr.mxu0 0.0
      %579 = vmatpush2.msra.mxu0 0.0
      %580 = vmatprep.subr.mxu0 0.0
      %581 = vmatpush2.msra.mxu0 0.0
      %582 = vmatprep.subr.mxu0 0.0
      %583 = vmatpush2.msra.mxu0 0.0
      %584 = vmatprep.subr.mxu0 0.0
      %585 = vmatpush2.msra.mxu0 0.0
      %586 = vmatprep.subr.mxu0 0.0
      %587 = vmatpush2.msra.mxu0 0.0
      %588 = vmatprep.subr.mxu0 0.0
      %589 = vmatpush2.msra.mxu0 0.0
      %590 = vmatprep.subr.mxu0 0.0
      %591 = vmatpush2.msra.mxu0 0.0
      %592 = vmatprep.subr.mxu0 0.0
      %593 = vmatpush2.msra.mxu0 0.0
      %594 = vmatprep.mubr.f32.mxu0 0.0
      %595 = vmatmul.mubr.f32.gmra.mxu0 %v525
      %v596 = vpop.f32.mrf.mxu0
      %v597 = vadd.f32 0.0, %v596
      %v598 = vpop.f32.mrf.mxu0
      %599 = vdwg.mxu0
      %600 = vrot.lane.b32.xlu0 %v148, 64
      %v601 = vpop.permute.xlu0 %600
      %v603 = vsel %vm523, %v518, 0
      %v605 = vsel %vm527, %v601, 0
      %607 = vmatprep.subr.mxu0 0.0
      %608 = vmatpush1.msra.mxu0 0.0
      %609 = vmatprep.subr.mxu0 0.0
      %610 = vmatpush1.msra.mxu0 0.0
      %611 = vmatprep.subr.mxu0 0.0
      %612 = vmatpush1.msra.mxu0 0.0
      %613 = vmatprep.subr.mxu0 0.0
      %614 = vmatpush1.msra.mxu0 0.0
      %615 = vmatprep.subr.mxu0 0.0
      %616 = vmatpush1.msra.mxu0 0.0
      %617 = vmatprep.subr.mxu0 0.0
      %618 = vmatpush1.msra.mxu0 0.0
      %619 = vmatprep.subr.mxu0 0.0
      %620 = vmatpush1.msra.mxu0 0.0
      %621 = vmatprep.subr.mxu0 0.0
      %622 = vmatpush1.msra.mxu0 0.0
      %623 = vmatprep.subr.mxu0 0.0
      %624 = vmatpush1.msra.mxu0 0.0
      %625 = vmatprep.subr.mxu0 0.0
      %626 = vmatpush1.msra.mxu0 0.0
      %627 = vmatprep.subr.mxu0 0.0
      %628 = vmatpush1.msra.mxu0 0.0
      %629 = vmatprep.subr.mxu0 0.0
      %630 = vmatpush1.msra.mxu0 0.0
      %631 = vmatprep.subr.mxu0 0.0
      %632 = vmatpush1.msra.mxu0 0.0
      %633 = vmatprep.subr.mxu0 0.0
      %634 = vmatpush1.msra.mxu0 0.0
      %635 = vmatprep.subr.mxu0 0.0
      %636 = vmatpush1.msra.mxu0 0.0
      %637 = vmatprep.subr.mxu0 0.0
      %638 = vmatpush1.msra.mxu0 %v605
      %639 = vmatprep.subr.mxu0 0.0
      %640 = vmatpush2.msra.mxu0 0.0
      %641 = vmatprep.subr.mxu0 0.0
      %642 = vmatpush2.msra.mxu0 0.0
      %643 = vmatprep.subr.mxu0 0.0
      %644 = vmatpush2.msra.mxu0 0.0
      %645 = vmatprep.subr.mxu0 0.0
      %646 = vmatpush2.msra.mxu0 0.0
      %647 = vmatprep.subr.mxu0 0.0
      %648 = vmatpush2.msra.mxu0 0.0
      %649 = vmatprep.subr.mxu0 0.0
      %650 = vmatpush2.msra.mxu0 0.0
      %651 = vmatprep.subr.mxu0 0.0
      %652 = vmatpush2.msra.mxu0 0.0
      %653 = vmatprep.subr.mxu0 0.0
      %654 = vmatpush2.msra.mxu0 0.0
      %655 = vmatprep.subr.mxu0 0.0
      %656 = vmatpush2.msra.mxu0 0.0
      %657 = vmatprep.subr.mxu0 0.0
      %658 = vmatpush2.msra.mxu0 0.0
      %659 = vmatprep.subr.mxu0 0.0
      %660 = vmatpush2.msra.mxu0 0.0
      %661 = vmatprep.subr.mxu0 0.0
      %662 = vmatpush2.msra.mxu0 0.0
      %663 = vmatprep.subr.mxu0 0.0
      %664 = vmatpush2.msra.mxu0 0.0
      %665 = vmatprep.subr.mxu0 0.0
      %666 = vmatpush2.msra.mxu0 0.0
      %667 = vmatprep.subr.mxu0 0.0
      %668 = vmatpush2.msra.mxu0 0.0
      %669 = vmatprep.subr.mxu0 0.0
      %670 = vmatpush2.msra.mxu0 0.0
      %671 = vmatprep.mubr.f32.mxu0 0.0
      %672 = vmatmul.mubr.f32.gmra.mxu0 %v603
      %v673 = vpop.f32.mrf.mxu0
      %v674 = vadd.f32 0.0, %v673
      %v675 = vpop.f32.mrf.mxu0
      %676 = vdwg.mxu0
      %677 = vrot.lane.b32.xlu0 %v149, 64
      %v678 = vpop.permute.xlu0 %677
      %v680 = vsel %vm523, %v519, 0
      %v682 = vsel %vm527, %v678, 0
      %684 = vmatprep.subr.mxu0 0.0
      %685 = vmatpush1.msra.mxu0 0.0
      %686 = vmatprep.subr.mxu0 0.0
      %687 = vmatpush1.msra.mxu0 0.0
      %688 = vmatprep.subr.mxu0 0.0
      %689 = vmatpush1.msra.mxu0 0.0
      %690 = vmatprep.subr.mxu0 0.0
      %691 = vmatpush1.msra.mxu0 0.0
      %692 = vmatprep.subr.mxu0 0.0
      %693 = vmatpush1.msra.mxu0 0.0
      %694 = vmatprep.subr.mxu0 0.0
      %695 = vmatpush1.msra.mxu0 0.0
      %696 = vmatprep.subr.mxu0 0.0
      %697 = vmatpush1.msra.mxu0 0.0
      %698 = vmatprep.subr.mxu0 0.0
      %699 = vmatpush1.msra.mxu0 0.0
      %700 = vmatprep.subr.mxu0 0.0
      %701 = vmatpush1.msra.mxu0 0.0
      %702 = vmatprep.subr.mxu0 0.0
      %703 = vmatpush1.msra.mxu0 0.0
      %704 = vmatprep.subr.mxu0 0.0
      %705 = vmatpush1.msra.mxu0 0.0
      %706 = vmatprep.subr.mxu0 0.0
      %707 = vmatpush1.msra.mxu0 0.0
      %708 = vmatprep.subr.mxu0 0.0
      %709 = vmatpush1.msra.mxu0 0.0
      %710 = vmatprep.subr.mxu0 0.0
      %711 = vmatpush1.msra.mxu0 0.0
      %712 = vmatprep.subr.mxu0 0.0
      %713 = vmatpush1.msra.mxu0 0.0
      %714 = vmatprep.subr.mxu0 0.0
      %715 = vmatpush1.msra.mxu0 %v682
      %716 = vmatprep.subr.mxu0 0.0
      %717 = vmatpush2.msra.mxu0 0.0
      %718 = vmatprep.subr.mxu0 0.0
      %719 = vmatpush2.msra.mxu0 0.0
      %720 = vmatprep.subr.mxu0 0.0
      %721 = vmatpush2.msra.mxu0 0.0
      %722 = vmatprep.subr.mxu0 0.0
      %723 = vmatpush2.msra.mxu0 0.0
      %724 = vmatprep.subr.mxu0 0.0
      %725 = vmatpush2.msra.mxu0 0.0
      %726 = vmatprep.subr.mxu0 0.0
      %727 = vmatpush2.msra.mxu0 0.0
      %728 = vmatprep.subr.mxu0 0.0
      %729 = vmatpush2.msra.mxu0 0.0
      %730 = vmatprep.subr.mxu0 0.0
      %731 = vmatpush2.msra.mxu0 0.0
      %732 = vmatprep.subr.mxu0 0.0
      %733 = vmatpush2.msra.mxu0 0.0
      %734 = vmatprep.subr.mxu0 0.0
      %735 = vmatpush2.msra.mxu0 0.0
      %736 = vmatprep.subr.mxu0 0.0
      %737 = vmatpush2.msra.mxu0 0.0
      %738 = vmatprep.subr.mxu0 0.0
      %739 = vmatpush2.msra.mxu0 0.0
      %740 = vmatprep.subr.mxu0 0.0
      %741 = vmatpush2.msra.mxu0 0.0
      %742 = vmatprep.subr.mxu0 0.0
      %743 = vmatpush2.msra.mxu0 0.0
      %744 = vmatprep.subr.mxu0 0.0
      %745 = vmatpush2.msra.mxu0 0.0
      %746 = vmatprep.subr.mxu0 0.0
      %747 = vmatpush2.msra.mxu0 0.0
      %748 = vmatprep.mubr.f32.mxu0 0.0
      %749 = vmatmul.mubr.f32.gmra.mxu0 %v680
      %v750 = vpop.f32.mrf.mxu0
      %v751 = vadd.f32 0.0, %v750
      %v752 = vpop.f32.mrf.mxu0
      %753 = vdwg.mxu0
      %754 = vrot.lane.b32.xlu0 %v150, 64
      %v755 = vpop.permute.xlu0 %754
      %v757 = vsel %vm523, %v520, 0
      %v759 = vsel %vm527, %v755, 0
      %761 = vmatprep.subr.mxu0 0.0
      %762 = vmatpush1.msra.mxu0 0.0
      %763 = vmatprep.subr.mxu0 0.0
      %764 = vmatpush1.msra.mxu0 0.0
      %765 = vmatprep.subr.mxu0 0.0
      %766 = vmatpush1.msra.mxu0 0.0
      %767 = vmatprep.subr.mxu0 0.0
      %768 = vmatpush1.msra.mxu0 0.0
      %769 = vmatprep.subr.mxu0 0.0
      %770 = vmatpush1.msra.mxu0 0.0
      %771 = vmatprep.subr.mxu0 0.0
      %772 = vmatpush1.msra.mxu0 0.0
      %773 = vmatprep.subr.mxu0 0.0
      %774 = vmatpush1.msra.mxu0 0.0
      %775 = vmatprep.subr.mxu0 0.0
      %776 = vmatpush1.msra.mxu0 0.0
      %777 = vmatprep.subr.mxu0 0.0
      %778 = vmatpush1.msra.mxu0 0.0
      %779 = vmatprep.subr.mxu0 0.0
      %780 = vmatpush1.msra.mxu0 0.0
      %781 = vmatprep.subr.mxu0 0.0
      %782 = vmatpush1.msra.mxu0 0.0
      %783 = vmatprep.subr.mxu0 0.0
      %784 = vmatpush1.msra.mxu0 0.0
      %785 = vmatprep.subr.mxu0 0.0
      %786 = vmatpush1.msra.mxu0 0.0
      %787 = vmatprep.subr.mxu0 0.0
      %788 = vmatpush1.msra.mxu0 0.0
      %789 = vmatprep.subr.mxu0 0.0
      %790 = vmatpush1.msra.mxu0 0.0
      %791 = vmatprep.subr.mxu0 0.0
      %792 = vmatpush1.msra.mxu0 %v759
      %793 = vmatprep.subr.mxu0 0.0
      %794 = vmatpush2.msra.mxu0 0.0
      %795 = vmatprep.subr.mxu0 0.0
      %796 = vmatpush2.msra.mxu0 0.0
      %797 = vmatprep.subr.mxu0 0.0
      %798 = vmatpush2.msra.mxu0 0.0
      %799 = vmatprep.subr.mxu0 0.0
      %800 = vmatpush2.msra.mxu0 0.0
      %801 = vmatprep.subr.mxu0 0.0
      %802 = vmatpush2.msra.mxu0 0.0
      %803 = vmatprep.subr.mxu0 0.0
      %804 = vmatpush2.msra.mxu0 0.0
      %805 = vmatprep.subr.mxu0 0.0
      %806 = vmatpush2.msra.mxu0 0.0
      %807 = vmatprep.subr.mxu0 0.0
      %808 = vmatpush2.msra.mxu0 0.0
      %809 = vmatprep.subr.mxu0 0.0
      %810 = vmatpush2.msra.mxu0 0.0
      %811 = vmatprep.subr.mxu0 0.0
      %812 = vmatpush2.msra.mxu0 0.0
      %813 = vmatprep.subr.mxu0 0.0
      %814 = vmatpush2.msra.mxu0 0.0
      %815 = vmatprep.subr.mxu0 0.0
      %816 = vmatpush2.msra.mxu0 0.0
      %817 = vmatprep.subr.mxu0 0.0
      %818 = vmatpush2.msra.mxu0 0.0
      %819 = vmatprep.subr.mxu0 0.0
      %820 = vmatpush2.msra.mxu0 0.0
      %821 = vmatprep.subr.mxu0 0.0
      %822 = vmatpush2.msra.mxu0 0.0
      %823 = vmatprep.subr.mxu0 0.0
      %824 = vmatpush2.msra.mxu0 0.0
      %825 = vmatprep.mubr.f32.mxu0 0.0
      %826 = vmatmul.mubr.f32.gmra.mxu0 %v757
      %v827 = vpop.f32.mrf.mxu0
      %v828 = vadd.f32 0.0, %v827
      %v829 = vpop.f32.mrf.mxu0
      %830 = vdwg.mxu0
      %831 = vrot.lane.b32.xlu0 %v147, 112
      %v832 = vpop.permute.xlu0 %831
      %833 = vrot.lane.b32.xlu0 %v147, 80
      %v834 = vpop.permute.xlu0 %833
      %v835 = vsel %vm162, %v832, 0
      %v837 = vsel %vm162, %v834, 0
      %839 = vmatprep.subr.mxu0 0.0
      %840 = vmatpush1.xpose.msra.mxu0 0.0
      %841 = vmatprep.subr.mxu0 0.0
      %842 = vmatpush1.xpose.msra.mxu0 0.0
      %843 = vmatprep.subr.mxu0 0.0
      %844 = vmatpush1.xpose.msra.mxu0 0.0
      %845 = vmatprep.subr.mxu0 0.0
      %846 = vmatpush1.xpose.msra.mxu0 0.0
      %847 = vmatprep.subr.mxu0 0.0
      %848 = vmatpush1.xpose.msra.mxu0 0.0
      %849 = vmatprep.subr.mxu0 0.0
      %850 = vmatpush1.xpose.msra.mxu0 0.0
      %851 = vmatprep.subr.mxu0 0.0
      %852 = vmatpush1.xpose.msra.mxu0 0.0
      %853 = vmatprep.subr.mxu0 0.0
      %854 = vmatpush1.xpose.msra.mxu0 0.0
      %855 = vmatprep.subr.mxu0 0.0
      %856 = vmatpush1.xpose.msra.mxu0 0.0
      %857 = vmatprep.subr.mxu0 0.0
      %858 = vmatpush1.xpose.msra.mxu0 0.0
      %859 = vmatprep.subr.mxu0 0.0
      %860 = vmatpush1.xpose.msra.mxu0 0.0
      %861 = vmatprep.subr.mxu0 0.0
      %862 = vmatpush1.xpose.msra.mxu0 0.0
      %863 = vmatprep.subr.mxu0 0.0
      %864 = vmatpush1.xpose.msra.mxu0 0.0
      %865 = vmatprep.subr.mxu0 0.0
      %866 = vmatpush1.xpose.msra.mxu0 0.0
      %867 = vmatprep.subr.mxu0 0.0
      %868 = vmatpush1.xpose.msra.mxu0 0.0
      %869 = vmatprep.subr.mxu0 0.0
      %870 = vmatpush1.xpose.msra.mxu0 %v837
      %871 = vmatprep.subr.mxu0 0.0
      %872 = vmatpush2.xpose.msra.mxu0 0.0
      %873 = vmatprep.subr.mxu0 0.0
      %874 = vmatpush2.xpose.msra.mxu0 0.0
      %875 = vmatprep.subr.mxu0 0.0
      %876 = vmatpush2.xpose.msra.mxu0 0.0
      %877 = vmatprep.subr.mxu0 0.0
      %878 = vmatpush2.xpose.msra.mxu0 0.0
      %879 = vmatprep.subr.mxu0 0.0
      %880 = vmatpush2.xpose.msra.mxu0 0.0
      %881 = vmatprep.subr.mxu0 0.0
      %882 = vmatpush2.xpose.msra.mxu0 0.0
      %883 = vmatprep.subr.mxu0 0.0
      %884 = vmatpush2.xpose.msra.mxu0 0.0
      %885 = vmatprep.subr.mxu0 0.0
      %886 = vmatpush2.xpose.msra.mxu0 0.0
      %887 = vmatprep.subr.mxu0 0.0
      %888 = vmatpush2.xpose.msra.mxu0 0.0
      %889 = vmatprep.subr.mxu0 0.0
      %890 = vmatpush2.xpose.msra.mxu0 0.0
      %891 = vmatprep.subr.mxu0 0.0
      %892 = vmatpush2.xpose.msra.mxu0 0.0
      %893 = vmatprep.subr.mxu0 0.0
      %894 = vmatpush2.xpose.msra.mxu0 0.0
      %895 = vmatprep.subr.mxu0 0.0
      %896 = vmatpush2.xpose.msra.mxu0 0.0
      %897 = vmatprep.subr.mxu0 0.0
      %898 = vmatpush2.xpose.msra.mxu0 0.0
      %899 = vmatprep.subr.mxu0 0.0
      %900 = vmatpush2.xpose.msra.mxu0 0.0
      %901 = vmatprep.subr.mxu0 0.0
      %902 = vmatpush2.xpose.msra.mxu0 0.0
      %903 = vmatprep.mubr.f32.mxu0 0.0
      %904 = vmatmul.mubr.f32.gmra.mxu0 %v835
      %v905 = vpop.f32.mrf.mxu0
      %v906 = vadd.f32 0.0, %v905
      %v907 = vpop.f32.mrf.mxu0
      %908 = vdwg.mxu0
      %909 = vrot.lane.b32.xlu0 %v148, 112
      %v910 = vpop.permute.xlu0 %909
      %911 = vrot.lane.b32.xlu0 %v148, 80
      %v912 = vpop.permute.xlu0 %911
      %v913 = vsel %vm162, %v910, 0
      %v915 = vsel %vm162, %v912, 0
      %917 = vmatprep.subr.mxu0 0.0
      %918 = vmatpush1.xpose.msra.mxu0 0.0
      %919 = vmatprep.subr.mxu0 0.0
      %920 = vmatpush1.xpose.msra.mxu0 0.0
      %921 = vmatprep.subr.mxu0 0.0
      %922 = vmatpush1.xpose.msra.mxu0 0.0
      %923 = vmatprep.subr.mxu0 0.0
      %924 = vmatpush1.xpose.msra.mxu0 0.0
      %925 = vmatprep.subr.mxu0 0.0
      %926 = vmatpush1.xpose.msra.mxu0 0.0
      %927 = vmatprep.subr.mxu0 0.0
      %928 = vmatpush1.xpose.msra.mxu0 0.0
      %929 = vmatprep.subr.mxu0 0.0
      %930 = vmatpush1.xpose.msra.mxu0 0.0
      %931 = vmatprep.subr.mxu0 0.0
      %932 = vmatpush1.xpose.msra.mxu0 0.0
      %933 = vmatprep.subr.mxu0 0.0
      %934 = vmatpush1.xpose.msra.mxu0 0.0
      %935 = vmatprep.subr.mxu0 0.0
      %936 = vmatpush1.xpose.msra.mxu0 0.0
      %937 = vmatprep.subr.mxu0 0.0
      %938 = vmatpush1.xpose.msra.mxu0 0.0
      %939 = vmatprep.subr.mxu0 0.0
      %940 = vmatpush1.xpose.msra.mxu0 0.0
      %941 = vmatprep.subr.mxu0 0.0
      %942 = vmatpush1.xpose.msra.mxu0 0.0
      %943 = vmatprep.subr.mxu0 0.0
      %944 = vmatpush1.xpose.msra.mxu0 0.0
      %945 = vmatprep.subr.mxu0 0.0
      %946 = vmatpush1.xpose.msra.mxu0 0.0
      %947 = vmatprep.subr.mxu0 0.0
      %948 = vmatpush1.xpose.msra.mxu0 %v915
      %949 = vmatprep.subr.mxu0 0.0
      %950 = vmatpush2.xpose.msra.mxu0 0.0
      %951 = vmatprep.subr.mxu0 0.0
      %952 = vmatpush2.xpose.msra.mxu0 0.0
      %953 = vmatprep.subr.mxu0 0.0
      %954 = vmatpush2.xpose.msra.mxu0 0.0
      %955 = vmatprep.subr.mxu0 0.0
      %956 = vmatpush2.xpose.msra.mxu0 0.0
      %957 = vmatprep.subr.mxu0 0.0
      %958 = vmatpush2.xpose.msra.mxu0 0.0
      %959 = vmatprep.subr.mxu0 0.0
      %960 = vmatpush2.xpose.msra.mxu0 0.0
      %961 = vmatprep.subr.mxu0 0.0
      %962 = vmatpush2.xpose.msra.mxu0 0.0
      %963 = vmatprep.subr.mxu0 0.0
      %964 = vmatpush2.xpose.msra.mxu0 0.0
      %965 = vmatprep.subr.mxu0 0.0
      %966 = vmatpush2.xpose.msra.mxu0 0.0
      %967 = vmatprep.subr.mxu0 0.0
      %968 = vmatpush2.xpose.msra.mxu0 0.0
      %969 = vmatprep.subr.mxu0 0.0
      %970 = vmatpush2.xpose.msra.mxu0 0.0
      %971 = vmatprep.subr.mxu0 0.0
      %972 = vmatpush2.xpose.msra.mxu0 0.0
      %973 = vmatprep.subr.mxu0 0.0
      %974 = vmatpush2.xpose.msra.mxu0 0.0
      %975 = vmatprep.subr.mxu0 0.0
      %976 = vmatpush2.xpose.msra.mxu0 0.0
      %977 = vmatprep.subr.mxu0 0.0
      %978 = vmatpush2.xpose.msra.mxu0 0.0
      %979 = vmatprep.subr.mxu0 0.0
      %980 = vmatpush2.xpose.msra.mxu0 0.0
      %981 = vmatprep.mubr.f32.mxu0 0.0
      %982 = vmatmul.mubr.f32.gmra.mxu0 %v913
      %v983 = vpop.f32.mrf.mxu0
      %v984 = vadd.f32 0.0, %v983
      %v985 = vpop.f32.mrf.mxu0
      %986 = vdwg.mxu0
      %987 = vrot.lane.b32.xlu0 %v149, 112
      %v988 = vpop.permute.xlu0 %987
      %989 = vrot.lane.b32.xlu0 %v149, 80
      %v990 = vpop.permute.xlu0 %989
      %v991 = vsel %vm162, %v988, 0
      %v993 = vsel %vm162, %v990, 0
      %995 = vmatprep.subr.mxu0 0.0
      %996 = vmatpush1.xpose.msra.mxu0 0.0
      %997 = vmatprep.subr.mxu0 0.0
      %998 = vmatpush1.xpose.msra.mxu0 0.0
      %999 = vmatprep.subr.mxu0 0.0
      %1000 = vmatpush1.xpose.msra.mxu0 0.0
      %1001 = vmatprep.subr.mxu0 0.0
      %1002 = vmatpush1.xpose.msra.mxu0 0.0
      %1003 = vmatprep.subr.mxu0 0.0
      %1004 = vmatpush1.xpose.msra.mxu0 0.0
      %1005 = vmatprep.subr.mxu0 0.0
      %1006 = vmatpush1.xpose.msra.mxu0 0.0
      %1007 = vmatprep.subr.mxu0 0.0
      %1008 = vmatpush1.xpose.msra.mxu0 0.0
      %1009 = vmatprep.subr.mxu0 0.0
      %1010 = vmatpush1.xpose.msra.mxu0 0.0
      %1011 = vmatprep.subr.mxu0 0.0
      %1012 = vmatpush1.xpose.msra.mxu0 0.0
      %1013 = vmatprep.subr.mxu0 0.0
      %1014 = vmatpush1.xpose.msra.mxu0 0.0
      %1015 = vmatprep.subr.mxu0 0.0
      %1016 = vmatpush1.xpose.msra.mxu0 0.0
      %1017 = vmatprep.subr.mxu0 0.0
      %1018 = vmatpush1.xpose.msra.mxu0 0.0
      %1019 = vmatprep.subr.mxu0 0.0
      %1020 = vmatpush1.xpose.msra.mxu0 0.0
      %1021 = vmatprep.subr.mxu0 0.0
      %1022 = vmatpush1.xpose.msra.mxu0 0.0
      %1023 = vmatprep.subr.mxu0 0.0
      %1024 = vmatpush1.xpose.msra.mxu0 0.0
      %1025 = vmatprep.subr.mxu0 0.0
      %1026 = vmatpush1.xpose.msra.mxu0 %v993
      %1027 = vmatprep.subr.mxu0 0.0
      %1028 = vmatpush2.xpose.msra.mxu0 0.0
      %1029 = vmatprep.subr.mxu0 0.0
      %1030 = vmatpush2.xpose.msra.mxu0 0.0
      %1031 = vmatprep.subr.mxu0 0.0
      %1032 = vmatpush2.xpose.msra.mxu0 0.0
      %1033 = vmatprep.subr.mxu0 0.0
      %1034 = vmatpush2.xpose.msra.mxu0 0.0
      %1035 = vmatprep.subr.mxu0 0.0
      %1036 = vmatpush2.xpose.msra.mxu0 0.0
      %1037 = vmatprep.subr.mxu0 0.0
      %1038 = vmatpush2.xpose.msra.mxu0 0.0
      %1039 = vmatprep.subr.mxu0 0.0
      %1040 = vmatpush2.xpose.msra.mxu0 0.0
      %1041 = vmatprep.subr.mxu0 0.0
      %1042 = vmatpush2.xpose.msra.mxu0 0.0
      %1043 = vmatprep.subr.mxu0 0.0
      %1044 = vmatpush2.xpose.msra.mxu0 0.0
      %1045 = vmatprep.subr.mxu0 0.0
      %1046 = vmatpush2.xpose.msra.mxu0 0.0
      %1047 = vmatprep.subr.mxu0 0.0
      %1048 = vmatpush2.xpose.msra.mxu0 0.0
      %1049 = vmatprep.subr.mxu0 0.0
      %1050 = vmatpush2.xpose.msra.mxu0 0.0
      %1051 = vmatprep.subr.mxu0 0.0
      %1052 = vmatpush2.xpose.msra.mxu0 0.0
      %1053 = vmatprep.subr.mxu0 0.0
      %1054 = vmatpush2.xpose.msra.mxu0 0.0
      %1055 = vmatprep.subr.mxu0 0.0
      %1056 = vmatpush2.xpose.msra.mxu0 0.0
      %1057 = vmatprep.subr.mxu0 0.0
      %1058 = vmatpush2.xpose.msra.mxu0 0.0
      %1059 = vmatprep.mubr.f32.mxu0 0.0
      %1060 = vmatmul.mubr.f32.gmra.mxu0 %v991
      %v1061 = vpop.f32.mrf.mxu0
      %v1062 = vadd.f32 0.0, %v1061
      %v1063 = vpop.f32.mrf.mxu0
      %1064 = vdwg.mxu0
      %1065 = vrot.lane.b32.xlu0 %v150, 112
      %v1066 = vpop.permute.xlu0 %1065
      %1067 = vrot.lane.b32.xlu0 %v150, 80
      %v1068 = vpop.permute.xlu0 %1067
      %v1069 = vsel %vm162, %v1066, 0
      %v1071 = vsel %vm162, %v1068, 0
      %1073 = vmatprep.subr.mxu0 0.0
      %1074 = vmatpush1.xpose.msra.mxu0 0.0
      %1075 = vmatprep.subr.mxu0 0.0
      %1076 = vmatpush1.xpose.msra.mxu0 0.0
      %1077 = vmatprep.subr.mxu0 0.0
      %1078 = vmatpush1.xpose.msra.mxu0 0.0
      %1079 = vmatprep.subr.mxu0 0.0
      %1080 = vmatpush1.xpose.msra.mxu0 0.0
      %1081 = vmatprep.subr.mxu0 0.0
      %1082 = vmatpush1.xpose.msra.mxu0 0.0
      %1083 = vmatprep.subr.mxu0 0.0
      %1084 = vmatpush1.xpose.msra.mxu0 0.0
      %1085 = vmatprep.subr.mxu0 0.0
      %1086 = vmatpush1.xpose.msra.mxu0 0.0
      %1087 = vmatprep.subr.mxu0 0.0
      %1088 = vmatpush1.xpose.msra.mxu0 0.0
      %1089 = vmatprep.subr.mxu0 0.0
      %1090 = vmatpush1.xpose.msra.mxu0 0.0
      %1091 = vmatprep.subr.mxu0 0.0
      %1092 = vmatpush1.xpose.msra.mxu0 0.0
      %1093 = vmatprep.subr.mxu0 0.0
      %1094 = vmatpush1.xpose.msra.mxu0 0.0
      %1095 = vmatprep.subr.mxu0 0.0
      %1096 = vmatpush1.xpose.msra.mxu0 0.0
      %1097 = vmatprep.subr.mxu0 0.0
      %1098 = vmatpush1.xpose.msra.mxu0 0.0
      %1099 = vmatprep.subr.mxu0 0.0
      %1100 = vmatpush1.xpose.msra.mxu0 0.0
      %1101 = vmatprep.subr.mxu0 0.0
      %1102 = vmatpush1.xpose.msra.mxu0 0.0
      %1103 = vmatprep.subr.mxu0 0.0
      %1104 = vmatpush1.xpose.msra.mxu0 %v1071
      %1105 = vmatprep.subr.mxu0 0.0
      %1106 = vmatpush2.xpose.msra.mxu0 0.0
      %1107 = vmatprep.subr.mxu0 0.0
      %1108 = vmatpush2.xpose.msra.mxu0 0.0
      %1109 = vmatprep.subr.mxu0 0.0
      %1110 = vmatpush2.xpose.msra.mxu0 0.0
      %1111 = vmatprep.subr.mxu0 0.0
      %1112 = vmatpush2.xpose.msra.mxu0 0.0
      %1113 = vmatprep.subr.mxu0 0.0
      %1114 = vmatpush2.xpose.msra.mxu0 0.0
      %1115 = vmatprep.subr.mxu0 0.0
      %1116 = vmatpush2.xpose.msra.mxu0 0.0
      %1117 = vmatprep.subr.mxu0 0.0
      %1118 = vmatpush2.xpose.msra.mxu0 0.0
      %1119 = vmatprep.subr.mxu0 0.0
      %1120 = vmatpush2.xpose.msra.mxu0 0.0
      %1121 = vmatprep.subr.mxu0 0.0
      %1122 = vmatpush2.xpose.msra.mxu0 0.0
      %1123 = vmatprep.subr.mxu0 0.0
      %1124 = vmatpush2.xpose.msra.mxu0 0.0
      %1125 = vmatprep.subr.mxu0 0.0
      %1126 = vmatpush2.xpose.msra.mxu0 0.0
      %1127 = vmatprep.subr.mxu0 0.0
      %1128 = vmatpush2.xpose.msra.mxu0 0.0
      %1129 = vmatprep.subr.mxu0 0.0
      %1130 = vmatpush2.xpose.msra.mxu0 0.0
      %1131 = vmatprep.subr.mxu0 0.0
      %1132 = vmatpush2.xpose.msra.mxu0 0.0
      %1133 = vmatprep.subr.mxu0 0.0
      %1134 = vmatpush2.xpose.msra.mxu0 0.0
      %1135 = vmatprep.subr.mxu0 0.0
      %1136 = vmatpush2.xpose.msra.mxu0 0.0
      %1137 = vmatprep.mubr.f32.mxu0 0.0
      %1138 = vmatmul.mubr.f32.gmra.mxu0 %v1069
      %v1139 = vpop.f32.mrf.mxu0
      %v1140 = vadd.f32 0.0, %v1139
      %v1141 = vpop.f32.mrf.mxu0
      %1142 = vdwg.mxu0
      %v1143 = vmul.f32 %v906, 0.25
      %v1144 = vmul.f32 %v984, 0.25
      %v1145 = vmul.f32 %v1062, 0.25
      %v1146 = vmul.f32 %v1140, 0.25
      %v1147 = vadd.f32 %v1143, %v152
      %v1148 = vadd.f32 %v1144, %v154
      %v1149 = vadd.f32 %v1145, %v156
      %v1150 = vadd.f32 %v1146, %v158
      %v1151 = vsel %vm476, %v1147, -inf
      %1152 = vmax.xlane.f32.xlu0 %v1151
      %v1153 = vpop.xlane.xlu0 %1152
      %v1154 = vsel %vm476, %v1148, -inf
      %1155 = vmax.xlane.f32.xlu0 %v1154
      %v1156 = vpop.xlane.xlu0 %1155
      %v1157 = vsel %vm476, %v1149, -inf
      %1158 = vmax.xlane.f32.xlu0 %v1157
      %v1159 = vpop.xlane.xlu0 %1158
      %v1160 = vsel %vm476, %v1150, -inf
      %1161 = vmax.xlane.f32.xlu0 %v1160
      %v1162 = vpop.xlane.xlu0 %1161
      %v1163 = vsub.f32 %v1147, %v1153
      %v1164 = vsub.f32 %v1148, %v1156
      %v1165 = vsub.f32 %v1149, %v1159
      %v1166 = vsub.f32 %v1150, %v1162
      %v1167 = vmul.f32 %v1163, 1.442695
      %v1168 = vpow.pop %v1167
      %v1169 = vmul.f32 %v1164, 1.442695
      %v1170 = vpow.pop %v1169
      %v1171 = vmul.f32 %v1165, 1.442695
      %v1172 = vpow.pop %v1171
      %v1173 = vmul.f32 %v1166, 1.442695
      %v1174 = vpow.pop %v1173
      %v1175 = vsel %vm476, %v1168, 0.0
      %1176 = vadd.xlane.f32.xlu0 %v1175
      %v1177 = vpop.xlane.xlu0 %1176
      %v1178 = vsel %vm476, %v1170, 0.0
      %1179 = vadd.xlane.f32.xlu0 %v1178
      %v1180 = vpop.xlane.xlu0 %1179
      %v1181 = vsel %vm476, %v1172, 0.0
      %1182 = vadd.xlane.f32.xlu0 %v1181
      %v1183 = vpop.xlane.xlu0 %1182
      %v1184 = vsel %vm476, %v1174, 0.0
      %1185 = vadd.xlane.f32.xlu0 %v1184
      %v1186 = vpop.xlane.xlu0 %1185
      %v1187 = vrcp.pop %v1177
      %v1188 = vrcp.pop %v1180
      %v1189 = vrcp.pop %v1183
      %v1190 = vrcp.pop %v1186
      %v1191 = vmul.f32 %v1168, %v1187
      %v1192 = vmul.f32 %v1170, %v1188
      %v1193 = vmul.f32 %v1172, %v1189
      %v1194 = vmul.f32 %v1174, %v1190
      %1195 = vrot.lane.b32.xlu0 %v147, 48
      %v1196 = vpop.permute.xlu0 %1195
      %v1198 = vsel %vm523, %v1191, 0
      %v1200 = vsel %vm527, %v1196, 0
      %1202 = vmatprep.subr.mxu0 0.0
      %1203 = vmatpush1.msra.mxu0 0.0
      %1204 = vmatprep.subr.mxu0 0.0
      %1205 = vmatpush1.msra.mxu0 0.0
      %1206 = vmatprep.subr.mxu0 0.0
      %1207 = vmatpush1.msra.mxu0 0.0
      %1208 = vmatprep.subr.mxu0 0.0
      %1209 = vmatpush1.msra.mxu0 0.0
      %1210 = vmatprep.subr.mxu0 0.0
      %1211 = vmatpush1.msra.mxu0 0.0
      %1212 = vmatprep.subr.mxu0 0.0
      %1213 = vmatpush1.msra.mxu0 0.0
      %1214 = vmatprep.subr.mxu0 0.0
      %1215 = vmatpush1.msra.mxu0 0.0
      %1216 = vmatprep.subr.mxu0 0.0
      %1217 = vmatpush1.msra.mxu0 0.0
      %1218 = vmatprep.subr.mxu0 0.0
      %1219 = vmatpush1.msra.mxu0 0.0
      %1220 = vmatprep.subr.mxu0 0.0
      %1221 = vmatpush1.msra.mxu0 0.0
      %1222 = vmatprep.subr.mxu0 0.0
      %1223 = vmatpush1.msra.mxu0 0.0
      %1224 = vmatprep.subr.mxu0 0.0
      %1225 = vmatpush1.msra.mxu0 0.0
      %1226 = vmatprep.subr.mxu0 0.0
      %1227 = vmatpush1.msra.mxu0 0.0
      %1228 = vmatprep.subr.mxu0 0.0
      %1229 = vmatpush1.msra.mxu0 0.0
      %1230 = vmatprep.subr.mxu0 0.0
      %1231 = vmatpush1.msra.mxu0 0.0
      %1232 = vmatprep.subr.mxu0 0.0
      %1233 = vmatpush1.msra.mxu0 %v1200
      %1234 = vmatprep.subr.mxu0 0.0
      %1235 = vmatpush2.msra.mxu0 0.0
      %1236 = vmatprep.subr.mxu0 0.0
      %1237 = vmatpush2.msra.mxu0 0.0
      %1238 = vmatprep.subr.mxu0 0.0
      %1239 = vmatpush2.msra.mxu0 0.0
      %1240 = vmatprep.subr.mxu0 0.0
      %1241 = vmatpush2.msra.mxu0 0.0
      %1242 = vmatprep.subr.mxu0 0.0
      %1243 = vmatpush2.msra.mxu0 0.0
      %1244 = vmatprep.subr.mxu0 0.0
      %1245 = vmatpush2.msra.mxu0 0.0
      %1246 = vmatprep.subr.mxu0 0.0
      %1247 = vmatpush2.msra.mxu0 0.0
      %1248 = vmatprep.subr.mxu0 0.0
      %1249 = vmatpush2.msra.mxu0 0.0
      %1250 = vmatprep.subr.mxu0 0.0
      %1251 = vmatpush2.msra.mxu0 0.0
      %1252 = vmatprep.subr.mxu0 0.0
      %1253 = vmatpush2.msra.mxu0 0.0
      %1254 = vmatprep.subr.mxu0 0.0
      %1255 = vmatpush2.msra.mxu0 0.0
      %1256 = vmatprep.subr.mxu0 0.0
      %1257 = vmatpush2.msra.mxu0 0.0
      %1258 = vmatprep.subr.mxu0 0.0
      %1259 = vmatpush2.msra.mxu0 0.0
      %1260 = vmatprep.subr.mxu0 0.0
      %1261 = vmatpush2.msra.mxu0 0.0
      %1262 = vmatprep.subr.mxu0 0.0
      %1263 = vmatpush2.msra.mxu0 0.0
      %1264 = vmatprep.subr.mxu0 0.0
      %1265 = vmatpush2.msra.mxu0 0.0
      %1266 = vmatprep.mubr.f32.mxu0 0.0
      %1267 = vmatmul.mubr.f32.gmra.mxu0 %v1198
      %v1268 = vpop.f32.mrf.mxu0
      %v1269 = vadd.f32 0.0, %v1268
      %v1270 = vpop.f32.mrf.mxu0
      %1271 = vdwg.mxu0
      %1272 = vrot.lane.b32.xlu0 %v148, 48
      %v1273 = vpop.permute.xlu0 %1272
      %v1275 = vsel %vm523, %v1192, 0
      %v1277 = vsel %vm527, %v1273, 0
      %1279 = vmatprep.subr.mxu0 0.0
      %1280 = vmatpush1.msra.mxu0 0.0
      %1281 = vmatprep.subr.mxu0 0.0
      %1282 = vmatpush1.msra.mxu0 0.0
      %1283 = vmatprep.subr.mxu0 0.0
      %1284 = vmatpush1.msra.mxu0 0.0
      %1285 = vmatprep.subr.mxu0 0.0
      %1286 = vmatpush1.msra.mxu0 0.0
      %1287 = vmatprep.subr.mxu0 0.0
      %1288 = vmatpush1.msra.mxu0 0.0
      %1289 = vmatprep.subr.mxu0 0.0
      %1290 = vmatpush1.msra.mxu0 0.0
      %1291 = vmatprep.subr.mxu0 0.0
      %1292 = vmatpush1.msra.mxu0 0.0
      %1293 = vmatprep.subr.mxu0 0.0
      %1294 = vmatpush1.msra.mxu0 0.0
      %1295 = vmatprep.subr.mxu0 0.0
      %1296 = vmatpush1.msra.mxu0 0.0
      %1297 = vmatprep.subr.mxu0 0.0
      %1298 = vmatpush1.msra.mxu0 0.0
      %1299 = vmatprep.subr.mxu0 0.0
      %1300 = vmatpush1.msra.mxu0 0.0
      %1301 = vmatprep.subr.mxu0 0.0
      %1302 = vmatpush1.msra.mxu0 0.0
      %1303 = vmatprep.subr.mxu0 0.0
      %1304 = vmatpush1.msra.mxu0 0.0
      %1305 = vmatprep.subr.mxu0 0.0
      %1306 = vmatpush1.msra.mxu0 0.0
      %1307 = vmatprep.subr.mxu0 0.0
      %1308 = vmatpush1.msra.mxu0 0.0
      %1309 = vmatprep.subr.mxu0 0.0
      %1310 = vmatpush1.msra.mxu0 %v1277
      %1311 = vmatprep.subr.mxu0 0.0
      %1312 = vmatpush2.msra.mxu0 0.0
      %1313 = vmatprep.subr.mxu0 0.0
      %1314 = vmatpush2.msra.mxu0 0.0
      %1315 = vmatprep.subr.mxu0 0.0
      %1316 = vmatpush2.msra.mxu0 0.0
      %1317 = vmatprep.subr.mxu0 0.0
      %1318 = vmatpush2.msra.mxu0 0.0
      %1319 = vmatprep.subr.mxu0 0.0
      %1320 = vmatpush2.msra.mxu0 0.0
      %1321 = vmatprep.subr.mxu0 0.0
      %1322 = vmatpush2.msra.mxu0 0.0
      %1323 = vmatprep.subr.mxu0 0.0
      %1324 = vmatpush2.msra.mxu0 0.0
      %1325 = vmatprep.subr.mxu0 0.0
      %1326 = vmatpush2.msra.mxu0 0.0
      %1327 = vmatprep.subr.mxu0 0.0
      %1328 = vmatpush2.msra.mxu0 0.0
      %1329 = vmatprep.subr.mxu0 0.0
      %1330 = vmatpush2.msra.mxu0 0.0
      %1331 = vmatprep.subr.mxu0 0.0
      %1332 = vmatpush2.msra.mxu0 0.0
      %1333 = vmatprep.subr.mxu0 0.0
      %1334 = vmatpush2.msra.mxu0 0.0
      %1335 = vmatprep.subr.mxu0 0.0
      %1336 = vmatpush2.msra.mxu0 0.0
      %1337 = vmatprep.subr.mxu0 0.0
      %1338 = vmatpush2.msra.mxu0 0.0
      %1339 = vmatprep.subr.mxu0 0.0
      %1340 = vmatpush2.msra.mxu0 0.0
      %1341 = vmatprep.subr.mxu0 0.0
      %1342 = vmatpush2.msra.mxu0 0.0
      %1343 = vmatprep.mubr.f32.mxu0 0.0
      %1344 = vmatmul.mubr.f32.gmra.mxu0 %v1275
      %v1345 = vpop.f32.mrf.mxu0
      %v1346 = vadd.f32 0.0, %v1345
      %v1347 = vpop.f32.mrf.mxu0
      %1348 = vdwg.mxu0
      %1349 = vrot.lane.b32.xlu0 %v149, 48
      %v1350 = vpop.permute.xlu0 %1349
      %v1352 = vsel %vm523, %v1193, 0
      %v1354 = vsel %vm527, %v1350, 0
      %1356 = vmatprep.subr.mxu0 0.0
      %1357 = vmatpush1.msra.mxu0 0.0
      %1358 = vmatprep.subr.mxu0 0.0
      %1359 = vmatpush1.msra.mxu0 0.0
      %1360 = vmatprep.subr.mxu0 0.0
      %1361 = vmatpush1.msra.mxu0 0.0
      %1362 = vmatprep.subr.mxu0 0.0
      %1363 = vmatpush1.msra.mxu0 0.0
      %1364 = vmatprep.subr.mxu0 0.0
      %1365 = vmatpush1.msra.mxu0 0.0
      %1366 = vmatprep.subr.mxu0 0.0
      %1367 = vmatpush1.msra.mxu0 0.0
      %1368 = vmatprep.subr.mxu0 0.0
      %1369 = vmatpush1.msra.mxu0 0.0
      %1370 = vmatprep.subr.mxu0 0.0
      %1371 = vmatpush1.msra.mxu0 0.0
      %1372 = vmatprep.subr.mxu0 0.0
      %1373 = vmatpush1.msra.mxu0 0.0
      %1374 = vmatprep.subr.mxu0 0.0
      %1375 = vmatpush1.msra.mxu0 0.0
      %1376 = vmatprep.subr.mxu0 0.0
      %1377 = vmatpush1.msra.mxu0 0.0
      %1378 = vmatprep.subr.mxu0 0.0
      %1379 = vmatpush1.msra.mxu0 0.0
      %1380 = vmatprep.subr.mxu0 0.0
      %1381 = vmatpush1.msra.mxu0 0.0
      %1382 = vmatprep.subr.mxu0 0.0
      %1383 = vmatpush1.msra.mxu0 0.0
      %1384 = vmatprep.subr.mxu0 0.0
      %1385 = vmatpush1.msra.mxu0 0.0
      %1386 = vmatprep.subr.mxu0 0.0
      %1387 = vmatpush1.msra.mxu0 %v1354
      %1388 = vmatprep.subr.mxu0 0.0
      %1389 = vmatpush2.msra.mxu0 0.0
      %1390 = vmatprep.subr.mxu0 0.0
      %1391 = vmatpush2.msra.mxu0 0.0
      %1392 = vmatprep.subr.mxu0 0.0
      %1393 = vmatpush2.msra.mxu0 0.0
      %1394 = vmatprep.subr.mxu0 0.0
      %1395 = vmatpush2.msra.mxu0 0.0
      %1396 = vmatprep.subr.mxu0 0.0
      %1397 = vmatpush2.msra.mxu0 0.0
      %1398 = vmatprep.subr.mxu0 0.0
      %1399 = vmatpush2.msra.mxu0 0.0
      %1400 = vmatprep.subr.mxu0 0.0
      %1401 = vmatpush2.msra.mxu0 0.0
      %1402 = vmatprep.subr.mxu0 0.0
      %1403 = vmatpush2.msra.mxu0 0.0
      %1404 = vmatprep.subr.mxu0 0.0
      %1405 = vmatpush2.msra.mxu0 0.0
      %1406 = vmatprep.subr.mxu0 0.0
      %1407 = vmatpush2.msra.mxu0 0.0
      %1408 = vmatprep.subr.mxu0 0.0
      %1409 = vmatpush2.msra.mxu0 0.0
      %1410 = vmatprep.subr.mxu0 0.0
      %1411 = vmatpush2.msra.mxu0 0.0
      %1412 = vmatprep.subr.mxu0 0.0
      %1413 = vmatpush2.msra.mxu0 0.0
      %1414 = vmatprep.subr.mxu0 0.0
      %1415 = vmatpush2.msra.mxu0 0.0
      %1416 = vmatprep.subr.mxu0 0.0
      %1417 = vmatpush2.msra.mxu0 0.0
      %1418 = vmatprep.subr.mxu0 0.0
      %1419 = vmatpush2.msra.mxu0 0.0
      %1420 = vmatprep.mubr.f32.mxu0 0.0
      %1421 = vmatmul.mubr.f32.gmra.mxu0 %v1352
      %v1422 = vpop.f32.mrf.mxu0
      %v1423 = vadd.f32 0.0, %v1422
      %v1424 = vpop.f32.mrf.mxu0
      %1425 = vdwg.mxu0
      %1426 = vrot.lane.b32.xlu0 %v150, 48
      %v1427 = vpop.permute.xlu0 %1426
      %v1429 = vsel %vm523, %v1194, 0
      %v1431 = vsel %vm527, %v1427, 0
      %1433 = vmatprep.subr.mxu0 0.0
      %1434 = vmatpush1.msra.mxu0 0.0
      %1435 = vmatprep.subr.mxu0 0.0
      %1436 = vmatpush1.msra.mxu0 0.0
      %1437 = vmatprep.subr.mxu0 0.0
      %1438 = vmatpush1.msra.mxu0 0.0
      %1439 = vmatprep.subr.mxu0 0.0
      %1440 = vmatpush1.msra.mxu0 0.0
      %1441 = vmatprep.subr.mxu0 0.0
      %1442 = vmatpush1.msra.mxu0 0.0
      %1443 = vmatprep.subr.mxu0 0.0
      %1444 = vmatpush1.msra.mxu0 0.0
      %1445 = vmatprep.subr.mxu0 0.0
      %1446 = vmatpush1.msra.mxu0 0.0
      %1447 = vmatprep.subr.mxu0 0.0
      %1448 = vmatpush1.msra.mxu0 0.0
      %1449 = vmatprep.subr.mxu0 0.0
      %1450 = vmatpush1.msra.mxu0 0.0
      %1451 = vmatprep.subr.mxu0 0.0
      %1452 = vmatpush1.msra.mxu0 0.0
      %1453 = vmatprep.subr.mxu0 0.0
      %1454 = vmatpush1.msra.mxu0 0.0
      %1455 = vmatprep.subr.mxu0 0.0
      %1456 = vmatpush1.msra.mxu0 0.0
      %1457 = vmatprep.subr.mxu0 0.0
      %1458 = vmatpush1.msra.mxu0 0.0
      %1459 = vmatprep.subr.mxu0 0.0
      %1460 = vmatpush1.msra.mxu0 0.0
      %1461 = vmatprep.subr.mxu0 0.0
      %1462 = vmatpush1.msra.mxu0 0.0
      %1463 = vmatprep.subr.mxu0 0.0
      %1464 = vmatpush1.msra.mxu0 %v1431
      %1465 = vmatprep.subr.mxu0 0.0
      %1466 = vmatpush2.msra.mxu0 0.0
      %1467 = vmatprep.subr.mxu0 0.0
      %1468 = vmatpush2.msra.mxu0 0.0
      %1469 = vmatprep.subr.mxu0 0.0
      %1470 = vmatpush2.msra.mxu0 0.0
      %1471 = vmatprep.subr.mxu0 0.0
      %1472 = vmatpush2.msra.mxu0 0.0
      %1473 = vmatprep.subr.mxu0 0.0
      %1474 = vmatpush2.msra.mxu0 0.0
      %1475 = vmatprep.subr.mxu0 0.0
      %1476 = vmatpush2.msra.mxu0 0.0
      %1477 = vmatprep.subr.mxu0 0.0
      %1478 = vmatpush2.msra.mxu0 0.0
      %1479 = vmatprep.subr.mxu0 0.0
      %1480 = vmatpush2.msra.mxu0 0.0
      %1481 = vmatprep.subr.mxu0 0.0
      %1482 = vmatpush2.msra.mxu0 0.0
      %1483 = vmatprep.subr.mxu0 0.0
      %1484 = vmatpush2.msra.mxu0 0.0
      %1485 = vmatprep.subr.mxu0 0.0
      %1486 = vmatpush2.msra.mxu0 0.0
      %1487 = vmatprep.subr.mxu0 0.0
      %1488 = vmatpush2.msra.mxu0 0.0
      %1489 = vmatprep.subr.mxu0 0.0
      %1490 = vmatpush2.msra.mxu0 0.0
      %1491 = vmatprep.subr.mxu0 0.0
      %1492 = vmatpush2.msra.mxu0 0.0
      %1493 = vmatprep.subr.mxu0 0.0
      %1494 = vmatpush2.msra.mxu0 0.0
      %1495 = vmatprep.subr.mxu0 0.0
      %1496 = vmatpush2.msra.mxu0 0.0
      %1497 = vmatprep.mubr.f32.mxu0 0.0
      %1498 = vmatmul.mubr.f32.gmra.mxu0 %v1429
      %v1499 = vpop.f32.mrf.mxu0
      %v1500 = vadd.f32 0.0, %v1499
      %v1501 = vpop.f32.mrf.mxu0
      %1502 = vdwg.mxu0
      %1507 = vrot.lane.b32.xlu0 %v1269, 16
      %v1508 = vpop.permute.xlu0 %1507
      %1509 = vrot.lane.b32.xlu0 %v1346, 16
      %v1510 = vpop.permute.xlu0 %1509
      %1511 = vrot.lane.b32.xlu0 %v1423, 16
      %v1512 = vpop.permute.xlu0 %1511
      %1513 = vrot.lane.b32.xlu0 %v1500, 16
      %v1514 = vpop.permute.xlu0 %1513
      %v1519 = vsel %vm162, %v597, %v1508
      %v1520 = vsel %vm162, %v674, %v1510
      %v1521 = vsel %vm162, %v751, %v1512
      %v1522 = vsel %vm162, %v828, %v1514
      %vm1523 = vcmask 257024
      %1524 = vst.msk [vmem:[%s145] sm:$0xf] %vm1523, %v1519
      %1525 = vst.msk [vmem:[%s145 + $0x4] sm:$0xf] %vm1523, %v1520
      %1526 = vst.msk [vmem:[%s145 + $0x8] sm:$0xf] %vm1523, %v1521
      %1527 = vst.msk [vmem:[%s145 + $0xc] sm:$0xf] %vm1523, %v1522
      %s1528 = smul.u32 4, %s13
      %p1529 = scmp.lt.s32.totalorder %s1528, 7
      %s1530 = scalar_select %p1529, %s1528, 7
      %s1531 = smul.addr %s1530, 4
      %s1532 = scalar_lea.vmem %s2, %s1531
      // Predicated region
      $region29: #{swin_forward.31} parent=27 // pred_check
        %p1533 = pneg %p78
      $region30: #{swin_forward.31} parent=27 // pred_check_branch
        %1535 = sbr.rel (%p1533) target = $region32
      $region31: #{swin_forward.31} parent=27 // pred_region
        %s1536 = smul.u32 4, %s13
      $region32: #{swin_forward.31} parent=27 // pred_fallthru
        _
    $region28: #{swin_forward.31} parent=5 // pred_fallthru
      _
    %p1537 = scmp.le.s32.totalorder 2, %s8
    // Predicated region
    $region33: #{swin_forward.31} parent=5 // pred_check
      %p1538 = pneg %p1537
    $region34: #{swin_forward.31} parent=5 // pred_check_branch
      %1540 = sbr.rel (%p1538) target = $region36
    $region35: #{swin_forward.31} parent=5 // pred_region
      %s1541 = ssub.s32 %s8, 2
      // Predicated region
      $region37: #{swin_forward.31} parent=35 // pred_check
        %p1542 = pneg %p84
      $region38: #{swin_forward.31} parent=35 // pred_check_branch
        %1544 = sbr.rel (%p1542) target = $region40
      $region39: #{swin_forward.31} parent=35 // pred_region
        %s1545 = smul.u32 4, %s14
        %p1546 = scmp.lt.s32.totalorder %s1545, 7
        %s1547 = scalar_select %p1546, %s1545, 7
        %s1548 = smul.addr %s1547, 4
        %s1549 = scalar_lea.vmem %s2, %s1548
      $region40: #{swin_forward.31} parent=35 // pred_fallthru
        _
    $region36: #{swin_forward.31} parent=5 // pred_fallthru
      _
  $region6: #{swin_forward.31} parent=0 // loop_footer
    %s12 = sadd.s32 1, %s8
  $region7: #{swin_forward.31} parent=0 // loop_footer_branch
    %7 = sbr.rel target = $region3
  $region8: #{swin_forward.31} parent=0 // loop_exit
    _

// kernel: swin_forward.39
$region0: #{swin_forward.39}
  #allocation0 [shape = 'u32[]', space=smem, size = 0x4, offset = 0x4, fixed_abs, tag = 'smem constant byte address 0x4 - core index']
  #allocation1 [shape = 'u32[144,128]{1,0:T(1,128)}', space=vmem, size = 0x12000, scoped, tag = 'internal scratch']
  %s0 = inlined_call_operand.vmem [shape: f32[8,64], index: 0, kind: input, shape index: {}]
  %s1 = inlined_call_operand.vmem [shape: f32[1,64], index: 1, kind: input, shape index: {}]
  %s2 = inlined_call_operand.vmem [shape: f32[1,64], index: 2, kind: input, shape index: {}]
  %s3 = inlined_call_operand.vmem [shape: f32[64,256], index: 3, kind: input, shape index: {}]
  %s4 = inlined_call_operand.vmem [shape: f32[1,256], index: 4, kind: input, shape index: {}]
  %s5 = inlined_call_operand.vmem [shape: f32[8,256], index: 5, kind: output, shape index: {}]
  %s6 = sld [smem:[#allocation0]]
  $region30: #{swin_forward.39} parent=0
    _
  %s8 = ssub.s32 1, %s6
  %s9 = scalar_select 0, %s8, %s6
  // Predicated region
  $region2: #{swin_forward.39} parent=0 // pred_check
    _
  $region3: #{swin_forward.39} parent=0 // pred_check_branch
    %11 = sbr.rel (0) target = $region5
  $region4: #{swin_forward.39} parent=0 // pred_region
    _
  $region5: #{swin_forward.39} parent=0 // pred_fallthru
    _
  // Predicated region
  $region6: #{swin_forward.39} parent=0 // pred_check
    _
  $region7: #{swin_forward.39} parent=0 // pred_check_branch
    %13 = sbr.rel (0) target = $region9
  $region8: #{swin_forward.39} parent=0 // pred_region
    _
  $region9: #{swin_forward.39} parent=0 // pred_fallthru
    _
  // Predicated region
  $region10: #{swin_forward.39} parent=0 // pred_check
    _
  $region11: #{swin_forward.39} parent=0 // pred_check_branch
    %15 = sbr.rel (0) target = $region13
  $region12: #{swin_forward.39} parent=0 // pred_region
    _
  $region13: #{swin_forward.39} parent=0 // pred_fallthru
    _
  // Predicated region
  $region14: #{swin_forward.39} parent=0 // pred_check
    _
  $region15: #{swin_forward.39} parent=0 // pred_check_branch
    %17 = sbr.rel (0) target = $region17
  $region16: #{swin_forward.39} parent=0 // pred_region
    _
  $region17: #{swin_forward.39} parent=0 // pred_fallthru
    _
  // Predicated region
  $region18: #{swin_forward.39} parent=0 // pred_check
    _
  $region19: #{swin_forward.39} parent=0 // pred_check_branch
    %19 = sbr.rel (0) target = $region21
  $region20: #{swin_forward.39} parent=0 // pred_region
    _
  $region21: #{swin_forward.39} parent=0 // pred_fallthru
    _
  %v20 = vld [vmem:[%s0] sm:$0xff]
  %v21 = vld [vmem:[%s1] sm:$0x1]
  %v22 = vld [vmem:[%s2] sm:$0x1]
  %vm23 = vcmask 523264
  %v24 = vsel %vm23, %v20, 0.0
  %25 = vadd.xlane.f32.xlu0 %v24
  %v26 = vpop.xlane.xlu0 %25
  %v27 = vrcp.pop 64.0
  %v28 = vmul.f32 %v26, %v27
  %v29 = vsub.f32 %v20, %v28
  %v30 = vmul.f32 %v29, %v29
  %v31 = vsel %vm23, %v30, 0.0
  %32 = vadd.xlane.f32.xlu0 %v31
  %v33 = vpop.xlane.xlu0 %32
  %v34 = vmul.f32 %v33, %v27
  %v35 = vadd.f32 %v34, 1e-05
  %v36 = vrsqrt.pop %v35
  %v37 = vmul.f32 %v29, %v36
  %v39 = vlaneseq
  %v40 = vshrl.u32 %v39, 7
  %v41 = vsub.s32 0, %v40
  %v42 = vrot.slane %v21, %v41
  %v44 = vmul.f32 %v37, %v42
  %v46 = vlaneseq
  %v47 = vshrl.u32 %v46, 7
  %v48 = vsub.s32 0, %v47
  %v49 = vrot.slane %v22, %v48
  %v51 = vadd.f32 %v44, %v49
  %v52 = vld [vmem:[%s3] sm:$0xff]
  %v53 = vld [vmem:[%s3 + $0x8] sm:$0xff]
  %v54 = vld [vmem:[%s3 + $0x10] sm:$0xff]
  %v55 = vld [vmem:[%s3 + $0x18] sm:$0xff]
  %v56 = vld [vmem:[%s3 + $0x20] sm:$0xff]
  %v57 = vld [vmem:[%s3 + $0x28] sm:$0xff]
  %v58 = vld [vmem:[%s3 + $0x30] sm:$0xff]
  %v59 = vld [vmem:[%s3 + $0x38] sm:$0xff]
  %v60 = vld [vmem:[%s3 + $0x40] sm:$0xff]
  %v61 = vld [vmem:[%s3 + $0x48] sm:$0xff]
  %v62 = vld [vmem:[%s3 + $0x50] sm:$0xff]
  %v63 = vld [vmem:[%s3 + $0x58] sm:$0xff]
  %v64 = vld [vmem:[%s3 + $0x60] sm:$0xff]
  %v65 = vld [vmem:[%s3 + $0x68] sm:$0xff]
  %v66 = vld [vmem:[%s3 + $0x70] sm:$0xff]
  %v67 = vld [vmem:[%s3 + $0x78] sm:$0xff]
  %v68 = vld [vmem:[%s4] sm:$0x3]
  %v70 = vlaneseq
  %v71 = vshrl.u32 %v70, 7
  %v72 = vsub.s32 0, %v71
  %v73 = vrot.slane %v68, %v72
  %v74 = vlaneseq
  %v75 = vshrl.u32 %v74, 7
  %v76 = vsub.s32 1, %v75
  %v77 = vrot.slane %v68, %v76
  %v81 = vsel %vm23, %v51, 0
  %83 = vmatprep.subr.mxu0 0.0
  %84 = vmatpush1.msra.mxu0 0.0
  %85 = vmatprep.subr.mxu0 0.0
  %86 = vmatpush1.msra.mxu0 0.0
  %87 = vmatprep.subr.mxu0 0.0
  %88 = vmatpush1.msra.mxu0 0.0
  %89 = vmatprep.subr.mxu0 0.0
  %90 = vmatpush1.msra.mxu0 0.0
  %91 = vmatprep.subr.mxu0 0.0
  %92 = vmatpush1.msra.mxu0 0.0
  %93 = vmatprep.subr.mxu0 0.0
  %94 = vmatpush1.msra.mxu0 0.0
  %95 = vmatprep.subr.mxu0 0.0
  %96 = vmatpush1.msra.mxu0 0.0
  %97 = vmatprep.subr.mxu0 0.0
  %98 = vmatpush1.msra.mxu0 0.0
  %99 = vmatprep.subr.mxu0 %v67
  %100 = vmatpush1.msra.mxu0 %v66
  %101 = vmatprep.subr.mxu0 %v65
  %102 = vmatpush1.msra.mxu0 %v64
  %103 = vmatprep.subr.mxu0 %v63
  %104 = vmatpush1.msra.mxu0 %v62
  %105 = vmatprep.subr.mxu0 %v61
  %106 = vmatpush1.msra.mxu0 %v60
  %107 = vmatprep.subr.mxu0 %v59
  %108 = vmatpush1.msra.mxu0 %v58
  %109 = vmatprep.subr.mxu0 %v57
  %110 = vmatpush1.msra.mxu0 %v56
  %111 = vmatprep.subr.mxu0 %v55
  %112 = vmatpush1.msra.mxu0 %v54
  %113 = vmatprep.subr.mxu0 %v53
  %114 = vmatpush1.msra.mxu0 %v52
  %115 = vmatprep.subr.mxu0 0.0
  %116 = vmatpush2.msra.mxu0 0.0
  %117 = vmatprep.subr.mxu0 0.0
  %118 = vmatpush2.msra.mxu0 0.0
  %119 = vmatprep.subr.mxu0 0.0
  %120 = vmatpush2.msra.mxu0 0.0
  %121 = vmatprep.subr.mxu0 0.0
  %122 = vmatpush2.msra.mxu0 0.0
  %123 = vmatprep.subr.mxu0 0.0
  %124 = vmatpush2.msra.mxu0 0.0
  %125 = vmatprep.subr.mxu0 0.0
  %126 = vmatpush2.msra.mxu0 0.0
  %127 = vmatprep.subr.mxu0 0.0
  %128 = vmatpush2.msra.mxu0 0.0
  %129 = vmatprep.subr.mxu0 0.0
  %130 = vmatpush2.msra.mxu0 0.0
  %131 = vmatprep.subr.mxu0 0.0
  %132 = vmatpush2.msra.mxu0 0.0
  %133 = vmatprep.subr.mxu0 0.0
  %134 = vmatpush2.msra.mxu0 0.0
  %135 = vmatprep.subr.mxu0 0.0
  %136 = vmatpush2.msra.mxu0 0.0
  %137 = vmatprep.subr.mxu0 0.0
  %138 = vmatpush2.msra.mxu0 0.0
  %139 = vmatprep.subr.mxu0 0.0
  %140 = vmatpush2.msra.mxu0 0.0
  %141 = vmatprep.subr.mxu0 0.0
  %142 = vmatpush2.msra.mxu0 0.0
  %143 = vmatprep.subr.mxu0 0.0
  %144 = vmatpush2.msra.mxu0 0.0
  %145 = vmatprep.subr.mxu0 0.0
  %146 = vmatpush2.msra.mxu0 0.0
  %147 = vmatprep.mubr.f32.mxu0 0.0
  %148 = vmatmul.mubr.f32.gmra.mxu0 %v81
  %v149 = vpop.f32.mrf.mxu0
  %v150 = vadd.f32 %v73, %v149
  %v151 = vpop.f32.mrf.mxu0
  %v152 = vadd.f32 %v77, %v151
  %153 = vdwg.mxu0
  %154 = vst [vmem:[%s5] sm:$0xff] %v150
  %155 = vst [vmem:[%s5 + $0x8] sm:$0xff] %v152
  // Predicated region
  $region22: #{swin_forward.39} parent=0 // pred_check
    _
  $region23: #{swin_forward.39} parent=0 // pred_check_branch
    %157 = sbr.rel (0) target = $region25
  $region24: #{swin_forward.39} parent=0 // pred_region
    _
  $region25: #{swin_forward.39} parent=0 // pred_fallthru
    _
  // Predicated region
  $region26: #{swin_forward.39} parent=0 // pred_check
    _
  $region27: #{swin_forward.39} parent=0 // pred_check_branch
    %159 = sbr.rel (0) target = $region29
  $region28: #{swin_forward.39} parent=0 // pred_region
    _
  $region29: #{swin_forward.39} parent=0 // pred_fallthru
    _

// kernel: swin_forward.37
$region0: #{swin_forward.37}
  #allocation0 [shape = 'u32[]', space=smem, size = 0x4, offset = 0x4, fixed_abs, tag = 'smem constant byte address 0x4 - core index']
  #allocation1 [shape = 'u32[144,128]{1,0:T(1,128)}', space=vmem, size = 0x12000, scoped, tag = 'internal scratch']
  %s0 = inlined_call_operand.vmem [shape: f32[2,4,192], index: 0, kind: input, shape index: {}]
  %s1 = inlined_call_operand.vmem [shape: f32[1,4,4,4], index: 1, kind: input, shape index: {}]
  %s2 = inlined_call_operand.vmem [shape: f32[2,4,64], index: 2, kind: output, shape index: {}]
  %s3 = sld [smem:[#allocation0]]
  $region18: #{swin_forward.37} parent=0
    _
  %s5 = ssub.s32 1, %s3
  %s6 = scalar_select 0, %s5, %s3
  // Predicated region
  $region2: #{swin_forward.37} parent=0 // pred_check
    _
  $region3: #{swin_forward.37} parent=0 // pred_check_branch
    %8 = sbr.rel (0) target = $region5
  $region4: #{swin_forward.37} parent=0 // pred_region
    _
  $region5: #{swin_forward.37} parent=0 // pred_fallthru
    _
  // Predicated region
  $region6: #{swin_forward.37} parent=0 // pred_check
    _
  $region7: #{swin_forward.37} parent=0 // pred_check_branch
    %10 = sbr.rel (0) target = $region9
  $region8: #{swin_forward.37} parent=0 // pred_region
    _
  $region9: #{swin_forward.37} parent=0 // pred_fallthru
    _
  %v11 = vld [vmem:[%s0] sm:$0xff]
  %v12 = vld [vmem:[%s0 + $0x8] sm:$0xff]
  %v13 = vld [vmem:[%s1] sm:$0xf]
  %v14 = vld [vmem:[%s1 + $0x4] sm:$0xf]
  %v15 = vld [vmem:[%s1 + $0x8] sm:$0xf]
  %v16 = vld [vmem:[%s1 + $0xc] sm:$0xf]
  %18 = vrot.lane.b32.xlu0 %v11, 64
  %v19 = vpop.permute.xlu0 %18
  %vm20 = vcmask 130048
  %v21 = vsel %vm20, %v11, 0
  %v23 = vsel %vm20, %v19, 0
  %25 = vmatprep.subr.mxu0 0.0
  %26 = vmatpush1.xpose.msra.mxu0 0.0
  %27 = vmatprep.subr.mxu0 0.0
  %28 = vmatpush1.xpose.msra.mxu0 0.0
  %29 = vmatprep.subr.mxu0 0.0
  %30 = vmatpush1.xpose.msra.mxu0 0.0
  %31 = vmatprep.subr.mxu0 0.0
  %32 = vmatpush1.xpose.msra.mxu0 0.0
  %33 = vmatprep.subr.mxu0 0.0
  %34 = vmatpush1.xpose.msra.mxu0 0.0
  %35 = vmatprep.subr.mxu0 0.0
  %36 = vmatpush1.xpose.msra.mxu0 0.0
  %37 = vmatprep.subr.mxu0 0.0
  %38 = vmatpush1.xpose.msra.mxu0 0.0
  %39 = vmatprep.subr.mxu0 0.0
  %40 = vmatpush1.xpose.msra.mxu0 0.0
  %41 = vmatprep.subr.mxu0 0.0
  %42 = vmatpush1.xpose.msra.mxu0 0.0
  %43 = vmatprep.subr.mxu0 0.0
  %44 = vmatpush1.xpose.msra.mxu0 0.0
  %45 = vmatprep.subr.mxu0 0.0
  %46 = vmatpush1.xpose.msra.mxu0 0.0
  %47 = vmatprep.subr.mxu0 0.0
  %48 = vmatpush1.xpose.msra.mxu0 0.0
  %49 = vmatprep.subr.mxu0 0.0
  %50 = vmatpush1.xpose.msra.mxu0 0.0
  %51 = vmatprep.subr.mxu0 0.0
  %52 = vmatpush1.xpose.msra.mxu0 0.0
  %53 = vmatprep.subr.mxu0 0.0
  %54 = vmatpush1.xpose.msra.mxu0 0.0
  %55 = vmatprep.subr.mxu0 0.0
  %56 = vmatpush1.xpose.msra.mxu0 %v23
  %57 = vmatprep.subr.mxu0 0.0
  %58 = vmatpush2.xpose.msra.mxu0 0.0
  %59 = vmatprep.subr.mxu0 0.0
  %60 = vmatpush2.xpose.msra.mxu0 0.0
  %61 = vmatprep.subr.mxu0 0.0
  %62 = vmatpush2.xpose.msra.mxu0 0.0
  %63 = vmatprep.subr.mxu0 0.0
  %64 = vmatpush2.xpose.msra.mxu0 0.0
  %65 = vmatprep.subr.mxu0 0.0
  %66 = vmatpush2.xpose.msra.mxu0 0.0
  %67 = vmatprep.subr.mxu0 0.0
  %68 = vmatpush2.xpose.msra.mxu0 0.0
  %69 = vmatprep.subr.mxu0 0.0
  %70 = vmatpush2.xpose.msra.mxu0 0.0
  %71 = vmatprep.subr.mxu0 0.0
  %72 = vmatpush2.xpose.msra.mxu0 0.0
  %73 = vmatprep.subr.mxu0 0.0
  %74 = vmatpush2.xpose.msra.mxu0 0.0
  %75 = vmatprep.subr.mxu0 0.0
  %76 = vmatpush2.xpose.msra.mxu0 0.0
  %77 = vmatprep.subr.mxu0 0.0
  %78 = vmatpush2.xpose.msra.mxu0 0.0
  %79 = vmatprep.subr.mxu0 0.0
  %80 = vmatpush2.xpose.msra.mxu0 0.0
  %81 = vmatprep.subr.mxu0 0.0
  %82 = vmatpush2.xpose.msra.mxu0 0.0
  %83 = vmatprep.subr.mxu0 0.0
  %84 = vmatpush2.xpose.msra.mxu0 0.0
  %85 = vmatprep.subr.mxu0 0.0
  %86 = vmatpush2.xpose.msra.mxu0 0.0
  %87 = vmatprep.subr.mxu0 0.0
  %88 = vmatpush2.xpose.msra.mxu0 0.0
  %89 = vmatprep.mubr.f32.mxu0 0.0
  %90 = vmatmul.mubr.f32.gmra.mxu0 %v21
  %v91 = vpop.f32.mrf.mxu0
  %v92 = vadd.f32 0.0, %v91
  %v93 = vpop.f32.mrf.mxu0
  %94 = vdwg.mxu0
  %96 = vrot.lane.b32.xlu0 %v12, 64
  %v97 = vpop.permute.xlu0 %96
  %v98 = vsel %vm20, %v12, 0
  %v100 = vsel %vm20, %v97, 0
  %102 = vmatprep.subr.mxu0 0.0
  %103 = vmatpush1.xpose.msra.mxu0 0.0
  %104 = vmatprep.subr.mxu0 0.0
  %105 = vmatpush1.xpose.msra.mxu0 0.0
  %106 = vmatprep.subr.mxu0 0.0
  %107 = vmatpush1.xpose.msra.mxu0 0.0
  %108 = vmatprep.subr.mxu0 0.0
  %109 = vmatpush1.xpose.msra.mxu0 0.0
  %110 = vmatprep.subr.mxu0 0.0
  %111 = vmatpush1.xpose.msra.mxu0 0.0
  %112 = vmatprep.subr.mxu0 0.0
  %113 = vmatpush1.xpose.msra.mxu0 0.0
  %114 = vmatprep.subr.mxu0 0.0
  %115 = vmatpush1.xpose.msra.mxu0 0.0
  %116 = vmatprep.subr.mxu0 0.0
  %117 = vmatpush1.xpose.msra.mxu0 0.0
  %118 = vmatprep.subr.mxu0 0.0
  %119 = vmatpush1.xpose.msra.mxu0 0.0
  %120 = vmatprep.subr.mxu0 0.0
  %121 = vmatpush1.xpose.msra.mxu0 0.0
  %122 = vmatprep.subr.mxu0 0.0
  %123 = vmatpush1.xpose.msra.mxu0 0.0
  %124 = vmatprep.subr.mxu0 0.0
  %125 = vmatpush1.xpose.msra.mxu0 0.0
  %126 = vmatprep.subr.mxu0 0.0
  %127 = vmatpush1.xpose.msra.mxu0 0.0
  %128 = vmatprep.subr.mxu0 0.0
  %129 = vmatpush1.xpose.msra.mxu0 0.0
  %130 = vmatprep.subr.mxu0 0.0
  %131 = vmatpush1.xpose.msra.mxu0 0.0
  %132 = vmatprep.subr.mxu0 0.0
  %133 = vmatpush1.xpose.msra.mxu0 %v100
  %134 = vmatprep.subr.mxu0 0.0
  %135 = vmatpush2.xpose.msra.mxu0 0.0
  %136 = vmatprep.subr.mxu0 0.0
  %137 = vmatpush2.xpose.msra.mxu0 0.0
  %138 = vmatprep.subr.mxu0 0.0
  %139 = vmatpush2.xpose.msra.mxu0 0.0
  %140 = vmatprep.subr.mxu0 0.0
  %141 = vmatpush2.xpose.msra.mxu0 0.0
  %142 = vmatprep.subr.mxu0 0.0
  %143 = vmatpush2.xpose.msra.mxu0 0.0
  %144 = vmatprep.subr.mxu0 0.0
  %145 = vmatpush2.xpose.msra.mxu0 0.0
  %146 = vmatprep.subr.mxu0 0.0
  %147 = vmatpush2.xpose.msra.mxu0 0.0
  %148 = vmatprep.subr.mxu0 0.0
  %149 = vmatpush2.xpose.msra.mxu0 0.0
  %150 = vmatprep.subr.mxu0 0.0
  %151 = vmatpush2.xpose.msra.mxu0 0.0
  %152 = vmatprep.subr.mxu0 0.0
  %153 = vmatpush2.xpose.msra.mxu0 0.0
  %154 = vmatprep.subr.mxu0 0.0
  %155 = vmatpush2.xpose.msra.mxu0 0.0
  %156 = vmatprep.subr.mxu0 0.0
  %157 = vmatpush2.xpose.msra.mxu0 0.0
  %158 = vmatprep.subr.mxu0 0.0
  %159 = vmatpush2.xpose.msra.mxu0 0.0
  %160 = vmatprep.subr.mxu0 0.0
  %161 = vmatpush2.xpose.msra.mxu0 0.0
  %162 = vmatprep.subr.mxu0 0.0
  %163 = vmatpush2.xpose.msra.mxu0 0.0
  %164 = vmatprep.subr.mxu0 0.0
  %165 = vmatpush2.xpose.msra.mxu0 0.0
  %166 = vmatprep.mubr.f32.mxu0 0.0
  %167 = vmatmul.mubr.f32.gmra.mxu0 %v98
  %v168 = vpop.f32.mrf.mxu0
  %v169 = vadd.f32 0.0, %v168
  %v170 = vpop.f32.mrf.mxu0
  %171 = vdwg.mxu0
  %v172 = vmul.f32 %v92, 0.25
  %v173 = vmul.f32 %v169, 0.25
  %v174 = vadd.f32 %v172, %v13
  %v175 = vadd.f32 %v173, %v13
  %vm176 = vcmask 27648
  %v177 = vsel %vm176, %v174, -inf
  %178 = vmax.xlane.f32.xlu0 %v177
  %v179 = vpop.xlane.xlu0 %178
  %v180 = vsel %vm176, %v175, -inf
  %181 = vmax.xlane.f32.xlu0 %v180
  %v182 = vpop.xlane.xlu0 %181
  %v183 = vsub.f32 %v174, %v179
  %v184 = vsub.f32 %v175, %v182
  %v185 = vmul.f32 %v183, 1.442695
  %v186 = vpow.pop %v185
  %v187 = vmul.f32 %v184, 1.442695
  %v188 = vpow.pop %v187
  %v189 = vsel %vm176, %v186, 0.0
  %190 = vadd.xlane.f32.xlu0 %v189
  %v191 = vpop.xlane.xlu0 %190
  %v192 = vsel %vm176, %v188, 0.0
  %193 = vadd.xlane.f32.xlu0 %v192
  %v194 = vpop.xlane.xlu0 %193
  %v195 = vrcp.pop %v191
  %v196 = vrcp.pop %v194
  %v197 = vmul.f32 %v186, %v195
  %v198 = vmul.f32 %v188, %v196
  %v199 = vrot.slane %v11, 4
  %vm200 = vcmask 31744
  %v202 = vsel %vm200, %v197, 0
  %vm204 = vcmask 1043456
  %v205 = vsel %vm204, %v199, 0
  %207 = vmatprep.subr.mxu0 0.0
  %208 = vmatpush1.msra.mxu0 0.0
  %209 = vmatprep.subr.mxu0 0.0
  %210 = vmatpush1.msra.mxu0 0.0
  %211 = vmatprep.subr.mxu0 0.0
  %212 = vmatpush1.msra.mxu0 0.0
  %213 = vmatprep.subr.mxu0 0.0
  %214 = vmatpush1.msra.mxu0 0.0
  %215 = vmatprep.subr.mxu0 0.0
  %216 = vmatpush1.msra.mxu0 0.0
  %217 = vmatprep.subr.mxu0 0.0
  %218 = vmatpush1.msra.mxu0 0.0
  %219 = vmatprep.subr.mxu0 0.0
  %220 = vmatpush1.msra.mxu0 0.0
  %221 = vmatprep.subr.mxu0 0.0
  %222 = vmatpush1.msra.mxu0 0.0
  %223 = vmatprep.subr.mxu0 0.0
  %224 = vmatpush1.msra.mxu0 0.0
  %225 = vmatprep.subr.mxu0 0.0
  %226 = vmatpush1.msra.mxu0 0.0
  %227 = vmatprep.subr.mxu0 0.0
  %228 = vmatpush1.msra.mxu0 0.0
  %229 = vmatprep.subr.mxu0 0.0
  %230 = vmatpush1.msra.mxu0 0.0
  %231 = vmatprep.subr.mxu0 0.0
  %232 = vmatpush1.msra.mxu0 0.0
  %233 = vmatprep.subr.mxu0 0.0
  %234 = vmatpush1.msra.mxu0 0.0
  %235 = vmatprep.subr.mxu0 0.0
  %236 = vmatpush1.msra.mxu0 0.0
  %237 = vmatprep.subr.mxu0 0.0
  %238 = vmatpush1.msra.mxu0 %v205
  %239 = vmatprep.subr.mxu0 0.0
  %240 = vmatpush2.msra.mxu0 0.0
  %241 = vmatprep.subr.mxu0 0.0
  %242 = vmatpush2.msra.mxu0 0.0
  %243 = vmatprep.subr.mxu0 0.0
  %244 = vmatpush2.msra.mxu0 0.0
  %245 = vmatprep.subr.mxu0 0.0
  %246 = vmatpush2.msra.mxu0 0.0
  %247 = vmatprep.subr.mxu0 0.0
  %248 = vmatpush2.msra.mxu0 0.0
  %249 = vmatprep.subr.mxu0 0.0
  %250 = vmatpush2.msra.mxu0 0.0
  %251 = vmatprep.subr.mxu0 0.0
  %252 = vmatpush2.msra.mxu0 0.0
  %253 = vmatprep.subr.mxu0 0.0
  %254 = vmatpush2.msra.mxu0 0.0
  %255 = vmatprep.subr.mxu0 0.0
  %256 = vmatpush2.msra.mxu0 0.0
  %257 = vmatprep.subr.mxu0 0.0
  %258 = vmatpush2.msra.mxu0 0.0
  %259 = vmatprep.subr.mxu0 0.0
  %260 = vmatpush2.msra.mxu0 0.0
  %261 = vmatprep.subr.mxu0 0.0
  %262 = vmatpush2.msra.mxu0 0.0
  %263 = vmatprep.subr.mxu0 0.0
  %264 = vmatpush2.msra.mxu0 0.0
  %265 = vmatprep.subr.mxu0 0.0
  %266 = vmatpush2.msra.mxu0 0.0
  %267 = vmatprep.subr.mxu0 0.0
  %268 = vmatpush2.msra.mxu0 0.0
  %269 = vmatprep.subr.mxu0 0.0
  %270 = vmatpush2.msra.mxu0 0.0
  %271 = vmatprep.mubr.f32.mxu0 0.0
  %272 = vmatmul.mubr.f32.gmra.mxu0 %v202
  %v273 = vpop.f32.mrf.mxu0
  %v274 = vadd.f32 0.0, %v273
  %v275 = vpop.f32.mrf.mxu0
  %276 = vdwg.mxu0
  %v277 = vrot.slane %v12, 4
  %v279 = vsel %vm200, %v198, 0
  %v281 = vsel %vm204, %v277, 0
  %283 = vmatprep.subr.mxu0 0.0
  %284 = vmatpush1.msra.mxu0 0.0
  %285 = vmatprep.subr.mxu0 0.0
  %286 = vmatpush1.msra.mxu0 0.0
  %287 = vmatprep.subr.mxu0 0.0
  %288 = vmatpush1.msra.mxu0 0.0
  %289 = vmatprep.subr.mxu0 0.0
  %290 = vmatpush1.msra.mxu0 0.0
  %291 = vmatprep.subr.mxu0 0.0
  %292 = vmatpush1.msra.mxu0 0.0
  %293 = vmatprep.subr.mxu0 0.0
  %294 = vmatpush1.msra.mxu0 0.0
  %295 = vmatprep.subr.mxu0 0.0
  %296 = vmatpush1.msra.mxu0 0.0
  %297 = vmatprep.subr.mxu0 0.0
  %298 = vmatpush1.msra.mxu0 0.0
  %299 = vmatprep.subr.mxu0 0.0
  %300 = vmatpush1.msra.mxu0 0.0
  %301 = vmatprep.subr.mxu0 0.0
  %302 = vmatpush1.msra.mxu0 0.0
  %303 = vmatprep.subr.mxu0 0.0
  %304 = vmatpush1.msra.mxu0 0.0
  %305 = vmatprep.subr.mxu0 0.0
  %306 = vmatpush1.msra.mxu0 0.0
  %307 = vmatprep.subr.mxu0 0.0
  %308 = vmatpush1.msra.mxu0 0.0
  %309 = vmatprep.subr.mxu0 0.0
  %310 = vmatpush1.msra.mxu0 0.0
  %311 = vmatprep.subr.mxu0 0.0
  %312 = vmatpush1.msra.mxu0 0.0
  %313 = vmatprep.subr.mxu0 0.0
  %314 = vmatpush1.msra.mxu0 %v281
  %315 = vmatprep.subr.mxu0 0.0
  %316 = vmatpush2.msra.mxu0 0.0
  %317 = vmatprep.subr.mxu0 0.0
  %318 = vmatpush2.msra.mxu0 0.0
  %319 = vmatprep.subr.mxu0 0.0
  %320 = vmatpush2.msra.mxu0 0.0
  %321 = vmatprep.subr.mxu0 0.0
  %322 = vmatpush2.msra.mxu0 0.0
  %323 = vmatprep.subr.mxu0 0.0
  %324 = vmatpush2.msra.mxu0 0.0
  %325 = vmatprep.subr.mxu0 0.0
  %326 = vmatpush2.msra.mxu0 0.0
  %327 = vmatprep.subr.mxu0 0.0
  %328 = vmatpush2.msra.mxu0 0.0
  %329 = vmatprep.subr.mxu0 0.0
  %330 = vmatpush2.msra.mxu0 0.0
  %331 = vmatprep.subr.mxu0 0.0
  %332 = vmatpush2.msra.mxu0 0.0
  %333 = vmatprep.subr.mxu0 0.0
  %334 = vmatpush2.msra.mxu0 0.0
  %335 = vmatprep.subr.mxu0 0.0
  %336 = vmatpush2.msra.mxu0 0.0
  %337 = vmatprep.subr.mxu0 0.0
  %338 = vmatpush2.msra.mxu0 0.0
  %339 = vmatprep.subr.mxu0 0.0
  %340 = vmatpush2.msra.mxu0 0.0
  %341 = vmatprep.subr.mxu0 0.0
  %342 = vmatpush2.msra.mxu0 0.0
  %343 = vmatprep.subr.mxu0 0.0
  %344 = vmatpush2.msra.mxu0 0.0
  %345 = vmatprep.subr.mxu0 0.0
  %346 = vmatpush2.msra.mxu0 0.0
  %347 = vmatprep.mubr.f32.mxu0 0.0
  %348 = vmatmul.mubr.f32.gmra.mxu0 %v279
  %v349 = vpop.f32.mrf.mxu0
  %v350 = vadd.f32 0.0, %v349
  %v351 = vpop.f32.mrf.mxu0
  %352 = vdwg.mxu0
  %353 = vrot.lane.b32.xlu0 %v11, 112
  %v354 = vpop.permute.xlu0 %353
  %355 = vrot.lane.b32.xlu0 %v11, 48
  %v356 = vpop.permute.xlu0 %355
  %v357 = vsel %vm20, %v354, 0
  %v359 = vsel %vm20, %v356, 0
  %361 = vmatprep.subr.mxu0 0.0
  %362 = vmatpush1.xpose.msra.mxu0 0.0
  %363 = vmatprep.subr.mxu0 0.0
  %364 = vmatpush1.xpose.msra.mxu0 0.0
  %365 = vmatprep.subr.mxu0 0.0
  %366 = vmatpush1.xpose.msra.mxu0 0.0
  %367 = vmatprep.subr.mxu0 0.0
  %368 = vmatpush1.xpose.msra.mxu0 0.0
  %369 = vmatprep.subr.mxu0 0.0
  %370 = vmatpush1.xpose.msra.mxu0 0.0
  %371 = vmatprep.subr.mxu0 0.0
  %372 = vmatpush1.xpose.msra.mxu0 0.0
  %373 = vmatprep.subr.mxu0 0.0
  %374 = vmatpush1.xpose.msra.mxu0 0.0
  %375 = vmatprep.subr.mxu0 0.0
  %376 = vmatpush1.xpose.msra.mxu0 0.0
  %377 = vmatprep.subr.mxu0 0.0
  %378 = vmatpush1.xpose.msra.mxu0 0.0
  %379 = vmatprep.subr.mxu0 0.0
  %380 = vmatpush1.xpose.msra.mxu0 0.0
  %381 = vmatprep.subr.mxu0 0.0
  %382 = vmatpush1.xpose.msra.mxu0 0.0
  %383 = vmatprep.subr.mxu0 0.0
  %384 = vmatpush1.xpose.msra.mxu0 0.0
  %385 = vmatprep.subr.mxu0 0.0
  %386 = vmatpush1.xpose.msra.mxu0 0.0
  %387 = vmatprep.subr.mxu0 0.0
  %388 = vmatpush1.xpose.msra.mxu0 0.0
  %389 = vmatprep.subr.mxu0 0.0
  %390 = vmatpush1.xpose.msra.mxu0 0.0
  %391 = vmatprep.subr.mxu0 0.0
  %392 = vmatpush1.xpose.msra.mxu0 %v359
  %393 = vmatprep.subr.mxu0 0.0
  %394 = vmatpush2.xpose.msra.mxu0 0.0
  %395 = vmatprep.subr.mxu0 0.0
  %396 = vmatpush2.xpose.msra.mxu0 0.0
  %397 = vmatprep.subr.mxu0 0.0
  %398 = vmatpush2.xpose.msra.mxu0 0.0
  %399 = vmatprep.subr.mxu0 0.0
  %400 = vmatpush2.xpose.msra.mxu0 0.0
  %401 = vmatprep.subr.mxu0 0.0
  %402 = vmatpush2.xpose.msra.mxu0 0.0
  %403 = vmatprep.subr.mxu0 0.0
  %404 = vmatpush2.xpose.msra.mxu0 0.0
  %405 = vmatprep.subr.mxu0 0.0
  %406 = vmatpush2.xpose.msra.mxu0 0.0
  %407 = vmatprep.subr.mxu0 0.0
  %408 = vmatpush2.xpose.msra.mxu0 0.0
  %409 = vmatprep.subr.mxu0 0.0
  %410 = vmatpush2.xpose.msra.mxu0 0.0
  %411 = vmatprep.subr.mxu0 0.0
  %412 = vmatpush2.xpose.msra.mxu0 0.0
  %413 = vmatprep.subr.mxu0 0.0
  %414 = vmatpush2.xpose.msra.mxu0 0.0
  %415 = vmatprep.subr.mxu0 0.0
  %416 = vmatpush2.xpose.msra.mxu0 0.0
  %417 = vmatprep.subr.mxu0 0.0
  %418 = vmatpush2.xpose.msra.mxu0 0.0
  %419 = vmatprep.subr.mxu0 0.0
  %420 = vmatpush2.xpose.msra.mxu0 0.0
  %421 = vmatprep.subr.mxu0 0.0
  %422 = vmatpush2.xpose.msra.mxu0 0.0
  %423 = vmatprep.subr.mxu0 0.0
  %424 = vmatpush2.xpose.msra.mxu0 0.0
  %425 = vmatprep.mubr.f32.mxu0 0.0
  %426 = vmatmul.mubr.f32.gmra.mxu0 %v357
  %v427 = vpop.f32.mrf.mxu0
  %v428 = vadd.f32 0.0, %v427
  %v429 = vpop.f32.mrf.mxu0
  %430 = vdwg.mxu0
  %431 = vrot.lane.b32.xlu0 %v12, 112
  %v432 = vpop.permute.xlu0 %431
  %433 = vrot.lane.b32.xlu0 %v12, 48
  %v434 = vpop.permute.xlu0 %433
  %v435 = vsel %vm20, %v432, 0
  %v437 = vsel %vm20, %v434, 0
  %439 = vmatprep.subr.mxu0 0.0
  %440 = vmatpush1.xpose.msra.mxu0 0.0
  %441 = vmatprep.subr.mxu0 0.0
  %442 = vmatpush1.xpose.msra.mxu0 0.0
  %443 = vmatprep.subr.mxu0 0.0
  %444 = vmatpush1.xpose.msra.mxu0 0.0
  %445 = vmatprep.subr.mxu0 0.0
  %446 = vmatpush1.xpose.msra.mxu0 0.0
  %447 = vmatprep.subr.mxu0 0.0
  %448 = vmatpush1.xpose.msra.mxu0 0.0
  %449 = vmatprep.subr.mxu0 0.0
  %450 = vmatpush1.xpose.msra.mxu0 0.0
  %451 = vmatprep.subr.mxu0 0.0
  %452 = vmatpush1.xpose.msra.mxu0 0.0
  %453 = vmatprep.subr.mxu0 0.0
  %454 = vmatpush1.xpose.msra.mxu0 0.0
  %455 = vmatprep.subr.mxu0 0.0
  %456 = vmatpush1.xpose.msra.mxu0 0.0
  %457 = vmatprep.subr.mxu0 0.0
  %458 = vmatpush1.xpose.msra.mxu0 0.0
  %459 = vmatprep.subr.mxu0 0.0
  %460 = vmatpush1.xpose.msra.mxu0 0.0
  %461 = vmatprep.subr.mxu0 0.0
  %462 = vmatpush1.xpose.msra.mxu0 0.0
  %463 = vmatprep.subr.mxu0 0.0
  %464 = vmatpush1.xpose.msra.mxu0 0.0
  %465 = vmatprep.subr.mxu0 0.0
  %466 = vmatpush1.xpose.msra.mxu0 0.0
  %467 = vmatprep.subr.mxu0 0.0
  %468 = vmatpush1.xpose.msra.mxu0 0.0
  %469 = vmatprep.subr.mxu0 0.0
  %470 = vmatpush1.xpose.msra.mxu0 %v437
  %471 = vmatprep.subr.mxu0 0.0
  %472 = vmatpush2.xpose.msra.mxu0 0.0
  %473 = vmatprep.subr.mxu0 0.0
  %474 = vmatpush2.xpose.msra.mxu0 0.0
  %475 = vmatprep.subr.mxu0 0.0
  %476 = vmatpush2.xpose.msra.mxu0 0.0
  %477 = vmatprep.subr.mxu0 0.0
  %478 = vmatpush2.xpose.msra.mxu0 0.0
  %479 = vmatprep.subr.mxu0 0.0
  %480 = vmatpush2.xpose.msra.mxu0 0.0
  %481 = vmatprep.subr.mxu0 0.0
  %482 = vmatpush2.xpose.msra.mxu0 0.0
  %483 = vmatprep.subr.mxu0 0.0
  %484 = vmatpush2.xpose.msra.mxu0 0.0
  %485 = vmatprep.subr.mxu0 0.0
  %486 = vmatpush2.xpose.msra.mxu0 0.0
  %487 = vmatprep.subr.mxu0 0.0
  %488 = vmatpush2.xpose.msra.mxu0 0.0
  %489 = vmatprep.subr.mxu0 0.0
  %490 = vmatpush2.xpose.msra.mxu0 0.0
  %491 = vmatprep.subr.mxu0 0.0
  %492 = vmatpush2.xpose.msra.mxu0 0.0
  %493 = vmatprep.subr.mxu0 0.0
  %494 = vmatpush2.xpose.msra.mxu0 0.0
  %495 = vmatprep.subr.mxu0 0.0
  %496 = vmatpush2.xpose.msra.mxu0 0.0
  %497 = vmatprep.subr.mxu0 0.0
  %498 = vmatpush2.xpose.msra.mxu0 0.0
  %499 = vmatprep.subr.mxu0 0.0
  %500 = vmatpush2.xpose.msra.mxu0 0.0
  %501 = vmatprep.subr.mxu0 0.0
  %502 = vmatpush2.xpose.msra.mxu0 0.0
  %503 = vmatprep.mubr.f32.mxu0 0.0
  %504 = vmatmul.mubr.f32.gmra.mxu0 %v435
  %v505 = vpop.f32.mrf.mxu0
  %v506 = vadd.f32 0.0, %v505
  %v507 = vpop.f32.mrf.mxu0
  %508 = vdwg.mxu0
  %v509 = vmul.f32 %v428, 0.25
  %v510 = vmul.f32 %v506, 0.25
  %v511 = vadd.f32 %v509, %v14
  %v512 = vadd.f32 %v510, %v14
  %v513 = vsel %vm176, %v511, -inf
  %514 = vmax.xlane.f32.xlu0 %v513
  %v515 = vpop.xlane.xlu0 %514
  %v516 = vsel %vm176, %v512, -inf
  %517 = vmax.xlane.f32.xlu0 %v516
  %v518 = vpop.xlane.xlu0 %517
  %v519 = vsub.f32 %v511, %v515
  %v520 = vsub.f32 %v512, %v518
  %v521 = vmul.f32 %v519, 1.442695
  %v522 = vpow.pop %v521
  %v523 = vmul.f32 %v520, 1.442695
  %v524 = vpow.pop %v523
  %v525 = vsel %vm176, %v522, 0.0
  %526 = vadd.xlane.f32.xlu0 %v525
  %v527 = vpop.xlane.xlu0 %526
  %v528 = vsel %vm176, %v524, 0.0
  %529 = vadd.xlane.f32.xlu0 %v528
  %v530 = vpop.xlane.xlu0 %529
  %v531 = vrcp.pop %v527
  %v532 = vrcp.pop %v530
  %v533 = vmul.f32 %v522, %v531
  %v534 = vmul.f32 %v524, %v532
  %v535 = vrot.slane %v354, 4
  %v537 = vsel %vm200, %v533, 0
  %v539 = vsel %vm204, %v535, 0
  %541 = vmatprep.subr.mxu0 0.0
  %542 = vmatpush1.msra.mxu0 0.0
  %543 = vmatprep.subr.mxu0 0.0
  %544 = vmatpush1.msra.mxu0 0.0
  %545 = vmatprep.subr.mxu0 0.0
  %546 = vmatpush1.msra.mxu0 0.0
  %547 = vmatprep.subr.mxu0 0.0
  %548 = vmatpush1.msra.mxu0 0.0
  %549 = vmatprep.subr.mxu0 0.0
  %550 = vmatpush1.msra.mxu0 0.0
  %551 = vmatprep.subr.mxu0 0.0
  %552 = vmatpush1.msra.mxu0 0.0
  %553 = vmatprep.subr.mxu0 0.0
  %554 = vmatpush1.msra.mxu0 0.0
  %555 = vmatprep.subr.mxu0 0.0
  %556 = vmatpush1.msra.mxu0 0.0
  %557 = vmatprep.subr.mxu0 0.0
  %558 = vmatpush1.msra.mxu0 0.0
  %559 = vmatprep.subr.mxu0 0.0
  %560 = vmatpush1.msra.mxu0 0.0
  %561 = vmatprep.subr.mxu0 0.0
  %562 = vmatpush1.msra.mxu0 0.0
  %563 = vmatprep.subr.mxu0 0.0
  %564 = vmatpush1.msra.mxu0 0.0
  %565 = vmatprep.subr.mxu0 0.0
  %566 = vmatpush1.msra.mxu0 0.0
  %567 = vmatprep.subr.mxu0 0.0
  %568 = vmatpush1.msra.mxu0 0.0
  %569 = vmatprep.subr.mxu0 0.0
  %570 = vmatpush1.msra.mxu0 0.0
  %571 = vmatprep.subr.mxu0 0.0
  %572 = vmatpush1.msra.mxu0 %v539
  %573 = vmatprep.subr.mxu0 0.0
  %574 = vmatpush2.msra.mxu0 0.0
  %575 = vmatprep.subr.mxu0 0.0
  %576 = vmatpush2.msra.mxu0 0.0
  %577 = vmatprep.subr.mxu0 0.0
  %578 = vmatpush2.msra.mxu0 0.0
  %579 = vmatprep.subr.mxu0 0.0
  %580 = vmatpush2.msra.mxu0 0.0
  %581 = vmatprep.subr.mxu0 0.0
  %582 = vmatpush2.msra.mxu0 0.0
  %583 = vmatprep.subr.mxu0 0.0
  %584 = vmatpush2.msra.mxu0 0.0
  %585 = vmatprep.subr.mxu0 0.0
  %586 = vmatpush2.msra.mxu0 0.0
  %587 = vmatprep.subr.mxu0 0.0
  %588 = vmatpush2.msra.mxu0 0.0
  %589 = vmatprep.subr.mxu0 0.0
  %590 = vmatpush2.msra.mxu0 0.0
  %591 = vmatprep.subr.mxu0 0.0
  %592 = vmatpush2.msra.mxu0 0.0
  %593 = vmatprep.subr.mxu0 0.0
  %594 = vmatpush2.msra.mxu0 0.0
  %595 = vmatprep.subr.mxu0 0.0
  %596 = vmatpush2.msra.mxu0 0.0
  %597 = vmatprep.subr.mxu0 0.0
  %598 = vmatpush2.msra.mxu0 0.0
  %599 = vmatprep.subr.mxu0 0.0
  %600 = vmatpush2.msra.mxu0 0.0
  %601 = vmatprep.subr.mxu0 0.0
  %602 = vmatpush2.msra.mxu0 0.0
  %603 = vmatprep.subr.mxu0 0.0
  %604 = vmatpush2.msra.mxu0 0.0
  %605 = vmatprep.mubr.f32.mxu0 0.0
  %606 = vmatmul.mubr.f32.gmra.mxu0 %v537
  %v607 = vpop.f32.mrf.mxu0
  %v608 = vadd.f32 0.0, %v607
  %v609 = vpop.f32.mrf.mxu0
  %610 = vdwg.mxu0
  %v611 = vrot.slane %v432, 4
  %v613 = vsel %vm200, %v534, 0
  %v615 = vsel %vm204, %v611, 0
  %617 = vmatprep.subr.mxu0 0.0
  %618 = vmatpush1.msra.mxu0 0.0
  %619 = vmatprep.subr.mxu0 0.0
  %620 = vmatpush1.msra.mxu0 0.0
  %621 = vmatprep.subr.mxu0 0.0
  %622 = vmatpush1.msra.mxu0 0.0
  %623 = vmatprep.subr.mxu0 0.0
  %624 = vmatpush1.msra.mxu0 0.0
  %625 = vmatprep.subr.mxu0 0.0
  %626 = vmatpush1.msra.mxu0 0.0
  %627 = vmatprep.subr.mxu0 0.0
  %628 = vmatpush1.msra.mxu0 0.0
  %629 = vmatprep.subr.mxu0 0.0
  %630 = vmatpush1.msra.mxu0 0.0
  %631 = vmatprep.subr.mxu0 0.0
  %632 = vmatpush1.msra.mxu0 0.0
  %633 = vmatprep.subr.mxu0 0.0
  %634 = vmatpush1.msra.mxu0 0.0
  %635 = vmatprep.subr.mxu0 0.0
  %636 = vmatpush1.msra.mxu0 0.0
  %637 = vmatprep.subr.mxu0 0.0
  %638 = vmatpush1.msra.mxu0 0.0
  %639 = vmatprep.subr.mxu0 0.0
  %640 = vmatpush1.msra.mxu0 0.0
  %641 = vmatprep.subr.mxu0 0.0
  %642 = vmatpush1.msra.mxu0 0.0
  %643 = vmatprep.subr.mxu0 0.0
  %644 = vmatpush1.msra.mxu0 0.0
  %645 = vmatprep.subr.mxu0 0.0
  %646 = vmatpush1.msra.mxu0 0.0
  %647 = vmatprep.subr.mxu0 0.0
  %648 = vmatpush1.msra.mxu0 %v615
  %649 = vmatprep.subr.mxu0 0.0
  %650 = vmatpush2.msra.mxu0 0.0
  %651 = vmatprep.subr.mxu0 0.0
  %652 = vmatpush2.msra.mxu0 0.0
  %653 = vmatprep.subr.mxu0 0.0
  %654 = vmatpush2.msra.mxu0 0.0
  %655 = vmatprep.subr.mxu0 0.0
  %656 = vmatpush2.msra.mxu0 0.0
  %657 = vmatprep.subr.mxu0 0.0
  %658 = vmatpush2.msra.mxu0 0.0
  %659 = vmatprep.subr.mxu0 0.0
  %660 = vmatpush2.msra.mxu0 0.0
  %661 = vmatprep.subr.mxu0 0.0
  %662 = vmatpush2.msra.mxu0 0.0
  %663 = vmatprep.subr.mxu0 0.0
  %664 = vmatpush2.msra.mxu0 0.0
  %665 = vmatprep.subr.mxu0 0.0
  %666 = vmatpush2.msra.mxu0 0.0
  %667 = vmatprep.subr.mxu0 0.0
  %668 = vmatpush2.msra.mxu0 0.0
  %669 = vmatprep.subr.mxu0 0.0
  %670 = vmatpush2.msra.mxu0 0.0
  %671 = vmatprep.subr.mxu0 0.0
  %672 = vmatpush2.msra.mxu0 0.0
  %673 = vmatprep.subr.mxu0 0.0
  %674 = vmatpush2.msra.mxu0 0.0
  %675 = vmatprep.subr.mxu0 0.0
  %676 = vmatpush2.msra.mxu0 0.0
  %677 = vmatprep.subr.mxu0 0.0
  %678 = vmatpush2.msra.mxu0 0.0
  %679 = vmatprep.subr.mxu0 0.0
  %680 = vmatpush2.msra.mxu0 0.0
  %681 = vmatprep.mubr.f32.mxu0 0.0
  %682 = vmatmul.mubr.f32.gmra.mxu0 %v613
  %v683 = vpop.f32.mrf.mxu0
  %v684 = vadd.f32 0.0, %v683
  %v685 = vpop.f32.mrf.mxu0
  %686 = vdwg.mxu0
  %687 = vrot.lane.b32.xlu0 %v11, 96
  %v688 = vpop.permute.xlu0 %687
  %689 = vrot.lane.b32.xlu0 %v11, 32
  %v690 = vpop.permute.xlu0 %689
  %v691 = vsel %vm20, %v688, 0
  %v693 = vsel %vm20, %v690, 0
  %695 = vmatprep.subr.mxu0 0.0
  %696 = vmatpush1.xpose.msra.mxu0 0.0
  %697 = vmatprep.subr.mxu0 0.0
  %698 = vmatpush1.xpose.msra.mxu0 0.0
  %699 = vmatprep.subr.mxu0 0.0
  %700 = vmatpush1.xpose.msra.mxu0 0.0
  %701 = vmatprep.subr.mxu0 0.0
  %702 = vmatpush1.xpose.msra.mxu0 0.0
  %703 = vmatprep.subr.mxu0 0.0
  %704 = vmatpush1.xpose.msra.mxu0 0.0
  %705 = vmatprep.subr.mxu0 0.0
  %706 = vmatpush1.xpose.msra.mxu0 0.0
  %707 = vmatprep.subr.mxu0 0.0
  %708 = vmatpush1.xpose.msra.mxu0 0.0
  %709 = vmatprep.subr.mxu0 0.0
  %710 = vmatpush1.xpose.msra.mxu0 0.0
  %711 = vmatprep.subr.mxu0 0.0
  %712 = vmatpush1.xpose.msra.mxu0 0.0
  %713 = vmatprep.subr.mxu0 0.0
  %714 = vmatpush1.xpose.msra.mxu0 0.0
  %715 = vmatprep.subr.mxu0 0.0
  %716 = vmatpush1.xpose.msra.mxu0 0.0
  %717 = vmatprep.subr.mxu0 0.0
  %718 = vmatpush1.xpose.msra.mxu0 0.0
  %719 = vmatprep.subr.mxu0 0.0
  %720 = vmatpush1.xpose.msra.mxu0 0.0
  %721 = vmatprep.subr.mxu0 0.0
  %722 = vmatpush1.xpose.msra.mxu0 0.0
  %723 = vmatprep.subr.mxu0 0.0
  %724 = vmatpush1.xpose.msra.mxu0 0.0
  %725 = vmatprep.subr.mxu0 0.0
  %726 = vmatpush1.xpose.msra.mxu0 %v693
  %727 = vmatprep.subr.mxu0 0.0
  %728 = vmatpush2.xpose.msra.mxu0 0.0
  %729 = vmatprep.subr.mxu0 0.0
  %730 = vmatpush2.xpose.msra.mxu0 0.0
  %731 = vmatprep.subr.mxu0 0.0
  %732 = vmatpush2.xpose.msra.mxu0 0.0
  %733 = vmatprep.subr.mxu0 0.0
  %734 = vmatpush2.xpose.msra.mxu0 0.0
  %735 = vmatprep.subr.mxu0 0.0
  %736 = vmatpush2.xpose.msra.mxu0 0.0
  %737 = vmatprep.subr.mxu0 0.0
  %738 = vmatpush2.xpose.msra.mxu0 0.0
  %739 = vmatprep.subr.mxu0 0.0
  %740 = vmatpush2.xpose.msra.mxu0 0.0
  %741 = vmatprep.subr.mxu0 0.0
  %742 = vmatpush2.xpose.msra.mxu0 0.0
  %743 = vmatprep.subr.mxu0 0.0
  %744 = vmatpush2.xpose.msra.mxu0 0.0
  %745 = vmatprep.subr.mxu0 0.0
  %746 = vmatpush2.xpose.msra.mxu0 0.0
  %747 = vmatprep.subr.mxu0 0.0
  %748 = vmatpush2.xpose.msra.mxu0 0.0
  %749 = vmatprep.subr.mxu0 0.0
  %750 = vmatpush2.xpose.msra.mxu0 0.0
  %751 = vmatprep.subr.mxu0 0.0
  %752 = vmatpush2.xpose.msra.mxu0 0.0
  %753 = vmatprep.subr.mxu0 0.0
  %754 = vmatpush2.xpose.msra.mxu0 0.0
  %755 = vmatprep.subr.mxu0 0.0
  %756 = vmatpush2.xpose.msra.mxu0 0.0
  %757 = vmatprep.subr.mxu0 0.0
  %758 = vmatpush2.xpose.msra.mxu0 0.0
  %759 = vmatprep.mubr.f32.mxu0 0.0
  %760 = vmatmul.mubr.f32.gmra.mxu0 %v691
  %v761 = vpop.f32.mrf.mxu0
  %v762 = vadd.f32 0.0, %v761
  %v763 = vpop.f32.mrf.mxu0
  %764 = vdwg.mxu0
  %765 = vrot.lane.b32.xlu0 %v12, 96
  %v766 = vpop.permute.xlu0 %765
  %767 = vrot.lane.b32.xlu0 %v12, 32
  %v768 = vpop.permute.xlu0 %767
  %v769 = vsel %vm20, %v766, 0
  %v771 = vsel %vm20, %v768, 0
  %773 = vmatprep.subr.mxu0 0.0
  %774 = vmatpush1.xpose.msra.mxu0 0.0
  %775 = vmatprep.subr.mxu0 0.0
  %776 = vmatpush1.xpose.msra.mxu0 0.0
  %777 = vmatprep.subr.mxu0 0.0
  %778 = vmatpush1.xpose.msra.mxu0 0.0
  %779 = vmatprep.subr.mxu0 0.0
  %780 = vmatpush1.xpose.msra.mxu0 0.0
  %781 = vmatprep.subr.mxu0 0.0
  %782 = vmatpush1.xpose.msra.mxu0 0.0
  %783 = vmatprep.subr.mxu0 0.0
  %784 = vmatpush1.xpose.msra.mxu0 0.0
  %785 = vmatprep.subr.mxu0 0.0
  %786 = vmatpush1.xpose.msra.mxu0 0.0
  %787 = vmatprep.subr.mxu0 0.0
  %788 = vmatpush1.xpose.msra.mxu0 0.0
  %789 = vmatprep.subr.mxu0 0.0
  %790 = vmatpush1.xpose.msra.mxu0 0.0
  %791 = vmatprep.subr.mxu0 0.0
  %792 = vmatpush1.xpose.msra.mxu0 0.0
  %793 = vmatprep.subr.mxu0 0.0
  %794 = vmatpush1.xpose.msra.mxu0 0.0
  %795 = vmatprep.subr.mxu0 0.0
  %796 = vmatpush1.xpose.msra.mxu0 0.0
  %797 = vmatprep.subr.mxu0 0.0
  %798 = vmatpush1.xpose.msra.mxu0 0.0
  %799 = vmatprep.subr.mxu0 0.0
  %800 = vmatpush1.xpose.msra.mxu0 0.0
  %801 = vmatprep.subr.mxu0 0.0
  %802 = vmatpush1.xpose.msra.mxu0 0.0
  %803 = vmatprep.subr.mxu0 0.0
  %804 = vmatpush1.xpose.msra.mxu0 %v771
  %805 = vmatprep.subr.mxu0 0.0
  %806 = vmatpush2.xpose.msra.mxu0 0.0
  %807 = vmatprep.subr.mxu0 0.0
  %808 = vmatpush2.xpose.msra.mxu0 0.0
  %809 = vmatprep.subr.mxu0 0.0
  %810 = vmatpush2.xpose.msra.mxu0 0.0
  %811 = vmatprep.subr.mxu0 0.0
  %812 = vmatpush2.xpose.msra.mxu0 0.0
  %813 = vmatprep.subr.mxu0 0.0
  %814 = vmatpush2.xpose.msra.mxu0 0.0
  %815 = vmatprep.subr.mxu0 0.0
  %816 = vmatpush2.xpose.msra.mxu0 0.0
  %817 = vmatprep.subr.mxu0 0.0
  %818 = vmatpush2.xpose.msra.mxu0 0.0
  %819 = vmatprep.subr.mxu0 0.0
  %820 = vmatpush2.xpose.msra.mxu0 0.0
  %821 = vmatprep.subr.mxu0 0.0
  %822 = vmatpush2.xpose.msra.mxu0 0.0
  %823 = vmatprep.subr.mxu0 0.0
  %824 = vmatpush2.xpose.msra.mxu0 0.0
  %825 = vmatprep.subr.mxu0 0.0
  %826 = vmatpush2.xpose.msra.mxu0 0.0
  %827 = vmatprep.subr.mxu0 0.0
  %828 = vmatpush2.xpose.msra.mxu0 0.0
  %829 = vmatprep.subr.mxu0 0.0
  %830 = vmatpush2.xpose.msra.mxu0 0.0
  %831 = vmatprep.subr.mxu0 0.0
  %832 = vmatpush2.xpose.msra.mxu0 0.0
  %833 = vmatprep.subr.mxu0 0.0
  %834 = vmatpush2.xpose.msra.mxu0 0.0
  %835 = vmatprep.subr.mxu0 0.0
  %836 = vmatpush2.xpose.msra.mxu0 0.0
  %837 = vmatprep.mubr.f32.mxu0 0.0
  %838 = vmatmul.mubr.f32.gmra.mxu0 %v769
  %v839 = vpop.f32.mrf.mxu0
  %v840 = vadd.f32 0.0, %v839
  %v841 = vpop.f32.mrf.mxu0
  %842 = vdwg.mxu0
  %v843 = vmul.f32 %v762, 0.25
  %v844 = vmul.f32 %v840, 0.25
  %v845 = vadd.f32 %v843, %v15
  %v846 = vadd.f32 %v844, %v15
  %v847 = vsel %vm176, %v845, -inf
  %848 = vmax.xlane.f32.xlu0 %v847
  %v849 = vpop.xlane.xlu0 %848
  %v850 = vsel %vm176, %v846, -inf
  %851 = vmax.xlane.f32.xlu0 %v850
  %v852 = vpop.xlane.xlu0 %851
  %v853 = vsub.f32 %v845, %v849
  %v854 = vsub.f32 %v846, %v852
  %v855 = vmul.f32 %v853, 1.442695
  %v856 = vpow.pop %v855
  %v857 = vmul.f32 %v854, 1.442695
  %v858 = vpow.pop %v857
  %v859 = vsel %vm176, %v856, 0.0
  %860 = vadd.xlane.f32.xlu0 %v859
  %v861 = vpop.xlane.xlu0 %860
  %v862 = vsel %vm176, %v858, 0.0
  %863 = vadd.xlane.f32.xlu0 %v862
  %v864 = vpop.xlane.xlu0 %863
  %v865 = vrcp.pop %v861
  %v866 = vrcp.pop %v864
  %v867 = vmul.f32 %v856, %v865
  %v868 = vmul.f32 %v858, %v866
  %v869 = vrot.slane %v688, 4
  %v871 = vsel %vm200, %v867, 0
  %v873 = vsel %vm204, %v869, 0
  %875 = vmatprep.subr.mxu0 0.0
  %876 = vmatpush1.msra.mxu0 0.0
  %877 = vmatprep.subr.mxu0 0.0
  %878 = vmatpush1.msra.mxu0 0.0
  %879 = vmatprep.subr.mxu0 0.0
  %880 = vmatpush1.msra.mxu0 0.0
  %881 = vmatprep.subr.mxu0 0.0
  %882 = vmatpush1.msra.mxu0 0.0
  %883 = vmatprep.subr.mxu0 0.0
  %884 = vmatpush1.msra.mxu0 0.0
  %885 = vmatprep.subr.mxu0 0.0
  %886 = vmatpush1.msra.mxu0 0.0
  %887 = vmatprep.subr.mxu0 0.0
  %888 = vmatpush1.msra.mxu0 0.0
  %889 = vmatprep.subr.mxu0 0.0
  %890 = vmatpush1.msra.mxu0 0.0
  %891 = vmatprep.subr.mxu0 0.0
  %892 = vmatpush1.msra.mxu0 0.0
  %893 = vmatprep.subr.mxu0 0.0
  %894 = vmatpush1.msra.mxu0 0.0
  %895 = vmatprep.subr.mxu0 0.0
  %896 = vmatpush1.msra.mxu0 0.0
  %897 = vmatprep.subr.mxu0 0.0
  %898 = vmatpush1.msra.mxu0 0.0
  %899 = vmatprep.subr.mxu0 0.0
  %900 = vmatpush1.msra.mxu0 0.0
  %901 = vmatprep.subr.mxu0 0.0
  %902 = vmatpush1.msra.mxu0 0.0
  %903 = vmatprep.subr.mxu0 0.0
  %904 = vmatpush1.msra.mxu0 0.0
  %905 = vmatprep.subr.mxu0 0.0
  %906 = vmatpush1.msra.mxu0 %v873
  %907 = vmatprep.subr.mxu0 0.0
  %908 = vmatpush2.msra.mxu0 0.0
  %909 = vmatprep.subr.mxu0 0.0
  %910 = vmatpush2.msra.mxu0 0.0
  %911 = vmatprep.subr.mxu0 0.0
  %912 = vmatpush2.msra.mxu0 0.0
  %913 = vmatprep.subr.mxu0 0.0
  %914 = vmatpush2.msra.mxu0 0.0
  %915 = vmatprep.subr.mxu0 0.0
  %916 = vmatpush2.msra.mxu0 0.0
  %917 = vmatprep.subr.mxu0 0.0
  %918 = vmatpush2.msra.mxu0 0.0
  %919 = vmatprep.subr.mxu0 0.0
  %920 = vmatpush2.msra.mxu0 0.0
  %921 = vmatprep.subr.mxu0 0.0
  %922 = vmatpush2.msra.mxu0 0.0
  %923 = vmatprep.subr.mxu0 0.0
  %924 = vmatpush2.msra.mxu0 0.0
  %925 = vmatprep.subr.mxu0 0.0
  %926 = vmatpush2.msra.mxu0 0.0
  %927 = vmatprep.subr.mxu0 0.0
  %928 = vmatpush2.msra.mxu0 0.0
  %929 = vmatprep.subr.mxu0 0.0
  %930 = vmatpush2.msra.mxu0 0.0
  %931 = vmatprep.subr.mxu0 0.0
  %932 = vmatpush2.msra.mxu0 0.0
  %933 = vmatprep.subr.mxu0 0.0
  %934 = vmatpush2.msra.mxu0 0.0
  %935 = vmatprep.subr.mxu0 0.0
  %936 = vmatpush2.msra.mxu0 0.0
  %937 = vmatprep.subr.mxu0 0.0
  %938 = vmatpush2.msra.mxu0 0.0
  %939 = vmatprep.mubr.f32.mxu0 0.0
  %940 = vmatmul.mubr.f32.gmra.mxu0 %v871
  %v941 = vpop.f32.mrf.mxu0
  %v942 = vadd.f32 0.0, %v941
  %v943 = vpop.f32.mrf.mxu0
  %944 = vdwg.mxu0
  %v945 = vrot.slane %v766, 4
  %v947 = vsel %vm200, %v868, 0
  %v949 = vsel %vm204, %v945, 0
  %951 = vmatprep.subr.mxu0 0.0
  %952 = vmatpush1.msra.mxu0 0.0
  %953 = vmatprep.subr.mxu0 0.0
  %954 = vmatpush1.msra.mxu0 0.0
  %955 = vmatprep.subr.mxu0 0.0
  %956 = vmatpush1.msra.mxu0 0.0
  %957 = vmatprep.subr.mxu0 0.0
  %958 = vmatpush1.msra.mxu0 0.0
  %959 = vmatprep.subr.mxu0 0.0
  %960 = vmatpush1.msra.mxu0 0.0
  %961 = vmatprep.subr.mxu0 0.0
  %962 = vmatpush1.msra.mxu0 0.0
  %963 = vmatprep.subr.mxu0 0.0
  %964 = vmatpush1.msra.mxu0 0.0
  %965 = vmatprep.subr.mxu0 0.0
  %966 = vmatpush1.msra.mxu0 0.0
  %967 = vmatprep.subr.mxu0 0.0
  %968 = vmatpush1.msra.mxu0 0.0
  %969 = vmatprep.subr.mxu0 0.0
  %970 = vmatpush1.msra.mxu0 0.0
  %971 = vmatprep.subr.mxu0 0.0
  %972 = vmatpush1.msra.mxu0 0.0
  %973 = vmatprep.subr.mxu0 0.0
  %974 = vmatpush1.msra.mxu0 0.0
  %975 = vmatprep.subr.mxu0 0.0
  %976 = vmatpush1.msra.mxu0 0.0
  %977 = vmatprep.subr.mxu0 0.0
  %978 = vmatpush1.msra.mxu0 0.0
  %979 = vmatprep.subr.mxu0 0.0
  %980 = vmatpush1.msra.mxu0 0.0
  %981 = vmatprep.subr.mxu0 0.0
  %982 = vmatpush1.msra.mxu0 %v949
  %983 = vmatprep.subr.mxu0 0.0
  %984 = vmatpush2.msra.mxu0 0.0
  %985 = vmatprep.subr.mxu0 0.0
  %986 = vmatpush2.msra.mxu0 0.0
  %987 = vmatprep.subr.mxu0 0.0
  %988 = vmatpush2.msra.mxu0 0.0
  %989 = vmatprep.subr.mxu0 0.0
  %990 = vmatpush2.msra.mxu0 0.0
  %991 = vmatprep.subr.mxu0 0.0
  %992 = vmatpush2.msra.mxu0 0.0
  %993 = vmatprep.subr.mxu0 0.0
  %994 = vmatpush2.msra.mxu0 0.0
  %995 = vmatprep.subr.mxu0 0.0
  %996 = vmatpush2.msra.mxu0 0.0
  %997 = vmatprep.subr.mxu0 0.0
  %998 = vmatpush2.msra.mxu0 0.0
  %999 = vmatprep.subr.mxu0 0.0
  %1000 = vmatpush2.msra.mxu0 0.0
  %1001 = vmatprep.subr.mxu0 0.0
  %1002 = vmatpush2.msra.mxu0 0.0
  %1003 = vmatprep.subr.mxu0 0.0
  %1004 = vmatpush2.msra.mxu0 0.0
  %1005 = vmatprep.subr.mxu0 0.0
  %1006 = vmatpush2.msra.mxu0 0.0
  %1007 = vmatprep.subr.mxu0 0.0
  %1008 = vmatpush2.msra.mxu0 0.0
  %1009 = vmatprep.subr.mxu0 0.0
  %1010 = vmatpush2.msra.mxu0 0.0
  %1011 = vmatprep.subr.mxu0 0.0
  %1012 = vmatpush2.msra.mxu0 0.0
  %1013 = vmatprep.subr.mxu0 0.0
  %1014 = vmatpush2.msra.mxu0 0.0
  %1015 = vmatprep.mubr.f32.mxu0 0.0
  %1016 = vmatmul.mubr.f32.gmra.mxu0 %v947
  %v1017 = vpop.f32.mrf.mxu0
  %v1018 = vadd.f32 0.0, %v1017
  %v1019 = vpop.f32.mrf.mxu0
  %1020 = vdwg.mxu0
  %1021 = vrot.lane.b32.xlu0 %v11, 80
  %v1022 = vpop.permute.xlu0 %1021
  %1023 = vrot.lane.b32.xlu0 %v11, 16
  %v1024 = vpop.permute.xlu0 %1023
  %v1025 = vsel %vm20, %v1022, 0
  %v1027 = vsel %vm20, %v1024, 0
  %1029 = vmatprep.subr.mxu0 0.0
  %1030 = vmatpush1.xpose.msra.mxu0 0.0
  %1031 = vmatprep.subr.mxu0 0.0
  %1032 = vmatpush1.xpose.msra.mxu0 0.0
  %1033 = vmatprep.subr.mxu0 0.0
  %1034 = vmatpush1.xpose.msra.mxu0 0.0
  %1035 = vmatprep.subr.mxu0 0.0
  %1036 = vmatpush1.xpose.msra.mxu0 0.0
  %1037 = vmatprep.subr.mxu0 0.0
  %1038 = vmatpush1.xpose.msra.mxu0 0.0
  %1039 = vmatprep.subr.mxu0 0.0
  %1040 = vmatpush1.xpose.msra.mxu0 0.0
  %1041 = vmatprep.subr.mxu0 0.0
  %1042 = vmatpush1.xpose.msra.mxu0 0.0
  %1043 = vmatprep.subr.mxu0 0.0
  %1044 = vmatpush1.xpose.msra.mxu0 0.0
  %1045 = vmatprep.subr.mxu0 0.0
  %1046 = vmatpush1.xpose.msra.mxu0 0.0
  %1047 = vmatprep.subr.mxu0 0.0
  %1048 = vmatpush1.xpose.msra.mxu0 0.0
  %1049 = vmatprep.subr.mxu0 0.0
  %1050 = vmatpush1.xpose.msra.mxu0 0.0
  %1051 = vmatprep.subr.mxu0 0.0
  %1052 = vmatpush1.xpose.msra.mxu0 0.0
  %1053 = vmatprep.subr.mxu0 0.0
  %1054 = vmatpush1.xpose.msra.mxu0 0.0
  %1055 = vmatprep.subr.mxu0 0.0
  %1056 = vmatpush1.xpose.msra.mxu0 0.0
  %1057 = vmatprep.subr.mxu0 0.0
  %1058 = vmatpush1.xpose.msra.mxu0 0.0
  %1059 = vmatprep.subr.mxu0 0.0
  %1060 = vmatpush1.xpose.msra.mxu0 %v1027
  %1061 = vmatprep.subr.mxu0 0.0
  %1062 = vmatpush2.xpose.msra.mxu0 0.0
  %1063 = vmatprep.subr.mxu0 0.0
  %1064 = vmatpush2.xpose.msra.mxu0 0.0
  %1065 = vmatprep.subr.mxu0 0.0
  %1066 = vmatpush2.xpose.msra.mxu0 0.0
  %1067 = vmatprep.subr.mxu0 0.0
  %1068 = vmatpush2.xpose.msra.mxu0 0.0
  %1069 = vmatprep.subr.mxu0 0.0
  %1070 = vmatpush2.xpose.msra.mxu0 0.0
  %1071 = vmatprep.subr.mxu0 0.0
  %1072 = vmatpush2.xpose.msra.mxu0 0.0
  %1073 = vmatprep.subr.mxu0 0.0
  %1074 = vmatpush2.xpose.msra.mxu0 0.0
  %1075 = vmatprep.subr.mxu0 0.0
  %1076 = vmatpush2.xpose.msra.mxu0 0.0
  %1077 = vmatprep.subr.mxu0 0.0
  %1078 = vmatpush2.xpose.msra.mxu0 0.0
  %1079 = vmatprep.subr.mxu0 0.0
  %1080 = vmatpush2.xpose.msra.mxu0 0.0
  %1081 = vmatprep.subr.mxu0 0.0
  %1082 = vmatpush2.xpose.msra.mxu0 0.0
  %1083 = vmatprep.subr.mxu0 0.0
  %1084 = vmatpush2.xpose.msra.mxu0 0.0
  %1085 = vmatprep.subr.mxu0 0.0
  %1086 = vmatpush2.xpose.msra.mxu0 0.0
  %1087 = vmatprep.subr.mxu0 0.0
  %1088 = vmatpush2.xpose.msra.mxu0 0.0
  %1089 = vmatprep.subr.mxu0 0.0
  %1090 = vmatpush2.xpose.msra.mxu0 0.0
  %1091 = vmatprep.subr.mxu0 0.0
  %1092 = vmatpush2.xpose.msra.mxu0 0.0
  %1093 = vmatprep.mubr.f32.mxu0 0.0
  %1094 = vmatmul.mubr.f32.gmra.mxu0 %v1025
  %v1095 = vpop.f32.mrf.mxu0
  %v1096 = vadd.f32 0.0, %v1095
  %v1097 = vpop.f32.mrf.mxu0
  %1098 = vdwg.mxu0
  %1099 = vrot.lane.b32.xlu0 %v12, 80
  %v1100 = vpop.permute.xlu0 %1099
  %1101 = vrot.lane.b32.xlu0 %v12, 16
  %v1102 = vpop.permute.xlu0 %1101
  %v1103 = vsel %vm20, %v1100, 0
  %v1105 = vsel %vm20, %v1102, 0
  %1107 = vmatprep.subr.mxu0 0.0
  %1108 = vmatpush1.xpose.msra.mxu0 0.0
  %1109 = vmatprep.subr.mxu0 0.0
  %1110 = vmatpush1.xpose.msra.mxu0 0.0
  %1111 = vmatprep.subr.mxu0 0.0
  %1112 = vmatpush1.xpose.msra.mxu0 0.0
  %1113 = vmatprep.subr.mxu0 0.0
  %1114 = vmatpush1.xpose.msra.mxu0 0.0
  %1115 = vmatprep.subr.mxu0 0.0
  %1116 = vmatpush1.xpose.msra.mxu0 0.0
  %1117 = vmatprep.subr.mxu0 0.0
  %1118 = vmatpush1.xpose.msra.mxu0 0.0
  %1119 = vmatprep.subr.mxu0 0.0
  %1120 = vmatpush1.xpose.msra.mxu0 0.0
  %1121 = vmatprep.subr.mxu0 0.0
  %1122 = vmatpush1.xpose.msra.mxu0 0.0
  %1123 = vmatprep.subr.mxu0 0.0
  %1124 = vmatpush1.xpose.msra.mxu0 0.0
  %1125 = vmatprep.subr.mxu0 0.0
  %1126 = vmatpush1.xpose.msra.mxu0 0.0
  %1127 = vmatprep.subr.mxu0 0.0
  %1128 = vmatpush1.xpose.msra.mxu0 0.0
  %1129 = vmatprep.subr.mxu0 0.0
  %1130 = vmatpush1.xpose.msra.mxu0 0.0
  %1131 = vmatprep.subr.mxu0 0.0
  %1132 = vmatpush1.xpose.msra.mxu0 0.0
  %1133 = vmatprep.subr.mxu0 0.0
  %1134 = vmatpush1.xpose.msra.mxu0 0.0
  %1135 = vmatprep.subr.mxu0 0.0
  %1136 = vmatpush1.xpose.msra.mxu0 0.0
  %1137 = vmatprep.subr.mxu0 0.0
  %1138 = vmatpush1.xpose.msra.mxu0 %v1105
  %1139 = vmatprep.subr.mxu0 0.0
  %1140 = vmatpush2.xpose.msra.mxu0 0.0
  %1141 = vmatprep.subr.mxu0 0.0
  %1142 = vmatpush2.xpose.msra.mxu0 0.0
  %1143 = vmatprep.subr.mxu0 0.0
  %1144 = vmatpush2.xpose.msra.mxu0 0.0
  %1145 = vmatprep.subr.mxu0 0.0
  %1146 = vmatpush2.xpose.msra.mxu0 0.0
  %1147 = vmatprep.subr.mxu0 0.0
  %1148 = vmatpush2.xpose.msra.mxu0 0.0
  %1149 = vmatprep.subr.mxu0 0.0
  %1150 = vmatpush2.xpose.msra.mxu0 0.0
  %1151 = vmatprep.subr.mxu0 0.0
  %1152 = vmatpush2.xpose.msra.mxu0 0.0
  %1153 = vmatprep.subr.mxu0 0.0
  %1154 = vmatpush2.xpose.msra.mxu0 0.0
  %1155 = vmatprep.subr.mxu0 0.0
  %1156 = vmatpush2.xpose.msra.mxu0 0.0
  %1157 = vmatprep.subr.mxu0 0.0
  %1158 = vmatpush2.xpose.msra.mxu0 0.0
  %1159 = vmatprep.subr.mxu0 0.0
  %1160 = vmatpush2.xpose.msra.mxu0 0.0
  %1161 = vmatprep.subr.mxu0 0.0
  %1162 = vmatpush2.xpose.msra.mxu0 0.0
  %1163 = vmatprep.subr.mxu0 0.0
  %1164 = vmatpush2.xpose.msra.mxu0 0.0
  %1165 = vmatprep.subr.mxu0 0.0
  %1166 = vmatpush2.xpose.msra.mxu0 0.0
  %1167 = vmatprep.subr.mxu0 0.0
  %1168 = vmatpush2.xpose.msra.mxu0 0.0
  %1169 = vmatprep.subr.mxu0 0.0
  %1170 = vmatpush2.xpose.msra.mxu0 0.0
  %1171 = vmatprep.mubr.f32.mxu0 0.0
  %1172 = vmatmul.mubr.f32.gmra.mxu0 %v1103
  %v1173 = vpop.f32.mrf.mxu0
  %v1174 = vadd.f32 0.0, %v1173
  %v1175 = vpop.f32.mrf.mxu0
  %1176 = vdwg.mxu0
  %v1177 = vmul.f32 %v1096, 0.25
  %v1178 = vmul.f32 %v1174, 0.25
  %v1179 = vadd.f32 %v1177, %v16
  %v1180 = vadd.f32 %v1178, %v16
  %v1181 = vsel %vm176, %v1179, -inf
  %1182 = vmax.xlane.f32.xlu0 %v1181
  %v1183 = vpop.xlane.xlu0 %1182
  %v1184 = vsel %vm176, %v1180, -inf
  %1185 = vmax.xlane.f32.xlu0 %v1184
  %v1186 = vpop.xlane.xlu0 %1185
  %v1187 = vsub.f32 %v1179, %v1183
  %v1188 = vsub.f32 %v1180, %v1186
  %v1189 = vmul.f32 %v1187, 1.442695
  %v1190 = vpow.pop %v1189
  %v1191 = vmul.f32 %v1188, 1.442695
  %v1192 = vpow.pop %v1191
  %v1193 = vsel %vm176, %v1190, 0.0
  %1194 = vadd.xlane.f32.xlu0 %v1193
  %v1195 = vpop.xlane.xlu0 %1194
  %v1196 = vsel %vm176, %v1192, 0.0
  %1197 = vadd.xlane.f32.xlu0 %v1196
  %v1198 = vpop.xlane.xlu0 %1197
  %v1199 = vrcp.pop %v1195
  %v1200 = vrcp.pop %v1198
  %v1201 = vmul.f32 %v1190, %v1199
  %v1202 = vmul.f32 %v1192, %v1200
  %v1203 = vrot.slane %v1022, 4
  %v1205 = vsel %vm200, %v1201, 0
  %v1207 = vsel %vm204, %v1203, 0
  %1209 = vmatprep.subr.mxu0 0.0
  %1210 = vmatpush1.msra.mxu0 0.0
  %1211 = vmatprep.subr.mxu0 0.0
  %1212 = vmatpush1.msra.mxu0 0.0
  %1213 = vmatprep.subr.mxu0 0.0
  %1214 = vmatpush1.msra.mxu0 0.0
  %1215 = vmatprep.subr.mxu0 0.0
  %1216 = vmatpush1.msra.mxu0 0.0
  %1217 = vmatprep.subr.mxu0 0.0
  %1218 = vmatpush1.msra.mxu0 0.0
  %1219 = vmatprep.subr.mxu0 0.0
  %1220 = vmatpush1.msra.mxu0 0.0
  %1221 = vmatprep.subr.mxu0 0.0
  %1222 = vmatpush1.msra.mxu0 0.0
  %1223 = vmatprep.subr.mxu0 0.0
  %1224 = vmatpush1.msra.mxu0 0.0
  %1225 = vmatprep.subr.mxu0 0.0
  %1226 = vmatpush1.msra.mxu0 0.0
  %1227 = vmatprep.subr.mxu0 0.0
  %1228 = vmatpush1.msra.mxu0 0.0
  %1229 = vmatprep.subr.mxu0 0.0
  %1230 = vmatpush1.msra.mxu0 0.0
  %1231 = vmatprep.subr.mxu0 0.0
  %1232 = vmatpush1.msra.mxu0 0.0
  %1233 = vmatprep.subr.mxu0 0.0
  %1234 = vmatpush1.msra.mxu0 0.0
  %1235 = vmatprep.subr.mxu0 0.0
  %1236 = vmatpush1.msra.mxu0 0.0
  %1237 = vmatprep.subr.mxu0 0.0
  %1238 = vmatpush1.msra.mxu0 0.0
  %1239 = vmatprep.subr.mxu0 0.0
  %1240 = vmatpush1.msra.mxu0 %v1207
  %1241 = vmatprep.subr.mxu0 0.0
  %1242 = vmatpush2.msra.mxu0 0.0
  %1243 = vmatprep.subr.mxu0 0.0
  %1244 = vmatpush2.msra.mxu0 0.0
  %1245 = vmatprep.subr.mxu0 0.0
  %1246 = vmatpush2.msra.mxu0 0.0
  %1247 = vmatprep.subr.mxu0 0.0
  %1248 = vmatpush2.msra.mxu0 0.0
  %1249 = vmatprep.subr.mxu0 0.0
  %1250 = vmatpush2.msra.mxu0 0.0
  %1251 = vmatprep.subr.mxu0 0.0
  %1252 = vmatpush2.msra.mxu0 0.0
  %1253 = vmatprep.subr.mxu0 0.0
  %1254 = vmatpush2.msra.mxu0 0.0
  %1255 = vmatprep.subr.mxu0 0.0
  %1256 = vmatpush2.msra.mxu0 0.0
  %1257 = vmatprep.subr.mxu0 0.0
  %1258 = vmatpush2.msra.mxu0 0.0
  %1259 = vmatprep.subr.mxu0 0.0
  %1260 = vmatpush2.msra.mxu0 0.0
  %1261 = vmatprep.subr.mxu0 0.0
  %1262 = vmatpush2.msra.mxu0 0.0
  %1263 = vmatprep.subr.mxu0 0.0
  %1264 = vmatpush2.msra.mxu0 0.0
  %1265 = vmatprep.subr.mxu0 0.0
  %1266 = vmatpush2.msra.mxu0 0.0
  %1267 = vmatprep.subr.mxu0 0.0
  %1268 = vmatpush2.msra.mxu0 0.0
  %1269 = vmatprep.subr.mxu0 0.0
  %1270 = vmatpush2.msra.mxu0 0.0
  %1271 = vmatprep.subr.mxu0 0.0
  %1272 = vmatpush2.msra.mxu0 0.0
  %1273 = vmatprep.mubr.f32.mxu0 0.0
  %1274 = vmatmul.mubr.f32.gmra.mxu0 %v1205
  %v1275 = vpop.f32.mrf.mxu0
  %v1276 = vadd.f32 0.0, %v1275
  %v1277 = vpop.f32.mrf.mxu0
  %1278 = vdwg.mxu0
  %v1279 = vrot.slane %v1100, 4
  %v1281 = vsel %vm200, %v1202, 0
  %v1283 = vsel %vm204, %v1279, 0
  %1285 = vmatprep.subr.mxu0 0.0
  %1286 = vmatpush1.msra.mxu0 0.0
  %1287 = vmatprep.subr.mxu0 0.0
  %1288 = vmatpush1.msra.mxu0 0.0
  %1289 = vmatprep.subr.mxu0 0.0
  %1290 = vmatpush1.msra.mxu0 0.0
  %1291 = vmatprep.subr.mxu0 0.0
  %1292 = vmatpush1.msra.mxu0 0.0
  %1293 = vmatprep.subr.mxu0 0.0
  %1294 = vmatpush1.msra.mxu0 0.0
  %1295 = vmatprep.subr.mxu0 0.0
  %1296 = vmatpush1.msra.mxu0 0.0
  %1297 = vmatprep.subr.mxu0 0.0
  %1298 = vmatpush1.msra.mxu0 0.0
  %1299 = vmatprep.subr.mxu0 0.0
  %1300 = vmatpush1.msra.mxu0 0.0
  %1301 = vmatprep.subr.mxu0 0.0
  %1302 = vmatpush1.msra.mxu0 0.0
  %1303 = vmatprep.subr.mxu0 0.0
  %1304 = vmatpush1.msra.mxu0 0.0
  %1305 = vmatprep.subr.mxu0 0.0
  %1306 = vmatpush1.msra.mxu0 0.0
  %1307 = vmatprep.subr.mxu0 0.0
  %1308 = vmatpush1.msra.mxu0 0.0
  %1309 = vmatprep.subr.mxu0 0.0
  %1310 = vmatpush1.msra.mxu0 0.0
  %1311 = vmatprep.subr.mxu0 0.0
  %1312 = vmatpush1.msra.mxu0 0.0
  %1313 = vmatprep.subr.mxu0 0.0
  %1314 = vmatpush1.msra.mxu0 0.0
  %1315 = vmatprep.subr.mxu0 0.0
  %1316 = vmatpush1.msra.mxu0 %v1283
  %1317 = vmatprep.subr.mxu0 0.0
  %1318 = vmatpush2.msra.mxu0 0.0
  %1319 = vmatprep.subr.mxu0 0.0
  %1320 = vmatpush2.msra.mxu0 0.0
  %1321 = vmatprep.subr.mxu0 0.0
  %1322 = vmatpush2.msra.mxu0 0.0
  %1323 = vmatprep.subr.mxu0 0.0
  %1324 = vmatpush2.msra.mxu0 0.0
  %1325 = vmatprep.subr.mxu0 0.0
  %1326 = vmatpush2.msra.mxu0 0.0
  %1327 = vmatprep.subr.mxu0 0.0
  %1328 = vmatpush2.msra.mxu0 0.0
  %1329 = vmatprep.subr.mxu0 0.0
  %1330 = vmatpush2.msra.mxu0 0.0
  %1331 = vmatprep.subr.mxu0 0.0
  %1332 = vmatpush2.msra.mxu0 0.0
  %1333 = vmatprep.subr.mxu0 0.0
  %1334 = vmatpush2.msra.mxu0 0.0
  %1335 = vmatprep.subr.mxu0 0.0
  %1336 = vmatpush2.msra.mxu0 0.0
  %1337 = vmatprep.subr.mxu0 0.0
  %1338 = vmatpush2.msra.mxu0 0.0
  %1339 = vmatprep.subr.mxu0 0.0
  %1340 = vmatpush2.msra.mxu0 0.0
  %1341 = vmatprep.subr.mxu0 0.0
  %1342 = vmatpush2.msra.mxu0 0.0
  %1343 = vmatprep.subr.mxu0 0.0
  %1344 = vmatpush2.msra.mxu0 0.0
  %1345 = vmatprep.subr.mxu0 0.0
  %1346 = vmatpush2.msra.mxu0 0.0
  %1347 = vmatprep.subr.mxu0 0.0
  %1348 = vmatpush2.msra.mxu0 0.0
  %1349 = vmatprep.mubr.f32.mxu0 0.0
  %1350 = vmatmul.mubr.f32.gmra.mxu0 %v1281
  %v1351 = vpop.f32.mrf.mxu0
  %v1352 = vadd.f32 0.0, %v1351
  %v1353 = vpop.f32.mrf.mxu0
  %1354 = vdwg.mxu0
  %1357 = vrot.lane.b32.xlu0 %v608, 16
  %v1358 = vpop.permute.xlu0 %1357
  %1359 = vrot.lane.b32.xlu0 %v684, 16
  %v1360 = vpop.permute.xlu0 %1359
  %1365 = vrot.lane.b32.xlu0 %v942, 32
  %v1366 = vpop.permute.xlu0 %1365
  %1367 = vrot.lane.b32.xlu0 %v1018, 32
  %v1368 = vpop.permute.xlu0 %1367
  %1373 = vrot.lane.b32.xlu0 %v1276, 48
  %v1374 = vpop.permute.xlu0 %1373
  %1375 = vrot.lane.b32.xlu0 %v1352, 48
  %v1376 = vpop.permute.xlu0 %1375
  %v1379 = vsel %vm20, %v274, %v1358
  %v1380 = vsel %vm20, %v350, %v1360
  %vm1381 = vcmask 261120
  %v1382 = vsel %vm1381, %v1379, %v1366
  %v1383 = vsel %vm1381, %v1380, %v1368
  %vm1384 = vcmask 392192
  %v1385 = vsel %vm1384, %v1382, %v1374
  %v1386 = vsel %vm1384, %v1383, %v1376
  %vm1387 = vcmask 519168
  %1388 = vst.msk [vmem:[%s2] sm:$0xf] %vm1387, %v1385
  %1389 = vst.msk [vmem:[%s2 + $0x4] sm:$0xf] %vm1387, %v1386
  // Predicated region
  $region10: #{swin_forward.37} parent=0 // pred_check
    _
  $region11: #{swin_forward.37} parent=0 // pred_check_branch
    %1391 = sbr.rel (0) target = $region13
  $region12: #{swin_forward.37} parent=0 // pred_region
    _
  $region13: #{swin_forward.37} parent=0 // pred_fallthru
    _
  // Predicated region
  $region14: #{swin_forward.37} parent=0 // pred_check
    _
  $region15: #{swin_forward.37} parent=0 // pred_check_branch
    %1393 = sbr.rel (0) target = $region17
  $region16: #{swin_forward.37} parent=0 // pred_region
    _
  $region17: #{swin_forward.37} parent=0 // pred_fallthru
    _

// kernel: swin_forward.38
$region0: #{swin_forward.38}
  #allocation0 [shape = 'u32[]', space=smem, size = 0x4, offset = 0x4, fixed_abs, tag = 'smem constant byte address 0x4 - core index']
  #allocation1 [shape = 'u32[144,128]{1,0:T(1,128)}', space=vmem, size = 0x12000, scoped, tag = 'internal scratch']
  %s0 = inlined_call_operand.vmem [shape: f32[8,64], index: 0, kind: input, shape index: {}]
  %s1 = inlined_call_operand.vmem [shape: f32[64,64], index: 1, kind: input, shape index: {}]
  %s2 = inlined_call_operand.vmem [shape: f32[1,64], index: 2, kind: input, shape index: {}]
  %s3 = inlined_call_operand.vmem [shape: f32[8,64], index: 3, kind: output, shape index: {}]
  %s4 = sld [smem:[#allocation0]]
  $region22: #{swin_forward.38} parent=0
    _
  %s6 = ssub.s32 1, %s4
  %s7 = scalar_select 0, %s6, %s4
  // Predicated region
  $region2: #{swin_forward.38} parent=0 // pred_check
    _
  $region3: #{swin_forward.38} parent=0 // pred_check_branch
    %9 = sbr.rel (0) target = $region5
  $region4: #{swin_forward.38} parent=0 // pred_region
    _
  $region5: #{swin_forward.38} parent=0 // pred_fallthru
    _
  // Predicated region
  $region6: #{swin_forward.38} parent=0 // pred_check
    _
  $region7: #{swin_forward.38} parent=0 // pred_check_branch
    %11 = sbr.rel (0) target = $region9
  $region8: #{swin_forward.38} parent=0 // pred_region
    _
  $region9: #{swin_forward.38} parent=0 // pred_fallthru
    _
  // Predicated region
  $region10: #{swin_forward.38} parent=0 // pred_check
    _
  $region11: #{swin_forward.38} parent=0 // pred_check_branch
    %13 = sbr.rel (0) target = $region13
  $region12: #{swin_forward.38} parent=0 // pred_region
    _
  $region13: #{swin_forward.38} parent=0 // pred_fallthru
    _
  %v14 = vld [vmem:[%s0] sm:$0xff]
  %v15 = vld [vmem:[%s1] sm:$0xff]
  %v16 = vld [vmem:[%s1 + $0x8] sm:$0xff]
  %v17 = vld [vmem:[%s1 + $0x10] sm:$0xff]
  %v18 = vld [vmem:[%s1 + $0x18] sm:$0xff]
  %v19 = vld [vmem:[%s1 + $0x20] sm:$0xff]
  %v20 = vld [vmem:[%s1 + $0x28] sm:$0xff]
  %v21 = vld [vmem:[%s1 + $0x30] sm:$0xff]
  %v22 = vld [vmem:[%s1 + $0x38] sm:$0xff]
  %v23 = vld [vmem:[%s2] sm:$0x1]
  %v25 = vlaneseq
  %v26 = vshrl.u32 %v25, 7
  %v27 = vsub.s32 0, %v26
  %v28 = vrot.slane %v23, %v27
  %vm30 = vcmask 523264
  %v32 = vsel %vm30, %v14, 0
  %34 = vmatprep.subr.mxu0 0.0
  %35 = vmatpush1.msra.mxu0 0.0
  %36 = vmatprep.subr.mxu0 0.0
  %37 = vmatpush1.msra.mxu0 0.0
  %38 = vmatprep.subr.mxu0 0.0
  %39 = vmatpush1.msra.mxu0 0.0
  %40 = vmatprep.subr.mxu0 0.0
  %41 = vmatpush1.msra.mxu0 0.0
  %42 = vmatprep.subr.mxu0 0.0
  %43 = vmatpush1.msra.mxu0 0.0
  %44 = vmatprep.subr.mxu0 0.0
  %45 = vmatpush1.msra.mxu0 0.0
  %46 = vmatprep.subr.mxu0 0.0
  %47 = vmatpush1.msra.mxu0 0.0
  %48 = vmatprep.subr.mxu0 0.0
  %49 = vmatpush1.msra.mxu0 0.0
  %50 = vmatprep.subr.mxu0 0.0
  %51 = vmatpush1.msra.mxu0 %v22
  %52 = vmatprep.subr.mxu0 0.0
  %53 = vmatpush1.msra.mxu0 %v21
  %54 = vmatprep.subr.mxu0 0.0
  %55 = vmatpush1.msra.mxu0 %v20
  %56 = vmatprep.subr.mxu0 0.0
  %57 = vmatpush1.msra.mxu0 %v19
  %58 = vmatprep.subr.mxu0 0.0
  %59 = vmatpush1.msra.mxu0 %v18
  %60 = vmatprep.subr.mxu0 0.0
  %61 = vmatpush1.msra.mxu0 %v17
  %62 = vmatprep.subr.mxu0 0.0
  %63 = vmatpush1.msra.mxu0 %v16
  %64 = vmatprep.subr.mxu0 0.0
  %65 = vmatpush1.msra.mxu0 %v15
  %66 = vmatprep.subr.mxu0 0.0
  %67 = vmatpush2.msra.mxu0 0.0
  %68 = vmatprep.subr.mxu0 0.0
  %69 = vmatpush2.msra.mxu0 0.0
  %70 = vmatprep.subr.mxu0 0.0
  %71 = vmatpush2.msra.mxu0 0.0
  %72 = vmatprep.subr.mxu0 0.0
  %73 = vmatpush2.msra.mxu0 0.0
  %74 = vmatprep.subr.mxu0 0.0
  %75 = vmatpush2.msra.mxu0 0.0
  %76 = vmatprep.subr.mxu0 0.0
  %77 = vmatpush2.msra.mxu0 0.0
  %78 = vmatprep.subr.mxu0 0.0
  %79 = vmatpush2.msra.mxu0 0.0
  %80 = vmatprep.subr.mxu0 0.0
  %81 = vmatpush2.msra.mxu0 0.0
  %82 = vmatprep.subr.mxu0 0.0
  %83 = vmatpush2.msra.mxu0 0.0
  %84 = vmatprep.subr.mxu0 0.0
  %85 = vmatpush2.msra.mxu0 0.0
  %86 = vmatprep.subr.mxu0 0.0
  %87 = vmatpush2.msra.mxu0 0.0
  %88 = vmatprep.subr.mxu0 0.0
  %89 = vmatpush2.msra.mxu0 0.0
  %90 = vmatprep.subr.mxu0 0.0
  %91 = vmatpush2.msra.mxu0 0.0
  %92 = vmatprep.subr.mxu0 0.0
  %93 = vmatpush2.msra.mxu0 0.0
  %94 = vmatprep.subr.mxu0 0.0
  %95 = vmatpush2.msra.mxu0 0.0
  %96 = vmatprep.subr.mxu0 0.0
  %97 = vmatpush2.msra.mxu0 0.0
  %98 = vmatprep.mubr.f32.mxu0 0.0
  %99 = vmatmul.mubr.f32.gmra.mxu0 %v32
  %v100 = vpop.f32.mrf.mxu0
  %v101 = vadd.f32 %v28, %v100
  %v102 = vpop.f32.mrf.mxu0
  %103 = vdwg.mxu0
  %104 = vst.msk [vmem:[%s3] sm:$0xff] %vm30, %v101
  // Predicated region
  $region14: #{swin_forward.38} parent=0 // pred_check
    _
  $region15: #{swin_forward.38} parent=0 // pred_check_branch
    %106 = sbr.rel (0) target = $region17
  $region16: #{swin_forward.38} parent=0 // pred_region
    _
  $region17: #{swin_forward.38} parent=0 // pred_fallthru
    _
  // Predicated region
  $region18: #{swin_forward.38} parent=0 // pred_check
    _
  $region19: #{swin_forward.38} parent=0 // pred_check_branch
    %108 = sbr.rel (0) target = $region21
  $region20: #{swin_forward.38} parent=0 // pred_region
    _
  $region21: #{swin_forward.38} parent=0 // pred_fallthru
    _

// kernel: swin_forward.40
$region0: #{swin_forward.40}
  #allocation0 [shape = 'u32[]', space=smem, size = 0x4, offset = 0x4, fixed_abs, tag = 'smem constant byte address 0x4 - core index']
  #allocation1 [shape = 'u32[144,128]{1,0:T(1,128)}', space=vmem, size = 0x12000, scoped, tag = 'internal scratch']
  %s0 = inlined_call_operand.vmem [shape: f32[8,256], index: 0, kind: input, shape index: {}]
  %s1 = inlined_call_operand.vmem [shape: f32[256,64], index: 1, kind: input, shape index: {}]
  %s2 = inlined_call_operand.vmem [shape: f32[1,64], index: 2, kind: input, shape index: {}]
  %s3 = inlined_call_operand.vmem [shape: f32[8,64], index: 3, kind: input, shape index: {}]
  %s4 = inlined_call_operand.vmem [shape: f32[8,64], index: 4, kind: output, shape index: {}]
  %s5 = sld [smem:[#allocation0]]
  $region26: #{swin_forward.40} parent=0
    _
  %s7 = ssub.s32 1, %s5
  %s8 = scalar_select 0, %s7, %s5
  // Predicated region
  $region2: #{swin_forward.40} parent=0 // pred_check
    _
  $region3: #{swin_forward.40} parent=0 // pred_check_branch
    %10 = sbr.rel (0) target = $region5
  $region4: #{swin_forward.40} parent=0 // pred_region
    _
  $region5: #{swin_forward.40} parent=0 // pred_fallthru
    _
  // Predicated region
  $region6: #{swin_forward.40} parent=0 // pred_check
    _
  $region7: #{swin_forward.40} parent=0 // pred_check_branch
    %12 = sbr.rel (0) target = $region9
  $region8: #{swin_forward.40} parent=0 // pred_region
    _
  $region9: #{swin_forward.40} parent=0 // pred_fallthru
    _
  // Predicated region
  $region10: #{swin_forward.40} parent=0 // pred_check
    _
  $region11: #{swin_forward.40} parent=0 // pred_check_branch
    %14 = sbr.rel (0) target = $region13
  $region12: #{swin_forward.40} parent=0 // pred_region
    _
  $region13: #{swin_forward.40} parent=0 // pred_fallthru
    _
  // Predicated region
  $region14: #{swin_forward.40} parent=0 // pred_check
    _
  $region15: #{swin_forward.40} parent=0 // pred_check_branch
    %16 = sbr.rel (0) target = $region17
  $region16: #{swin_forward.40} parent=0 // pred_region
    _
  $region17: #{swin_forward.40} parent=0 // pred_fallthru
    _
  %v17 = vld [vmem:[%s0] sm:$0xff]
  %v18 = vld [vmem:[%s0 + $0x8] sm:$0xff]
  %v19 = vld [vmem:[%s1] sm:$0xff]
  %v20 = vld [vmem:[%s1 + $0x8] sm:$0xff]
  %v21 = vld [vmem:[%s1 + $0x10] sm:$0xff]
  %v22 = vld [vmem:[%s1 + $0x18] sm:$0xff]
  %v23 = vld [vmem:[%s1 + $0x20] sm:$0xff]
  %v24 = vld [vmem:[%s1 + $0x28] sm:$0xff]
  %v25 = vld [vmem:[%s1 + $0x30] sm:$0xff]
  %v26 = vld [vmem:[%s1 + $0x38] sm:$0xff]
  %v27 = vld [vmem:[%s1 + $0x40] sm:$0xff]
  %v28 = vld [vmem:[%s1 + $0x48] sm:$0xff]
  %v29 = vld [vmem:[%s1 + $0x50] sm:$0xff]
  %v30 = vld [vmem:[%s1 + $0x58] sm:$0xff]
  %v31 = vld [vmem:[%s1 + $0x60] sm:$0xff]
  %v32 = vld [vmem:[%s1 + $0x68] sm:$0xff]
  %v33 = vld [vmem:[%s1 + $0x70] sm:$0xff]
  %v34 = vld [vmem:[%s1 + $0x78] sm:$0xff]
  %v35 = vld [vmem:[%s1 + $0x80] sm:$0xff]
  %v36 = vld [vmem:[%s1 + $0x88] sm:$0xff]
  %v37 = vld [vmem:[%s1 + $0x90] sm:$0xff]
  %v38 = vld [vmem:[%s1 + $0x98] sm:$0xff]
  %v39 = vld [vmem:[%s1 + $0xa0] sm:$0xff]
  %v40 = vld [vmem:[%s1 + $0xa8] sm:$0xff]
  %v41 = vld [vmem:[%s1 + $0xb0] sm:$0xff]
  %v42 = vld [vmem:[%s1 + $0xb8] sm:$0xff]
  %v43 = vld [vmem:[%s1 + $0xc0] sm:$0xff]
  %v44 = vld [vmem:[%s1 + $0xc8] sm:$0xff]
  %v45 = vld [vmem:[%s1 + $0xd0] sm:$0xff]
  %v46 = vld [vmem:[%s1 + $0xd8] sm:$0xff]
  %v47 = vld [vmem:[%s1 + $0xe0] sm:$0xff]
  %v48 = vld [vmem:[%s1 + $0xe8] sm:$0xff]
  %v49 = vld [vmem:[%s1 + $0xf0] sm:$0xff]
  %v50 = vld [vmem:[%s1 + $0xf8] sm:$0xff]
  %v51 = vld [vmem:[%s2] sm:$0x1]
  %v53 = vlaneseq
  %v54 = vshrl.u32 %v53, 7
  %v55 = vsub.s32 0, %v54
  %v56 = vrot.slane %v51, %v55
  %58 = vmatprep.subr.mxu0 0.0
  %59 = vmatpush1.msra.mxu0 %v34
  %60 = vmatprep.subr.mxu0 0.0
  %61 = vmatpush1.msra.mxu0 %v33
  %62 = vmatprep.subr.mxu0 0.0
  %63 = vmatpush1.msra.mxu0 %v32
  %64 = vmatprep.subr.mxu0 0.0
  %65 = vmatpush1.msra.mxu0 %v31
  %66 = vmatprep.subr.mxu0 0.0
  %67 = vmatpush1.msra.mxu0 %v30
  %68 = vmatprep.subr.mxu0 0.0
  %69 = vmatpush1.msra.mxu0 %v29
  %70 = vmatprep.subr.mxu0 0.0
  %71 = vmatpush1.msra.mxu0 %v28
  %72 = vmatprep.subr.mxu0 0.0
  %73 = vmatpush1.msra.mxu0 %v27
  %74 = vmatprep.subr.mxu0 0.0
  %75 = vmatpush1.msra.mxu0 %v26
  %76 = vmatprep.subr.mxu0 0.0
  %77 = vmatpush1.msra.mxu0 %v25
  %78 = vmatprep.subr.mxu0 0.0
  %79 = vmatpush1.msra.mxu0 %v24
  %80 = vmatprep.subr.mxu0 0.0
  %81 = vmatpush1.msra.mxu0 %v23
  %82 = vmatprep.subr.mxu0 0.0
  %83 = vmatpush1.msra.mxu0 %v22
  %84 = vmatprep.subr.mxu0 0.0
  %85 = vmatpush1.msra.mxu0 %v21
  %86 = vmatprep.subr.mxu0 0.0
  %87 = vmatpush1.msra.mxu0 %v20
  %88 = vmatprep.subr.mxu0 0.0
  %89 = vmatpush1.msra.mxu0 %v19
  %90 = vmatprep.subr.mxu0 0.0
  %91 = vmatpush2.msra.mxu0 %v50
  %92 = vmatprep.subr.mxu0 0.0
  %93 = vmatpush2.msra.mxu0 %v49
  %94 = vmatprep.subr.mxu0 0.0
  %95 = vmatpush2.msra.mxu0 %v48
  %96 = vmatprep.subr.mxu0 0.0
  %97 = vmatpush2.msra.mxu0 %v47
  %98 = vmatprep.subr.mxu0 0.0
  %99 = vmatpush2.msra.mxu0 %v46
  %100 = vmatprep.subr.mxu0 0.0
  %101 = vmatpush2.msra.mxu0 %v45
  %102 = vmatprep.subr.mxu0 0.0
  %103 = vmatpush2.msra.mxu0 %v44
  %104 = vmatprep.subr.mxu0 0.0
  %105 = vmatpush2.msra.mxu0 %v43
  %106 = vmatprep.subr.mxu0 0.0
  %107 = vmatpush2.msra.mxu0 %v42
  %108 = vmatprep.subr.mxu0 0.0
  %109 = vmatpush2.msra.mxu0 %v41
  %110 = vmatprep.subr.mxu0 0.0
  %111 = vmatpush2.msra.mxu0 %v40
  %112 = vmatprep.subr.mxu0 0.0
  %113 = vmatpush2.msra.mxu0 %v39
  %114 = vmatprep.subr.mxu0 0.0
  %115 = vmatpush2.msra.mxu0 %v38
  %116 = vmatprep.subr.mxu0 0.0
  %117 = vmatpush2.msra.mxu0 %v37
  %118 = vmatprep.subr.mxu0 0.0
  %119 = vmatpush2.msra.mxu0 %v36
  %120 = vmatprep.subr.mxu0 0.0
  %121 = vmatpush2.msra.mxu0 %v35
  %122 = vmatprep.mubr.f32.mxu0 %v18
  %123 = vmatmul.mubr.f32.gmra.mxu0 %v17
  %v124 = vpop.f32.mrf.mxu0
  %v125 = vadd.f32 %v56, %v124
  %v126 = vpop.f32.mrf.mxu0
  %127 = vdwg.mxu0
  %v128 = vld [vmem:[%s3] sm:$0xff]
  %v129 = vadd.f32 %v125, %v128
  %vm130 = vcmask 523264
  %131 = vst.msk [vmem:[%s4] sm:$0xff] %vm130, %v129
  // Predicated region
  $region18: #{swin_forward.40} parent=0 // pred_check
    _
  $region19: #{swin_forward.40} parent=0 // pred_check_branch
    %133 = sbr.rel (0) target = $region21
  $region20: #{swin_forward.40} parent=0 // pred_region
    _
  $region21: #{swin_forward.40} parent=0 // pred_fallthru
    _
  // Predicated region
  $region22: #{swin_forward.40} parent=0 // pred_check
    _
  $region23: #{swin_forward.40} parent=0 // pred_check_branch
    %135 = sbr.rel (0) target = $region25
  $region24: #{swin_forward.40} parent=0 // pred_region
    _
  $region25: #{swin_forward.40} parent=0 // pred_fallthru
    _

// kernel: swin_forward.46
$region0: #{swin_forward.46}
  #allocation0 [shape = 'u32[]', space=smem, size = 0x4, offset = 0x4, fixed_abs, tag = 'smem constant byte address 0x4 - core index']
  #allocation1 [shape = 'u32[144,128]{1,0:T(1,128)}', space=vmem, size = 0x12000, scoped, tag = 'internal scratch']
  %s0 = inlined_call_operand.vmem [shape: f32[8,64], index: 0, kind: input, shape index: {}]
  %s1 = inlined_call_operand.vmem [shape: f32[1,64], index: 1, kind: input, shape index: {}]
  %s2 = inlined_call_operand.vmem [shape: f32[1,64], index: 2, kind: input, shape index: {}]
  %s3 = inlined_call_operand.vmem [shape: f32[8,64], index: 3, kind: output, shape index: {}]
  %s4 = sld [smem:[#allocation0]]
  $region22: #{swin_forward.46} parent=0
    _
  %s6 = ssub.s32 1, %s4
  %s7 = scalar_select 0, %s6, %s4
  // Predicated region
  $region2: #{swin_forward.46} parent=0 // pred_check
    _
  $region3: #{swin_forward.46} parent=0 // pred_check_branch
    %9 = sbr.rel (0) target = $region5
  $region4: #{swin_forward.46} parent=0 // pred_region
    _
  $region5: #{swin_forward.46} parent=0 // pred_fallthru
    _
  // Predicated region
  $region6: #{swin_forward.46} parent=0 // pred_check
    _
  $region7: #{swin_forward.46} parent=0 // pred_check_branch
    %11 = sbr.rel (0) target = $region9
  $region8: #{swin_forward.46} parent=0 // pred_region
    _
  $region9: #{swin_forward.46} parent=0 // pred_fallthru
    _
  // Predicated region
  $region10: #{swin_forward.46} parent=0 // pred_check
    _
  $region11: #{swin_forward.46} parent=0 // pred_check_branch
    %13 = sbr.rel (0) target = $region13
  $region12: #{swin_forward.46} parent=0 // pred_region
    _
  $region13: #{swin_forward.46} parent=0 // pred_fallthru
    _
  %v14 = vld [vmem:[%s0] sm:$0xff]
  %v15 = vld [vmem:[%s1] sm:$0x1]
  %v16 = vld [vmem:[%s2] sm:$0x1]
  %vm17 = vcmask 523264
  %v18 = vsel %vm17, %v14, 0.0
  %19 = vadd.xlane.f32.xlu0 %v18
  %v20 = vpop.xlane.xlu0 %19
  %v21 = vrcp.pop 64.0
  %v22 = vmul.f32 %v20, %v21
  %v23 = vsub.f32 %v14, %v22
  %v24 = vmul.f32 %v23, %v23
  %v25 = vsel %vm17, %v24, 0.0
  %26 = vadd.xlane.f32.xlu0 %v25
  %v27 = vpop.xlane.xlu0 %26
  %v28 = vmul.f32 %v27, %v21
  %v29 = vadd.f32 %v28, 1e-05
  %v30 = vrsqrt.pop %v29
  %v31 = vmul.f32 %v23, %v30
  %v33 = vlaneseq
  %v34 = vshrl.u32 %v33, 7
  %v35 = vsub.s32 0, %v34
  %v36 = vrot.slane %v15, %v35
  %v38 = vmul.f32 %v31, %v36
  %v40 = vlaneseq
  %v41 = vshrl.u32 %v40, 7
  %v42 = vsub.s32 0, %v41
  %v43 = vrot.slane %v16, %v42
  %v45 = vadd.f32 %v38, %v43
  %46 = vst.msk [vmem:[%s3] sm:$0xff] %vm17, %v45
  // Predicated region
  $region14: #{swin_forward.46} parent=0 // pred_check
    _
  $region15: #{swin_forward.46} parent=0 // pred_check_branch
    %48 = sbr.rel (0) target = $region17
  $region16: #{swin_forward.46} parent=0 // pred_region
    _
  $region17: #{swin_forward.46} parent=0 // pred_fallthru
    _
  // Predicated region
  $region18: #{swin_forward.46} parent=0 // pred_check
    _
  $region19: #{swin_forward.46} parent=0 // pred_check_branch
    %50 = sbr.rel (0) target = $region21
  $region20: #{swin_forward.46} parent=0 // pred_region
    _
  $region21: #{swin_forward.46} parent=0 // pred_fallthru
    _

// kernel: swin_forward.47
$region0: #{swin_forward.47}
  #allocation0 [shape = 'u32[]', space=smem, size = 0x4, offset = 0x4, fixed_abs, tag = 'smem constant byte address 0x4 - core index']
  #allocation1 [shape = 'u32[144,128]{1,0:T(1,128)}', space=vmem, size = 0x12000, scoped, tag = 'internal scratch']
  %s0 = inlined_call_operand.vmem [shape: f32[2,4,64], index: 0, kind: input, shape index: {}]
  %s1 = inlined_call_operand.hbm [shape: f32[2,64], index: 1, kind: output, shape index: {}]
  %s2 = sld [smem:[#allocation0]]
  $region14: #{swin_forward.47} parent=0
    _
  %s4 = ssub.s32 1, %s2
  %s5 = scalar_select 0, %s4, %s2
  $region1: #{swin_forward.47} parent=0
    #allocation2 [shape = 'u8[1024]{0}', space=vmem, size = 0x400, scoped, tag = 'output window, operand 0, single buffered']
    #allocation3 [shape = 's32[1]{0}', space=sflag, size = 0x4, scoped, tag = 'scoped memory for swin_forward.47']
    %6 = vsyncpa [#allocation3], 0
    // Predicated region
    $region2: #{swin_forward.47} parent=1 // pred_check
      _
    $region3: #{swin_forward.47} parent=1 // pred_check_branch
      %8 = sbr.rel (0) target = $region5
    $region4: #{swin_forward.47} parent=1 // pred_region
      _
    $region5: #{swin_forward.47} parent=1 // pred_fallthru
      _
    %v9 = vld [vmem:[%s0] sm:$0xf]
    %v10 = vld [vmem:[%s0 + $0x4] sm:$0xf]
    %vm11 = vcmask 519168
    %v12 = vsel %vm11, %v9, 0.0
    %v13 = vrot.slane %v12, 4
    %v14 = vadd.f32 %v12, %v13
    %v15 = vrot.slane %v14, 2
    %v16 = vadd.f32 %v14, %v15
    %v17 = vrot.slane %v16, 1
    %v18 = vadd.f32 %v16, %v17
    %v19 = vsel %vm11, %v10, 0.0
    %v20 = vrot.slane %v19, 4
    %v21 = vadd.f32 %v19, %v20
    %v22 = vrot.slane %v21, 2
    %v23 = vadd.f32 %v21, %v22
    %v24 = vrot.slane %v23, 1
    %v25 = vadd.f32 %v23, %v24
    %v26 = vrcp.pop 4.0
    %v27 = vmul.f32 %v18, %v26
    %v28 = vmul.f32 %v25, %v26
    %vm31 = vcmask 1041409
    %v32 = vsel %vm31, %v28, %v27
    %vm34 = vcmask 517120
    %35 = vst.msk [vmem:[#allocation2] sm:$0x3] %vm34, %v32
    // Predicated region
    $region6: #{swin_forward.47} parent=1 // pred_check
      _
    $region7: #{swin_forward.47} parent=1 // pred_check_branch
      %37 = sbr.rel (0) target = $region9
    $region8: #{swin_forward.47} parent=1 // pred_region
      %s39 = ssub.s32 32, 32
      %40 = vsyncadd [#allocation3], %s39
      %s42 = sshll.u32 [#allocation2], 4
      %s43 = int_to_ptr.vmem [resolvable:$true] %s42
      %45 = dma.vmem_to_hbm [thread:$0]  %s43, 32, %s1, [#allocation3]
    $region9: #{swin_forward.47} parent=1 // pred_fallthru
      _
    // Predicated region
    $region10: #{swin_forward.47} parent=1 // pred_check
      _
    $region11: #{swin_forward.47} parent=1 // pred_check_branch
      %47 = sbr.rel (0) target = $region13
    $region12: #{swin_forward.47} parent=1 // pred_region
      %48 = dma.done [#allocation3], 32
    $region13: #{swin_forward.47} parent=1 // pred_fallthru
      _
    %49 = vsyncpa [#allocation3], 1

</llo_original>
